<compile_context>
chip_gen: v6e
topology: v6e:2x2x1
jax: 0.10.0
libtpu: 0.0.40
codegen_flags: <defaults>
</compile_context>

<pallas_src>
import math
import functools

import jax
import jax.numpy as jnp
from jax import lax
from jax.experimental import pallas as pl
from jax.experimental.pallas import tpu as pltpu  # noqa: F401  (TPU backend import)

HIDDEN = 128
GATES = 4 * HIDDEN


# ----------------------------- parameter init -----------------------------
def _uniform(key, shape, lo, hi):
    return jax.random.uniform(key, shape, jnp.float32, lo, hi)


def init_params(key, n_states, n_actions, init_w=0.003):
    d_in = n_states + n_actions
    ks = iter(jax.random.split(key, 24))
    p = {}
    s = 1.0 / math.sqrt(HIDDEN)
    # nn.LSTM(n_states + n_actions, 128, 2, batch_first=True)
    p["wih0"] = _uniform(next(ks), (GATES, d_in), -s, s)
    p["whh0"] = _uniform(next(ks), (GATES, HIDDEN), -s, s)
    p["bih0"] = _uniform(next(ks), (GATES,), -s, s)
    p["bhh0"] = _uniform(next(ks), (GATES,), -s, s)
    p["wih1"] = _uniform(next(ks), (GATES, HIDDEN), -s, s)
    p["whh1"] = _uniform(next(ks), (GATES, HIDDEN), -s, s)
    p["bih1"] = _uniform(next(ks), (GATES,), -s, s)
    p["bhh1"] = _uniform(next(ks), (GATES,), -s, s)

    def lin(k, out_f, in_f, lo=None, hi=None):
        k1, k2 = jax.random.split(k)
        b = 1.0 / math.sqrt(in_f)
        lo = -b if lo is None else lo
        hi = b if hi is None else hi
        return _uniform(k1, (out_f, in_f), lo, hi), _uniform(k2, (out_f,), lo, hi)

    p["la_w"], p["la_b"] = lin(next(ks), 256, HIDDEN, -0.1, 0.1)           # la
    p["lga1_w"], p["lga1_b"] = lin(next(ks), n_states, 1)                  # lga1
    p["lga2_w"], p["lga2_b"] = lin(next(ks), HIDDEN, n_states)             # lga2
    p["lga3_w"], p["lga3_b"] = lin(next(ks), n_states, HIDDEN, -0.1, 0.1)  # lga3
    p["l1_w"], p["l1_b"] = lin(next(ks), 256, HIDDEN + n_states)           # l1
    p["l2_w"], p["l2_b"] = lin(next(ks), HIDDEN, 256)                      # l2
    p["l3_w"], p["l3_b"] = lin(next(ks), 4, HIDDEN, -init_w, init_w)       # l3
    return p


# ----------------------------- fused Actor kernel --------------------------
def actor_kernel(hist_ref, state_ref, mask_ref, bias_ref,
                 wih0T_ref, whh0T_ref, b0_ref, wih1T_ref, whh1T_ref, b1_ref,
                 la_wT_ref, la_b_ref,
                 g1_w_ref, g1_b_ref, g2_wT_ref, g2_b_ref, g3_wT_ref, g3_b_ref,
                 l1a_wT_ref, l1b_wT_ref, l1_b_ref,
                 l2_wT_ref, l2_b_ref, l3_wT_ref, l3_b_ref,
                 out_ref, *, T, max_action):
    H = HIDDEN
    B, S = state_ref.shape
    inv_sqrt_b = 1.0 / math.sqrt(B)

    # ---- hoisted layer-0 input projection (off the serial recurrence path) ----
    # hist is time-major flattened: row t*B + b == history[b, t, :]
    x0_all = (jnp.dot(hist_ref[...], wih0T_ref[...],
                      preferred_element_type=jnp.float32)
              + b0_ref[...])                                     # (T*B, 4H)

    whh0T = whh0T_ref[...]
    wih1T = wih1T_ref[...]
    whh1T = whh1T_ref[...]
    b1 = b1_ref[...]

    def gates(g, c):
        i = jax.nn.sigmoid(g[:, 0:H])
        f = jax.nn.sigmoid(g[:, H:2 * H])
        gg = jnp.tanh(g[:, 2 * H:3 * H])
        o = jax.nn.sigmoid(g[:, 3 * H:4 * H])
        c_new = f * c + i * gg
        h_new = o * jnp.tanh(c_new)
        return h_new, c_new

    h0 = jnp.zeros((B, H), jnp.float32)
    c0 = jnp.zeros((B, H), jnp.float32)
    h1 = jnp.zeros((B, H), jnp.float32)
    c1 = jnp.zeros((B, H), jnp.float32)

    # ---- unrolled 2-layer LSTM recurrence (T is a static Python int) ----
    x1_ts = []
    for t in range(T):
        g0 = x0_all[t * B:(t + 1) * B, :] + jnp.dot(
            h0, whh0T, preferred_element_type=jnp.float32)
        h0, c0 = gates(g0, c0)
        g1 = (jnp.dot(h0, wih1T, preferred_element_type=jnp.float32)
              + jnp.dot(h1, whh1T, preferred_element_type=jnp.float32)
              + b1)
        h1, c1 = gates(g1, c1)
        x1_ts.append(h1)                                         # top-layer output at t

    # ---- temporal attention over LSTM outputs ----
    # k = concat(h0_final, h1_final); consumed as a split lane-sum (no concat needed).
    la_wT = la_wT_ref[...]
    la_b = la_b_ref[...]
    att = []
    for t in range(T):
        u_t = jnp.tanh(jnp.dot(x1_ts[t], la_wT,
                               preferred_element_type=jnp.float32) + la_b)   # (B, 256)
        a_t = (jnp.sum(u_t[:, :H] * h0, axis=1, keepdims=True)
               + jnp.sum(u_t[:, H:] * h1, axis=1, keepdims=True)) * inv_sqrt_b
        att.append(a_t)                                          # (B, 1)

    m = att[0]
    for t in range(1, T):
        m = jnp.maximum(m, att[t])
    es = [jnp.exp(a - m) for a in att]
    denom = es[0]
    for t in range(1, T):
        denom = denom + es[t]
    inv_denom = 1.0 / denom                                      # (B, 1)

    feat = jnp.zeros((B, H), jnp.float32)
    for t in range(T):
        feat = feat + x1_ts[t] * (es[t] * inv_denom)             # (B, 128)

    # ---- guide attention over state ----
    state = state_ref[...]                                       # (B, S)
    g1_w = g1_w_ref[0]                                           # (S,)  lga1.weight squeezed
    g1_b = g1_b_ref[0]                                           # (S,)
    q1 = jnp.maximum(state[:, :, None] * g1_w[None, None, :]
                     + g1_b[None, None, :], 0.0)                 # (B, S, S)
    q2 = jnp.maximum(jnp.dot(q1.reshape(B * S, S), g2_wT_ref[...],
                             preferred_element_type=jnp.float32)
                     + g2_b_ref[...], 0.0)                       # (B*S, 128)
    q3 = jnp.tanh(jnp.dot(q2, g3_wT_ref[...],
                          preferred_element_type=jnp.float32)
                  + g3_b_ref[...]).reshape(B, S, S)              # (B, S, S)
    k1 = state * mask_ref[...] + bias_ref[...]                   # (B, S)
    attn = jnp.sum(q3 * k1[:, None, :], axis=-1) * inv_sqrt_b    # (B, S)
    attn = attn - jnp.max(attn, axis=1, keepdims=True)
    e2 = jnp.exp(attn)
    attn_score = e2 / jnp.sum(e2, axis=1, keepdims=True)         # softmax over S
    attn_state = attn_score * state                              # (B, S)

    # ---- MLP head (l1 weight split to avoid in-kernel concat) ----
    h1m = jnp.maximum(
        jnp.dot(feat, l1a_wT_ref[...], preferred_element_type=jnp.float32)
        + jnp.dot(attn_state, l1b_wT_ref[...], preferred_element_type=jnp.float32)
        + l1_b_ref[...], 0.0)                                    # (B, 256)
    h2m = jnp.maximum(
        jnp.dot(h1m, l2_wT_ref[...], preferred_element_type=jnp.float32)
        + l2_b_ref[...], 0.0)                                    # (B, 128)
    act = jnp.tanh(jnp.dot(h2m, l3_wT_ref[...],
                           preferred_element_type=jnp.float32) + l3_b_ref[...])
    out_ref[...] = max_action * act


# ------------------------------- wrapper -----------------------------------
@functools.partial(jax.jit, static_argnames=("n_move", "n_sensor", "max_action"))
def actor_forward(params, history, state, *, n_move, n_sensor, max_action):
    B, T, d_in = history.shape
    n_actions = params["l3_w"].shape[0]

    # time-major flattened history: row t*B + b == history[b, t, :]
    hist_flat = jnp.transpose(history, (1, 0, 2)).reshape(T * B, d_in)

    wih0T = params["wih0"].T
    whh0T = params["whh0"].T
    b0 = (params["bih0"] + params["bhh0"]).reshape(1, GATES)
    wih1T = params["wih1"].T
    whh1T = params["whh1"].T
    b1 = (params["bih1"] + params["bhh1"]).reshape(1, GATES)

    # guide-attention mask / bias (broadcast over batch inside the kernel)
    mask = jnp.concatenate([jnp.zeros((1, n_move)), jnp.ones((1, n_sensor))],
                           axis=1).astype(jnp.float32)
    bias = jnp.concatenate([jnp.full((1, n_move), 0.25), jnp.zeros((1, n_sensor))],
                           axis=1).astype(jnp.float32)

    kern = functools.partial(actor_kernel, T=T, max_action=max_action)
    # Single fused call; every operand is tiny (~1.5 MB total) and lives whole in VMEM,
    # so no grid / BlockSpec tiling is needed.
    action = pl.pallas_call(
        kern,
        out_shape=jax.ShapeDtypeStruct((B, n_actions), jnp.float32),
    )(hist_flat, state, mask, bias,
      wih0T, whh0T, b0, wih1T, whh1T, b1,
      params["la_w"].T, params["la_b"].reshape(1, -1),
      params["lga1_w"].reshape(1, -1), params["lga1_b"].reshape(1, -1),
      params["lga2_w"].T, params["lga2_b"].reshape(1, -1),
      params["lga3_w"].T, params["lga3_b"].reshape(1, -1),
      params["l1_w"][:, :HIDDEN].T, params["l1_w"][:, HIDDEN:].T,
      params["l1_b"].reshape(1, -1),
      params["l2_w"].T, params["l2_b"].reshape(1, -1),
      params["l3_w"].T, params["l3_b"].reshape(1, -1))
    return action


# -------------------------- pure-JAX reference -----------------------------
def actor_forward_ref(params, history, state, *, n_move, n_sensor, max_action):
    B, T, d_in = history.shape
    wih0T, whh0T = params["wih0"].T, params["whh0"].T
    b0 = params["bih0"] + params["bhh0"]
    wih1T, whh1T = params["wih1"].T, params["whh1"].T
    b1 = params["bih1"] + params["bhh1"]

    def cell(x, h, c, wihT, whhT, b):
        g = x @ wihT + h @ whhT + b
        i = jax.nn.sigmoid(g[:, :HIDDEN])
        f = jax.nn.sigmoid(g[:, HIDDEN:2 * HIDDEN])
        gg = jnp.tanh(g[:, 2 * HIDDEN:3 * HIDDEN])
        o = jax.nn.sigmoid(g[:, 3 * HIDDEN:])
        c = f * c + i * gg
        return o * jnp.tanh(c), c

    def step(carry, x_t):
        h0, c0, h1, c1 = carry
        h0, c0 = cell(x_t, h0, c0, wih0T, whh0T, b0)
        h1, c1 = cell(h0, h1, c1, wih1T, whh1T, b1)
        return (h0, c0, h1, c1), h1

    init = tuple(jnp.zeros((B, HIDDEN), jnp.float32) for _ in range(4))
    (h0, _, h1, _), ys = lax.scan(step, init, jnp.transpose(history, (1, 0, 2)))
    x1 = jnp.transpose(ys, (1, 0, 2))
    k = jnp.concatenate([h0, h1], axis=1)

    u = jnp.tanh(x1 @ params["la_w"].T + params["la_b"])
    att = jnp.einsum("btc,bc->bt", u, k) / math.sqrt(B)
    att_score = jax.nn.softmax(att, axis=1)
    feat = jnp.sum(x1 * att_score[:, :, None], axis=1)

    s3 = state[:, :, None]
    q = jax.nn.relu(s3 @ params["lga1_w"].T + params["lga1_b"])
    q = jax.nn.relu(q @ params["lga2_w"].T + params["lga2_b"])
    q = jnp.tanh(q @ params["lga3_w"].T + params["lga3_b"])
    mask = jnp.concatenate([jnp.zeros((B, n_move)), jnp.ones((B, n_sensor))], axis=1)
    bias = jnp.concatenate([jnp.full((B, n_move), 0.25), jnp.zeros((B, n_sensor))], axis=1)
    k1 = state * mask + bias
    attn = jnp.einsum("bij,bj->bi", q, k1) / math.sqrt(B)
    attn_score = jax.nn.softmax(attn, axis=1)
    attn_state = attn_score * state

    x2 = jnp.concatenate([feat, attn_state], axis=1)
    x2 = jax.nn.relu(x2 @ params["l1_w"].T + params["l1_b"])
    x2 = jax.nn.relu(x2 @ params["l2_w"].T + params["l2_b"])
    action = jnp.tanh(x2 @ params["l3_w"].T + params["l3_b"])
    return max_action * action


# ---------------------------------- main ------------------------------------
if __name__ == "__main__":
    n_move, n_sensor = 3, 5
    n_states = n_move + n_sensor          # 8
    n_actions = 4
    max_action = 2.0
    B, T = 2, 8                           # batch, sequence length

    key = jax.random.PRNGKey(0)
    kp, kh, ks = jax.random.split(key, 3)
    params = init_params(kp, n_states, n_actions)
    history = jax.random.normal(kh, (B, T, n_states + n_actions), jnp.float32)
    state = jax.random.normal(ks, (B, n_states), jnp.float32)

    out = actor_forward(params, history, state,
                        n_move=n_move, n_sensor=n_sensor, max_action=max_action)
    out = jax.block_until_ready(out)

    ref = actor_forward_ref(params, history, state,
                            n_move=n_move, n_sensor=n_sensor, max_action=max_action)
    ref = jax.block_until_ready(ref)

    assert out.shape == (B, n_actions), out.shape
    assert bool(jnp.all(jnp.isfinite(out)))
    assert bool(jnp.allclose(out, ref, atol=1e-2, rtol=1e-2)), (out, ref)
    print("KERNEL_OK")
</pallas_src>

<mosaic_0001>
module attributes {stable_mosaic.version = 11 : i64} {
  func.func @actor_kernel(%arg0: memref<16x12xf32, #tpu.memory_space<vmem>>, %arg1: memref<2x8xf32, #tpu.memory_space<vmem>>, %arg2: memref<1x8xf32, #tpu.memory_space<vmem>>, %arg3: memref<1x8xf32, #tpu.memory_space<vmem>>, %arg4: memref<12x512xf32, #tpu.memory_space<vmem>>, %arg5: memref<128x512xf32, #tpu.memory_space<vmem>>, %arg6: memref<1x512xf32, #tpu.memory_space<vmem>>, %arg7: memref<128x512xf32, #tpu.memory_space<vmem>>, %arg8: memref<128x512xf32, #tpu.memory_space<vmem>>, %arg9: memref<1x512xf32, #tpu.memory_space<vmem>>, %arg10: memref<128x256xf32, #tpu.memory_space<vmem>>, %arg11: memref<1x256xf32, #tpu.memory_space<vmem>>, %arg12: memref<1x8xf32, #tpu.memory_space<vmem>>, %arg13: memref<1x8xf32, #tpu.memory_space<vmem>>, %arg14: memref<8x128xf32, #tpu.memory_space<vmem>>, %arg15: memref<1x128xf32, #tpu.memory_space<vmem>>, %arg16: memref<128x8xf32, #tpu.memory_space<vmem>>, %arg17: memref<1x8xf32, #tpu.memory_space<vmem>>, %arg18: memref<128x256xf32, #tpu.memory_space<vmem>>, %arg19: memref<8x256xf32, #tpu.memory_space<vmem>>, %arg20: memref<1x256xf32, #tpu.memory_space<vmem>>, %arg21: memref<256x128xf32, #tpu.memory_space<vmem>>, %arg22: memref<1x128xf32, #tpu.memory_space<vmem>>, %arg23: memref<128x4xf32, #tpu.memory_space<vmem>>, %arg24: memref<1x4xf32, #tpu.memory_space<vmem>>, %arg25: memref<2x4xf32, #tpu.memory_space<vmem>>) attributes {dimension_semantics = [], scalar_prefetch = 0 : i64, scratch_operands = 0 : i64, tpu.core_type = #tpu.core_type<tc>} {
    %c0 = arith.constant 0 : index
    %c0_0 = arith.constant 0 : index
    %0 = vector.load %arg0[%c0, %c0_0] : memref<16x12xf32, #tpu.memory_space<vmem>>, vector<16x12xf32>
    %c0_1 = arith.constant 0 : index
    %c0_2 = arith.constant 0 : index
    %1 = vector.load %arg4[%c0_1, %c0_2] : memref<12x512xf32, #tpu.memory_space<vmem>>, vector<12x512xf32>
    %cst = arith.constant dense<0.000000e+00> : vector<16x512xf32>
    %2 = tpu.matmul %0, %1, %cst {dimension_numbers = #tpu.dot_dimension_numbers<[1], [0], [0], [1], [0, 0, 1, 1], [], []>} : vector<16x12xf32>, vector<12x512xf32>, vector<16x512xf32> -> vector<16x512xf32>
    %c0_3 = arith.constant 0 : index
    %c0_4 = arith.constant 0 : index
    %3 = vector.load %arg6[%c0_3, %c0_4] : memref<1x512xf32, #tpu.memory_space<vmem>>, vector<1x512xf32>
    %4 = vector.broadcast %3 : vector<1x512xf32> to vector<16x512xf32>
    %5 = arith.addf %2, %4 : vector<16x512xf32>
    %c0_5 = arith.constant 0 : index
    %c0_6 = arith.constant 0 : index
    %6 = vector.load %arg5[%c0_5, %c0_6] : memref<128x512xf32, #tpu.memory_space<vmem>>, vector<128x512xf32>
    %c0_7 = arith.constant 0 : index
    %c0_8 = arith.constant 0 : index
    %7 = vector.load %arg7[%c0_7, %c0_8] : memref<128x512xf32, #tpu.memory_space<vmem>>, vector<128x512xf32>
    %c0_9 = arith.constant 0 : index
    %c0_10 = arith.constant 0 : index
    %8 = vector.load %arg8[%c0_9, %c0_10] : memref<128x512xf32, #tpu.memory_space<vmem>>, vector<128x512xf32>
    %c0_11 = arith.constant 0 : index
    %c0_12 = arith.constant 0 : index
    %9 = vector.load %arg9[%c0_11, %c0_12] : memref<1x512xf32, #tpu.memory_space<vmem>>, vector<1x512xf32>
    %cst_13 = arith.constant 0.000000e+00 : f32
    %10 = vector.broadcast %cst_13 : f32 to vector<2x128xf32>
    %cst_14 = arith.constant 0.000000e+00 : f32
    %11 = vector.broadcast %cst_14 : f32 to vector<2x128xf32>
    %cst_15 = arith.constant 0.000000e+00 : f32
    %12 = vector.broadcast %cst_15 : f32 to vector<2x128xf32>
    %cst_16 = arith.constant 0.000000e+00 : f32
    %13 = vector.broadcast %cst_16 : f32 to vector<2x128xf32>
    %14 = vector.extract_strided_slice %5 {offsets = [0, 0], sizes = [2, 512], strides = [1, 1]} : vector<16x512xf32> to vector<2x512xf32>
    %cst_17 = arith.constant dense<0.000000e+00> : vector<2x512xf32>
    %15 = tpu.matmul %10, %6, %cst_17 {dimension_numbers = #tpu.dot_dimension_numbers<[1], [0], [0], [1], [0, 0, 1, 1], [], []>} : vector<2x128xf32>, vector<128x512xf32>, vector<2x512xf32> -> vector<2x512xf32>
    %16 = arith.addf %14, %15 : vector<2x512xf32>
    %17 = vector.extract_strided_slice %16 {offsets = [0, 0], sizes = [2, 128], strides = [1, 1]} : vector<2x512xf32> to vector<2x128xf32>
    %18 = arith.negf %17 : vector<2x128xf32>
    %19 = math.exp %18 : vector<2x128xf32>
    %cst_18 = arith.constant 1.000000e+00 : f32
    %20 = vector.broadcast %cst_18 : f32 to vector<2x128xf32>
    %21 = arith.addf %20, %19 : vector<2x128xf32>
    %22 = arith.divf %20, %21 : vector<2x128xf32>
    %23 = vector.extract_strided_slice %16 {offsets = [0, 128], sizes = [2, 128], strides = [1, 1]} : vector<2x512xf32> to vector<2x128xf32>
    %24 = arith.negf %23 : vector<2x128xf32>
    %25 = math.exp %24 : vector<2x128xf32>
    %cst_19 = arith.constant 1.000000e+00 : f32
    %26 = vector.broadcast %cst_19 : f32 to vector<2x128xf32>
    %27 = arith.addf %26, %25 : vector<2x128xf32>
    %28 = arith.divf %26, %27 : vector<2x128xf32>
    %29 = vector.extract_strided_slice %16 {offsets = [0, 256], sizes = [2, 128], strides = [1, 1]} : vector<2x512xf32> to vector<2x128xf32>
    %30 = math.tanh %29 : vector<2x128xf32>
    %31 = vector.extract_strided_slice %16 {offsets = [0, 384], sizes = [2, 128], strides = [1, 1]} : vector<2x512xf32> to vector<2x128xf32>
    %32 = arith.negf %31 : vector<2x128xf32>
    %33 = math.exp %32 : vector<2x128xf32>
    %cst_20 = arith.constant 1.000000e+00 : f32
    %34 = vector.broadcast %cst_20 : f32 to vector<2x128xf32>
    %35 = arith.addf %34, %33 : vector<2x128xf32>
    %36 = arith.divf %34, %35 : vector<2x128xf32>
    %37 = arith.mulf %28, %11 : vector<2x128xf32>
    %38 = arith.mulf %22, %30 : vector<2x128xf32>
    %39 = arith.addf %37, %38 : vector<2x128xf32>
    %40 = math.tanh %39 : vector<2x128xf32>
    %41 = arith.mulf %36, %40 : vector<2x128xf32>
    %cst_21 = arith.constant dense<0.000000e+00> : vector<2x512xf32>
    %42 = tpu.matmul %41, %7, %cst_21 {dimension_numbers = #tpu.dot_dimension_numbers<[1], [0], [0], [1], [0, 0, 1, 1], [], []>} : vector<2x128xf32>, vector<128x512xf32>, vector<2x512xf32> -> vector<2x512xf32>
    %cst_22 = arith.constant dense<0.000000e+00> : vector<2x512xf32>
    %43 = tpu.matmul %12, %8, %cst_22 {dimension_numbers = #tpu.dot_dimension_numbers<[1], [0], [0], [1], [0, 0, 1, 1], [], []>} : vector<2x128xf32>, vector<128x512xf32>, vector<2x512xf32> -> vector<2x512xf32>
    %44 = arith.addf %42, %43 : vector<2x512xf32>
    %45 = vector.broadcast %9 : vector<1x512xf32> to vector<2x512xf32>
    %46 = arith.addf %44, %45 : vector<2x512xf32>
    %47 = vector.extract_strided_slice %46 {offsets = [0, 0], sizes = [2, 128], strides = [1, 1]} : vector<2x512xf32> to vector<2x128xf32>
    %48 = arith.negf %47 : vector<2x128xf32>
    %49 = math.exp %48 : vector<2x128xf32>
    %cst_23 = arith.constant 1.000000e+00 : f32
    %50 = vector.broadcast %cst_23 : f32 to vector<2x128xf32>
    %51 = arith.addf %50, %49 : vector<2x128xf32>
    %52 = arith.divf %50, %51 : vector<2x128xf32>
    %53 = vector.extract_strided_slice %46 {offsets = [0, 128], sizes = [2, 128], strides = [1, 1]} : vector<2x512xf32> to vector<2x128xf32>
    %54 = arith.negf %53 : vector<2x128xf32>
    %55 = math.exp %54 : vector<2x128xf32>
    %cst_24 = arith.constant 1.000000e+00 : f32
    %56 = vector.broadcast %cst_24 : f32 to vector<2x128xf32>
    %57 = arith.addf %56, %55 : vector<2x128xf32>
    %58 = arith.divf %56, %57 : vector<2x128xf32>
    %59 = vector.extract_strided_slice %46 {offsets = [0, 256], sizes = [2, 128], strides = [1, 1]} : vector<2x512xf32> to vector<2x128xf32>
    %60 = math.tanh %59 : vector<2x128xf32>
    %61 = vector.extract_strided_slice %46 {offsets = [0, 384], sizes = [2, 128], strides = [1, 1]} : vector<2x512xf32> to vector<2x128xf32>
    %62 = arith.negf %61 : vector<2x128xf32>
    %63 = math.exp %62 : vector<2x128xf32>
    %cst_25 = arith.constant 1.000000e+00 : f32
    %64 = vector.broadcast %cst_25 : f32 to vector<2x128xf32>
    %65 = arith.addf %64, %63 : vector<2x128xf32>
    %66 = arith.divf %64, %65 : vector<2x128xf32>
    %67 = arith.mulf %58, %13 : vector<2x128xf32>
    %68 = arith.mulf %52, %60 : vector<2x128xf32>
    %69 = arith.addf %67, %68 : vector<2x128xf32>
    %70 = math.tanh %69 : vector<2x128xf32>
    %71 = arith.mulf %66, %70 : vector<2x128xf32>
    %72 = vector.extract_strided_slice %5 {offsets = [2, 0], sizes = [2, 512], strides = [1, 1]} : vector<16x512xf32> to vector<2x512xf32>
    %cst_26 = arith.constant dense<0.000000e+00> : vector<2x512xf32>
    %73 = tpu.matmul %41, %6, %cst_26 {dimension_numbers = #tpu.dot_dimension_numbers<[1], [0], [0], [1], [0, 0, 1, 1], [], []>} : vector<2x128xf32>, vector<128x512xf32>, vector<2x512xf32> -> vector<2x512xf32>
    %74 = arith.addf %72, %73 : vector<2x512xf32>
    %75 = vector.extract_strided_slice %74 {offsets = [0, 0], sizes = [2, 128], strides = [1, 1]} : vector<2x512xf32> to vector<2x128xf32>
    %76 = arith.negf %75 : vector<2x128xf32>
    %77 = math.exp %76 : vector<2x128xf32>
    %cst_27 = arith.constant 1.000000e+00 : f32
    %78 = vector.broadcast %cst_27 : f32 to vector<2x128xf32>
    %79 = arith.addf %78, %77 : vector<2x128xf32>
    %80 = arith.divf %78, %79 : vector<2x128xf32>
    %81 = vector.extract_strided_slice %74 {offsets = [0, 128], sizes = [2, 128], strides = [1, 1]} : vector<2x512xf32> to vector<2x128xf32>
    %82 = arith.negf %81 : vector<2x128xf32>
    %83 = math.exp %82 : vector<2x128xf32>
    %cst_28 = arith.constant 1.000000e+00 : f32
    %84 = vector.broadcast %cst_28 : f32 to vector<2x128xf32>
    %85 = arith.addf %84, %83 : vector<2x128xf32>
    %86 = arith.divf %84, %85 : vector<2x128xf32>
    %87 = vector.extract_strided_slice %74 {offsets = [0, 256], sizes = [2, 128], strides = [1, 1]} : vector<2x512xf32> to vector<2x128xf32>
    %88 = math.tanh %87 : vector<2x128xf32>
    %89 = vector.extract_strided_slice %74 {offsets = [0, 384], sizes = [2, 128], strides = [1, 1]} : vector<2x512xf32> to vector<2x128xf32>
    %90 = arith.negf %89 : vector<2x128xf32>
    %91 = math.exp %90 : vector<2x128xf32>
    %cst_29 = arith.constant 1.000000e+00 : f32
    %92 = vector.broadcast %cst_29 : f32 to vector<2x128xf32>
    %93 = arith.addf %92, %91 : vector<2x128xf32>
    %94 = arith.divf %92, %93 : vector<2x128xf32>
    %95 = arith.mulf %86, %39 : vector<2x128xf32>
    %96 = arith.mulf %80, %88 : vector<2x128xf32>
    %97 = arith.addf %95, %96 : vector<2x128xf32>
    %98 = math.tanh %97 : vector<2x128xf32>
    %99 = arith.mulf %94, %98 : vector<2x128xf32>
    %cst_30 = arith.constant dense<0.000000e+00> : vector<2x512xf32>
    %100 = tpu.matmul %99, %7, %cst_30 {dimension_numbers = #tpu.dot_dimension_numbers<[1], [0], [0], [1], [0, 0, 1, 1], [], []>} : vector<2x128xf32>, vector<128x512xf32>, vector<2x512xf32> -> vector<2x512xf32>
    %cst_31 = arith.constant dense<0.000000e+00> : vector<2x512xf32>
    %101 = tpu.matmul %71, %8, %cst_31 {dimension_numbers = #tpu.dot_dimension_numbers<[1], [0], [0], [1], [0, 0, 1, 1], [], []>} : vector<2x128xf32>, vector<128x512xf32>, vector<2x512xf32> -> vector<2x512xf32>
    %102 = arith.addf %100, %101 : vector<2x512xf32>
    %103 = vector.broadcast %9 : vector<1x512xf32> to vector<2x512xf32>
    %104 = arith.addf %102, %103 : vector<2x512xf32>
    %105 = vector.extract_strided_slice %104 {offsets = [0, 0], sizes = [2, 128], strides = [1, 1]} : vector<2x512xf32> to vector<2x128xf32>
    %106 = arith.negf %105 : vector<2x128xf32>
    %107 = math.exp %106 : vector<2x128xf32>
    %cst_32 = arith.constant 1.000000e+00 : f32
    %108 = vector.broadcast %cst_32 : f32 to vector<2x128xf32>
    %109 = arith.addf %108, %107 : vector<2x128xf32>
    %110 = arith.divf %108, %109 : vector<2x128xf32>
    %111 = vector.extract_strided_slice %104 {offsets = [0, 128], sizes = [2, 128], strides = [1, 1]} : vector<2x512xf32> to vector<2x128xf32>
    %112 = arith.negf %111 : vector<2x128xf32>
    %113 = math.exp %112 : vector<2x128xf32>
    %cst_33 = arith.constant 1.000000e+00 : f32
    %114 = vector.broadcast %cst_33 : f32 to vector<2x128xf32>
    %115 = arith.addf %114, %113 : vector<2x128xf32>
    %116 = arith.divf %114, %115 : vector<2x128xf32>
    %117 = vector.extract_strided_slice %104 {offsets = [0, 256], sizes = [2, 128], strides = [1, 1]} : vector<2x512xf32> to vector<2x128xf32>
    %118 = math.tanh %117 : vector<2x128xf32>
    %119 = vector.extract_strided_slice %104 {offsets = [0, 384], sizes = [2, 128], strides = [1, 1]} : vector<2x512xf32> to vector<2x128xf32>
    %120 = arith.negf %119 : vector<2x128xf32>
    %121 = math.exp %120 : vector<2x128xf32>
    %cst_34 = arith.constant 1.000000e+00 : f32
    %122 = vector.broadcast %cst_34 : f32 to vector<2x128xf32>
    %123 = arith.addf %122, %121 : vector<2x128xf32>
    %124 = arith.divf %122, %123 : vector<2x128xf32>
    %125 = arith.mulf %116, %69 : vector<2x128xf32>
    %126 = arith.mulf %110, %118 : vector<2x128xf32>
    %127 = arith.addf %125, %126 : vector<2x128xf32>
    %128 = math.tanh %127 : vector<2x128xf32>
    %129 = arith.mulf %124, %128 : vector<2x128xf32>
    %130 = vector.extract_strided_slice %5 {offsets = [4, 0], sizes = [2, 512], strides = [1, 1]} : vector<16x512xf32> to vector<2x512xf32>
    %cst_35 = arith.constant dense<0.000000e+00> : vector<2x512xf32>
    %131 = tpu.matmul %99, %6, %cst_35 {dimension_numbers = #tpu.dot_dimension_numbers<[1], [0], [0], [1], [0, 0, 1, 1], [], []>} : vector<2x128xf32>, vector<128x512xf32>, vector<2x512xf32> -> vector<2x512xf32>
    %132 = arith.addf %130, %131 : vector<2x512xf32>
    %133 = vector.extract_strided_slice %132 {offsets = [0, 0], sizes = [2, 128], strides = [1, 1]} : vector<2x512xf32> to vector<2x128xf32>
    %134 = arith.negf %133 : vector<2x128xf32>
    %135 = math.exp %134 : vector<2x128xf32>
    %cst_36 = arith.constant 1.000000e+00 : f32
    %136 = vector.broadcast %cst_36 : f32 to vector<2x128xf32>
    %137 = arith.addf %136, %135 : vector<2x128xf32>
    %138 = arith.divf %136, %137 : vector<2x128xf32>
    %139 = vector.extract_strided_slice %132 {offsets = [0, 128], sizes = [2, 128], strides = [1, 1]} : vector<2x512xf32> to vector<2x128xf32>
    %140 = arith.negf %139 : vector<2x128xf32>
    %141 = math.exp %140 : vector<2x128xf32>
    %cst_37 = arith.constant 1.000000e+00 : f32
    %142 = vector.broadcast %cst_37 : f32 to vector<2x128xf32>
    %143 = arith.addf %142, %141 : vector<2x128xf32>
    %144 = arith.divf %142, %143 : vector<2x128xf32>
    %145 = vector.extract_strided_slice %132 {offsets = [0, 256], sizes = [2, 128], strides = [1, 1]} : vector<2x512xf32> to vector<2x128xf32>
    %146 = math.tanh %145 : vector<2x128xf32>
    %147 = vector.extract_strided_slice %132 {offsets = [0, 384], sizes = [2, 128], strides = [1, 1]} : vector<2x512xf32> to vector<2x128xf32>
    %148 = arith.negf %147 : vector<2x128xf32>
    %149 = math.exp %148 : vector<2x128xf32>
    %cst_38 = arith.constant 1.000000e+00 : f32
    %150 = vector.broadcast %cst_38 : f32 to vector<2x128xf32>
    %151 = arith.addf %150, %149 : vector<2x128xf32>
    %152 = arith.divf %150, %151 : vector<2x128xf32>
    %153 = arith.mulf %144, %97 : vector<2x128xf32>
    %154 = arith.mulf %138, %146 : vector<2x128xf32>
    %155 = arith.addf %153, %154 : vector<2x128xf32>
    %156 = math.tanh %155 : vector<2x128xf32>
    %157 = arith.mulf %152, %156 : vector<2x128xf32>
    %cst_39 = arith.constant dense<0.000000e+00> : vector<2x512xf32>
    %158 = tpu.matmul %157, %7, %cst_39 {dimension_numbers = #tpu.dot_dimension_numbers<[1], [0], [0], [1], [0, 0, 1, 1], [], []>} : vector<2x128xf32>, vector<128x512xf32>, vector<2x512xf32> -> vector<2x512xf32>
    %cst_40 = arith.constant dense<0.000000e+00> : vector<2x512xf32>
    %159 = tpu.matmul %129, %8, %cst_40 {dimension_numbers = #tpu.dot_dimension_numbers<[1], [0], [0], [1], [0, 0, 1, 1], [], []>} : vector<2x128xf32>, vector<128x512xf32>, vector<2x512xf32> -> vector<2x512xf32>
    %160 = arith.addf %158, %159 : vector<2x512xf32>
    %161 = vector.broadcast %9 : vector<1x512xf32> to vector<2x512xf32>
    %162 = arith.addf %160, %161 : vector<2x512xf32>
    %163 = vector.extract_strided_slice %162 {offsets = [0, 0], sizes = [2, 128], strides = [1, 1]} : vector<2x512xf32> to vector<2x128xf32>
    %164 = arith.negf %163 : vector<2x128xf32>
    %165 = math.exp %164 : vector<2x128xf32>
    %cst_41 = arith.constant 1.000000e+00 : f32
    %166 = vector.broadcast %cst_41 : f32 to vector<2x128xf32>
    %167 = arith.addf %166, %165 : vector<2x128xf32>
    %168 = arith.divf %166, %167 : vector<2x128xf32>
    %169 = vector.extract_strided_slice %162 {offsets = [0, 128], sizes = [2, 128], strides = [1, 1]} : vector<2x512xf32> to vector<2x128xf32>
    %170 = arith.negf %169 : vector<2x128xf32>
    %171 = math.exp %170 : vector<2x128xf32>
    %cst_42 = arith.constant 1.000000e+00 : f32
    %172 = vector.broadcast %cst_42 : f32 to vector<2x128xf32>
    %173 = arith.addf %172, %171 : vector<2x128xf32>
    %174 = arith.divf %172, %173 : vector<2x128xf32>
    %175 = vector.extract_strided_slice %162 {offsets = [0, 256], sizes = [2, 128], strides = [1, 1]} : vector<2x512xf32> to vector<2x128xf32>
    %176 = math.tanh %175 : vector<2x128xf32>
    %177 = vector.extract_strided_slice %162 {offsets = [0, 384], sizes = [2, 128], strides = [1, 1]} : vector<2x512xf32> to vector<2x128xf32>
    %178 = arith.negf %177 : vector<2x128xf32>
    %179 = math.exp %178 : vector<2x128xf32>
    %cst_43 = arith.constant 1.000000e+00 : f32
    %180 = vector.broadcast %cst_43 : f32 to vector<2x128xf32>
    %181 = arith.addf %180, %179 : vector<2x128xf32>
    %182 = arith.divf %180, %181 : vector<2x128xf32>
    %183 = arith.mulf %174, %127 : vector<2x128xf32>
    %184 = arith.mulf %168, %176 : vector<2x128xf32>
    %185 = arith.addf %183, %184 : vector<2x128xf32>
    %186 = math.tanh %185 : vector<2x128xf32>
    %187 = arith.mulf %182, %186 : vector<2x128xf32>
    %188 = vector.extract_strided_slice %5 {offsets = [6, 0], sizes = [2, 512], strides = [1, 1]} : vector<16x512xf32> to vector<2x512xf32>
    %cst_44 = arith.constant dense<0.000000e+00> : vector<2x512xf32>
    %189 = tpu.matmul %157, %6, %cst_44 {dimension_numbers = #tpu.dot_dimension_numbers<[1], [0], [0], [1], [0, 0, 1, 1], [], []>} : vector<2x128xf32>, vector<128x512xf32>, vector<2x512xf32> -> vector<2x512xf32>
    %190 = arith.addf %188, %189 : vector<2x512xf32>
    %191 = vector.extract_strided_slice %190 {offsets = [0, 0], sizes = [2, 128], strides = [1, 1]} : vector<2x512xf32> to vector<2x128xf32>
    %192 = arith.negf %191 : vector<2x128xf32>
    %193 = math.exp %192 : vector<2x128xf32>
    %cst_45 = arith.constant 1.000000e+00 : f32
    %194 = vector.broadcast %cst_45 : f32 to vector<2x128xf32>
    %195 = arith.addf %194, %193 : vector<2x128xf32>
    %196 = arith.divf %194, %195 : vector<2x128xf32>
    %197 = vector.extract_strided_slice %190 {offsets = [0, 128], sizes = [2, 128], strides = [1, 1]} : vector<2x512xf32> to vector<2x128xf32>
    %198 = arith.negf %197 : vector<2x128xf32>
    %199 = math.exp %198 : vector<2x128xf32>
    %cst_46 = arith.constant 1.000000e+00 : f32
    %200 = vector.broadcast %cst_46 : f32 to vector<2x128xf32>
    %201 = arith.addf %200, %199 : vector<2x128xf32>
    %202 = arith.divf %200, %201 : vector<2x128xf32>
    %203 = vector.extract_strided_slice %190 {offsets = [0, 256], sizes = [2, 128], strides = [1, 1]} : vector<2x512xf32> to vector<2x128xf32>
    %204 = math.tanh %203 : vector<2x128xf32>
    %205 = vector.extract_strided_slice %190 {offsets = [0, 384], sizes = [2, 128], strides = [1, 1]} : vector<2x512xf32> to vector<2x128xf32>
    %206 = arith.negf %205 : vector<2x128xf32>
    %207 = math.exp %206 : vector<2x128xf32>
    %cst_47 = arith.constant 1.000000e+00 : f32
    %208 = vector.broadcast %cst_47 : f32 to vector<2x128xf32>
    %209 = arith.addf %208, %207 : vector<2x128xf32>
    %210 = arith.divf %208, %209 : vector<2x128xf32>
    %211 = arith.mulf %202, %155 : vector<2x128xf32>
    %212 = arith.mulf %196, %204 : vector<2x128xf32>
    %213 = arith.addf %211, %212 : vector<2x128xf32>
    %214 = math.tanh %213 : vector<2x128xf32>
    %215 = arith.mulf %210, %214 : vector<2x128xf32>
    %cst_48 = arith.constant dense<0.000000e+00> : vector<2x512xf32>
    %216 = tpu.matmul %215, %7, %cst_48 {dimension_numbers = #tpu.dot_dimension_numbers<[1], [0], [0], [1], [0, 0, 1, 1], [], []>} : vector<2x128xf32>, vector<128x512xf32>, vector<2x512xf32> -> vector<2x512xf32>
    %cst_49 = arith.constant dense<0.000000e+00> : vector<2x512xf32>
    %217 = tpu.matmul %187, %8, %cst_49 {dimension_numbers = #tpu.dot_dimension_numbers<[1], [0], [0], [1], [0, 0, 1, 1], [], []>} : vector<2x128xf32>, vector<128x512xf32>, vector<2x512xf32> -> vector<2x512xf32>
    %218 = arith.addf %216, %217 : vector<2x512xf32>
    %219 = vector.broadcast %9 : vector<1x512xf32> to vector<2x512xf32>
    %220 = arith.addf %218, %219 : vector<2x512xf32>
    %221 = vector.extract_strided_slice %220 {offsets = [0, 0], sizes = [2, 128], strides = [1, 1]} : vector<2x512xf32> to vector<2x128xf32>
    %222 = arith.negf %221 : vector<2x128xf32>
    %223 = math.exp %222 : vector<2x128xf32>
    %cst_50 = arith.constant 1.000000e+00 : f32
    %224 = vector.broadcast %cst_50 : f32 to vector<2x128xf32>
    %225 = arith.addf %224, %223 : vector<2x128xf32>
    %226 = arith.divf %224, %225 : vector<2x128xf32>
    %227 = vector.extract_strided_slice %220 {offsets = [0, 128], sizes = [2, 128], strides = [1, 1]} : vector<2x512xf32> to vector<2x128xf32>
    %228 = arith.negf %227 : vector<2x128xf32>
    %229 = math.exp %228 : vector<2x128xf32>
    %cst_51 = arith.constant 1.000000e+00 : f32
    %230 = vector.broadcast %cst_51 : f32 to vector<2x128xf32>
    %231 = arith.addf %230, %229 : vector<2x128xf32>
    %232 = arith.divf %230, %231 : vector<2x128xf32>
    %233 = vector.extract_strided_slice %220 {offsets = [0, 256], sizes = [2, 128], strides = [1, 1]} : vector<2x512xf32> to vector<2x128xf32>
    %234 = math.tanh %233 : vector<2x128xf32>
    %235 = vector.extract_strided_slice %220 {offsets = [0, 384], sizes = [2, 128], strides = [1, 1]} : vector<2x512xf32> to vector<2x128xf32>
    %236 = arith.negf %235 : vector<2x128xf32>
    %237 = math.exp %236 : vector<2x128xf32>
    %cst_52 = arith.constant 1.000000e+00 : f32
    %238 = vector.broadcast %cst_52 : f32 to vector<2x128xf32>
    %239 = arith.addf %238, %237 : vector<2x128xf32>
    %240 = arith.divf %238, %239 : vector<2x128xf32>
    %241 = arith.mulf %232, %185 : vector<2x128xf32>
    %242 = arith.mulf %226, %234 : vector<2x128xf32>
    %243 = arith.addf %241, %242 : vector<2x128xf32>
    %244 = math.tanh %243 : vector<2x128xf32>
    %245 = arith.mulf %240, %244 : vector<2x128xf32>
    %246 = vector.extract_strided_slice %5 {offsets = [8, 0], sizes = [2, 512], strides = [1, 1]} : vector<16x512xf32> to vector<2x512xf32>
    %cst_53 = arith.constant dense<0.000000e+00> : vector<2x512xf32>
    %247 = tpu.matmul %215, %6, %cst_53 {dimension_numbers = #tpu.dot_dimension_numbers<[1], [0], [0], [1], [0, 0, 1, 1], [], []>} : vector<2x128xf32>, vector<128x512xf32>, vector<2x512xf32> -> vector<2x512xf32>
    %248 = arith.addf %246, %247 : vector<2x512xf32>
    %249 = vector.extract_strided_slice %248 {offsets = [0, 0], sizes = [2, 128], strides = [1, 1]} : vector<2x512xf32> to vector<2x128xf32>
    %250 = arith.negf %249 : vector<2x128xf32>
    %251 = math.exp %250 : vector<2x128xf32>
    %cst_54 = arith.constant 1.000000e+00 : f32
    %252 = vector.broadcast %cst_54 : f32 to vector<2x128xf32>
    %253 = arith.addf %252, %251 : vector<2x128xf32>
    %254 = arith.divf %252, %253 : vector<2x128xf32>
    %255 = vector.extract_strided_slice %248 {offsets = [0, 128], sizes = [2, 128], strides = [1, 1]} : vector<2x512xf32> to vector<2x128xf32>
    %256 = arith.negf %255 : vector<2x128xf32>
    %257 = math.exp %256 : vector<2x128xf32>
    %cst_55 = arith.constant 1.000000e+00 : f32
    %258 = vector.broadcast %cst_55 : f32 to vector<2x128xf32>
    %259 = arith.addf %258, %257 : vector<2x128xf32>
    %260 = arith.divf %258, %259 : vector<2x128xf32>
    %261 = vector.extract_strided_slice %248 {offsets = [0, 256], sizes = [2, 128], strides = [1, 1]} : vector<2x512xf32> to vector<2x128xf32>
    %262 = math.tanh %261 : vector<2x128xf32>
    %263 = vector.extract_strided_slice %248 {offsets = [0, 384], sizes = [2, 128], strides = [1, 1]} : vector<2x512xf32> to vector<2x128xf32>
    %264 = arith.negf %263 : vector<2x128xf32>
    %265 = math.exp %264 : vector<2x128xf32>
    %cst_56 = arith.constant 1.000000e+00 : f32
    %266 = vector.broadcast %cst_56 : f32 to vector<2x128xf32>
    %267 = arith.addf %266, %265 : vector<2x128xf32>
    %268 = arith.divf %266, %267 : vector<2x128xf32>
    %269 = arith.mulf %260, %213 : vector<2x128xf32>
    %270 = arith.mulf %254, %262 : vector<2x128xf32>
    %271 = arith.addf %269, %270 : vector<2x128xf32>
    %272 = math.tanh %271 : vector<2x128xf32>
    %273 = arith.mulf %268, %272 : vector<2x128xf32>
    %cst_57 = arith.constant dense<0.000000e+00> : vector<2x512xf32>
    %274 = tpu.matmul %273, %7, %cst_57 {dimension_numbers = #tpu.dot_dimension_numbers<[1], [0], [0], [1], [0, 0, 1, 1], [], []>} : vector<2x128xf32>, vector<128x512xf32>, vector<2x512xf32> -> vector<2x512xf32>
    %cst_58 = arith.constant dense<0.000000e+00> : vector<2x512xf32>
    %275 = tpu.matmul %245, %8, %cst_58 {dimension_numbers = #tpu.dot_dimension_numbers<[1], [0], [0], [1], [0, 0, 1, 1], [], []>} : vector<2x128xf32>, vector<128x512xf32>, vector<2x512xf32> -> vector<2x512xf32>
    %276 = arith.addf %274, %275 : vector<2x512xf32>
    %277 = vector.broadcast %9 : vector<1x512xf32> to vector<2x512xf32>
    %278 = arith.addf %276, %277 : vector<2x512xf32>
    %279 = vector.extract_strided_slice %278 {offsets = [0, 0], sizes = [2, 128], strides = [1, 1]} : vector<2x512xf32> to vector<2x128xf32>
    %280 = arith.negf %279 : vector<2x128xf32>
    %281 = math.exp %280 : vector<2x128xf32>
    %cst_59 = arith.constant 1.000000e+00 : f32
    %282 = vector.broadcast %cst_59 : f32 to vector<2x128xf32>
    %283 = arith.addf %282, %281 : vector<2x128xf32>
    %284 = arith.divf %282, %283 : vector<2x128xf32>
    %285 = vector.extract_strided_slice %278 {offsets = [0, 128], sizes = [2, 128], strides = [1, 1]} : vector<2x512xf32> to vector<2x128xf32>
    %286 = arith.negf %285 : vector<2x128xf32>
    %287 = math.exp %286 : vector<2x128xf32>
    %cst_60 = arith.constant 1.000000e+00 : f32
    %288 = vector.broadcast %cst_60 : f32 to vector<2x128xf32>
    %289 = arith.addf %288, %287 : vector<2x128xf32>
    %290 = arith.divf %288, %289 : vector<2x128xf32>
    %291 = vector.extract_strided_slice %278 {offsets = [0, 256], sizes = [2, 128], strides = [1, 1]} : vector<2x512xf32> to vector<2x128xf32>
    %292 = math.tanh %291 : vector<2x128xf32>
    %293 = vector.extract_strided_slice %278 {offsets = [0, 384], sizes = [2, 128], strides = [1, 1]} : vector<2x512xf32> to vector<2x128xf32>
    %294 = arith.negf %293 : vector<2x128xf32>
    %295 = math.exp %294 : vector<2x128xf32>
    %cst_61 = arith.constant 1.000000e+00 : f32
    %296 = vector.broadcast %cst_61 : f32 to vector<2x128xf32>
    %297 = arith.addf %296, %295 : vector<2x128xf32>
    %298 = arith.divf %296, %297 : vector<2x128xf32>
    %299 = arith.mulf %290, %243 : vector<2x128xf32>
    %300 = arith.mulf %284, %292 : vector<2x128xf32>
    %301 = arith.addf %299, %300 : vector<2x128xf32>
    %302 = math.tanh %301 : vector<2x128xf32>
    %303 = arith.mulf %298, %302 : vector<2x128xf32>
    %304 = vector.extract_strided_slice %5 {offsets = [10, 0], sizes = [2, 512], strides = [1, 1]} : vector<16x512xf32> to vector<2x512xf32>
    %cst_62 = arith.constant dense<0.000000e+00> : vector<2x512xf32>
    %305 = tpu.matmul %273, %6, %cst_62 {dimension_numbers = #tpu.dot_dimension_numbers<[1], [0], [0], [1], [0, 0, 1, 1], [], []>} : vector<2x128xf32>, vector<128x512xf32>, vector<2x512xf32> -> vector<2x512xf32>
    %306 = arith.addf %304, %305 : vector<2x512xf32>
    %307 = vector.extract_strided_slice %306 {offsets = [0, 0], sizes = [2, 128], strides = [1, 1]} : vector<2x512xf32> to vector<2x128xf32>
    %308 = arith.negf %307 : vector<2x128xf32>
    %309 = math.exp %308 : vector<2x128xf32>
    %cst_63 = arith.constant 1.000000e+00 : f32
    %310 = vector.broadcast %cst_63 : f32 to vector<2x128xf32>
    %311 = arith.addf %310, %309 : vector<2x128xf32>
    %312 = arith.divf %310, %311 : vector<2x128xf32>
    %313 = vector.extract_strided_slice %306 {offsets = [0, 128], sizes = [2, 128], strides = [1, 1]} : vector<2x512xf32> to vector<2x128xf32>
    %314 = arith.negf %313 : vector<2x128xf32>
    %315 = math.exp %314 : vector<2x128xf32>
    %cst_64 = arith.constant 1.000000e+00 : f32
    %316 = vector.broadcast %cst_64 : f32 to vector<2x128xf32>
    %317 = arith.addf %316, %315 : vector<2x128xf32>
    %318 = arith.divf %316, %317 : vector<2x128xf32>
    %319 = vector.extract_strided_slice %306 {offsets = [0, 256], sizes = [2, 128], strides = [1, 1]} : vector<2x512xf32> to vector<2x128xf32>
    %320 = math.tanh %319 : vector<2x128xf32>
    %321 = vector.extract_strided_slice %306 {offsets = [0, 384], sizes = [2, 128], strides = [1, 1]} : vector<2x512xf32> to vector<2x128xf32>
    %322 = arith.negf %321 : vector<2x128xf32>
    %323 = math.exp %322 : vector<2x128xf32>
    %cst_65 = arith.constant 1.000000e+00 : f32
    %324 = vector.broadcast %cst_65 : f32 to vector<2x128xf32>
    %325 = arith.addf %324, %323 : vector<2x128xf32>
    %326 = arith.divf %324, %325 : vector<2x128xf32>
    %327 = arith.mulf %318, %271 : vector<2x128xf32>
    %328 = arith.mulf %312, %320 : vector<2x128xf32>
    %329 = arith.addf %327, %328 : vector<2x128xf32>
    %330 = math.tanh %329 : vector<2x128xf32>
    %331 = arith.mulf %326, %330 : vector<2x128xf32>
    %cst_66 = arith.constant dense<0.000000e+00> : vector<2x512xf32>
    %332 = tpu.matmul %331, %7, %cst_66 {dimension_numbers = #tpu.dot_dimension_numbers<[1], [0], [0], [1], [0, 0, 1, 1], [], []>} : vector<2x128xf32>, vector<128x512xf32>, vector<2x512xf32> -> vector<2x512xf32>
    %cst_67 = arith.constant dense<0.000000e+00> : vector<2x512xf32>
    %333 = tpu.matmul %303, %8, %cst_67 {dimension_numbers = #tpu.dot_dimension_numbers<[1], [0], [0], [1], [0, 0, 1, 1], [], []>} : vector<2x128xf32>, vector<128x512xf32>, vector<2x512xf32> -> vector<2x512xf32>
    %334 = arith.addf %332, %333 : vector<2x512xf32>
    %335 = vector.broadcast %9 : vector<1x512xf32> to vector<2x512xf32>
    %336 = arith.addf %334, %335 : vector<2x512xf32>
    %337 = vector.extract_strided_slice %336 {offsets = [0, 0], sizes = [2, 128], strides = [1, 1]} : vector<2x512xf32> to vector<2x128xf32>
    %338 = arith.negf %337 : vector<2x128xf32>
    %339 = math.exp %338 : vector<2x128xf32>
    %cst_68 = arith.constant 1.000000e+00 : f32
    %340 = vector.broadcast %cst_68 : f32 to vector<2x128xf32>
    %341 = arith.addf %340, %339 : vector<2x128xf32>
    %342 = arith.divf %340, %341 : vector<2x128xf32>
    %343 = vector.extract_strided_slice %336 {offsets = [0, 128], sizes = [2, 128], strides = [1, 1]} : vector<2x512xf32> to vector<2x128xf32>
    %344 = arith.negf %343 : vector<2x128xf32>
    %345 = math.exp %344 : vector<2x128xf32>
    %cst_69 = arith.constant 1.000000e+00 : f32
    %346 = vector.broadcast %cst_69 : f32 to vector<2x128xf32>
    %347 = arith.addf %346, %345 : vector<2x128xf32>
    %348 = arith.divf %346, %347 : vector<2x128xf32>
    %349 = vector.extract_strided_slice %336 {offsets = [0, 256], sizes = [2, 128], strides = [1, 1]} : vector<2x512xf32> to vector<2x128xf32>
    %350 = math.tanh %349 : vector<2x128xf32>
    %351 = vector.extract_strided_slice %336 {offsets = [0, 384], sizes = [2, 128], strides = [1, 1]} : vector<2x512xf32> to vector<2x128xf32>
    %352 = arith.negf %351 : vector<2x128xf32>
    %353 = math.exp %352 : vector<2x128xf32>
    %cst_70 = arith.constant 1.000000e+00 : f32
    %354 = vector.broadcast %cst_70 : f32 to vector<2x128xf32>
    %355 = arith.addf %354, %353 : vector<2x128xf32>
    %356 = arith.divf %354, %355 : vector<2x128xf32>
    %357 = arith.mulf %348, %301 : vector<2x128xf32>
    %358 = arith.mulf %342, %350 : vector<2x128xf32>
    %359 = arith.addf %357, %358 : vector<2x128xf32>
    %360 = math.tanh %359 : vector<2x128xf32>
    %361 = arith.mulf %356, %360 : vector<2x128xf32>
    %362 = vector.extract_strided_slice %5 {offsets = [12, 0], sizes = [2, 512], strides = [1, 1]} : vector<16x512xf32> to vector<2x512xf32>
    %cst_71 = arith.constant dense<0.000000e+00> : vector<2x512xf32>
    %363 = tpu.matmul %331, %6, %cst_71 {dimension_numbers = #tpu.dot_dimension_numbers<[1], [0], [0], [1], [0, 0, 1, 1], [], []>} : vector<2x128xf32>, vector<128x512xf32>, vector<2x512xf32> -> vector<2x512xf32>
    %364 = arith.addf %362, %363 : vector<2x512xf32>
    %365 = vector.extract_strided_slice %364 {offsets = [0, 0], sizes = [2, 128], strides = [1, 1]} : vector<2x512xf32> to vector<2x128xf32>
    %366 = arith.negf %365 : vector<2x128xf32>
    %367 = math.exp %366 : vector<2x128xf32>
    %cst_72 = arith.constant 1.000000e+00 : f32
    %368 = vector.broadcast %cst_72 : f32 to vector<2x128xf32>
    %369 = arith.addf %368, %367 : vector<2x128xf32>
    %370 = arith.divf %368, %369 : vector<2x128xf32>
    %371 = vector.extract_strided_slice %364 {offsets = [0, 128], sizes = [2, 128], strides = [1, 1]} : vector<2x512xf32> to vector<2x128xf32>
    %372 = arith.negf %371 : vector<2x128xf32>
    %373 = math.exp %372 : vector<2x128xf32>
    %cst_73 = arith.constant 1.000000e+00 : f32
    %374 = vector.broadcast %cst_73 : f32 to vector<2x128xf32>
    %375 = arith.addf %374, %373 : vector<2x128xf32>
    %376 = arith.divf %374, %375 : vector<2x128xf32>
    %377 = vector.extract_strided_slice %364 {offsets = [0, 256], sizes = [2, 128], strides = [1, 1]} : vector<2x512xf32> to vector<2x128xf32>
    %378 = math.tanh %377 : vector<2x128xf32>
    %379 = vector.extract_strided_slice %364 {offsets = [0, 384], sizes = [2, 128], strides = [1, 1]} : vector<2x512xf32> to vector<2x128xf32>
    %380 = arith.negf %379 : vector<2x128xf32>
    %381 = math.exp %380 : vector<2x128xf32>
    %cst_74 = arith.constant 1.000000e+00 : f32
    %382 = vector.broadcast %cst_74 : f32 to vector<2x128xf32>
    %383 = arith.addf %382, %381 : vector<2x128xf32>
    %384 = arith.divf %382, %383 : vector<2x128xf32>
    %385 = arith.mulf %376, %329 : vector<2x128xf32>
    %386 = arith.mulf %370, %378 : vector<2x128xf32>
    %387 = arith.addf %385, %386 : vector<2x128xf32>
    %388 = math.tanh %387 : vector<2x128xf32>
    %389 = arith.mulf %384, %388 : vector<2x128xf32>
    %cst_75 = arith.constant dense<0.000000e+00> : vector<2x512xf32>
    %390 = tpu.matmul %389, %7, %cst_75 {dimension_numbers = #tpu.dot_dimension_numbers<[1], [0], [0], [1], [0, 0, 1, 1], [], []>} : vector<2x128xf32>, vector<128x512xf32>, vector<2x512xf32> -> vector<2x512xf32>
    %cst_76 = arith.constant dense<0.000000e+00> : vector<2x512xf32>
    %391 = tpu.matmul %361, %8, %cst_76 {dimension_numbers = #tpu.dot_dimension_numbers<[1], [0], [0], [1], [0, 0, 1, 1], [], []>} : vector<2x128xf32>, vector<128x512xf32>, vector<2x512xf32> -> vector<2x512xf32>
    %392 = arith.addf %390, %391 : vector<2x512xf32>
    %393 = vector.broadcast %9 : vector<1x512xf32> to vector<2x512xf32>
    %394 = arith.addf %392, %393 : vector<2x512xf32>
    %395 = vector.extract_strided_slice %394 {offsets = [0, 0], sizes = [2, 128], strides = [1, 1]} : vector<2x512xf32> to vector<2x128xf32>
    %396 = arith.negf %395 : vector<2x128xf32>
    %397 = math.exp %396 : vector<2x128xf32>
    %cst_77 = arith.constant 1.000000e+00 : f32
    %398 = vector.broadcast %cst_77 : f32 to vector<2x128xf32>
    %399 = arith.addf %398, %397 : vector<2x128xf32>
    %400 = arith.divf %398, %399 : vector<2x128xf32>
    %401 = vector.extract_strided_slice %394 {offsets = [0, 128], sizes = [2, 128], strides = [1, 1]} : vector<2x512xf32> to vector<2x128xf32>
    %402 = arith.negf %401 : vector<2x128xf32>
    %403 = math.exp %402 : vector<2x128xf32>
    %cst_78 = arith.constant 1.000000e+00 : f32
    %404 = vector.broadcast %cst_78 : f32 to vector<2x128xf32>
    %405 = arith.addf %404, %403 : vector<2x128xf32>
    %406 = arith.divf %404, %405 : vector<2x128xf32>
    %407 = vector.extract_strided_slice %394 {offsets = [0, 256], sizes = [2, 128], strides = [1, 1]} : vector<2x512xf32> to vector<2x128xf32>
    %408 = math.tanh %407 : vector<2x128xf32>
    %409 = vector.extract_strided_slice %394 {offsets = [0, 384], sizes = [2, 128], strides = [1, 1]} : vector<2x512xf32> to vector<2x128xf32>
    %410 = arith.negf %409 : vector<2x128xf32>
    %411 = math.exp %410 : vector<2x128xf32>
    %cst_79 = arith.constant 1.000000e+00 : f32
    %412 = vector.broadcast %cst_79 : f32 to vector<2x128xf32>
    %413 = arith.addf %412, %411 : vector<2x128xf32>
    %414 = arith.divf %412, %413 : vector<2x128xf32>
    %415 = arith.mulf %406, %359 : vector<2x128xf32>
    %416 = arith.mulf %400, %408 : vector<2x128xf32>
    %417 = arith.addf %415, %416 : vector<2x128xf32>
    %418 = math.tanh %417 : vector<2x128xf32>
    %419 = arith.mulf %414, %418 : vector<2x128xf32>
    %420 = vector.extract_strided_slice %5 {offsets = [14, 0], sizes = [2, 512], strides = [1, 1]} : vector<16x512xf32> to vector<2x512xf32>
    %cst_80 = arith.constant dense<0.000000e+00> : vector<2x512xf32>
    %421 = tpu.matmul %389, %6, %cst_80 {dimension_numbers = #tpu.dot_dimension_numbers<[1], [0], [0], [1], [0, 0, 1, 1], [], []>} : vector<2x128xf32>, vector<128x512xf32>, vector<2x512xf32> -> vector<2x512xf32>
    %422 = arith.addf %420, %421 : vector<2x512xf32>
    %423 = vector.extract_strided_slice %422 {offsets = [0, 0], sizes = [2, 128], strides = [1, 1]} : vector<2x512xf32> to vector<2x128xf32>
    %424 = arith.negf %423 : vector<2x128xf32>
    %425 = math.exp %424 : vector<2x128xf32>
    %cst_81 = arith.constant 1.000000e+00 : f32
    %426 = vector.broadcast %cst_81 : f32 to vector<2x128xf32>
    %427 = arith.addf %426, %425 : vector<2x128xf32>
    %428 = arith.divf %426, %427 : vector<2x128xf32>
    %429 = vector.extract_strided_slice %422 {offsets = [0, 128], sizes = [2, 128], strides = [1, 1]} : vector<2x512xf32> to vector<2x128xf32>
    %430 = arith.negf %429 : vector<2x128xf32>
    %431 = math.exp %430 : vector<2x128xf32>
    %cst_82 = arith.constant 1.000000e+00 : f32
    %432 = vector.broadcast %cst_82 : f32 to vector<2x128xf32>
    %433 = arith.addf %432, %431 : vector<2x128xf32>
    %434 = arith.divf %432, %433 : vector<2x128xf32>
    %435 = vector.extract_strided_slice %422 {offsets = [0, 256], sizes = [2, 128], strides = [1, 1]} : vector<2x512xf32> to vector<2x128xf32>
    %436 = math.tanh %435 : vector<2x128xf32>
    %437 = vector.extract_strided_slice %422 {offsets = [0, 384], sizes = [2, 128], strides = [1, 1]} : vector<2x512xf32> to vector<2x128xf32>
    %438 = arith.negf %437 : vector<2x128xf32>
    %439 = math.exp %438 : vector<2x128xf32>
    %cst_83 = arith.constant 1.000000e+00 : f32
    %440 = vector.broadcast %cst_83 : f32 to vector<2x128xf32>
    %441 = arith.addf %440, %439 : vector<2x128xf32>
    %442 = arith.divf %440, %441 : vector<2x128xf32>
    %443 = arith.mulf %434, %387 : vector<2x128xf32>
    %444 = arith.mulf %428, %436 : vector<2x128xf32>
    %445 = arith.addf %443, %444 : vector<2x128xf32>
    %446 = math.tanh %445 : vector<2x128xf32>
    %447 = arith.mulf %442, %446 : vector<2x128xf32>
    %cst_84 = arith.constant dense<0.000000e+00> : vector<2x512xf32>
    %448 = tpu.matmul %447, %7, %cst_84 {dimension_numbers = #tpu.dot_dimension_numbers<[1], [0], [0], [1], [0, 0, 1, 1], [], []>} : vector<2x128xf32>, vector<128x512xf32>, vector<2x512xf32> -> vector<2x512xf32>
    %cst_85 = arith.constant dense<0.000000e+00> : vector<2x512xf32>
    %449 = tpu.matmul %419, %8, %cst_85 {dimension_numbers = #tpu.dot_dimension_numbers<[1], [0], [0], [1], [0, 0, 1, 1], [], []>} : vector<2x128xf32>, vector<128x512xf32>, vector<2x512xf32> -> vector<2x512xf32>
    %450 = arith.addf %448, %449 : vector<2x512xf32>
    %451 = vector.broadcast %9 : vector<1x512xf32> to vector<2x512xf32>
    %452 = arith.addf %450, %451 : vector<2x512xf32>
    %453 = vector.extract_strided_slice %452 {offsets = [0, 0], sizes = [2, 128], strides = [1, 1]} : vector<2x512xf32> to vector<2x128xf32>
    %454 = arith.negf %453 : vector<2x128xf32>
    %455 = math.exp %454 : vector<2x128xf32>
    %cst_86 = arith.constant 1.000000e+00 : f32
    %456 = vector.broadcast %cst_86 : f32 to vector<2x128xf32>
    %457 = arith.addf %456, %455 : vector<2x128xf32>
    %458 = arith.divf %456, %457 : vector<2x128xf32>
    %459 = vector.extract_strided_slice %452 {offsets = [0, 128], sizes = [2, 128], strides = [1, 1]} : vector<2x512xf32> to vector<2x128xf32>
    %460 = arith.negf %459 : vector<2x128xf32>
    %461 = math.exp %460 : vector<2x128xf32>
    %cst_87 = arith.constant 1.000000e+00 : f32
    %462 = vector.broadcast %cst_87 : f32 to vector<2x128xf32>
    %463 = arith.addf %462, %461 : vector<2x128xf32>
    %464 = arith.divf %462, %463 : vector<2x128xf32>
    %465 = vector.extract_strided_slice %452 {offsets = [0, 256], sizes = [2, 128], strides = [1, 1]} : vector<2x512xf32> to vector<2x128xf32>
    %466 = math.tanh %465 : vector<2x128xf32>
    %467 = vector.extract_strided_slice %452 {offsets = [0, 384], sizes = [2, 128], strides = [1, 1]} : vector<2x512xf32> to vector<2x128xf32>
    %468 = arith.negf %467 : vector<2x128xf32>
    %469 = math.exp %468 : vector<2x128xf32>
    %cst_88 = arith.constant 1.000000e+00 : f32
    %470 = vector.broadcast %cst_88 : f32 to vector<2x128xf32>
    %471 = arith.addf %470, %469 : vector<2x128xf32>
    %472 = arith.divf %470, %471 : vector<2x128xf32>
    %473 = arith.mulf %464, %417 : vector<2x128xf32>
    %474 = arith.mulf %458, %466 : vector<2x128xf32>
    %475 = arith.addf %473, %474 : vector<2x128xf32>
    %476 = math.tanh %475 : vector<2x128xf32>
    %477 = arith.mulf %472, %476 : vector<2x128xf32>
    %c0_89 = arith.constant 0 : index
    %c0_90 = arith.constant 0 : index
    %478 = vector.load %arg10[%c0_89, %c0_90] : memref<128x256xf32, #tpu.memory_space<vmem>>, vector<128x256xf32>
    %c0_91 = arith.constant 0 : index
    %c0_92 = arith.constant 0 : index
    %479 = vector.load %arg11[%c0_91, %c0_92] : memref<1x256xf32, #tpu.memory_space<vmem>>, vector<1x256xf32>
    %cst_93 = arith.constant dense<0.000000e+00> : vector<2x256xf32>
    %480 = tpu.matmul %71, %478, %cst_93 {dimension_numbers = #tpu.dot_dimension_numbers<[1], [0], [0], [1], [0, 0, 1, 1], [], []>} : vector<2x128xf32>, vector<128x256xf32>, vector<2x256xf32> -> vector<2x256xf32>
    %481 = vector.broadcast %479 : vector<1x256xf32> to vector<2x256xf32>
    %482 = arith.addf %480, %481 : vector<2x256xf32>
    %483 = math.tanh %482 : vector<2x256xf32>
    %484 = vector.extract_strided_slice %483 {offsets = [0, 0], sizes = [2, 128], strides = [1, 1]} : vector<2x256xf32> to vector<2x128xf32>
    %485 = arith.mulf %484, %447 : vector<2x128xf32>
    %cst_94 = arith.constant dense<0.000000e+00> : vector<2xf32>
    %486 = vector.multi_reduction <add>, %485, %cst_94 [1] : vector<2x128xf32> to vector<2xf32>
    %487 = vector.shape_cast %486 : vector<2xf32> to vector<2x1xf32>
    %488 = vector.extract_strided_slice %483 {offsets = [0, 128], sizes = [2, 128], strides = [1, 1]} : vector<2x256xf32> to vector<2x128xf32>
    %489 = arith.mulf %488, %477 : vector<2x128xf32>
    %cst_95 = arith.constant dense<0.000000e+00> : vector<2xf32>
    %490 = vector.multi_reduction <add>, %489, %cst_95 [1] : vector<2x128xf32> to vector<2xf32>
    %491 = vector.shape_cast %490 : vector<2xf32> to vector<2x1xf32>
    %492 = arith.addf %487, %491 : vector<2x1xf32>
    %cst_96 = arith.constant 0.707106769 : f32
    %493 = vector.broadcast %cst_96 : f32 to vector<2x1xf32>
    %494 = arith.mulf %492, %493 : vector<2x1xf32>
    %cst_97 = arith.constant dense<0.000000e+00> : vector<2x256xf32>
    %495 = tpu.matmul %129, %478, %cst_97 {dimension_numbers = #tpu.dot_dimension_numbers<[1], [0], [0], [1], [0, 0, 1, 1], [], []>} : vector<2x128xf32>, vector<128x256xf32>, vector<2x256xf32> -> vector<2x256xf32>
    %496 = vector.broadcast %479 : vector<1x256xf32> to vector<2x256xf32>
    %497 = arith.addf %495, %496 : vector<2x256xf32>
    %498 = math.tanh %497 : vector<2x256xf32>
    %499 = vector.extract_strided_slice %498 {offsets = [0, 0], sizes = [2, 128], strides = [1, 1]} : vector<2x256xf32> to vector<2x128xf32>
    %500 = arith.mulf %499, %447 : vector<2x128xf32>
    %cst_98 = arith.constant dense<0.000000e+00> : vector<2xf32>
    %501 = vector.multi_reduction <add>, %500, %cst_98 [1] : vector<2x128xf32> to vector<2xf32>
    %502 = vector.shape_cast %501 : vector<2xf32> to vector<2x1xf32>
    %503 = vector.extract_strided_slice %498 {offsets = [0, 128], sizes = [2, 128], strides = [1, 1]} : vector<2x256xf32> to vector<2x128xf32>
    %504 = arith.mulf %503, %477 : vector<2x128xf32>
    %cst_99 = arith.constant dense<0.000000e+00> : vector<2xf32>
    %505 = vector.multi_reduction <add>, %504, %cst_99 [1] : vector<2x128xf32> to vector<2xf32>
    %506 = vector.shape_cast %505 : vector<2xf32> to vector<2x1xf32>
    %507 = arith.addf %502, %506 : vector<2x1xf32>
    %cst_100 = arith.constant 0.707106769 : f32
    %508 = vector.broadcast %cst_100 : f32 to vector<2x1xf32>
    %509 = arith.mulf %507, %508 : vector<2x1xf32>
    %cst_101 = arith.constant dense<0.000000e+00> : vector<2x256xf32>
    %510 = tpu.matmul %187, %478, %cst_101 {dimension_numbers = #tpu.dot_dimension_numbers<[1], [0], [0], [1], [0, 0, 1, 1], [], []>} : vector<2x128xf32>, vector<128x256xf32>, vector<2x256xf32> -> vector<2x256xf32>
    %511 = vector.broadcast %479 : vector<1x256xf32> to vector<2x256xf32>
    %512 = arith.addf %510, %511 : vector<2x256xf32>
    %513 = math.tanh %512 : vector<2x256xf32>
    %514 = vector.extract_strided_slice %513 {offsets = [0, 0], sizes = [2, 128], strides = [1, 1]} : vector<2x256xf32> to vector<2x128xf32>
    %515 = arith.mulf %514, %447 : vector<2x128xf32>
    %cst_102 = arith.constant dense<0.000000e+00> : vector<2xf32>
    %516 = vector.multi_reduction <add>, %515, %cst_102 [1] : vector<2x128xf32> to vector<2xf32>
    %517 = vector.shape_cast %516 : vector<2xf32> to vector<2x1xf32>
    %518 = vector.extract_strided_slice %513 {offsets = [0, 128], sizes = [2, 128], strides = [1, 1]} : vector<2x256xf32> to vector<2x128xf32>
    %519 = arith.mulf %518, %477 : vector<2x128xf32>
    %cst_103 = arith.constant dense<0.000000e+00> : vector<2xf32>
    %520 = vector.multi_reduction <add>, %519, %cst_103 [1] : vector<2x128xf32> to vector<2xf32>
    %521 = vector.shape_cast %520 : vector<2xf32> to vector<2x1xf32>
    %522 = arith.addf %517, %521 : vector<2x1xf32>
    %cst_104 = arith.constant 0.707106769 : f32
    %523 = vector.broadcast %cst_104 : f32 to vector<2x1xf32>
    %524 = arith.mulf %522, %523 : vector<2x1xf32>
    %cst_105 = arith.constant dense<0.000000e+00> : vector<2x256xf32>
    %525 = tpu.matmul %245, %478, %cst_105 {dimension_numbers = #tpu.dot_dimension_numbers<[1], [0], [0], [1], [0, 0, 1, 1], [], []>} : vector<2x128xf32>, vector<128x256xf32>, vector<2x256xf32> -> vector<2x256xf32>
    %526 = vector.broadcast %479 : vector<1x256xf32> to vector<2x256xf32>
    %527 = arith.addf %525, %526 : vector<2x256xf32>
    %528 = math.tanh %527 : vector<2x256xf32>
    %529 = vector.extract_strided_slice %528 {offsets = [0, 0], sizes = [2, 128], strides = [1, 1]} : vector<2x256xf32> to vector<2x128xf32>
    %530 = arith.mulf %529, %447 : vector<2x128xf32>
    %cst_106 = arith.constant dense<0.000000e+00> : vector<2xf32>
    %531 = vector.multi_reduction <add>, %530, %cst_106 [1] : vector<2x128xf32> to vector<2xf32>
    %532 = vector.shape_cast %531 : vector<2xf32> to vector<2x1xf32>
    %533 = vector.extract_strided_slice %528 {offsets = [0, 128], sizes = [2, 128], strides = [1, 1]} : vector<2x256xf32> to vector<2x128xf32>
    %534 = arith.mulf %533, %477 : vector<2x128xf32>
    %cst_107 = arith.constant dense<0.000000e+00> : vector<2xf32>
    %535 = vector.multi_reduction <add>, %534, %cst_107 [1] : vector<2x128xf32> to vector<2xf32>
    %536 = vector.shape_cast %535 : vector<2xf32> to vector<2x1xf32>
    %537 = arith.addf %532, %536 : vector<2x1xf32>
    %cst_108 = arith.constant 0.707106769 : f32
    %538 = vector.broadcast %cst_108 : f32 to vector<2x1xf32>
    %539 = arith.mulf %537, %538 : vector<2x1xf32>
    %cst_109 = arith.constant dense<0.000000e+00> : vector<2x256xf32>
    %540 = tpu.matmul %303, %478, %cst_109 {dimension_numbers = #tpu.dot_dimension_numbers<[1], [0], [0], [1], [0, 0, 1, 1], [], []>} : vector<2x128xf32>, vector<128x256xf32>, vector<2x256xf32> -> vector<2x256xf32>
    %541 = vector.broadcast %479 : vector<1x256xf32> to vector<2x256xf32>
    %542 = arith.addf %540, %541 : vector<2x256xf32>
    %543 = math.tanh %542 : vector<2x256xf32>
    %544 = vector.extract_strided_slice %543 {offsets = [0, 0], sizes = [2, 128], strides = [1, 1]} : vector<2x256xf32> to vector<2x128xf32>
    %545 = arith.mulf %544, %447 : vector<2x128xf32>
    %cst_110 = arith.constant dense<0.000000e+00> : vector<2xf32>
    %546 = vector.multi_reduction <add>, %545, %cst_110 [1] : vector<2x128xf32> to vector<2xf32>
    %547 = vector.shape_cast %546 : vector<2xf32> to vector<2x1xf32>
    %548 = vector.extract_strided_slice %543 {offsets = [0, 128], sizes = [2, 128], strides = [1, 1]} : vector<2x256xf32> to vector<2x128xf32>
    %549 = arith.mulf %548, %477 : vector<2x128xf32>
    %cst_111 = arith.constant dense<0.000000e+00> : vector<2xf32>
    %550 = vector.multi_reduction <add>, %549, %cst_111 [1] : vector<2x128xf32> to vector<2xf32>
    %551 = vector.shape_cast %550 : vector<2xf32> to vector<2x1xf32>
    %552 = arith.addf %547, %551 : vector<2x1xf32>
    %cst_112 = arith.constant 0.707106769 : f32
    %553 = vector.broadcast %cst_112 : f32 to vector<2x1xf32>
    %554 = arith.mulf %552, %553 : vector<2x1xf32>
    %cst_113 = arith.constant dense<0.000000e+00> : vector<2x256xf32>
    %555 = tpu.matmul %361, %478, %cst_113 {dimension_numbers = #tpu.dot_dimension_numbers<[1], [0], [0], [1], [0, 0, 1, 1], [], []>} : vector<2x128xf32>, vector<128x256xf32>, vector<2x256xf32> -> vector<2x256xf32>
    %556 = vector.broadcast %479 : vector<1x256xf32> to vector<2x256xf32>
    %557 = arith.addf %555, %556 : vector<2x256xf32>
    %558 = math.tanh %557 : vector<2x256xf32>
    %559 = vector.extract_strided_slice %558 {offsets = [0, 0], sizes = [2, 128], strides = [1, 1]} : vector<2x256xf32> to vector<2x128xf32>
    %560 = arith.mulf %559, %447 : vector<2x128xf32>
    %cst_114 = arith.constant dense<0.000000e+00> : vector<2xf32>
    %561 = vector.multi_reduction <add>, %560, %cst_114 [1] : vector<2x128xf32> to vector<2xf32>
    %562 = vector.shape_cast %561 : vector<2xf32> to vector<2x1xf32>
    %563 = vector.extract_strided_slice %558 {offsets = [0, 128], sizes = [2, 128], strides = [1, 1]} : vector<2x256xf32> to vector<2x128xf32>
    %564 = arith.mulf %563, %477 : vector<2x128xf32>
    %cst_115 = arith.constant dense<0.000000e+00> : vector<2xf32>
    %565 = vector.multi_reduction <add>, %564, %cst_115 [1] : vector<2x128xf32> to vector<2xf32>
    %566 = vector.shape_cast %565 : vector<2xf32> to vector<2x1xf32>
    %567 = arith.addf %562, %566 : vector<2x1xf32>
    %cst_116 = arith.constant 0.707106769 : f32
    %568 = vector.broadcast %cst_116 : f32 to vector<2x1xf32>
    %569 = arith.mulf %567, %568 : vector<2x1xf32>
    %cst_117 = arith.constant dense<0.000000e+00> : vector<2x256xf32>
    %570 = tpu.matmul %419, %478, %cst_117 {dimension_numbers = #tpu.dot_dimension_numbers<[1], [0], [0], [1], [0, 0, 1, 1], [], []>} : vector<2x128xf32>, vector<128x256xf32>, vector<2x256xf32> -> vector<2x256xf32>
    %571 = vector.broadcast %479 : vector<1x256xf32> to vector<2x256xf32>
    %572 = arith.addf %570, %571 : vector<2x256xf32>
    %573 = math.tanh %572 : vector<2x256xf32>
    %574 = vector.extract_strided_slice %573 {offsets = [0, 0], sizes = [2, 128], strides = [1, 1]} : vector<2x256xf32> to vector<2x128xf32>
    %575 = arith.mulf %574, %447 : vector<2x128xf32>
    %cst_118 = arith.constant dense<0.000000e+00> : vector<2xf32>
    %576 = vector.multi_reduction <add>, %575, %cst_118 [1] : vector<2x128xf32> to vector<2xf32>
    %577 = vector.shape_cast %576 : vector<2xf32> to vector<2x1xf32>
    %578 = vector.extract_strided_slice %573 {offsets = [0, 128], sizes = [2, 128], strides = [1, 1]} : vector<2x256xf32> to vector<2x128xf32>
    %579 = arith.mulf %578, %477 : vector<2x128xf32>
    %cst_119 = arith.constant dense<0.000000e+00> : vector<2xf32>
    %580 = vector.multi_reduction <add>, %579, %cst_119 [1] : vector<2x128xf32> to vector<2xf32>
    %581 = vector.shape_cast %580 : vector<2xf32> to vector<2x1xf32>
    %582 = arith.addf %577, %581 : vector<2x1xf32>
    %cst_120 = arith.constant 0.707106769 : f32
    %583 = vector.broadcast %cst_120 : f32 to vector<2x1xf32>
    %584 = arith.mulf %582, %583 : vector<2x1xf32>
    %cst_121 = arith.constant dense<0.000000e+00> : vector<2x256xf32>
    %585 = tpu.matmul %477, %478, %cst_121 {dimension_numbers = #tpu.dot_dimension_numbers<[1], [0], [0], [1], [0, 0, 1, 1], [], []>} : vector<2x128xf32>, vector<128x256xf32>, vector<2x256xf32> -> vector<2x256xf32>
    %586 = vector.broadcast %479 : vector<1x256xf32> to vector<2x256xf32>
    %587 = arith.addf %585, %586 : vector<2x256xf32>
    %588 = math.tanh %587 : vector<2x256xf32>
    %589 = vector.extract_strided_slice %588 {offsets = [0, 0], sizes = [2, 128], strides = [1, 1]} : vector<2x256xf32> to vector<2x128xf32>
    %590 = arith.mulf %589, %447 : vector<2x128xf32>
    %cst_122 = arith.constant dense<0.000000e+00> : vector<2xf32>
    %591 = vector.multi_reduction <add>, %590, %cst_122 [1] : vector<2x128xf32> to vector<2xf32>
    %592 = vector.shape_cast %591 : vector<2xf32> to vector<2x1xf32>
    %593 = vector.extract_strided_slice %588 {offsets = [0, 128], sizes = [2, 128], strides = [1, 1]} : vector<2x256xf32> to vector<2x128xf32>
    %594 = arith.mulf %593, %477 : vector<2x128xf32>
    %cst_123 = arith.constant dense<0.000000e+00> : vector<2xf32>
    %595 = vector.multi_reduction <add>, %594, %cst_123 [1] : vector<2x128xf32> to vector<2xf32>
    %596 = vector.shape_cast %595 : vector<2xf32> to vector<2x1xf32>
    %597 = arith.addf %592, %596 : vector<2x1xf32>
    %cst_124 = arith.constant 0.707106769 : f32
    %598 = vector.broadcast %cst_124 : f32 to vector<2x1xf32>
    %599 = arith.mulf %597, %598 : vector<2x1xf32>
    %600 = arith.maximumf %494, %509 : vector<2x1xf32>
    %601 = arith.maximumf %600, %524 : vector<2x1xf32>
    %602 = arith.maximumf %601, %539 : vector<2x1xf32>
    %603 = arith.maximumf %602, %554 : vector<2x1xf32>
    %604 = arith.maximumf %603, %569 : vector<2x1xf32>
    %605 = arith.maximumf %604, %584 : vector<2x1xf32>
    %606 = arith.maximumf %605, %599 : vector<2x1xf32>
    %607 = arith.subf %494, %606 : vector<2x1xf32>
    %608 = math.exp %607 : vector<2x1xf32>
    %609 = arith.subf %509, %606 : vector<2x1xf32>
    %610 = math.exp %609 : vector<2x1xf32>
    %611 = arith.subf %524, %606 : vector<2x1xf32>
    %612 = math.exp %611 : vector<2x1xf32>
    %613 = arith.subf %539, %606 : vector<2x1xf32>
    %614 = math.exp %613 : vector<2x1xf32>
    %615 = arith.subf %554, %606 : vector<2x1xf32>
    %616 = math.exp %615 : vector<2x1xf32>
    %617 = arith.subf %569, %606 : vector<2x1xf32>
    %618 = math.exp %617 : vector<2x1xf32>
    %619 = arith.subf %584, %606 : vector<2x1xf32>
    %620 = math.exp %619 : vector<2x1xf32>
    %621 = arith.subf %599, %606 : vector<2x1xf32>
    %622 = math.exp %621 : vector<2x1xf32>
    %623 = arith.addf %608, %610 : vector<2x1xf32>
    %624 = arith.addf %623, %612 : vector<2x1xf32>
    %625 = arith.addf %624, %614 : vector<2x1xf32>
    %626 = arith.addf %625, %616 : vector<2x1xf32>
    %627 = arith.addf %626, %618 : vector<2x1xf32>
    %628 = arith.addf %627, %620 : vector<2x1xf32>
    %629 = arith.addf %628, %622 : vector<2x1xf32>
    %cst_125 = arith.constant 1.000000e+00 : f32
    %630 = vector.broadcast %cst_125 : f32 to vector<2x1xf32>
    %631 = arith.divf %630, %629 : vector<2x1xf32>
    %cst_126 = arith.constant 0.000000e+00 : f32
    %632 = vector.broadcast %cst_126 : f32 to vector<2x128xf32>
    %633 = arith.mulf %608, %631 : vector<2x1xf32>
    %634 = vector.broadcast %633 : vector<2x1xf32> to vector<2x128xf32>
    %635 = arith.mulf %71, %634 : vector<2x128xf32>
    %636 = arith.addf %632, %635 : vector<2x128xf32>
    %637 = arith.mulf %610, %631 : vector<2x1xf32>
    %638 = vector.broadcast %637 : vector<2x1xf32> to vector<2x128xf32>
    %639 = arith.mulf %129, %638 : vector<2x128xf32>
    %640 = arith.addf %636, %639 : vector<2x128xf32>
    %641 = arith.mulf %612, %631 : vector<2x1xf32>
    %642 = vector.broadcast %641 : vector<2x1xf32> to vector<2x128xf32>
    %643 = arith.mulf %187, %642 : vector<2x128xf32>
    %644 = arith.addf %640, %643 : vector<2x128xf32>
    %645 = arith.mulf %614, %631 : vector<2x1xf32>
    %646 = vector.broadcast %645 : vector<2x1xf32> to vector<2x128xf32>
    %647 = arith.mulf %245, %646 : vector<2x128xf32>
    %648 = arith.addf %644, %647 : vector<2x128xf32>
    %649 = arith.mulf %616, %631 : vector<2x1xf32>
    %650 = vector.broadcast %649 : vector<2x1xf32> to vector<2x128xf32>
    %651 = arith.mulf %303, %650 : vector<2x128xf32>
    %652 = arith.addf %648, %651 : vector<2x128xf32>
    %653 = arith.mulf %618, %631 : vector<2x1xf32>
    %654 = vector.broadcast %653 : vector<2x1xf32> to vector<2x128xf32>
    %655 = arith.mulf %361, %654 : vector<2x128xf32>
    %656 = arith.addf %652, %655 : vector<2x128xf32>
    %657 = arith.mulf %620, %631 : vector<2x1xf32>
    %658 = vector.broadcast %657 : vector<2x1xf32> to vector<2x128xf32>
    %659 = arith.mulf %419, %658 : vector<2x128xf32>
    %660 = arith.addf %656, %659 : vector<2x128xf32>
    %661 = arith.mulf %622, %631 : vector<2x1xf32>
    %662 = vector.broadcast %661 : vector<2x1xf32> to vector<2x128xf32>
    %663 = arith.mulf %477, %662 : vector<2x128xf32>
    %664 = arith.addf %660, %663 : vector<2x128xf32>
    %c0_127 = arith.constant 0 : index
    %c0_128 = arith.constant 0 : index
    %665 = vector.load %arg1[%c0_127, %c0_128] : memref<2x8xf32, #tpu.memory_space<vmem>>, vector<2x8xf32>
    %c0_129 = arith.constant 0 : index
    %c0_130 = arith.constant 0 : index
    %666 = vector.load %arg12[%c0_129, %c0_130] : memref<1x8xf32, #tpu.memory_space<vmem>>, vector<1x8xf32>
    %667 = vector.shape_cast %666 : vector<1x8xf32> to vector<8xf32>
    %c0_131 = arith.constant 0 : index
    %c0_132 = arith.constant 0 : index
    %668 = vector.load %arg13[%c0_131, %c0_132] : memref<1x8xf32, #tpu.memory_space<vmem>>, vector<1x8xf32>
    %669 = vector.shape_cast %668 : vector<1x8xf32> to vector<8xf32>
    %670 = vector.shape_cast %665 : vector<2x8xf32> to vector<2x8x1xf32>
    %671 = vector.shape_cast %667 : vector<8xf32> to vector<1x1x8xf32>
    %672 = vector.broadcast %670 : vector<2x8x1xf32> to vector<2x8x8xf32>
    %673 = vector.broadcast %671 : vector<1x1x8xf32> to vector<2x8x8xf32>
    %674 = arith.mulf %672, %673 : vector<2x8x8xf32>
    %675 = vector.shape_cast %669 : vector<8xf32> to vector<1x1x8xf32>
    %676 = vector.broadcast %675 : vector<1x1x8xf32> to vector<2x8x8xf32>
    %677 = arith.addf %674, %676 : vector<2x8x8xf32>
    %cst_133 = arith.constant 0.000000e+00 : f32
    %678 = vector.broadcast %cst_133 : f32 to vector<2x8x8xf32>
    %679 = arith.maximumf %677, %678 : vector<2x8x8xf32>
    %680 = vector.shape_cast %679 : vector<2x8x8xf32> to vector<16x8xf32>
    %c0_134 = arith.constant 0 : index
    %c0_135 = arith.constant 0 : index
    %681 = vector.load %arg14[%c0_134, %c0_135] : memref<8x128xf32, #tpu.memory_space<vmem>>, vector<8x128xf32>
    %cst_136 = arith.constant dense<0.000000e+00> : vector<16x128xf32>
    %682 = tpu.matmul %680, %681, %cst_136 {dimension_numbers = #tpu.dot_dimension_numbers<[1], [0], [0], [1], [0, 0, 1, 1], [], []>} : vector<16x8xf32>, vector<8x128xf32>, vector<16x128xf32> -> vector<16x128xf32>
    %c0_137 = arith.constant 0 : index
    %c0_138 = arith.constant 0 : index
    %683 = vector.load %arg15[%c0_137, %c0_138] : memref<1x128xf32, #tpu.memory_space<vmem>>, vector<1x128xf32>
    %684 = vector.broadcast %683 : vector<1x128xf32> to vector<16x128xf32>
    %685 = arith.addf %682, %684 : vector<16x128xf32>
    %cst_139 = arith.constant 0.000000e+00 : f32
    %686 = vector.broadcast %cst_139 : f32 to vector<16x128xf32>
    %687 = arith.maximumf %685, %686 : vector<16x128xf32>
    %c0_140 = arith.constant 0 : index
    %c0_141 = arith.constant 0 : index
    %688 = vector.load %arg16[%c0_140, %c0_141] : memref<128x8xf32, #tpu.memory_space<vmem>>, vector<128x8xf32>
    %cst_142 = arith.constant dense<0.000000e+00> : vector<16x8xf32>
    %689 = tpu.matmul %687, %688, %cst_142 {dimension_numbers = #tpu.dot_dimension_numbers<[1], [0], [0], [1], [0, 0, 1, 1], [], []>} : vector<16x128xf32>, vector<128x8xf32>, vector<16x8xf32> -> vector<16x8xf32>
    %c0_143 = arith.constant 0 : index
    %c0_144 = arith.constant 0 : index
    %690 = vector.load %arg17[%c0_143, %c0_144] : memref<1x8xf32, #tpu.memory_space<vmem>>, vector<1x8xf32>
    %691 = vector.broadcast %690 : vector<1x8xf32> to vector<16x8xf32>
    %692 = arith.addf %689, %691 : vector<16x8xf32>
    %693 = math.tanh %692 : vector<16x8xf32>
    %694 = vector.shape_cast %693 : vector<16x8xf32> to vector<2x8x8xf32>
    %c0_145 = arith.constant 0 : index
    %c0_146 = arith.constant 0 : index
    %695 = vector.load %arg2[%c0_145, %c0_146] : memref<1x8xf32, #tpu.memory_space<vmem>>, vector<1x8xf32>
    %696 = vector.broadcast %695 : vector<1x8xf32> to vector<2x8xf32>
    %697 = arith.mulf %665, %696 : vector<2x8xf32>
    %c0_147 = arith.constant 0 : index
    %c0_148 = arith.constant 0 : index
    %698 = vector.load %arg3[%c0_147, %c0_148] : memref<1x8xf32, #tpu.memory_space<vmem>>, vector<1x8xf32>
    %699 = vector.broadcast %698 : vector<1x8xf32> to vector<2x8xf32>
    %700 = arith.addf %697, %699 : vector<2x8xf32>
    %701 = vector.shape_cast %700 : vector<2x8xf32> to vector<2x1x8xf32>
    %702 = vector.broadcast %701 : vector<2x1x8xf32> to vector<2x8x8xf32>
    %703 = arith.mulf %694, %702 : vector<2x8x8xf32>
    %cst_149 = arith.constant dense<0.000000e+00> : vector<2x8xf32>
    %704 = vector.multi_reduction <add>, %703, %cst_149 [2] : vector<2x8x8xf32> to vector<2x8xf32>
    %cst_150 = arith.constant 0.707106769 : f32
    %705 = vector.broadcast %cst_150 : f32 to vector<2x8xf32>
    %706 = arith.mulf %704, %705 : vector<2x8xf32>
    %cst_151 = arith.constant dense<0xFF800000> : vector<2xf32>
    %707 = vector.multi_reduction <maximumf>, %706, %cst_151 [1] : vector<2x8xf32> to vector<2xf32>
    %708 = vector.shape_cast %707 : vector<2xf32> to vector<2x1xf32>
    %709 = vector.broadcast %708 : vector<2x1xf32> to vector<2x8xf32>
    %710 = arith.subf %706, %709 : vector<2x8xf32>
    %711 = math.exp %710 : vector<2x8xf32>
    %cst_152 = arith.constant dense<0.000000e+00> : vector<2xf32>
    %712 = vector.multi_reduction <add>, %711, %cst_152 [1] : vector<2x8xf32> to vector<2xf32>
    %713 = vector.shape_cast %712 : vector<2xf32> to vector<2x1xf32>
    %714 = vector.broadcast %713 : vector<2x1xf32> to vector<2x8xf32>
    %715 = arith.divf %711, %714 : vector<2x8xf32>
    %716 = arith.mulf %715, %665 : vector<2x8xf32>
    %c0_153 = arith.constant 0 : index
    %c0_154 = arith.constant 0 : index
    %717 = vector.load %arg18[%c0_153, %c0_154] : memref<128x256xf32, #tpu.memory_space<vmem>>, vector<128x256xf32>
    %cst_155 = arith.constant dense<0.000000e+00> : vector<2x256xf32>
    %718 = tpu.matmul %664, %717, %cst_155 {dimension_numbers = #tpu.dot_dimension_numbers<[1], [0], [0], [1], [0, 0, 1, 1], [], []>} : vector<2x128xf32>, vector<128x256xf32>, vector<2x256xf32> -> vector<2x256xf32>
    %c0_156 = arith.constant 0 : index
    %c0_157 = arith.constant 0 : index
    %719 = vector.load %arg19[%c0_156, %c0_157] : memref<8x256xf32, #tpu.memory_space<vmem>>, vector<8x256xf32>
    %cst_158 = arith.constant dense<0.000000e+00> : vector<2x256xf32>
    %720 = tpu.matmul %716, %719, %cst_158 {dimension_numbers = #tpu.dot_dimension_numbers<[1], [0], [0], [1], [0, 0, 1, 1], [], []>} : vector<2x8xf32>, vector<8x256xf32>, vector<2x256xf32> -> vector<2x256xf32>
    %721 = arith.addf %718, %720 : vector<2x256xf32>
    %c0_159 = arith.constant 0 : index
    %c0_160 = arith.constant 0 : index
    %722 = vector.load %arg20[%c0_159, %c0_160] : memref<1x256xf32, #tpu.memory_space<vmem>>, vector<1x256xf32>
    %723 = vector.broadcast %722 : vector<1x256xf32> to vector<2x256xf32>
    %724 = arith.addf %721, %723 : vector<2x256xf32>
    %cst_161 = arith.constant 0.000000e+00 : f32
    %725 = vector.broadcast %cst_161 : f32 to vector<2x256xf32>
    %726 = arith.maximumf %724, %725 : vector<2x256xf32>
    %c0_162 = arith.constant 0 : index
    %c0_163 = arith.constant 0 : index
    %727 = vector.load %arg21[%c0_162, %c0_163] : memref<256x128xf32, #tpu.memory_space<vmem>>, vector<256x128xf32>
    %cst_164 = arith.constant dense<0.000000e+00> : vector<2x128xf32>
    %728 = tpu.matmul %726, %727, %cst_164 {dimension_numbers = #tpu.dot_dimension_numbers<[1], [0], [0], [1], [0, 0, 1, 1], [], []>} : vector<2x256xf32>, vector<256x128xf32>, vector<2x128xf32> -> vector<2x128xf32>
    %c0_165 = arith.constant 0 : index
    %c0_166 = arith.constant 0 : index
    %729 = vector.load %arg22[%c0_165, %c0_166] : memref<1x128xf32, #tpu.memory_space<vmem>>, vector<1x128xf32>
    %730 = vector.broadcast %729 : vector<1x128xf32> to vector<2x128xf32>
    %731 = arith.addf %728, %730 : vector<2x128xf32>
    %cst_167 = arith.constant 0.000000e+00 : f32
    %732 = vector.broadcast %cst_167 : f32 to vector<2x128xf32>
    %733 = arith.maximumf %731, %732 : vector<2x128xf32>
    %c0_168 = arith.constant 0 : index
    %c0_169 = arith.constant 0 : index
    %734 = vector.load %arg23[%c0_168, %c0_169] : memref<128x4xf32, #tpu.memory_space<vmem>>, vector<128x4xf32>
    %cst_170 = arith.constant dense<0.000000e+00> : vector<2x4xf32>
    %735 = tpu.matmul %733, %734, %cst_170 {dimension_numbers = #tpu.dot_dimension_numbers<[1], [0], [0], [1], [0, 0, 1, 1], [], []>} : vector<2x128xf32>, vector<128x4xf32>, vector<2x4xf32> -> vector<2x4xf32>
    %c0_171 = arith.constant 0 : index
    %c0_172 = arith.constant 0 : index
    %736 = vector.load %arg24[%c0_171, %c0_172] : memref<1x4xf32, #tpu.memory_space<vmem>>, vector<1x4xf32>
    %737 = vector.broadcast %736 : vector<1x4xf32> to vector<2x4xf32>
    %738 = arith.addf %735, %737 : vector<2x4xf32>
    %739 = math.tanh %738 : vector<2x4xf32>
    %cst_173 = arith.constant 2.000000e+00 : f32
    %740 = vector.broadcast %cst_173 : f32 to vector<2x4xf32>
    %741 = arith.mulf %740, %739 : vector<2x4xf32>
    %c0_174 = arith.constant 0 : index
    %c0_175 = arith.constant 0 : index
    %742 = vector.load %arg25[%c0_174, %c0_175] : memref<2x4xf32, #tpu.memory_space<vmem>>, vector<2x4xf32>
    tpu.vector_store %arg25[%c0_174, %c0_175], %741 {strides = array<i32>} : memref<2x4xf32, #tpu.memory_space<vmem>>, vector<2x4xf32>,
    return
  }
}

</mosaic_0001>

<llo_original>
// kernel: actor_forward.1
$region0: #{actor_forward.1}
  #allocation0 [shape = 'u32[]', space=smem, size = 0x4, offset = 0x4, fixed_abs, tag = 'smem constant byte address 0x4 - core index']
  #allocation1 [shape = 'u32[144,128]{1,0:T(1,128)}', space=vmem, size = 0x12000, scoped, tag = 'internal scratch']
  %s0 = inlined_call_operand.vmem [shape: f32[16,12], index: 0, kind: input, shape index: {}]
  %s1 = inlined_call_operand.vmem [shape: f32[2,8], index: 1, kind: input, shape index: {}]
  %s2 = inlined_call_operand.vmem [shape: f32[1,8], index: 2, kind: input, shape index: {}]
  %s3 = inlined_call_operand.vmem [shape: f32[1,8], index: 3, kind: input, shape index: {}]
  %s4 = inlined_call_operand.vmem [shape: f32[12,512], index: 4, kind: input, shape index: {}]
  %s5 = inlined_call_operand.vmem [shape: f32[128,512], index: 5, kind: input, shape index: {}]
  %s6 = inlined_call_operand.vmem [shape: f32[1,512], index: 6, kind: input, shape index: {}]
  %s7 = inlined_call_operand.vmem [shape: f32[128,512], index: 7, kind: input, shape index: {}]
  %s8 = inlined_call_operand.vmem [shape: f32[128,512], index: 8, kind: input, shape index: {}]
  %s9 = inlined_call_operand.vmem [shape: f32[1,512], index: 9, kind: input, shape index: {}]
  %s10 = inlined_call_operand.vmem [shape: f32[128,256], index: 10, kind: input, shape index: {}]
  %s11 = inlined_call_operand.vmem [shape: f32[1,256], index: 11, kind: input, shape index: {}]
  %s12 = inlined_call_operand.vmem [shape: f32[1,8], index: 12, kind: input, shape index: {}]
  %s13 = inlined_call_operand.vmem [shape: f32[1,8], index: 13, kind: input, shape index: {}]
  %s14 = inlined_call_operand.vmem [shape: f32[8,128], index: 14, kind: input, shape index: {}]
  %s15 = inlined_call_operand.vmem [shape: f32[1,128], index: 15, kind: input, shape index: {}]
  %s16 = inlined_call_operand.vmem [shape: f32[128,8], index: 16, kind: input, shape index: {}]
  %s17 = inlined_call_operand.vmem [shape: f32[1,8], index: 17, kind: input, shape index: {}]
  %s18 = inlined_call_operand.vmem [shape: f32[128,256], index: 18, kind: input, shape index: {}]
  %s19 = inlined_call_operand.vmem [shape: f32[8,256], index: 19, kind: input, shape index: {}]
  %s20 = inlined_call_operand.vmem [shape: f32[1,256], index: 20, kind: input, shape index: {}]
  %s21 = inlined_call_operand.vmem [shape: f32[256,128], index: 21, kind: input, shape index: {}]
  %s22 = inlined_call_operand.vmem [shape: f32[1,128], index: 22, kind: input, shape index: {}]
  %s23 = inlined_call_operand.vmem [shape: f32[128,4], index: 23, kind: input, shape index: {}]
  %s24 = inlined_call_operand.vmem [shape: f32[1,4], index: 24, kind: input, shape index: {}]
  %s25 = inlined_call_operand.hbm [shape: f32[2,4], index: 25, kind: output, shape index: {}]
  %s26 = sld [smem:[#allocation0]]
  $region110: #{actor_forward.1} parent=0
    _
  %s28 = ssub.s32 1, %s26
  %s29 = scalar_select 0, %s28, %s26
  $region1: #{actor_forward.1} parent=0
    #allocation2 [shape = 'u8[1024]{0}', space=vmem, size = 0x400, scoped, tag = 'output window, operand 0, single buffered']
    #allocation3 [shape = 's32[1]{0}', space=sflag, size = 0x4, scoped, tag = 'scoped memory for actor_forward.1']
    %30 = vsyncpa [#allocation3], 0
    // Predicated region
    $region2: #{actor_forward.1} parent=1 // pred_check
      _
    $region3: #{actor_forward.1} parent=1 // pred_check_branch
      %32 = sbr.rel (0) target = $region5
    $region4: #{actor_forward.1} parent=1 // pred_region
      _
    $region5: #{actor_forward.1} parent=1 // pred_fallthru
      _
    // Predicated region
    $region6: #{actor_forward.1} parent=1 // pred_check
      _
    $region7: #{actor_forward.1} parent=1 // pred_check_branch
      %34 = sbr.rel (0) target = $region9
    $region8: #{actor_forward.1} parent=1 // pred_region
      _
    $region9: #{actor_forward.1} parent=1 // pred_fallthru
      _
    // Predicated region
    $region10: #{actor_forward.1} parent=1 // pred_check
      _
    $region11: #{actor_forward.1} parent=1 // pred_check_branch
      %36 = sbr.rel (0) target = $region13
    $region12: #{actor_forward.1} parent=1 // pred_region
      _
    $region13: #{actor_forward.1} parent=1 // pred_fallthru
      _
    // Predicated region
    $region14: #{actor_forward.1} parent=1 // pred_check
      _
    $region15: #{actor_forward.1} parent=1 // pred_check_branch
      %38 = sbr.rel (0) target = $region17
    $region16: #{actor_forward.1} parent=1 // pred_region
      _
    $region17: #{actor_forward.1} parent=1 // pred_fallthru
      _
    // Predicated region
    $region18: #{actor_forward.1} parent=1 // pred_check
      _
    $region19: #{actor_forward.1} parent=1 // pred_check_branch
      %40 = sbr.rel (0) target = $region21
    $region20: #{actor_forward.1} parent=1 // pred_region
      _
    $region21: #{actor_forward.1} parent=1 // pred_fallthru
      _
    // Predicated region
    $region22: #{actor_forward.1} parent=1 // pred_check
      _
    $region23: #{actor_forward.1} parent=1 // pred_check_branch
      %42 = sbr.rel (0) target = $region25
    $region24: #{actor_forward.1} parent=1 // pred_region
      _
    $region25: #{actor_forward.1} parent=1 // pred_fallthru
      _
    // Predicated region
    $region26: #{actor_forward.1} parent=1 // pred_check
      _
    $region27: #{actor_forward.1} parent=1 // pred_check_branch
      %44 = sbr.rel (0) target = $region29
    $region28: #{actor_forward.1} parent=1 // pred_region
      _
    $region29: #{actor_forward.1} parent=1 // pred_fallthru
      _
    // Predicated region
    $region30: #{actor_forward.1} parent=1 // pred_check
      _
    $region31: #{actor_forward.1} parent=1 // pred_check_branch
      %46 = sbr.rel (0) target = $region33
    $region32: #{actor_forward.1} parent=1 // pred_region
      _
    $region33: #{actor_forward.1} parent=1 // pred_fallthru
      _
    // Predicated region
    $region34: #{actor_forward.1} parent=1 // pred_check
      _
    $region35: #{actor_forward.1} parent=1 // pred_check_branch
      %48 = sbr.rel (0) target = $region37
    $region36: #{actor_forward.1} parent=1 // pred_region
      _
    $region37: #{actor_forward.1} parent=1 // pred_fallthru
      _
    // Predicated region
    $region38: #{actor_forward.1} parent=1 // pred_check
      _
    $region39: #{actor_forward.1} parent=1 // pred_check_branch
      %50 = sbr.rel (0) target = $region41
    $region40: #{actor_forward.1} parent=1 // pred_region
      _
    $region41: #{actor_forward.1} parent=1 // pred_fallthru
      _
    // Predicated region
    $region42: #{actor_forward.1} parent=1 // pred_check
      _
    $region43: #{actor_forward.1} parent=1 // pred_check_branch
      %52 = sbr.rel (0) target = $region45
    $region44: #{actor_forward.1} parent=1 // pred_region
      _
    $region45: #{actor_forward.1} parent=1 // pred_fallthru
      _
    // Predicated region
    $region46: #{actor_forward.1} parent=1 // pred_check
      _
    $region47: #{actor_forward.1} parent=1 // pred_check_branch
      %54 = sbr.rel (0) target = $region49
    $region48: #{actor_forward.1} parent=1 // pred_region
      _
    $region49: #{actor_forward.1} parent=1 // pred_fallthru
      _
    // Predicated region
    $region50: #{actor_forward.1} parent=1 // pred_check
      _
    $region51: #{actor_forward.1} parent=1 // pred_check_branch
      %56 = sbr.rel (0) target = $region53
    $region52: #{actor_forward.1} parent=1 // pred_region
      _
    $region53: #{actor_forward.1} parent=1 // pred_fallthru
      _
    // Predicated region
    $region54: #{actor_forward.1} parent=1 // pred_check
      _
    $region55: #{actor_forward.1} parent=1 // pred_check_branch
      %58 = sbr.rel (0) target = $region57
    $region56: #{actor_forward.1} parent=1 // pred_region
      _
    $region57: #{actor_forward.1} parent=1 // pred_fallthru
      _
    // Predicated region
    $region58: #{actor_forward.1} parent=1 // pred_check
      _
    $region59: #{actor_forward.1} parent=1 // pred_check_branch
      %60 = sbr.rel (0) target = $region61
    $region60: #{actor_forward.1} parent=1 // pred_region
      _
    $region61: #{actor_forward.1} parent=1 // pred_fallthru
      _
    // Predicated region
    $region62: #{actor_forward.1} parent=1 // pred_check
      _
    $region63: #{actor_forward.1} parent=1 // pred_check_branch
      %62 = sbr.rel (0) target = $region65
    $region64: #{actor_forward.1} parent=1 // pred_region
      _
    $region65: #{actor_forward.1} parent=1 // pred_fallthru
      _
    // Predicated region
    $region66: #{actor_forward.1} parent=1 // pred_check
      _
    $region67: #{actor_forward.1} parent=1 // pred_check_branch
      %64 = sbr.rel (0) target = $region69
    $region68: #{actor_forward.1} parent=1 // pred_region
      _
    $region69: #{actor_forward.1} parent=1 // pred_fallthru
      _
    // Predicated region
    $region70: #{actor_forward.1} parent=1 // pred_check
      _
    $region71: #{actor_forward.1} parent=1 // pred_check_branch
      %66 = sbr.rel (0) target = $region73
    $region72: #{actor_forward.1} parent=1 // pred_region
      _
    $region73: #{actor_forward.1} parent=1 // pred_fallthru
      _
    // Predicated region
    $region74: #{actor_forward.1} parent=1 // pred_check
      _
    $region75: #{actor_forward.1} parent=1 // pred_check_branch
      %68 = sbr.rel (0) target = $region77
    $region76: #{actor_forward.1} parent=1 // pred_region
      _
    $region77: #{actor_forward.1} parent=1 // pred_fallthru
      _
    // Predicated region
    $region78: #{actor_forward.1} parent=1 // pred_check
      _
    $region79: #{actor_forward.1} parent=1 // pred_check_branch
      %70 = sbr.rel (0) target = $region81
    $region80: #{actor_forward.1} parent=1 // pred_region
      _
    $region81: #{actor_forward.1} parent=1 // pred_fallthru
      _
    // Predicated region
    $region82: #{actor_forward.1} parent=1 // pred_check
      _
    $region83: #{actor_forward.1} parent=1 // pred_check_branch
      %72 = sbr.rel (0) target = $region85
    $region84: #{actor_forward.1} parent=1 // pred_region
      _
    $region85: #{actor_forward.1} parent=1 // pred_fallthru
      _
    // Predicated region
    $region86: #{actor_forward.1} parent=1 // pred_check
      _
    $region87: #{actor_forward.1} parent=1 // pred_check_branch
      %74 = sbr.rel (0) target = $region89
    $region88: #{actor_forward.1} parent=1 // pred_region
      _
    $region89: #{actor_forward.1} parent=1 // pred_fallthru
      _
    // Predicated region
    $region90: #{actor_forward.1} parent=1 // pred_check
      _
    $region91: #{actor_forward.1} parent=1 // pred_check_branch
      %76 = sbr.rel (0) target = $region93
    $region92: #{actor_forward.1} parent=1 // pred_region
      _
    $region93: #{actor_forward.1} parent=1 // pred_fallthru
      _
    // Predicated region
    $region94: #{actor_forward.1} parent=1 // pred_check
      _
    $region95: #{actor_forward.1} parent=1 // pred_check_branch
      %78 = sbr.rel (0) target = $region97
    $region96: #{actor_forward.1} parent=1 // pred_region
      _
    $region97: #{actor_forward.1} parent=1 // pred_fallthru
      _
    // Predicated region
    $region98: #{actor_forward.1} parent=1 // pred_check
      _
    $region99: #{actor_forward.1} parent=1 // pred_check_branch
      %80 = sbr.rel (0) target = $region101
    $region100: #{actor_forward.1} parent=1 // pred_region
      _
    $region101: #{actor_forward.1} parent=1 // pred_fallthru
      _
    %v81 = vld [vmem:[%s0] sm:$0xff]
    %v82 = vld [vmem:[%s0 + $0x8] sm:$0xff]
    %v83 = vld [vmem:[%s4] sm:$0xff]
    %v84 = vld [vmem:[%s4 + $0x8] sm:$0xff]
    %v85 = vld [vmem:[%s4 + $0x10] sm:$0xff]
    %v86 = vld [vmem:[%s4 + $0x18] sm:$0xff]
    %v87 = vld [vmem:[%s4 + $0x20] sm:$0xf]
    %v88 = vld [vmem:[%s4 + $0x28] sm:$0xf]
    %v89 = vld [vmem:[%s4 + $0x30] sm:$0xf]
    %v90 = vld [vmem:[%s4 + $0x38] sm:$0xf]
    %v91 = vld [vmem:[%s6] sm:$0xf]
    %v93 = vlaneseq
    %v94 = vshrl.u32 %v93, 7
    %v95 = vsub.s32 0, %v94
    %v96 = vrot.slane %v91, %v95
    %v97 = vlaneseq
    %v98 = vshrl.u32 %v97, 7
    %v99 = vsub.s32 1, %v98
    %v100 = vrot.slane %v91, %v99
    %v101 = vlaneseq
    %v102 = vshrl.u32 %v101, 7
    %v103 = vsub.s32 2, %v102
    %v104 = vrot.slane %v91, %v103
    %v105 = vlaneseq
    %v106 = vshrl.u32 %v105, 7
    %v107 = vsub.s32 3, %v106
    %v108 = vrot.slane %v91, %v107
    %vm113 = vcmask 97280
    %v115 = vsel %vm113, %v81, 0
    %v118 = vsel %vm113, %v82, 0
    %vm120 = vcmask 1043456
    %v122 = vsel %vm120, %v87, 0
    %v125 = vsel %vm120, %v88, 0
    %v128 = vsel %vm120, %v89, 0
    %v131 = vsel %vm120, %v90, 0
    %133 = vmatprep.subr.mxu0 0.0
    %134 = vmatpush1.msra.mxu0 0.0
    %135 = vmatprep.subr.mxu0 0.0
    %136 = vmatpush1.msra.mxu0 0.0
    %137 = vmatprep.subr.mxu0 0.0
    %138 = vmatpush1.msra.mxu0 0.0
    %139 = vmatprep.subr.mxu0 0.0
    %140 = vmatpush1.msra.mxu0 0.0
    %141 = vmatprep.subr.mxu0 0.0
    %142 = vmatpush1.msra.mxu0 0.0
    %143 = vmatprep.subr.mxu0 0.0
    %144 = vmatpush1.msra.mxu0 0.0
    %145 = vmatprep.subr.mxu0 0.0
    %146 = vmatpush1.msra.mxu0 0.0
    %147 = vmatprep.subr.mxu0 0.0
    %148 = vmatpush1.msra.mxu0 0.0
    %149 = vmatprep.subr.mxu0 0.0
    %150 = vmatpush1.msra.mxu0 0.0
    %151 = vmatprep.subr.mxu0 0.0
    %152 = vmatpush1.msra.mxu0 0.0
    %153 = vmatprep.subr.mxu0 0.0
    %154 = vmatpush1.msra.mxu0 0.0
    %155 = vmatprep.subr.mxu0 0.0
    %156 = vmatpush1.msra.mxu0 0.0
    %157 = vmatprep.subr.mxu0 0.0
    %158 = vmatpush1.msra.mxu0 0.0
    %159 = vmatprep.subr.mxu0 0.0
    %160 = vmatpush1.msra.mxu0 0.0
    %161 = vmatprep.subr.mxu0 %v125
    %162 = vmatpush1.msra.mxu0 %v122
    %163 = vmatprep.subr.mxu0 %v84
    %164 = vmatpush1.msra.mxu0 %v83
    %165 = vmatprep.subr.mxu0 0.0
    %166 = vmatpush2.msra.mxu0 0.0
    %167 = vmatprep.subr.mxu0 0.0
    %168 = vmatpush2.msra.mxu0 0.0
    %169 = vmatprep.subr.mxu0 0.0
    %170 = vmatpush2.msra.mxu0 0.0
    %171 = vmatprep.subr.mxu0 0.0
    %172 = vmatpush2.msra.mxu0 0.0
    %173 = vmatprep.subr.mxu0 0.0
    %174 = vmatpush2.msra.mxu0 0.0
    %175 = vmatprep.subr.mxu0 0.0
    %176 = vmatpush2.msra.mxu0 0.0
    %177 = vmatprep.subr.mxu0 0.0
    %178 = vmatpush2.msra.mxu0 0.0
    %179 = vmatprep.subr.mxu0 0.0
    %180 = vmatpush2.msra.mxu0 0.0
    %181 = vmatprep.subr.mxu0 0.0
    %182 = vmatpush2.msra.mxu0 0.0
    %183 = vmatprep.subr.mxu0 0.0
    %184 = vmatpush2.msra.mxu0 0.0
    %185 = vmatprep.subr.mxu0 0.0
    %186 = vmatpush2.msra.mxu0 0.0
    %187 = vmatprep.subr.mxu0 0.0
    %188 = vmatpush2.msra.mxu0 0.0
    %189 = vmatprep.subr.mxu0 0.0
    %190 = vmatpush2.msra.mxu0 0.0
    %191 = vmatprep.subr.mxu0 0.0
    %192 = vmatpush2.msra.mxu0 0.0
    %193 = vmatprep.subr.mxu0 0.0
    %194 = vmatpush2.msra.mxu0 0.0
    %195 = vmatprep.subr.mxu0 0.0
    %196 = vmatpush2.msra.mxu0 0.0
    %197 = vmatprep.mubr.f32.mxu0 0.0
    %198 = vmatmul.mubr.f32.gmra.mxu0 %v115
    %v199 = vpop.f32.mrf.mxu0
    %v200 = vadd.f32 %v96, %v199
    %v201 = vpop.f32.mrf.mxu0
    %v202 = vadd.f32 %v100, %v201
    %203 = vmatprep.mubr.f32.mxu0 0.0
    %204 = vmatmul.mubr.f32.gmra.mxu0 %v118
    %v205 = vpop.f32.mrf.mxu0
    %v206 = vadd.f32 %v96, %v205
    %v207 = vpop.f32.mrf.mxu0
    %v208 = vadd.f32 %v100, %v207
    %209 = vdwg.mxu0
    %210 = vmatprep.subr.mxu0 0.0
    %211 = vmatpush1.msra.mxu0 0.0
    %212 = vmatprep.subr.mxu0 0.0
    %213 = vmatpush1.msra.mxu0 0.0
    %214 = vmatprep.subr.mxu0 0.0
    %215 = vmatpush1.msra.mxu0 0.0
    %216 = vmatprep.subr.mxu0 0.0
    %217 = vmatpush1.msra.mxu0 0.0
    %218 = vmatprep.subr.mxu0 0.0
    %219 = vmatpush1.msra.mxu0 0.0
    %220 = vmatprep.subr.mxu0 0.0
    %221 = vmatpush1.msra.mxu0 0.0
    %222 = vmatprep.subr.mxu0 0.0
    %223 = vmatpush1.msra.mxu0 0.0
    %224 = vmatprep.subr.mxu0 0.0
    %225 = vmatpush1.msra.mxu0 0.0
    %226 = vmatprep.subr.mxu0 0.0
    %227 = vmatpush1.msra.mxu0 0.0
    %228 = vmatprep.subr.mxu0 0.0
    %229 = vmatpush1.msra.mxu0 0.0
    %230 = vmatprep.subr.mxu0 0.0
    %231 = vmatpush1.msra.mxu0 0.0
    %232 = vmatprep.subr.mxu0 0.0
    %233 = vmatpush1.msra.mxu0 0.0
    %234 = vmatprep.subr.mxu0 0.0
    %235 = vmatpush1.msra.mxu0 0.0
    %236 = vmatprep.subr.mxu0 0.0
    %237 = vmatpush1.msra.mxu0 0.0
    %238 = vmatprep.subr.mxu0 %v131
    %239 = vmatpush1.msra.mxu0 %v128
    %240 = vmatprep.subr.mxu0 %v86
    %241 = vmatpush1.msra.mxu0 %v85
    %242 = vmatprep.subr.mxu0 0.0
    %243 = vmatpush2.msra.mxu0 0.0
    %244 = vmatprep.subr.mxu0 0.0
    %245 = vmatpush2.msra.mxu0 0.0
    %246 = vmatprep.subr.mxu0 0.0
    %247 = vmatpush2.msra.mxu0 0.0
    %248 = vmatprep.subr.mxu0 0.0
    %249 = vmatpush2.msra.mxu0 0.0
    %250 = vmatprep.subr.mxu0 0.0
    %251 = vmatpush2.msra.mxu0 0.0
    %252 = vmatprep.subr.mxu0 0.0
    %253 = vmatpush2.msra.mxu0 0.0
    %254 = vmatprep.subr.mxu0 0.0
    %255 = vmatpush2.msra.mxu0 0.0
    %256 = vmatprep.subr.mxu0 0.0
    %257 = vmatpush2.msra.mxu0 0.0
    %258 = vmatprep.subr.mxu0 0.0
    %259 = vmatpush2.msra.mxu0 0.0
    %260 = vmatprep.subr.mxu0 0.0
    %261 = vmatpush2.msra.mxu0 0.0
    %262 = vmatprep.subr.mxu0 0.0
    %263 = vmatpush2.msra.mxu0 0.0
    %264 = vmatprep.subr.mxu0 0.0
    %265 = vmatpush2.msra.mxu0 0.0
    %266 = vmatprep.subr.mxu0 0.0
    %267 = vmatpush2.msra.mxu0 0.0
    %268 = vmatprep.subr.mxu0 0.0
    %269 = vmatpush2.msra.mxu0 0.0
    %270 = vmatprep.subr.mxu0 0.0
    %271 = vmatpush2.msra.mxu0 0.0
    %272 = vmatprep.subr.mxu0 0.0
    %273 = vmatpush2.msra.mxu0 0.0
    %274 = vmatprep.mubr.f32.mxu0 0.0
    %275 = vmatmul.mubr.f32.gmra.mxu0 %v115
    %v276 = vpop.f32.mrf.mxu0
    %v277 = vadd.f32 %v104, %v276
    %v278 = vpop.f32.mrf.mxu0
    %v279 = vadd.f32 %v108, %v278
    %280 = vmatprep.mubr.f32.mxu0 0.0
    %281 = vmatmul.mubr.f32.gmra.mxu0 %v118
    %v282 = vpop.f32.mrf.mxu0
    %v283 = vadd.f32 %v104, %v282
    %v284 = vpop.f32.mrf.mxu0
    %v285 = vadd.f32 %v108, %v284
    %286 = vdwg.mxu0
    %v287 = vld [vmem:[%s5] sm:$0xff]
    %v288 = vld [vmem:[%s5 + $0x8] sm:$0xff]
    %v289 = vld [vmem:[%s5 + $0x10] sm:$0xff]
    %v290 = vld [vmem:[%s5 + $0x18] sm:$0xff]
    %v291 = vld [vmem:[%s5 + $0x20] sm:$0xff]
    %v292 = vld [vmem:[%s5 + $0x28] sm:$0xff]
    %v293 = vld [vmem:[%s5 + $0x30] sm:$0xff]
    %v294 = vld [vmem:[%s5 + $0x38] sm:$0xff]
    %v295 = vld [vmem:[%s5 + $0x40] sm:$0xff]
    %v296 = vld [vmem:[%s5 + $0x48] sm:$0xff]
    %v297 = vld [vmem:[%s5 + $0x50] sm:$0xff]
    %v298 = vld [vmem:[%s5 + $0x58] sm:$0xff]
    %v299 = vld [vmem:[%s5 + $0x60] sm:$0xff]
    %v300 = vld [vmem:[%s5 + $0x68] sm:$0xff]
    %v301 = vld [vmem:[%s5 + $0x70] sm:$0xff]
    %v302 = vld [vmem:[%s5 + $0x78] sm:$0xff]
    %v303 = vld [vmem:[%s5 + $0x80] sm:$0xff]
    %v304 = vld [vmem:[%s5 + $0x88] sm:$0xff]
    %v305 = vld [vmem:[%s5 + $0x90] sm:$0xff]
    %v306 = vld [vmem:[%s5 + $0x98] sm:$0xff]
    %v307 = vld [vmem:[%s5 + $0xa0] sm:$0xff]
    %v308 = vld [vmem:[%s5 + $0xa8] sm:$0xff]
    %v309 = vld [vmem:[%s5 + $0xb0] sm:$0xff]
    %v310 = vld [vmem:[%s5 + $0xb8] sm:$0xff]
    %v311 = vld [vmem:[%s5 + $0xc0] sm:$0xff]
    %v312 = vld [vmem:[%s5 + $0xc8] sm:$0xff]
    %v313 = vld [vmem:[%s5 + $0xd0] sm:$0xff]
    %v314 = vld [vmem:[%s5 + $0xd8] sm:$0xff]
    %v315 = vld [vmem:[%s5 + $0xe0] sm:$0xff]
    %v316 = vld [vmem:[%s5 + $0xe8] sm:$0xff]
    %v317 = vld [vmem:[%s5 + $0xf0] sm:$0xff]
    %v318 = vld [vmem:[%s5 + $0xf8] sm:$0xff]
    %v319 = vld [vmem:[%s5 + $0x100] sm:$0xff]
    %v320 = vld [vmem:[%s5 + $0x108] sm:$0xff]
    %v321 = vld [vmem:[%s5 + $0x110] sm:$0xff]
    %v322 = vld [vmem:[%s5 + $0x118] sm:$0xff]
    %v323 = vld [vmem:[%s5 + $0x120] sm:$0xff]
    %v324 = vld [vmem:[%s5 + $0x128] sm:$0xff]
    %v325 = vld [vmem:[%s5 + $0x130] sm:$0xff]
    %v326 = vld [vmem:[%s5 + $0x138] sm:$0xff]
    %v327 = vld [vmem:[%s5 + $0x140] sm:$0xff]
    %v328 = vld [vmem:[%s5 + $0x148] sm:$0xff]
    %v329 = vld [vmem:[%s5 + $0x150] sm:$0xff]
    %v330 = vld [vmem:[%s5 + $0x158] sm:$0xff]
    %v331 = vld [vmem:[%s5 + $0x160] sm:$0xff]
    %v332 = vld [vmem:[%s5 + $0x168] sm:$0xff]
    %v333 = vld [vmem:[%s5 + $0x170] sm:$0xff]
    %v334 = vld [vmem:[%s5 + $0x178] sm:$0xff]
    %v335 = vld [vmem:[%s5 + $0x180] sm:$0xff]
    %v336 = vld [vmem:[%s5 + $0x188] sm:$0xff]
    %v337 = vld [vmem:[%s5 + $0x190] sm:$0xff]
    %v338 = vld [vmem:[%s5 + $0x198] sm:$0xff]
    %v339 = vld [vmem:[%s5 + $0x1a0] sm:$0xff]
    %v340 = vld [vmem:[%s5 + $0x1a8] sm:$0xff]
    %v341 = vld [vmem:[%s5 + $0x1b0] sm:$0xff]
    %v342 = vld [vmem:[%s5 + $0x1b8] sm:$0xff]
    %v343 = vld [vmem:[%s5 + $0x1c0] sm:$0xff]
    %v344 = vld [vmem:[%s5 + $0x1c8] sm:$0xff]
    %v345 = vld [vmem:[%s5 + $0x1d0] sm:$0xff]
    %v346 = vld [vmem:[%s5 + $0x1d8] sm:$0xff]
    %v347 = vld [vmem:[%s5 + $0x1e0] sm:$0xff]
    %v348 = vld [vmem:[%s5 + $0x1e8] sm:$0xff]
    %v349 = vld [vmem:[%s5 + $0x1f0] sm:$0xff]
    %v350 = vld [vmem:[%s5 + $0x1f8] sm:$0xff]
    %v351 = vld [vmem:[%s7] sm:$0xff]
    %v352 = vld [vmem:[%s7 + $0x8] sm:$0xff]
    %v353 = vld [vmem:[%s7 + $0x10] sm:$0xff]
    %v354 = vld [vmem:[%s7 + $0x18] sm:$0xff]
    %v355 = vld [vmem:[%s7 + $0x20] sm:$0xff]
    %v356 = vld [vmem:[%s7 + $0x28] sm:$0xff]
    %v357 = vld [vmem:[%s7 + $0x30] sm:$0xff]
    %v358 = vld [vmem:[%s7 + $0x38] sm:$0xff]
    %v359 = vld [vmem:[%s7 + $0x40] sm:$0xff]
    %v360 = vld [vmem:[%s7 + $0x48] sm:$0xff]
    %v361 = vld [vmem:[%s7 + $0x50] sm:$0xff]
    %v362 = vld [vmem:[%s7 + $0x58] sm:$0xff]
    %v363 = vld [vmem:[%s7 + $0x60] sm:$0xff]
    %v364 = vld [vmem:[%s7 + $0x68] sm:$0xff]
    %v365 = vld [vmem:[%s7 + $0x70] sm:$0xff]
    %v366 = vld [vmem:[%s7 + $0x78] sm:$0xff]
    %v367 = vld [vmem:[%s7 + $0x80] sm:$0xff]
    %v368 = vld [vmem:[%s7 + $0x88] sm:$0xff]
    %v369 = vld [vmem:[%s7 + $0x90] sm:$0xff]
    %v370 = vld [vmem:[%s7 + $0x98] sm:$0xff]
    %v371 = vld [vmem:[%s7 + $0xa0] sm:$0xff]
    %v372 = vld [vmem:[%s7 + $0xa8] sm:$0xff]
    %v373 = vld [vmem:[%s7 + $0xb0] sm:$0xff]
    %v374 = vld [vmem:[%s7 + $0xb8] sm:$0xff]
    %v375 = vld [vmem:[%s7 + $0xc0] sm:$0xff]
    %v376 = vld [vmem:[%s7 + $0xc8] sm:$0xff]
    %v377 = vld [vmem:[%s7 + $0xd0] sm:$0xff]
    %v378 = vld [vmem:[%s7 + $0xd8] sm:$0xff]
    %v379 = vld [vmem:[%s7 + $0xe0] sm:$0xff]
    %v380 = vld [vmem:[%s7 + $0xe8] sm:$0xff]
    %v381 = vld [vmem:[%s7 + $0xf0] sm:$0xff]
    %v382 = vld [vmem:[%s7 + $0xf8] sm:$0xff]
    %v383 = vld [vmem:[%s7 + $0x100] sm:$0xff]
    %v384 = vld [vmem:[%s7 + $0x108] sm:$0xff]
    %v385 = vld [vmem:[%s7 + $0x110] sm:$0xff]
    %v386 = vld [vmem:[%s7 + $0x118] sm:$0xff]
    %v387 = vld [vmem:[%s7 + $0x120] sm:$0xff]
    %v388 = vld [vmem:[%s7 + $0x128] sm:$0xff]
    %v389 = vld [vmem:[%s7 + $0x130] sm:$0xff]
    %v390 = vld [vmem:[%s7 + $0x138] sm:$0xff]
    %v391 = vld [vmem:[%s7 + $0x140] sm:$0xff]
    %v392 = vld [vmem:[%s7 + $0x148] sm:$0xff]
    %v393 = vld [vmem:[%s7 + $0x150] sm:$0xff]
    %v394 = vld [vmem:[%s7 + $0x158] sm:$0xff]
    %v395 = vld [vmem:[%s7 + $0x160] sm:$0xff]
    %v396 = vld [vmem:[%s7 + $0x168] sm:$0xff]
    %v397 = vld [vmem:[%s7 + $0x170] sm:$0xff]
    %v398 = vld [vmem:[%s7 + $0x178] sm:$0xff]
    %v399 = vld [vmem:[%s7 + $0x180] sm:$0xff]
    %v400 = vld [vmem:[%s7 + $0x188] sm:$0xff]
    %v401 = vld [vmem:[%s7 + $0x190] sm:$0xff]
    %v402 = vld [vmem:[%s7 + $0x198] sm:$0xff]
    %v403 = vld [vmem:[%s7 + $0x1a0] sm:$0xff]
    %v404 = vld [vmem:[%s7 + $0x1a8] sm:$0xff]
    %v405 = vld [vmem:[%s7 + $0x1b0] sm:$0xff]
    %v406 = vld [vmem:[%s7 + $0x1b8] sm:$0xff]
    %v407 = vld [vmem:[%s7 + $0x1c0] sm:$0xff]
    %v408 = vld [vmem:[%s7 + $0x1c8] sm:$0xff]
    %v409 = vld [vmem:[%s7 + $0x1d0] sm:$0xff]
    %v410 = vld [vmem:[%s7 + $0x1d8] sm:$0xff]
    %v411 = vld [vmem:[%s7 + $0x1e0] sm:$0xff]
    %v412 = vld [vmem:[%s7 + $0x1e8] sm:$0xff]
    %v413 = vld [vmem:[%s7 + $0x1f0] sm:$0xff]
    %v414 = vld [vmem:[%s7 + $0x1f8] sm:$0xff]
    %v415 = vld [vmem:[%s8] sm:$0xff]
    %v416 = vld [vmem:[%s8 + $0x8] sm:$0xff]
    %v417 = vld [vmem:[%s8 + $0x10] sm:$0xff]
    %v418 = vld [vmem:[%s8 + $0x18] sm:$0xff]
    %v419 = vld [vmem:[%s8 + $0x20] sm:$0xff]
    %v420 = vld [vmem:[%s8 + $0x28] sm:$0xff]
    %v421 = vld [vmem:[%s8 + $0x30] sm:$0xff]
    %v422 = vld [vmem:[%s8 + $0x38] sm:$0xff]
    %v423 = vld [vmem:[%s8 + $0x40] sm:$0xff]
    %v424 = vld [vmem:[%s8 + $0x48] sm:$0xff]
    %v425 = vld [vmem:[%s8 + $0x50] sm:$0xff]
    %v426 = vld [vmem:[%s8 + $0x58] sm:$0xff]
    %v427 = vld [vmem:[%s8 + $0x60] sm:$0xff]
    %v428 = vld [vmem:[%s8 + $0x68] sm:$0xff]
    %v429 = vld [vmem:[%s8 + $0x70] sm:$0xff]
    %v430 = vld [vmem:[%s8 + $0x78] sm:$0xff]
    %v431 = vld [vmem:[%s8 + $0x80] sm:$0xff]
    %v432 = vld [vmem:[%s8 + $0x88] sm:$0xff]
    %v433 = vld [vmem:[%s8 + $0x90] sm:$0xff]
    %v434 = vld [vmem:[%s8 + $0x98] sm:$0xff]
    %v435 = vld [vmem:[%s8 + $0xa0] sm:$0xff]
    %v436 = vld [vmem:[%s8 + $0xa8] sm:$0xff]
    %v437 = vld [vmem:[%s8 + $0xb0] sm:$0xff]
    %v438 = vld [vmem:[%s8 + $0xb8] sm:$0xff]
    %v439 = vld [vmem:[%s8 + $0xc0] sm:$0xff]
    %v440 = vld [vmem:[%s8 + $0xc8] sm:$0xff]
    %v441 = vld [vmem:[%s8 + $0xd0] sm:$0xff]
    %v442 = vld [vmem:[%s8 + $0xd8] sm:$0xff]
    %v443 = vld [vmem:[%s8 + $0xe0] sm:$0xff]
    %v444 = vld [vmem:[%s8 + $0xe8] sm:$0xff]
    %v445 = vld [vmem:[%s8 + $0xf0] sm:$0xff]
    %v446 = vld [vmem:[%s8 + $0xf8] sm:$0xff]
    %v447 = vld [vmem:[%s8 + $0x100] sm:$0xff]
    %v448 = vld [vmem:[%s8 + $0x108] sm:$0xff]
    %v449 = vld [vmem:[%s8 + $0x110] sm:$0xff]
    %v450 = vld [vmem:[%s8 + $0x118] sm:$0xff]
    %v451 = vld [vmem:[%s8 + $0x120] sm:$0xff]
    %v452 = vld [vmem:[%s8 + $0x128] sm:$0xff]
    %v453 = vld [vmem:[%s8 + $0x130] sm:$0xff]
    %v454 = vld [vmem:[%s8 + $0x138] sm:$0xff]
    %v455 = vld [vmem:[%s8 + $0x140] sm:$0xff]
    %v456 = vld [vmem:[%s8 + $0x148] sm:$0xff]
    %v457 = vld [vmem:[%s8 + $0x150] sm:$0xff]
    %v458 = vld [vmem:[%s8 + $0x158] sm:$0xff]
    %v459 = vld [vmem:[%s8 + $0x160] sm:$0xff]
    %v460 = vld [vmem:[%s8 + $0x168] sm:$0xff]
    %v461 = vld [vmem:[%s8 + $0x170] sm:$0xff]
    %v462 = vld [vmem:[%s8 + $0x178] sm:$0xff]
    %v463 = vld [vmem:[%s8 + $0x180] sm:$0xff]
    %v464 = vld [vmem:[%s8 + $0x188] sm:$0xff]
    %v465 = vld [vmem:[%s8 + $0x190] sm:$0xff]
    %v466 = vld [vmem:[%s8 + $0x198] sm:$0xff]
    %v467 = vld [vmem:[%s8 + $0x1a0] sm:$0xff]
    %v468 = vld [vmem:[%s8 + $0x1a8] sm:$0xff]
    %v469 = vld [vmem:[%s8 + $0x1b0] sm:$0xff]
    %v470 = vld [vmem:[%s8 + $0x1b8] sm:$0xff]
    %v471 = vld [vmem:[%s8 + $0x1c0] sm:$0xff]
    %v472 = vld [vmem:[%s8 + $0x1c8] sm:$0xff]
    %v473 = vld [vmem:[%s8 + $0x1d0] sm:$0xff]
    %v474 = vld [vmem:[%s8 + $0x1d8] sm:$0xff]
    %v475 = vld [vmem:[%s8 + $0x1e0] sm:$0xff]
    %v476 = vld [vmem:[%s8 + $0x1e8] sm:$0xff]
    %v477 = vld [vmem:[%s8 + $0x1f0] sm:$0xff]
    %v478 = vld [vmem:[%s8 + $0x1f8] sm:$0xff]
    %v479 = vld [vmem:[%s9] sm:$0xf]
    %480 = vmatprep.subr.mxu0 %v348
    %481 = vmatpush1.msra.mxu0 %v347
    %482 = vmatprep.subr.mxu0 %v344
    %483 = vmatpush1.msra.mxu0 %v343
    %484 = vmatprep.subr.mxu0 %v340
    %485 = vmatpush1.msra.mxu0 %v339
    %486 = vmatprep.subr.mxu0 %v336
    %487 = vmatpush1.msra.mxu0 %v335
    %488 = vmatprep.subr.mxu0 %v332
    %489 = vmatpush1.msra.mxu0 %v331
    %490 = vmatprep.subr.mxu0 %v328
    %491 = vmatpush1.msra.mxu0 %v327
    %492 = vmatprep.subr.mxu0 %v324
    %493 = vmatpush1.msra.mxu0 %v323
    %494 = vmatprep.subr.mxu0 %v320
    %495 = vmatpush1.msra.mxu0 %v319
    %496 = vmatprep.subr.mxu0 %v316
    %497 = vmatpush1.msra.mxu0 %v315
    %498 = vmatprep.subr.mxu0 %v312
    %499 = vmatpush1.msra.mxu0 %v311
    %500 = vmatprep.subr.mxu0 %v308
    %501 = vmatpush1.msra.mxu0 %v307
    %502 = vmatprep.subr.mxu0 %v304
    %503 = vmatpush1.msra.mxu0 %v303
    %504 = vmatprep.subr.mxu0 %v300
    %505 = vmatpush1.msra.mxu0 %v299
    %506 = vmatprep.subr.mxu0 %v296
    %507 = vmatpush1.msra.mxu0 %v295
    %508 = vmatprep.subr.mxu0 %v292
    %509 = vmatpush1.msra.mxu0 %v291
    %510 = vmatprep.subr.mxu0 %v288
    %511 = vmatpush1.msra.mxu0 %v287
    %512 = vmatprep.subr.mxu0 0.0
    %513 = vmatpush2.msra.mxu0 0.0
    %514 = vmatprep.subr.mxu0 0.0
    %515 = vmatpush2.msra.mxu0 0.0
    %516 = vmatprep.subr.mxu0 0.0
    %517 = vmatpush2.msra.mxu0 0.0
    %518 = vmatprep.subr.mxu0 0.0
    %519 = vmatpush2.msra.mxu0 0.0
    %520 = vmatprep.subr.mxu0 0.0
    %521 = vmatpush2.msra.mxu0 0.0
    %522 = vmatprep.subr.mxu0 0.0
    %523 = vmatpush2.msra.mxu0 0.0
    %524 = vmatprep.subr.mxu0 0.0
    %525 = vmatpush2.msra.mxu0 0.0
    %526 = vmatprep.subr.mxu0 0.0
    %527 = vmatpush2.msra.mxu0 0.0
    %528 = vmatprep.subr.mxu0 0.0
    %529 = vmatpush2.msra.mxu0 0.0
    %530 = vmatprep.subr.mxu0 0.0
    %531 = vmatpush2.msra.mxu0 0.0
    %532 = vmatprep.subr.mxu0 0.0
    %533 = vmatpush2.msra.mxu0 0.0
    %534 = vmatprep.subr.mxu0 0.0
    %535 = vmatpush2.msra.mxu0 0.0
    %536 = vmatprep.subr.mxu0 0.0
    %537 = vmatpush2.msra.mxu0 0.0
    %538 = vmatprep.subr.mxu0 0.0
    %539 = vmatpush2.msra.mxu0 0.0
    %540 = vmatprep.subr.mxu0 0.0
    %541 = vmatpush2.msra.mxu0 0.0
    %542 = vmatprep.subr.mxu0 0.0
    %543 = vmatpush2.msra.mxu0 0.0
    %544 = vmatprep.mubr.f32.mxu0 0.0
    %545 = vmatmul.mubr.f32.gmra.mxu0 0.0
    %v546 = vpop.f32.mrf.mxu0
    %v547 = vadd.f32 0.0, %v546
    %v548 = vpop.f32.mrf.mxu0
    %v549 = vadd.f32 0.0, %v548
    %550 = vdwg.mxu0
    %551 = vmatprep.subr.mxu0 %v350
    %552 = vmatpush1.msra.mxu0 %v349
    %553 = vmatprep.subr.mxu0 %v346
    %554 = vmatpush1.msra.mxu0 %v345
    %555 = vmatprep.subr.mxu0 %v342
    %556 = vmatpush1.msra.mxu0 %v341
    %557 = vmatprep.subr.mxu0 %v338
    %558 = vmatpush1.msra.mxu0 %v337
    %559 = vmatprep.subr.mxu0 %v334
    %560 = vmatpush1.msra.mxu0 %v333
    %561 = vmatprep.subr.mxu0 %v330
    %562 = vmatpush1.msra.mxu0 %v329
    %563 = vmatprep.subr.mxu0 %v326
    %564 = vmatpush1.msra.mxu0 %v325
    %565 = vmatprep.subr.mxu0 %v322
    %566 = vmatpush1.msra.mxu0 %v321
    %567 = vmatprep.subr.mxu0 %v318
    %568 = vmatpush1.msra.mxu0 %v317
    %569 = vmatprep.subr.mxu0 %v314
    %570 = vmatpush1.msra.mxu0 %v313
    %571 = vmatprep.subr.mxu0 %v310
    %572 = vmatpush1.msra.mxu0 %v309
    %573 = vmatprep.subr.mxu0 %v306
    %574 = vmatpush1.msra.mxu0 %v305
    %575 = vmatprep.subr.mxu0 %v302
    %576 = vmatpush1.msra.mxu0 %v301
    %577 = vmatprep.subr.mxu0 %v298
    %578 = vmatpush1.msra.mxu0 %v297
    %579 = vmatprep.subr.mxu0 %v294
    %580 = vmatpush1.msra.mxu0 %v293
    %581 = vmatprep.subr.mxu0 %v290
    %582 = vmatpush1.msra.mxu0 %v289
    %583 = vmatprep.subr.mxu0 0.0
    %584 = vmatpush2.msra.mxu0 0.0
    %585 = vmatprep.subr.mxu0 0.0
    %586 = vmatpush2.msra.mxu0 0.0
    %587 = vmatprep.subr.mxu0 0.0
    %588 = vmatpush2.msra.mxu0 0.0
    %589 = vmatprep.subr.mxu0 0.0
    %590 = vmatpush2.msra.mxu0 0.0
    %591 = vmatprep.subr.mxu0 0.0
    %592 = vmatpush2.msra.mxu0 0.0
    %593 = vmatprep.subr.mxu0 0.0
    %594 = vmatpush2.msra.mxu0 0.0
    %595 = vmatprep.subr.mxu0 0.0
    %596 = vmatpush2.msra.mxu0 0.0
    %597 = vmatprep.subr.mxu0 0.0
    %598 = vmatpush2.msra.mxu0 0.0
    %599 = vmatprep.subr.mxu0 0.0
    %600 = vmatpush2.msra.mxu0 0.0
    %601 = vmatprep.subr.mxu0 0.0
    %602 = vmatpush2.msra.mxu0 0.0
    %603 = vmatprep.subr.mxu0 0.0
    %604 = vmatpush2.msra.mxu0 0.0
    %605 = vmatprep.subr.mxu0 0.0
    %606 = vmatpush2.msra.mxu0 0.0
    %607 = vmatprep.subr.mxu0 0.0
    %608 = vmatpush2.msra.mxu0 0.0
    %609 = vmatprep.subr.mxu0 0.0
    %610 = vmatpush2.msra.mxu0 0.0
    %611 = vmatprep.subr.mxu0 0.0
    %612 = vmatpush2.msra.mxu0 0.0
    %613 = vmatprep.subr.mxu0 0.0
    %614 = vmatpush2.msra.mxu0 0.0
    %615 = vmatprep.mubr.f32.mxu0 0.0
    %616 = vmatmul.mubr.f32.gmra.mxu0 0.0
    %v617 = vpop.f32.mrf.mxu0
    %v618 = vadd.f32 0.0, %v617
    %v619 = vpop.f32.mrf.mxu0
    %v620 = vadd.f32 0.0, %v619
    %621 = vdwg.mxu0
    %v622 = vadd.f32 %v200, %v547
    %v623 = vadd.f32 %v202, %v549
    %v624 = vadd.f32 %v277, %v618
    %v625 = vadd.f32 %v279, %v620
    %v626 = vxor.u32 %v622, 2147483648
    %v627 = vmul.f32 %v626, 1.442695
    %v628 = vpow.pop %v627
    %v629 = vadd.f32 %v628, 1.0
    %v630 = vrcp.pop %v629
    %v631 = vmul.f32 1.0, %v630
    %v632 = vxor.u32 %v623, 2147483648
    %v633 = vmul.f32 %v632, 1.442695
    %v634 = vpow.pop %v633
    %v635 = vadd.f32 %v634, 1.0
    %v636 = vrcp.pop %v635
    %v637 = vmul.f32 1.0, %v636
    %v638 = vtanh.pop %v624
    %v639 = vxor.u32 %v625, 2147483648
    %v640 = vmul.f32 %v639, 1.442695
    %v641 = vpow.pop %v640
    %v642 = vadd.f32 %v641, 1.0
    %v643 = vrcp.pop %v642
    %v644 = vmul.f32 1.0, %v643
    %v645 = vmul.f32 %v637, 0.0
    %v646 = vmul.f32 %v631, %v638
    %v647 = vadd.f32 %v645, %v646
    %v648 = vtanh.pop %v647
    %v649 = vmul.f32 %v644, %v648
    %650 = vmatprep.subr.mxu0 %v476
    %651 = vmatpush1.msra.mxu0 %v475
    %652 = vmatprep.subr.mxu0 %v472
    %653 = vmatpush1.msra.mxu0 %v471
    %654 = vmatprep.subr.mxu0 %v468
    %655 = vmatpush1.msra.mxu0 %v467
    %656 = vmatprep.subr.mxu0 %v464
    %657 = vmatpush1.msra.mxu0 %v463
    %658 = vmatprep.subr.mxu0 %v460
    %659 = vmatpush1.msra.mxu0 %v459
    %660 = vmatprep.subr.mxu0 %v456
    %661 = vmatpush1.msra.mxu0 %v455
    %662 = vmatprep.subr.mxu0 %v452
    %663 = vmatpush1.msra.mxu0 %v451
    %664 = vmatprep.subr.mxu0 %v448
    %665 = vmatpush1.msra.mxu0 %v447
    %666 = vmatprep.subr.mxu0 %v444
    %667 = vmatpush1.msra.mxu0 %v443
    %668 = vmatprep.subr.mxu0 %v440
    %669 = vmatpush1.msra.mxu0 %v439
    %670 = vmatprep.subr.mxu0 %v436
    %671 = vmatpush1.msra.mxu0 %v435
    %672 = vmatprep.subr.mxu0 %v432
    %673 = vmatpush1.msra.mxu0 %v431
    %674 = vmatprep.subr.mxu0 %v428
    %675 = vmatpush1.msra.mxu0 %v427
    %676 = vmatprep.subr.mxu0 %v424
    %677 = vmatpush1.msra.mxu0 %v423
    %678 = vmatprep.subr.mxu0 %v420
    %679 = vmatpush1.msra.mxu0 %v419
    %680 = vmatprep.subr.mxu0 %v416
    %681 = vmatpush1.msra.mxu0 %v415
    %682 = vmatprep.subr.mxu0 0.0
    %683 = vmatpush2.msra.mxu0 0.0
    %684 = vmatprep.subr.mxu0 0.0
    %685 = vmatpush2.msra.mxu0 0.0
    %686 = vmatprep.subr.mxu0 0.0
    %687 = vmatpush2.msra.mxu0 0.0
    %688 = vmatprep.subr.mxu0 0.0
    %689 = vmatpush2.msra.mxu0 0.0
    %690 = vmatprep.subr.mxu0 0.0
    %691 = vmatpush2.msra.mxu0 0.0
    %692 = vmatprep.subr.mxu0 0.0
    %693 = vmatpush2.msra.mxu0 0.0
    %694 = vmatprep.subr.mxu0 0.0
    %695 = vmatpush2.msra.mxu0 0.0
    %696 = vmatprep.subr.mxu0 0.0
    %697 = vmatpush2.msra.mxu0 0.0
    %698 = vmatprep.subr.mxu0 0.0
    %699 = vmatpush2.msra.mxu0 0.0
    %700 = vmatprep.subr.mxu0 0.0
    %701 = vmatpush2.msra.mxu0 0.0
    %702 = vmatprep.subr.mxu0 0.0
    %703 = vmatpush2.msra.mxu0 0.0
    %704 = vmatprep.subr.mxu0 0.0
    %705 = vmatpush2.msra.mxu0 0.0
    %706 = vmatprep.subr.mxu0 0.0
    %707 = vmatpush2.msra.mxu0 0.0
    %708 = vmatprep.subr.mxu0 0.0
    %709 = vmatpush2.msra.mxu0 0.0
    %710 = vmatprep.subr.mxu0 0.0
    %711 = vmatpush2.msra.mxu0 0.0
    %712 = vmatprep.subr.mxu0 0.0
    %713 = vmatpush2.msra.mxu0 0.0
    %714 = vmatprep.mubr.f32.mxu0 0.0
    %715 = vmatmul.mubr.f32.gmra.mxu0 0.0
    %v716 = vpop.f32.mrf.mxu0
    %v717 = vadd.f32 0.0, %v716
    %v718 = vpop.f32.mrf.mxu0
    %v719 = vadd.f32 0.0, %v718
    %720 = vdwg.mxu0
    %721 = vmatprep.subr.mxu0 %v478
    %722 = vmatpush1.msra.mxu0 %v477
    %723 = vmatprep.subr.mxu0 %v474
    %724 = vmatpush1.msra.mxu0 %v473
    %725 = vmatprep.subr.mxu0 %v470
    %726 = vmatpush1.msra.mxu0 %v469
    %727 = vmatprep.subr.mxu0 %v466
    %728 = vmatpush1.msra.mxu0 %v465
    %729 = vmatprep.subr.mxu0 %v462
    %730 = vmatpush1.msra.mxu0 %v461
    %731 = vmatprep.subr.mxu0 %v458
    %732 = vmatpush1.msra.mxu0 %v457
    %733 = vmatprep.subr.mxu0 %v454
    %734 = vmatpush1.msra.mxu0 %v453
    %735 = vmatprep.subr.mxu0 %v450
    %736 = vmatpush1.msra.mxu0 %v449
    %737 = vmatprep.subr.mxu0 %v446
    %738 = vmatpush1.msra.mxu0 %v445
    %739 = vmatprep.subr.mxu0 %v442
    %740 = vmatpush1.msra.mxu0 %v441
    %741 = vmatprep.subr.mxu0 %v438
    %742 = vmatpush1.msra.mxu0 %v437
    %743 = vmatprep.subr.mxu0 %v434
    %744 = vmatpush1.msra.mxu0 %v433
    %745 = vmatprep.subr.mxu0 %v430
    %746 = vmatpush1.msra.mxu0 %v429
    %747 = vmatprep.subr.mxu0 %v426
    %748 = vmatpush1.msra.mxu0 %v425
    %749 = vmatprep.subr.mxu0 %v422
    %750 = vmatpush1.msra.mxu0 %v421
    %751 = vmatprep.subr.mxu0 %v418
    %752 = vmatpush1.msra.mxu0 %v417
    %753 = vmatprep.subr.mxu0 0.0
    %754 = vmatpush2.msra.mxu0 0.0
    %755 = vmatprep.subr.mxu0 0.0
    %756 = vmatpush2.msra.mxu0 0.0
    %757 = vmatprep.subr.mxu0 0.0
    %758 = vmatpush2.msra.mxu0 0.0
    %759 = vmatprep.subr.mxu0 0.0
    %760 = vmatpush2.msra.mxu0 0.0
    %761 = vmatprep.subr.mxu0 0.0
    %762 = vmatpush2.msra.mxu0 0.0
    %763 = vmatprep.subr.mxu0 0.0
    %764 = vmatpush2.msra.mxu0 0.0
    %765 = vmatprep.subr.mxu0 0.0
    %766 = vmatpush2.msra.mxu0 0.0
    %767 = vmatprep.subr.mxu0 0.0
    %768 = vmatpush2.msra.mxu0 0.0
    %769 = vmatprep.subr.mxu0 0.0
    %770 = vmatpush2.msra.mxu0 0.0
    %771 = vmatprep.subr.mxu0 0.0
    %772 = vmatpush2.msra.mxu0 0.0
    %773 = vmatprep.subr.mxu0 0.0
    %774 = vmatpush2.msra.mxu0 0.0
    %775 = vmatprep.subr.mxu0 0.0
    %776 = vmatpush2.msra.mxu0 0.0
    %777 = vmatprep.subr.mxu0 0.0
    %778 = vmatpush2.msra.mxu0 0.0
    %779 = vmatprep.subr.mxu0 0.0
    %780 = vmatpush2.msra.mxu0 0.0
    %781 = vmatprep.subr.mxu0 0.0
    %782 = vmatpush2.msra.mxu0 0.0
    %783 = vmatprep.subr.mxu0 0.0
    %784 = vmatpush2.msra.mxu0 0.0
    %785 = vmatprep.mubr.f32.mxu0 0.0
    %786 = vmatmul.mubr.f32.gmra.mxu0 0.0
    %v787 = vpop.f32.mrf.mxu0
    %v788 = vadd.f32 0.0, %v787
    %v789 = vpop.f32.mrf.mxu0
    %v790 = vadd.f32 0.0, %v789
    %791 = vdwg.mxu0
    %792 = vmatprep.subr.mxu0 %v412
    %793 = vmatpush1.msra.mxu0 %v411
    %794 = vmatprep.subr.mxu0 %v408
    %795 = vmatpush1.msra.mxu0 %v407
    %796 = vmatprep.subr.mxu0 %v404
    %797 = vmatpush1.msra.mxu0 %v403
    %798 = vmatprep.subr.mxu0 %v400
    %799 = vmatpush1.msra.mxu0 %v399
    %800 = vmatprep.subr.mxu0 %v396
    %801 = vmatpush1.msra.mxu0 %v395
    %802 = vmatprep.subr.mxu0 %v392
    %803 = vmatpush1.msra.mxu0 %v391
    %804 = vmatprep.subr.mxu0 %v388
    %805 = vmatpush1.msra.mxu0 %v387
    %806 = vmatprep.subr.mxu0 %v384
    %807 = vmatpush1.msra.mxu0 %v383
    %808 = vmatprep.subr.mxu0 %v380
    %809 = vmatpush1.msra.mxu0 %v379
    %810 = vmatprep.subr.mxu0 %v376
    %811 = vmatpush1.msra.mxu0 %v375
    %812 = vmatprep.subr.mxu0 %v372
    %813 = vmatpush1.msra.mxu0 %v371
    %814 = vmatprep.subr.mxu0 %v368
    %815 = vmatpush1.msra.mxu0 %v367
    %816 = vmatprep.subr.mxu0 %v364
    %817 = vmatpush1.msra.mxu0 %v363
    %818 = vmatprep.subr.mxu0 %v360
    %819 = vmatpush1.msra.mxu0 %v359
    %820 = vmatprep.subr.mxu0 %v356
    %821 = vmatpush1.msra.mxu0 %v355
    %822 = vmatprep.subr.mxu0 %v352
    %823 = vmatpush1.msra.mxu0 %v351
    %824 = vmatprep.subr.mxu0 0.0
    %825 = vmatpush2.msra.mxu0 0.0
    %826 = vmatprep.subr.mxu0 0.0
    %827 = vmatpush2.msra.mxu0 0.0
    %828 = vmatprep.subr.mxu0 0.0
    %829 = vmatpush2.msra.mxu0 0.0
    %830 = vmatprep.subr.mxu0 0.0
    %831 = vmatpush2.msra.mxu0 0.0
    %832 = vmatprep.subr.mxu0 0.0
    %833 = vmatpush2.msra.mxu0 0.0
    %834 = vmatprep.subr.mxu0 0.0
    %835 = vmatpush2.msra.mxu0 0.0
    %836 = vmatprep.subr.mxu0 0.0
    %837 = vmatpush2.msra.mxu0 0.0
    %838 = vmatprep.subr.mxu0 0.0
    %839 = vmatpush2.msra.mxu0 0.0
    %840 = vmatprep.subr.mxu0 0.0
    %841 = vmatpush2.msra.mxu0 0.0
    %842 = vmatprep.subr.mxu0 0.0
    %843 = vmatpush2.msra.mxu0 0.0
    %844 = vmatprep.subr.mxu0 0.0
    %845 = vmatpush2.msra.mxu0 0.0
    %846 = vmatprep.subr.mxu0 0.0
    %847 = vmatpush2.msra.mxu0 0.0
    %848 = vmatprep.subr.mxu0 0.0
    %849 = vmatpush2.msra.mxu0 0.0
    %850 = vmatprep.subr.mxu0 0.0
    %851 = vmatpush2.msra.mxu0 0.0
    %852 = vmatprep.subr.mxu0 0.0
    %853 = vmatpush2.msra.mxu0 0.0
    %854 = vmatprep.subr.mxu0 0.0
    %855 = vmatpush2.msra.mxu0 0.0
    %856 = vmatprep.mubr.f32.mxu0 0.0
    %857 = vmatmul.mubr.f32.gmra.mxu0 %v649
    %v858 = vpop.f32.mrf.mxu0
    %v859 = vadd.f32 %v717, %v858
    %v860 = vpop.f32.mrf.mxu0
    %v861 = vadd.f32 %v719, %v860
    %862 = vdwg.mxu0
    %863 = vmatprep.subr.mxu0 %v414
    %864 = vmatpush1.msra.mxu0 %v413
    %865 = vmatprep.subr.mxu0 %v410
    %866 = vmatpush1.msra.mxu0 %v409
    %867 = vmatprep.subr.mxu0 %v406
    %868 = vmatpush1.msra.mxu0 %v405
    %869 = vmatprep.subr.mxu0 %v402
    %870 = vmatpush1.msra.mxu0 %v401
    %871 = vmatprep.subr.mxu0 %v398
    %872 = vmatpush1.msra.mxu0 %v397
    %873 = vmatprep.subr.mxu0 %v394
    %874 = vmatpush1.msra.mxu0 %v393
    %875 = vmatprep.subr.mxu0 %v390
    %876 = vmatpush1.msra.mxu0 %v389
    %877 = vmatprep.subr.mxu0 %v386
    %878 = vmatpush1.msra.mxu0 %v385
    %879 = vmatprep.subr.mxu0 %v382
    %880 = vmatpush1.msra.mxu0 %v381
    %881 = vmatprep.subr.mxu0 %v378
    %882 = vmatpush1.msra.mxu0 %v377
    %883 = vmatprep.subr.mxu0 %v374
    %884 = vmatpush1.msra.mxu0 %v373
    %885 = vmatprep.subr.mxu0 %v370
    %886 = vmatpush1.msra.mxu0 %v369
    %887 = vmatprep.subr.mxu0 %v366
    %888 = vmatpush1.msra.mxu0 %v365
    %889 = vmatprep.subr.mxu0 %v362
    %890 = vmatpush1.msra.mxu0 %v361
    %891 = vmatprep.subr.mxu0 %v358
    %892 = vmatpush1.msra.mxu0 %v357
    %893 = vmatprep.subr.mxu0 %v354
    %894 = vmatpush1.msra.mxu0 %v353
    %895 = vmatprep.subr.mxu0 0.0
    %896 = vmatpush2.msra.mxu0 0.0
    %897 = vmatprep.subr.mxu0 0.0
    %898 = vmatpush2.msra.mxu0 0.0
    %899 = vmatprep.subr.mxu0 0.0
    %900 = vmatpush2.msra.mxu0 0.0
    %901 = vmatprep.subr.mxu0 0.0
    %902 = vmatpush2.msra.mxu0 0.0
    %903 = vmatprep.subr.mxu0 0.0
    %904 = vmatpush2.msra.mxu0 0.0
    %905 = vmatprep.subr.mxu0 0.0
    %906 = vmatpush2.msra.mxu0 0.0
    %907 = vmatprep.subr.mxu0 0.0
    %908 = vmatpush2.msra.mxu0 0.0
    %909 = vmatprep.subr.mxu0 0.0
    %910 = vmatpush2.msra.mxu0 0.0
    %911 = vmatprep.subr.mxu0 0.0
    %912 = vmatpush2.msra.mxu0 0.0
    %913 = vmatprep.subr.mxu0 0.0
    %914 = vmatpush2.msra.mxu0 0.0
    %915 = vmatprep.subr.mxu0 0.0
    %916 = vmatpush2.msra.mxu0 0.0
    %917 = vmatprep.subr.mxu0 0.0
    %918 = vmatpush2.msra.mxu0 0.0
    %919 = vmatprep.subr.mxu0 0.0
    %920 = vmatpush2.msra.mxu0 0.0
    %921 = vmatprep.subr.mxu0 0.0
    %922 = vmatpush2.msra.mxu0 0.0
    %923 = vmatprep.subr.mxu0 0.0
    %924 = vmatpush2.msra.mxu0 0.0
    %925 = vmatprep.subr.mxu0 0.0
    %926 = vmatpush2.msra.mxu0 0.0
    %927 = vmatprep.mubr.f32.mxu0 0.0
    %928 = vmatmul.mubr.f32.gmra.mxu0 %v649
    %v929 = vpop.f32.mrf.mxu0
    %v930 = vadd.f32 %v788, %v929
    %v931 = vpop.f32.mrf.mxu0
    %v932 = vadd.f32 %v790, %v931
    %933 = vdwg.mxu0
    %v935 = vlaneseq
    %v936 = vshrl.u32 %v935, 7
    %v937 = vsub.s32 0, %v936
    %v938 = vrot.slane %v479, %v937
    %v939 = vlaneseq
    %v940 = vshrl.u32 %v939, 7
    %v941 = vsub.s32 1, %v940
    %v942 = vrot.slane %v479, %v941
    %v943 = vlaneseq
    %v944 = vshrl.u32 %v943, 7
    %v945 = vsub.s32 2, %v944
    %v946 = vrot.slane %v479, %v945
    %v947 = vlaneseq
    %v948 = vshrl.u32 %v947, 7
    %v949 = vsub.s32 3, %v948
    %v950 = vrot.slane %v479, %v949
    %v955 = vadd.f32 %v859, %v938
    %v956 = vadd.f32 %v861, %v942
    %v957 = vadd.f32 %v930, %v946
    %v958 = vadd.f32 %v932, %v950
    %v959 = vxor.u32 %v955, 2147483648
    %v960 = vmul.f32 %v959, 1.442695
    %v961 = vpow.pop %v960
    %v962 = vadd.f32 %v961, 1.0
    %v963 = vrcp.pop %v962
    %v964 = vmul.f32 1.0, %v963
    %v965 = vxor.u32 %v956, 2147483648
    %v966 = vmul.f32 %v965, 1.442695
    %v967 = vpow.pop %v966
    %v968 = vadd.f32 %v967, 1.0
    %v969 = vrcp.pop %v968
    %v970 = vmul.f32 1.0, %v969
    %v971 = vtanh.pop %v957
    %v972 = vxor.u32 %v958, 2147483648
    %v973 = vmul.f32 %v972, 1.442695
    %v974 = vpow.pop %v973
    %v975 = vadd.f32 %v974, 1.0
    %v976 = vrcp.pop %v975
    %v977 = vmul.f32 1.0, %v976
    %v978 = vmul.f32 %v970, 0.0
    %v979 = vmul.f32 %v964, %v971
    %v980 = vadd.f32 %v978, %v979
    %v981 = vtanh.pop %v980
    %v982 = vmul.f32 %v977, %v981
    %983 = vmatprep.subr.mxu0 %v348
    %984 = vmatpush1.msra.mxu0 %v347
    %985 = vmatprep.subr.mxu0 %v344
    %986 = vmatpush1.msra.mxu0 %v343
    %987 = vmatprep.subr.mxu0 %v340
    %988 = vmatpush1.msra.mxu0 %v339
    %989 = vmatprep.subr.mxu0 %v336
    %990 = vmatpush1.msra.mxu0 %v335
    %991 = vmatprep.subr.mxu0 %v332
    %992 = vmatpush1.msra.mxu0 %v331
    %993 = vmatprep.subr.mxu0 %v328
    %994 = vmatpush1.msra.mxu0 %v327
    %995 = vmatprep.subr.mxu0 %v324
    %996 = vmatpush1.msra.mxu0 %v323
    %997 = vmatprep.subr.mxu0 %v320
    %998 = vmatpush1.msra.mxu0 %v319
    %999 = vmatprep.subr.mxu0 %v316
    %1000 = vmatpush1.msra.mxu0 %v315
    %1001 = vmatprep.subr.mxu0 %v312
    %1002 = vmatpush1.msra.mxu0 %v311
    %1003 = vmatprep.subr.mxu0 %v308
    %1004 = vmatpush1.msra.mxu0 %v307
    %1005 = vmatprep.subr.mxu0 %v304
    %1006 = vmatpush1.msra.mxu0 %v303
    %1007 = vmatprep.subr.mxu0 %v300
    %1008 = vmatpush1.msra.mxu0 %v299
    %1009 = vmatprep.subr.mxu0 %v296
    %1010 = vmatpush1.msra.mxu0 %v295
    %1011 = vmatprep.subr.mxu0 %v292
    %1012 = vmatpush1.msra.mxu0 %v291
    %1013 = vmatprep.subr.mxu0 %v288
    %1014 = vmatpush1.msra.mxu0 %v287
    %1015 = vmatprep.subr.mxu0 0.0
    %1016 = vmatpush2.msra.mxu0 0.0
    %1017 = vmatprep.subr.mxu0 0.0
    %1018 = vmatpush2.msra.mxu0 0.0
    %1019 = vmatprep.subr.mxu0 0.0
    %1020 = vmatpush2.msra.mxu0 0.0
    %1021 = vmatprep.subr.mxu0 0.0
    %1022 = vmatpush2.msra.mxu0 0.0
    %1023 = vmatprep.subr.mxu0 0.0
    %1024 = vmatpush2.msra.mxu0 0.0
    %1025 = vmatprep.subr.mxu0 0.0
    %1026 = vmatpush2.msra.mxu0 0.0
    %1027 = vmatprep.subr.mxu0 0.0
    %1028 = vmatpush2.msra.mxu0 0.0
    %1029 = vmatprep.subr.mxu0 0.0
    %1030 = vmatpush2.msra.mxu0 0.0
    %1031 = vmatprep.subr.mxu0 0.0
    %1032 = vmatpush2.msra.mxu0 0.0
    %1033 = vmatprep.subr.mxu0 0.0
    %1034 = vmatpush2.msra.mxu0 0.0
    %1035 = vmatprep.subr.mxu0 0.0
    %1036 = vmatpush2.msra.mxu0 0.0
    %1037 = vmatprep.subr.mxu0 0.0
    %1038 = vmatpush2.msra.mxu0 0.0
    %1039 = vmatprep.subr.mxu0 0.0
    %1040 = vmatpush2.msra.mxu0 0.0
    %1041 = vmatprep.subr.mxu0 0.0
    %1042 = vmatpush2.msra.mxu0 0.0
    %1043 = vmatprep.subr.mxu0 0.0
    %1044 = vmatpush2.msra.mxu0 0.0
    %1045 = vmatprep.subr.mxu0 0.0
    %1046 = vmatpush2.msra.mxu0 0.0
    %1047 = vmatprep.mubr.f32.mxu0 0.0
    %1048 = vmatmul.mubr.f32.gmra.mxu0 %v649
    %v1049 = vpop.f32.mrf.mxu0
    %v1050 = vadd.f32 0.0, %v1049
    %v1051 = vpop.f32.mrf.mxu0
    %v1052 = vadd.f32 0.0, %v1051
    %1053 = vdwg.mxu0
    %1054 = vmatprep.subr.mxu0 %v350
    %1055 = vmatpush1.msra.mxu0 %v349
    %1056 = vmatprep.subr.mxu0 %v346
    %1057 = vmatpush1.msra.mxu0 %v345
    %1058 = vmatprep.subr.mxu0 %v342
    %1059 = vmatpush1.msra.mxu0 %v341
    %1060 = vmatprep.subr.mxu0 %v338
    %1061 = vmatpush1.msra.mxu0 %v337
    %1062 = vmatprep.subr.mxu0 %v334
    %1063 = vmatpush1.msra.mxu0 %v333
    %1064 = vmatprep.subr.mxu0 %v330
    %1065 = vmatpush1.msra.mxu0 %v329
    %1066 = vmatprep.subr.mxu0 %v326
    %1067 = vmatpush1.msra.mxu0 %v325
    %1068 = vmatprep.subr.mxu0 %v322
    %1069 = vmatpush1.msra.mxu0 %v321
    %1070 = vmatprep.subr.mxu0 %v318
    %1071 = vmatpush1.msra.mxu0 %v317
    %1072 = vmatprep.subr.mxu0 %v314
    %1073 = vmatpush1.msra.mxu0 %v313
    %1074 = vmatprep.subr.mxu0 %v310
    %1075 = vmatpush1.msra.mxu0 %v309
    %1076 = vmatprep.subr.mxu0 %v306
    %1077 = vmatpush1.msra.mxu0 %v305
    %1078 = vmatprep.subr.mxu0 %v302
    %1079 = vmatpush1.msra.mxu0 %v301
    %1080 = vmatprep.subr.mxu0 %v298
    %1081 = vmatpush1.msra.mxu0 %v297
    %1082 = vmatprep.subr.mxu0 %v294
    %1083 = vmatpush1.msra.mxu0 %v293
    %1084 = vmatprep.subr.mxu0 %v290
    %1085 = vmatpush1.msra.mxu0 %v289
    %1086 = vmatprep.subr.mxu0 0.0
    %1087 = vmatpush2.msra.mxu0 0.0
    %1088 = vmatprep.subr.mxu0 0.0
    %1089 = vmatpush2.msra.mxu0 0.0
    %1090 = vmatprep.subr.mxu0 0.0
    %1091 = vmatpush2.msra.mxu0 0.0
    %1092 = vmatprep.subr.mxu0 0.0
    %1093 = vmatpush2.msra.mxu0 0.0
    %1094 = vmatprep.subr.mxu0 0.0
    %1095 = vmatpush2.msra.mxu0 0.0
    %1096 = vmatprep.subr.mxu0 0.0
    %1097 = vmatpush2.msra.mxu0 0.0
    %1098 = vmatprep.subr.mxu0 0.0
    %1099 = vmatpush2.msra.mxu0 0.0
    %1100 = vmatprep.subr.mxu0 0.0
    %1101 = vmatpush2.msra.mxu0 0.0
    %1102 = vmatprep.subr.mxu0 0.0
    %1103 = vmatpush2.msra.mxu0 0.0
    %1104 = vmatprep.subr.mxu0 0.0
    %1105 = vmatpush2.msra.mxu0 0.0
    %1106 = vmatprep.subr.mxu0 0.0
    %1107 = vmatpush2.msra.mxu0 0.0
    %1108 = vmatprep.subr.mxu0 0.0
    %1109 = vmatpush2.msra.mxu0 0.0
    %1110 = vmatprep.subr.mxu0 0.0
    %1111 = vmatpush2.msra.mxu0 0.0
    %1112 = vmatprep.subr.mxu0 0.0
    %1113 = vmatpush2.msra.mxu0 0.0
    %1114 = vmatprep.subr.mxu0 0.0
    %1115 = vmatpush2.msra.mxu0 0.0
    %1116 = vmatprep.subr.mxu0 0.0
    %1117 = vmatpush2.msra.mxu0 0.0
    %1118 = vmatprep.mubr.f32.mxu0 0.0
    %1119 = vmatmul.mubr.f32.gmra.mxu0 %v649
    %v1120 = vpop.f32.mrf.mxu0
    %v1121 = vadd.f32 0.0, %v1120
    %v1122 = vpop.f32.mrf.mxu0
    %v1123 = vadd.f32 0.0, %v1122
    %1124 = vdwg.mxu0
    %v1129 = vrot.slane %v1050, 6
    %v1130 = vrot.slane %v1052, 6
    %v1131 = vrot.slane %v1121, 6
    %v1132 = vrot.slane %v1123, 6
    %v1137 = vadd.f32 %v200, %v1129
    %v1138 = vadd.f32 %v202, %v1130
    %v1139 = vadd.f32 %v277, %v1131
    %v1140 = vadd.f32 %v279, %v1132
    %v1141 = vxor.u32 %v1137, 2147483648
    %v1142 = vmul.f32 %v1141, 1.442695
    %v1143 = vpow.pop %v1142
    %v1144 = vadd.f32 %v1143, 1.0
    %v1145 = vrcp.pop %v1144
    %v1146 = vmul.f32 1.0, %v1145
    %v1147 = vxor.u32 %v1138, 2147483648
    %v1148 = vmul.f32 %v1147, 1.442695
    %v1149 = vpow.pop %v1148
    %v1150 = vadd.f32 %v1149, 1.0
    %v1151 = vrcp.pop %v1150
    %v1152 = vmul.f32 1.0, %v1151
    %v1153 = vtanh.pop %v1139
    %v1154 = vxor.u32 %v1140, 2147483648
    %v1155 = vmul.f32 %v1154, 1.442695
    %v1156 = vpow.pop %v1155
    %v1157 = vadd.f32 %v1156, 1.0
    %v1158 = vrcp.pop %v1157
    %v1159 = vmul.f32 1.0, %v1158
    %v1161 = vrot.slane %v647, 6
    %v1163 = vmul.f32 %v1152, %v1161
    %v1164 = vmul.f32 %v1146, %v1153
    %v1165 = vadd.f32 %v1163, %v1164
    %v1166 = vtanh.pop %v1165
    %v1167 = vmul.f32 %v1159, %v1166
    %1168 = vmatprep.subr.mxu0 %v476
    %1169 = vmatpush1.msra.mxu0 %v475
    %1170 = vmatprep.subr.mxu0 %v472
    %1171 = vmatpush1.msra.mxu0 %v471
    %1172 = vmatprep.subr.mxu0 %v468
    %1173 = vmatpush1.msra.mxu0 %v467
    %1174 = vmatprep.subr.mxu0 %v464
    %1175 = vmatpush1.msra.mxu0 %v463
    %1176 = vmatprep.subr.mxu0 %v460
    %1177 = vmatpush1.msra.mxu0 %v459
    %1178 = vmatprep.subr.mxu0 %v456
    %1179 = vmatpush1.msra.mxu0 %v455
    %1180 = vmatprep.subr.mxu0 %v452
    %1181 = vmatpush1.msra.mxu0 %v451
    %1182 = vmatprep.subr.mxu0 %v448
    %1183 = vmatpush1.msra.mxu0 %v447
    %1184 = vmatprep.subr.mxu0 %v444
    %1185 = vmatpush1.msra.mxu0 %v443
    %1186 = vmatprep.subr.mxu0 %v440
    %1187 = vmatpush1.msra.mxu0 %v439
    %1188 = vmatprep.subr.mxu0 %v436
    %1189 = vmatpush1.msra.mxu0 %v435
    %1190 = vmatprep.subr.mxu0 %v432
    %1191 = vmatpush1.msra.mxu0 %v431
    %1192 = vmatprep.subr.mxu0 %v428
    %1193 = vmatpush1.msra.mxu0 %v427
    %1194 = vmatprep.subr.mxu0 %v424
    %1195 = vmatpush1.msra.mxu0 %v423
    %1196 = vmatprep.subr.mxu0 %v420
    %1197 = vmatpush1.msra.mxu0 %v419
    %1198 = vmatprep.subr.mxu0 %v416
    %1199 = vmatpush1.msra.mxu0 %v415
    %1200 = vmatprep.subr.mxu0 0.0
    %1201 = vmatpush2.msra.mxu0 0.0
    %1202 = vmatprep.subr.mxu0 0.0
    %1203 = vmatpush2.msra.mxu0 0.0
    %1204 = vmatprep.subr.mxu0 0.0
    %1205 = vmatpush2.msra.mxu0 0.0
    %1206 = vmatprep.subr.mxu0 0.0
    %1207 = vmatpush2.msra.mxu0 0.0
    %1208 = vmatprep.subr.mxu0 0.0
    %1209 = vmatpush2.msra.mxu0 0.0
    %1210 = vmatprep.subr.mxu0 0.0
    %1211 = vmatpush2.msra.mxu0 0.0
    %1212 = vmatprep.subr.mxu0 0.0
    %1213 = vmatpush2.msra.mxu0 0.0
    %1214 = vmatprep.subr.mxu0 0.0
    %1215 = vmatpush2.msra.mxu0 0.0
    %1216 = vmatprep.subr.mxu0 0.0
    %1217 = vmatpush2.msra.mxu0 0.0
    %1218 = vmatprep.subr.mxu0 0.0
    %1219 = vmatpush2.msra.mxu0 0.0
    %1220 = vmatprep.subr.mxu0 0.0
    %1221 = vmatpush2.msra.mxu0 0.0
    %1222 = vmatprep.subr.mxu0 0.0
    %1223 = vmatpush2.msra.mxu0 0.0
    %1224 = vmatprep.subr.mxu0 0.0
    %1225 = vmatpush2.msra.mxu0 0.0
    %1226 = vmatprep.subr.mxu0 0.0
    %1227 = vmatpush2.msra.mxu0 0.0
    %1228 = vmatprep.subr.mxu0 0.0
    %1229 = vmatpush2.msra.mxu0 0.0
    %1230 = vmatprep.subr.mxu0 0.0
    %1231 = vmatpush2.msra.mxu0 0.0
    %1232 = vmatprep.mubr.f32.mxu0 0.0
    %1233 = vmatmul.mubr.f32.gmra.mxu0 %v982
    %v1234 = vpop.f32.mrf.mxu0
    %v1235 = vadd.f32 0.0, %v1234
    %v1236 = vpop.f32.mrf.mxu0
    %v1237 = vadd.f32 0.0, %v1236
    %1238 = vdwg.mxu0
    %1239 = vmatprep.subr.mxu0 %v478
    %1240 = vmatpush1.msra.mxu0 %v477
    %1241 = vmatprep.subr.mxu0 %v474
    %1242 = vmatpush1.msra.mxu0 %v473
    %1243 = vmatprep.subr.mxu0 %v470
    %1244 = vmatpush1.msra.mxu0 %v469
    %1245 = vmatprep.subr.mxu0 %v466
    %1246 = vmatpush1.msra.mxu0 %v465
    %1247 = vmatprep.subr.mxu0 %v462
    %1248 = vmatpush1.msra.mxu0 %v461
    %1249 = vmatprep.subr.mxu0 %v458
    %1250 = vmatpush1.msra.mxu0 %v457
    %1251 = vmatprep.subr.mxu0 %v454
    %1252 = vmatpush1.msra.mxu0 %v453
    %1253 = vmatprep.subr.mxu0 %v450
    %1254 = vmatpush1.msra.mxu0 %v449
    %1255 = vmatprep.subr.mxu0 %v446
    %1256 = vmatpush1.msra.mxu0 %v445
    %1257 = vmatprep.subr.mxu0 %v442
    %1258 = vmatpush1.msra.mxu0 %v441
    %1259 = vmatprep.subr.mxu0 %v438
    %1260 = vmatpush1.msra.mxu0 %v437
    %1261 = vmatprep.subr.mxu0 %v434
    %1262 = vmatpush1.msra.mxu0 %v433
    %1263 = vmatprep.subr.mxu0 %v430
    %1264 = vmatpush1.msra.mxu0 %v429
    %1265 = vmatprep.subr.mxu0 %v426
    %1266 = vmatpush1.msra.mxu0 %v425
    %1267 = vmatprep.subr.mxu0 %v422
    %1268 = vmatpush1.msra.mxu0 %v421
    %1269 = vmatprep.subr.mxu0 %v418
    %1270 = vmatpush1.msra.mxu0 %v417
    %1271 = vmatprep.subr.mxu0 0.0
    %1272 = vmatpush2.msra.mxu0 0.0
    %1273 = vmatprep.subr.mxu0 0.0
    %1274 = vmatpush2.msra.mxu0 0.0
    %1275 = vmatprep.subr.mxu0 0.0
    %1276 = vmatpush2.msra.mxu0 0.0
    %1277 = vmatprep.subr.mxu0 0.0
    %1278 = vmatpush2.msra.mxu0 0.0
    %1279 = vmatprep.subr.mxu0 0.0
    %1280 = vmatpush2.msra.mxu0 0.0
    %1281 = vmatprep.subr.mxu0 0.0
    %1282 = vmatpush2.msra.mxu0 0.0
    %1283 = vmatprep.subr.mxu0 0.0
    %1284 = vmatpush2.msra.mxu0 0.0
    %1285 = vmatprep.subr.mxu0 0.0
    %1286 = vmatpush2.msra.mxu0 0.0
    %1287 = vmatprep.subr.mxu0 0.0
    %1288 = vmatpush2.msra.mxu0 0.0
    %1289 = vmatprep.subr.mxu0 0.0
    %1290 = vmatpush2.msra.mxu0 0.0
    %1291 = vmatprep.subr.mxu0 0.0
    %1292 = vmatpush2.msra.mxu0 0.0
    %1293 = vmatprep.subr.mxu0 0.0
    %1294 = vmatpush2.msra.mxu0 0.0
    %1295 = vmatprep.subr.mxu0 0.0
    %1296 = vmatpush2.msra.mxu0 0.0
    %1297 = vmatprep.subr.mxu0 0.0
    %1298 = vmatpush2.msra.mxu0 0.0
    %1299 = vmatprep.subr.mxu0 0.0
    %1300 = vmatpush2.msra.mxu0 0.0
    %1301 = vmatprep.subr.mxu0 0.0
    %1302 = vmatpush2.msra.mxu0 0.0
    %1303 = vmatprep.mubr.f32.mxu0 0.0
    %1304 = vmatmul.mubr.f32.gmra.mxu0 %v982
    %v1305 = vpop.f32.mrf.mxu0
    %v1306 = vadd.f32 0.0, %v1305
    %v1307 = vpop.f32.mrf.mxu0
    %v1308 = vadd.f32 0.0, %v1307
    %1309 = vdwg.mxu0
    %v1311 = vrot.slane %v1167, 2
    %1313 = vmatprep.subr.mxu0 %v412
    %1314 = vmatpush1.msra.mxu0 %v411
    %1315 = vmatprep.subr.mxu0 %v408
    %1316 = vmatpush1.msra.mxu0 %v407
    %1317 = vmatprep.subr.mxu0 %v404
    %1318 = vmatpush1.msra.mxu0 %v403
    %1319 = vmatprep.subr.mxu0 %v400
    %1320 = vmatpush1.msra.mxu0 %v399
    %1321 = vmatprep.subr.mxu0 %v396
    %1322 = vmatpush1.msra.mxu0 %v395
    %1323 = vmatprep.subr.mxu0 %v392
    %1324 = vmatpush1.msra.mxu0 %v391
    %1325 = vmatprep.subr.mxu0 %v388
    %1326 = vmatpush1.msra.mxu0 %v387
    %1327 = vmatprep.subr.mxu0 %v384
    %1328 = vmatpush1.msra.mxu0 %v383
    %1329 = vmatprep.subr.mxu0 %v380
    %1330 = vmatpush1.msra.mxu0 %v379
    %1331 = vmatprep.subr.mxu0 %v376
    %1332 = vmatpush1.msra.mxu0 %v375
    %1333 = vmatprep.subr.mxu0 %v372
    %1334 = vmatpush1.msra.mxu0 %v371
    %1335 = vmatprep.subr.mxu0 %v368
    %1336 = vmatpush1.msra.mxu0 %v367
    %1337 = vmatprep.subr.mxu0 %v364
    %1338 = vmatpush1.msra.mxu0 %v363
    %1339 = vmatprep.subr.mxu0 %v360
    %1340 = vmatpush1.msra.mxu0 %v359
    %1341 = vmatprep.subr.mxu0 %v356
    %1342 = vmatpush1.msra.mxu0 %v355
    %1343 = vmatprep.subr.mxu0 %v352
    %1344 = vmatpush1.msra.mxu0 %v351
    %1345 = vmatprep.subr.mxu0 0.0
    %1346 = vmatpush2.msra.mxu0 0.0
    %1347 = vmatprep.subr.mxu0 0.0
    %1348 = vmatpush2.msra.mxu0 0.0
    %1349 = vmatprep.subr.mxu0 0.0
    %1350 = vmatpush2.msra.mxu0 0.0
    %1351 = vmatprep.subr.mxu0 0.0
    %1352 = vmatpush2.msra.mxu0 0.0
    %1353 = vmatprep.subr.mxu0 0.0
    %1354 = vmatpush2.msra.mxu0 0.0
    %1355 = vmatprep.subr.mxu0 0.0
    %1356 = vmatpush2.msra.mxu0 0.0
    %1357 = vmatprep.subr.mxu0 0.0
    %1358 = vmatpush2.msra.mxu0 0.0
    %1359 = vmatprep.subr.mxu0 0.0
    %1360 = vmatpush2.msra.mxu0 0.0
    %1361 = vmatprep.subr.mxu0 0.0
    %1362 = vmatpush2.msra.mxu0 0.0
    %1363 = vmatprep.subr.mxu0 0.0
    %1364 = vmatpush2.msra.mxu0 0.0
    %1365 = vmatprep.subr.mxu0 0.0
    %1366 = vmatpush2.msra.mxu0 0.0
    %1367 = vmatprep.subr.mxu0 0.0
    %1368 = vmatpush2.msra.mxu0 0.0
    %1369 = vmatprep.subr.mxu0 0.0
    %1370 = vmatpush2.msra.mxu0 0.0
    %1371 = vmatprep.subr.mxu0 0.0
    %1372 = vmatpush2.msra.mxu0 0.0
    %1373 = vmatprep.subr.mxu0 0.0
    %1374 = vmatpush2.msra.mxu0 0.0
    %1375 = vmatprep.subr.mxu0 0.0
    %1376 = vmatpush2.msra.mxu0 0.0
    %1377 = vmatprep.mubr.f32.mxu0 0.0
    %1378 = vmatmul.mubr.f32.gmra.mxu0 %v1311
    %v1379 = vpop.f32.mrf.mxu0
    %v1380 = vadd.f32 %v1235, %v1379
    %v1381 = vpop.f32.mrf.mxu0
    %v1382 = vadd.f32 %v1237, %v1381
    %1383 = vdwg.mxu0
    %1384 = vmatprep.subr.mxu0 %v414
    %1385 = vmatpush1.msra.mxu0 %v413
    %1386 = vmatprep.subr.mxu0 %v410
    %1387 = vmatpush1.msra.mxu0 %v409
    %1388 = vmatprep.subr.mxu0 %v406
    %1389 = vmatpush1.msra.mxu0 %v405
    %1390 = vmatprep.subr.mxu0 %v402
    %1391 = vmatpush1.msra.mxu0 %v401
    %1392 = vmatprep.subr.mxu0 %v398
    %1393 = vmatpush1.msra.mxu0 %v397
    %1394 = vmatprep.subr.mxu0 %v394
    %1395 = vmatpush1.msra.mxu0 %v393
    %1396 = vmatprep.subr.mxu0 %v390
    %1397 = vmatpush1.msra.mxu0 %v389
    %1398 = vmatprep.subr.mxu0 %v386
    %1399 = vmatpush1.msra.mxu0 %v385
    %1400 = vmatprep.subr.mxu0 %v382
    %1401 = vmatpush1.msra.mxu0 %v381
    %1402 = vmatprep.subr.mxu0 %v378
    %1403 = vmatpush1.msra.mxu0 %v377
    %1404 = vmatprep.subr.mxu0 %v374
    %1405 = vmatpush1.msra.mxu0 %v373
    %1406 = vmatprep.subr.mxu0 %v370
    %1407 = vmatpush1.msra.mxu0 %v369
    %1408 = vmatprep.subr.mxu0 %v366
    %1409 = vmatpush1.msra.mxu0 %v365
    %1410 = vmatprep.subr.mxu0 %v362
    %1411 = vmatpush1.msra.mxu0 %v361
    %1412 = vmatprep.subr.mxu0 %v358
    %1413 = vmatpush1.msra.mxu0 %v357
    %1414 = vmatprep.subr.mxu0 %v354
    %1415 = vmatpush1.msra.mxu0 %v353
    %1416 = vmatprep.subr.mxu0 0.0
    %1417 = vmatpush2.msra.mxu0 0.0
    %1418 = vmatprep.subr.mxu0 0.0
    %1419 = vmatpush2.msra.mxu0 0.0
    %1420 = vmatprep.subr.mxu0 0.0
    %1421 = vmatpush2.msra.mxu0 0.0
    %1422 = vmatprep.subr.mxu0 0.0
    %1423 = vmatpush2.msra.mxu0 0.0
    %1424 = vmatprep.subr.mxu0 0.0
    %1425 = vmatpush2.msra.mxu0 0.0
    %1426 = vmatprep.subr.mxu0 0.0
    %1427 = vmatpush2.msra.mxu0 0.0
    %1428 = vmatprep.subr.mxu0 0.0
    %1429 = vmatpush2.msra.mxu0 0.0
    %1430 = vmatprep.subr.mxu0 0.0
    %1431 = vmatpush2.msra.mxu0 0.0
    %1432 = vmatprep.subr.mxu0 0.0
    %1433 = vmatpush2.msra.mxu0 0.0
    %1434 = vmatprep.subr.mxu0 0.0
    %1435 = vmatpush2.msra.mxu0 0.0
    %1436 = vmatprep.subr.mxu0 0.0
    %1437 = vmatpush2.msra.mxu0 0.0
    %1438 = vmatprep.subr.mxu0 0.0
    %1439 = vmatpush2.msra.mxu0 0.0
    %1440 = vmatprep.subr.mxu0 0.0
    %1441 = vmatpush2.msra.mxu0 0.0
    %1442 = vmatprep.subr.mxu0 0.0
    %1443 = vmatpush2.msra.mxu0 0.0
    %1444 = vmatprep.subr.mxu0 0.0
    %1445 = vmatpush2.msra.mxu0 0.0
    %1446 = vmatprep.subr.mxu0 0.0
    %1447 = vmatpush2.msra.mxu0 0.0
    %1448 = vmatprep.mubr.f32.mxu0 0.0
    %1449 = vmatmul.mubr.f32.gmra.mxu0 %v1311
    %v1450 = vpop.f32.mrf.mxu0
    %v1451 = vadd.f32 %v1306, %v1450
    %v1452 = vpop.f32.mrf.mxu0
    %v1453 = vadd.f32 %v1308, %v1452
    %1454 = vdwg.mxu0
    %v1455 = vadd.f32 %v1380, %v938
    %v1456 = vadd.f32 %v1382, %v942
    %v1457 = vadd.f32 %v1451, %v946
    %v1458 = vadd.f32 %v1453, %v950
    %v1459 = vxor.u32 %v1455, 2147483648
    %v1460 = vmul.f32 %v1459, 1.442695
    %v1461 = vpow.pop %v1460
    %v1462 = vadd.f32 %v1461, 1.0
    %v1463 = vrcp.pop %v1462
    %v1464 = vmul.f32 1.0, %v1463
    %v1465 = vxor.u32 %v1456, 2147483648
    %v1466 = vmul.f32 %v1465, 1.442695
    %v1467 = vpow.pop %v1466
    %v1468 = vadd.f32 %v1467, 1.0
    %v1469 = vrcp.pop %v1468
    %v1470 = vmul.f32 1.0, %v1469
    %v1471 = vtanh.pop %v1457
    %v1472 = vxor.u32 %v1458, 2147483648
    %v1473 = vmul.f32 %v1472, 1.442695
    %v1474 = vpow.pop %v1473
    %v1475 = vadd.f32 %v1474, 1.0
    %v1476 = vrcp.pop %v1475
    %v1477 = vmul.f32 1.0, %v1476
    %v1478 = vmul.f32 %v1470, %v980
    %v1479 = vmul.f32 %v1464, %v1471
    %v1480 = vadd.f32 %v1478, %v1479
    %v1481 = vtanh.pop %v1480
    %v1482 = vmul.f32 %v1477, %v1481
    %1483 = vmatprep.subr.mxu0 %v348
    %1484 = vmatpush1.msra.mxu0 %v347
    %1485 = vmatprep.subr.mxu0 %v344
    %1486 = vmatpush1.msra.mxu0 %v343
    %1487 = vmatprep.subr.mxu0 %v340
    %1488 = vmatpush1.msra.mxu0 %v339
    %1489 = vmatprep.subr.mxu0 %v336
    %1490 = vmatpush1.msra.mxu0 %v335
    %1491 = vmatprep.subr.mxu0 %v332
    %1492 = vmatpush1.msra.mxu0 %v331
    %1493 = vmatprep.subr.mxu0 %v328
    %1494 = vmatpush1.msra.mxu0 %v327
    %1495 = vmatprep.subr.mxu0 %v324
    %1496 = vmatpush1.msra.mxu0 %v323
    %1497 = vmatprep.subr.mxu0 %v320
    %1498 = vmatpush1.msra.mxu0 %v319
    %1499 = vmatprep.subr.mxu0 %v316
    %1500 = vmatpush1.msra.mxu0 %v315
    %1501 = vmatprep.subr.mxu0 %v312
    %1502 = vmatpush1.msra.mxu0 %v311
    %1503 = vmatprep.subr.mxu0 %v308
    %1504 = vmatpush1.msra.mxu0 %v307
    %1505 = vmatprep.subr.mxu0 %v304
    %1506 = vmatpush1.msra.mxu0 %v303
    %1507 = vmatprep.subr.mxu0 %v300
    %1508 = vmatpush1.msra.mxu0 %v299
    %1509 = vmatprep.subr.mxu0 %v296
    %1510 = vmatpush1.msra.mxu0 %v295
    %1511 = vmatprep.subr.mxu0 %v292
    %1512 = vmatpush1.msra.mxu0 %v291
    %1513 = vmatprep.subr.mxu0 %v288
    %1514 = vmatpush1.msra.mxu0 %v287
    %1515 = vmatprep.subr.mxu0 0.0
    %1516 = vmatpush2.msra.mxu0 0.0
    %1517 = vmatprep.subr.mxu0 0.0
    %1518 = vmatpush2.msra.mxu0 0.0
    %1519 = vmatprep.subr.mxu0 0.0
    %1520 = vmatpush2.msra.mxu0 0.0
    %1521 = vmatprep.subr.mxu0 0.0
    %1522 = vmatpush2.msra.mxu0 0.0
    %1523 = vmatprep.subr.mxu0 0.0
    %1524 = vmatpush2.msra.mxu0 0.0
    %1525 = vmatprep.subr.mxu0 0.0
    %1526 = vmatpush2.msra.mxu0 0.0
    %1527 = vmatprep.subr.mxu0 0.0
    %1528 = vmatpush2.msra.mxu0 0.0
    %1529 = vmatprep.subr.mxu0 0.0
    %1530 = vmatpush2.msra.mxu0 0.0
    %1531 = vmatprep.subr.mxu0 0.0
    %1532 = vmatpush2.msra.mxu0 0.0
    %1533 = vmatprep.subr.mxu0 0.0
    %1534 = vmatpush2.msra.mxu0 0.0
    %1535 = vmatprep.subr.mxu0 0.0
    %1536 = vmatpush2.msra.mxu0 0.0
    %1537 = vmatprep.subr.mxu0 0.0
    %1538 = vmatpush2.msra.mxu0 0.0
    %1539 = vmatprep.subr.mxu0 0.0
    %1540 = vmatpush2.msra.mxu0 0.0
    %1541 = vmatprep.subr.mxu0 0.0
    %1542 = vmatpush2.msra.mxu0 0.0
    %1543 = vmatprep.subr.mxu0 0.0
    %1544 = vmatpush2.msra.mxu0 0.0
    %1545 = vmatprep.subr.mxu0 0.0
    %1546 = vmatpush2.msra.mxu0 0.0
    %1547 = vmatprep.mubr.f32.mxu0 0.0
    %1548 = vmatmul.mubr.f32.gmra.mxu0 %v1311
    %v1549 = vpop.f32.mrf.mxu0
    %v1550 = vadd.f32 0.0, %v1549
    %v1551 = vpop.f32.mrf.mxu0
    %v1552 = vadd.f32 0.0, %v1551
    %1553 = vdwg.mxu0
    %1554 = vmatprep.subr.mxu0 %v350
    %1555 = vmatpush1.msra.mxu0 %v349
    %1556 = vmatprep.subr.mxu0 %v346
    %1557 = vmatpush1.msra.mxu0 %v345
    %1558 = vmatprep.subr.mxu0 %v342
    %1559 = vmatpush1.msra.mxu0 %v341
    %1560 = vmatprep.subr.mxu0 %v338
    %1561 = vmatpush1.msra.mxu0 %v337
    %1562 = vmatprep.subr.mxu0 %v334
    %1563 = vmatpush1.msra.mxu0 %v333
    %1564 = vmatprep.subr.mxu0 %v330
    %1565 = vmatpush1.msra.mxu0 %v329
    %1566 = vmatprep.subr.mxu0 %v326
    %1567 = vmatpush1.msra.mxu0 %v325
    %1568 = vmatprep.subr.mxu0 %v322
    %1569 = vmatpush1.msra.mxu0 %v321
    %1570 = vmatprep.subr.mxu0 %v318
    %1571 = vmatpush1.msra.mxu0 %v317
    %1572 = vmatprep.subr.mxu0 %v314
    %1573 = vmatpush1.msra.mxu0 %v313
    %1574 = vmatprep.subr.mxu0 %v310
    %1575 = vmatpush1.msra.mxu0 %v309
    %1576 = vmatprep.subr.mxu0 %v306
    %1577 = vmatpush1.msra.mxu0 %v305
    %1578 = vmatprep.subr.mxu0 %v302
    %1579 = vmatpush1.msra.mxu0 %v301
    %1580 = vmatprep.subr.mxu0 %v298
    %1581 = vmatpush1.msra.mxu0 %v297
    %1582 = vmatprep.subr.mxu0 %v294
    %1583 = vmatpush1.msra.mxu0 %v293
    %1584 = vmatprep.subr.mxu0 %v290
    %1585 = vmatpush1.msra.mxu0 %v289
    %1586 = vmatprep.subr.mxu0 0.0
    %1587 = vmatpush2.msra.mxu0 0.0
    %1588 = vmatprep.subr.mxu0 0.0
    %1589 = vmatpush2.msra.mxu0 0.0
    %1590 = vmatprep.subr.mxu0 0.0
    %1591 = vmatpush2.msra.mxu0 0.0
    %1592 = vmatprep.subr.mxu0 0.0
    %1593 = vmatpush2.msra.mxu0 0.0
    %1594 = vmatprep.subr.mxu0 0.0
    %1595 = vmatpush2.msra.mxu0 0.0
    %1596 = vmatprep.subr.mxu0 0.0
    %1597 = vmatpush2.msra.mxu0 0.0
    %1598 = vmatprep.subr.mxu0 0.0
    %1599 = vmatpush2.msra.mxu0 0.0
    %1600 = vmatprep.subr.mxu0 0.0
    %1601 = vmatpush2.msra.mxu0 0.0
    %1602 = vmatprep.subr.mxu0 0.0
    %1603 = vmatpush2.msra.mxu0 0.0
    %1604 = vmatprep.subr.mxu0 0.0
    %1605 = vmatpush2.msra.mxu0 0.0
    %1606 = vmatprep.subr.mxu0 0.0
    %1607 = vmatpush2.msra.mxu0 0.0
    %1608 = vmatprep.subr.mxu0 0.0
    %1609 = vmatpush2.msra.mxu0 0.0
    %1610 = vmatprep.subr.mxu0 0.0
    %1611 = vmatpush2.msra.mxu0 0.0
    %1612 = vmatprep.subr.mxu0 0.0
    %1613 = vmatpush2.msra.mxu0 0.0
    %1614 = vmatprep.subr.mxu0 0.0
    %1615 = vmatpush2.msra.mxu0 0.0
    %1616 = vmatprep.subr.mxu0 0.0
    %1617 = vmatpush2.msra.mxu0 0.0
    %1618 = vmatprep.mubr.f32.mxu0 0.0
    %1619 = vmatmul.mubr.f32.gmra.mxu0 %v1311
    %v1620 = vpop.f32.mrf.mxu0
    %v1621 = vadd.f32 0.0, %v1620
    %v1622 = vpop.f32.mrf.mxu0
    %v1623 = vadd.f32 0.0, %v1622
    %1624 = vdwg.mxu0
    %v1629 = vrot.slane %v1550, 4
    %v1630 = vrot.slane %v1552, 4
    %v1631 = vrot.slane %v1621, 4
    %v1632 = vrot.slane %v1623, 4
    %v1637 = vadd.f32 %v200, %v1629
    %v1638 = vadd.f32 %v202, %v1630
    %v1639 = vadd.f32 %v277, %v1631
    %v1640 = vadd.f32 %v279, %v1632
    %v1641 = vxor.u32 %v1637, 2147483648
    %v1642 = vmul.f32 %v1641, 1.442695
    %v1643 = vpow.pop %v1642
    %v1644 = vadd.f32 %v1643, 1.0
    %v1645 = vrcp.pop %v1644
    %v1646 = vmul.f32 1.0, %v1645
    %v1647 = vxor.u32 %v1638, 2147483648
    %v1648 = vmul.f32 %v1647, 1.442695
    %v1649 = vpow.pop %v1648
    %v1650 = vadd.f32 %v1649, 1.0
    %v1651 = vrcp.pop %v1650
    %v1652 = vmul.f32 1.0, %v1651
    %v1653 = vtanh.pop %v1639
    %v1654 = vxor.u32 %v1640, 2147483648
    %v1655 = vmul.f32 %v1654, 1.442695
    %v1656 = vpow.pop %v1655
    %v1657 = vadd.f32 %v1656, 1.0
    %v1658 = vrcp.pop %v1657
    %v1659 = vmul.f32 1.0, %v1658
    %v1661 = vrot.slane %v1165, 6
    %v1663 = vmul.f32 %v1652, %v1661
    %v1664 = vmul.f32 %v1646, %v1653
    %v1665 = vadd.f32 %v1663, %v1664
    %v1666 = vtanh.pop %v1665
    %v1667 = vmul.f32 %v1659, %v1666
    %1668 = vmatprep.subr.mxu0 %v476
    %1669 = vmatpush1.msra.mxu0 %v475
    %1670 = vmatprep.subr.mxu0 %v472
    %1671 = vmatpush1.msra.mxu0 %v471
    %1672 = vmatprep.subr.mxu0 %v468
    %1673 = vmatpush1.msra.mxu0 %v467
    %1674 = vmatprep.subr.mxu0 %v464
    %1675 = vmatpush1.msra.mxu0 %v463
    %1676 = vmatprep.subr.mxu0 %v460
    %1677 = vmatpush1.msra.mxu0 %v459
    %1678 = vmatprep.subr.mxu0 %v456
    %1679 = vmatpush1.msra.mxu0 %v455
    %1680 = vmatprep.subr.mxu0 %v452
    %1681 = vmatpush1.msra.mxu0 %v451
    %1682 = vmatprep.subr.mxu0 %v448
    %1683 = vmatpush1.msra.mxu0 %v447
    %1684 = vmatprep.subr.mxu0 %v444
    %1685 = vmatpush1.msra.mxu0 %v443
    %1686 = vmatprep.subr.mxu0 %v440
    %1687 = vmatpush1.msra.mxu0 %v439
    %1688 = vmatprep.subr.mxu0 %v436
    %1689 = vmatpush1.msra.mxu0 %v435
    %1690 = vmatprep.subr.mxu0 %v432
    %1691 = vmatpush1.msra.mxu0 %v431
    %1692 = vmatprep.subr.mxu0 %v428
    %1693 = vmatpush1.msra.mxu0 %v427
    %1694 = vmatprep.subr.mxu0 %v424
    %1695 = vmatpush1.msra.mxu0 %v423
    %1696 = vmatprep.subr.mxu0 %v420
    %1697 = vmatpush1.msra.mxu0 %v419
    %1698 = vmatprep.subr.mxu0 %v416
    %1699 = vmatpush1.msra.mxu0 %v415
    %1700 = vmatprep.subr.mxu0 0.0
    %1701 = vmatpush2.msra.mxu0 0.0
    %1702 = vmatprep.subr.mxu0 0.0
    %1703 = vmatpush2.msra.mxu0 0.0
    %1704 = vmatprep.subr.mxu0 0.0
    %1705 = vmatpush2.msra.mxu0 0.0
    %1706 = vmatprep.subr.mxu0 0.0
    %1707 = vmatpush2.msra.mxu0 0.0
    %1708 = vmatprep.subr.mxu0 0.0
    %1709 = vmatpush2.msra.mxu0 0.0
    %1710 = vmatprep.subr.mxu0 0.0
    %1711 = vmatpush2.msra.mxu0 0.0
    %1712 = vmatprep.subr.mxu0 0.0
    %1713 = vmatpush2.msra.mxu0 0.0
    %1714 = vmatprep.subr.mxu0 0.0
    %1715 = vmatpush2.msra.mxu0 0.0
    %1716 = vmatprep.subr.mxu0 0.0
    %1717 = vmatpush2.msra.mxu0 0.0
    %1718 = vmatprep.subr.mxu0 0.0
    %1719 = vmatpush2.msra.mxu0 0.0
    %1720 = vmatprep.subr.mxu0 0.0
    %1721 = vmatpush2.msra.mxu0 0.0
    %1722 = vmatprep.subr.mxu0 0.0
    %1723 = vmatpush2.msra.mxu0 0.0
    %1724 = vmatprep.subr.mxu0 0.0
    %1725 = vmatpush2.msra.mxu0 0.0
    %1726 = vmatprep.subr.mxu0 0.0
    %1727 = vmatpush2.msra.mxu0 0.0
    %1728 = vmatprep.subr.mxu0 0.0
    %1729 = vmatpush2.msra.mxu0 0.0
    %1730 = vmatprep.subr.mxu0 0.0
    %1731 = vmatpush2.msra.mxu0 0.0
    %1732 = vmatprep.mubr.f32.mxu0 0.0
    %1733 = vmatmul.mubr.f32.gmra.mxu0 %v1482
    %v1734 = vpop.f32.mrf.mxu0
    %v1735 = vadd.f32 0.0, %v1734
    %v1736 = vpop.f32.mrf.mxu0
    %v1737 = vadd.f32 0.0, %v1736
    %1738 = vdwg.mxu0
    %1739 = vmatprep.subr.mxu0 %v478
    %1740 = vmatpush1.msra.mxu0 %v477
    %1741 = vmatprep.subr.mxu0 %v474
    %1742 = vmatpush1.msra.mxu0 %v473
    %1743 = vmatprep.subr.mxu0 %v470
    %1744 = vmatpush1.msra.mxu0 %v469
    %1745 = vmatprep.subr.mxu0 %v466
    %1746 = vmatpush1.msra.mxu0 %v465
    %1747 = vmatprep.subr.mxu0 %v462
    %1748 = vmatpush1.msra.mxu0 %v461
    %1749 = vmatprep.subr.mxu0 %v458
    %1750 = vmatpush1.msra.mxu0 %v457
    %1751 = vmatprep.subr.mxu0 %v454
    %1752 = vmatpush1.msra.mxu0 %v453
    %1753 = vmatprep.subr.mxu0 %v450
    %1754 = vmatpush1.msra.mxu0 %v449
    %1755 = vmatprep.subr.mxu0 %v446
    %1756 = vmatpush1.msra.mxu0 %v445
    %1757 = vmatprep.subr.mxu0 %v442
    %1758 = vmatpush1.msra.mxu0 %v441
    %1759 = vmatprep.subr.mxu0 %v438
    %1760 = vmatpush1.msra.mxu0 %v437
    %1761 = vmatprep.subr.mxu0 %v434
    %1762 = vmatpush1.msra.mxu0 %v433
    %1763 = vmatprep.subr.mxu0 %v430
    %1764 = vmatpush1.msra.mxu0 %v429
    %1765 = vmatprep.subr.mxu0 %v426
    %1766 = vmatpush1.msra.mxu0 %v425
    %1767 = vmatprep.subr.mxu0 %v422
    %1768 = vmatpush1.msra.mxu0 %v421
    %1769 = vmatprep.subr.mxu0 %v418
    %1770 = vmatpush1.msra.mxu0 %v417
    %1771 = vmatprep.subr.mxu0 0.0
    %1772 = vmatpush2.msra.mxu0 0.0
    %1773 = vmatprep.subr.mxu0 0.0
    %1774 = vmatpush2.msra.mxu0 0.0
    %1775 = vmatprep.subr.mxu0 0.0
    %1776 = vmatpush2.msra.mxu0 0.0
    %1777 = vmatprep.subr.mxu0 0.0
    %1778 = vmatpush2.msra.mxu0 0.0
    %1779 = vmatprep.subr.mxu0 0.0
    %1780 = vmatpush2.msra.mxu0 0.0
    %1781 = vmatprep.subr.mxu0 0.0
    %1782 = vmatpush2.msra.mxu0 0.0
    %1783 = vmatprep.subr.mxu0 0.0
    %1784 = vmatpush2.msra.mxu0 0.0
    %1785 = vmatprep.subr.mxu0 0.0
    %1786 = vmatpush2.msra.mxu0 0.0
    %1787 = vmatprep.subr.mxu0 0.0
    %1788 = vmatpush2.msra.mxu0 0.0
    %1789 = vmatprep.subr.mxu0 0.0
    %1790 = vmatpush2.msra.mxu0 0.0
    %1791 = vmatprep.subr.mxu0 0.0
    %1792 = vmatpush2.msra.mxu0 0.0
    %1793 = vmatprep.subr.mxu0 0.0
    %1794 = vmatpush2.msra.mxu0 0.0
    %1795 = vmatprep.subr.mxu0 0.0
    %1796 = vmatpush2.msra.mxu0 0.0
    %1797 = vmatprep.subr.mxu0 0.0
    %1798 = vmatpush2.msra.mxu0 0.0
    %1799 = vmatprep.subr.mxu0 0.0
    %1800 = vmatpush2.msra.mxu0 0.0
    %1801 = vmatprep.subr.mxu0 0.0
    %1802 = vmatpush2.msra.mxu0 0.0
    %1803 = vmatprep.mubr.f32.mxu0 0.0
    %1804 = vmatmul.mubr.f32.gmra.mxu0 %v1482
    %v1805 = vpop.f32.mrf.mxu0
    %v1806 = vadd.f32 0.0, %v1805
    %v1807 = vpop.f32.mrf.mxu0
    %v1808 = vadd.f32 0.0, %v1807
    %1809 = vdwg.mxu0
    %v1811 = vrot.slane %v1667, 4
    %1813 = vmatprep.subr.mxu0 %v412
    %1814 = vmatpush1.msra.mxu0 %v411
    %1815 = vmatprep.subr.mxu0 %v408
    %1816 = vmatpush1.msra.mxu0 %v407
    %1817 = vmatprep.subr.mxu0 %v404
    %1818 = vmatpush1.msra.mxu0 %v403
    %1819 = vmatprep.subr.mxu0 %v400
    %1820 = vmatpush1.msra.mxu0 %v399
    %1821 = vmatprep.subr.mxu0 %v396
    %1822 = vmatpush1.msra.mxu0 %v395
    %1823 = vmatprep.subr.mxu0 %v392
    %1824 = vmatpush1.msra.mxu0 %v391
    %1825 = vmatprep.subr.mxu0 %v388
    %1826 = vmatpush1.msra.mxu0 %v387
    %1827 = vmatprep.subr.mxu0 %v384
    %1828 = vmatpush1.msra.mxu0 %v383
    %1829 = vmatprep.subr.mxu0 %v380
    %1830 = vmatpush1.msra.mxu0 %v379
    %1831 = vmatprep.subr.mxu0 %v376
    %1832 = vmatpush1.msra.mxu0 %v375
    %1833 = vmatprep.subr.mxu0 %v372
    %1834 = vmatpush1.msra.mxu0 %v371
    %1835 = vmatprep.subr.mxu0 %v368
    %1836 = vmatpush1.msra.mxu0 %v367
    %1837 = vmatprep.subr.mxu0 %v364
    %1838 = vmatpush1.msra.mxu0 %v363
    %1839 = vmatprep.subr.mxu0 %v360
    %1840 = vmatpush1.msra.mxu0 %v359
    %1841 = vmatprep.subr.mxu0 %v356
    %1842 = vmatpush1.msra.mxu0 %v355
    %1843 = vmatprep.subr.mxu0 %v352
    %1844 = vmatpush1.msra.mxu0 %v351
    %1845 = vmatprep.subr.mxu0 0.0
    %1846 = vmatpush2.msra.mxu0 0.0
    %1847 = vmatprep.subr.mxu0 0.0
    %1848 = vmatpush2.msra.mxu0 0.0
    %1849 = vmatprep.subr.mxu0 0.0
    %1850 = vmatpush2.msra.mxu0 0.0
    %1851 = vmatprep.subr.mxu0 0.0
    %1852 = vmatpush2.msra.mxu0 0.0
    %1853 = vmatprep.subr.mxu0 0.0
    %1854 = vmatpush2.msra.mxu0 0.0
    %1855 = vmatprep.subr.mxu0 0.0
    %1856 = vmatpush2.msra.mxu0 0.0
    %1857 = vmatprep.subr.mxu0 0.0
    %1858 = vmatpush2.msra.mxu0 0.0
    %1859 = vmatprep.subr.mxu0 0.0
    %1860 = vmatpush2.msra.mxu0 0.0
    %1861 = vmatprep.subr.mxu0 0.0
    %1862 = vmatpush2.msra.mxu0 0.0
    %1863 = vmatprep.subr.mxu0 0.0
    %1864 = vmatpush2.msra.mxu0 0.0
    %1865 = vmatprep.subr.mxu0 0.0
    %1866 = vmatpush2.msra.mxu0 0.0
    %1867 = vmatprep.subr.mxu0 0.0
    %1868 = vmatpush2.msra.mxu0 0.0
    %1869 = vmatprep.subr.mxu0 0.0
    %1870 = vmatpush2.msra.mxu0 0.0
    %1871 = vmatprep.subr.mxu0 0.0
    %1872 = vmatpush2.msra.mxu0 0.0
    %1873 = vmatprep.subr.mxu0 0.0
    %1874 = vmatpush2.msra.mxu0 0.0
    %1875 = vmatprep.subr.mxu0 0.0
    %1876 = vmatpush2.msra.mxu0 0.0
    %1877 = vmatprep.mubr.f32.mxu0 0.0
    %1878 = vmatmul.mubr.f32.gmra.mxu0 %v1811
    %v1879 = vpop.f32.mrf.mxu0
    %v1880 = vadd.f32 %v1735, %v1879
    %v1881 = vpop.f32.mrf.mxu0
    %v1882 = vadd.f32 %v1737, %v1881
    %1883 = vdwg.mxu0
    %1884 = vmatprep.subr.mxu0 %v414
    %1885 = vmatpush1.msra.mxu0 %v413
    %1886 = vmatprep.subr.mxu0 %v410
    %1887 = vmatpush1.msra.mxu0 %v409
    %1888 = vmatprep.subr.mxu0 %v406
    %1889 = vmatpush1.msra.mxu0 %v405
    %1890 = vmatprep.subr.mxu0 %v402
    %1891 = vmatpush1.msra.mxu0 %v401
    %1892 = vmatprep.subr.mxu0 %v398
    %1893 = vmatpush1.msra.mxu0 %v397
    %1894 = vmatprep.subr.mxu0 %v394
    %1895 = vmatpush1.msra.mxu0 %v393
    %1896 = vmatprep.subr.mxu0 %v390
    %1897 = vmatpush1.msra.mxu0 %v389
    %1898 = vmatprep.subr.mxu0 %v386
    %1899 = vmatpush1.msra.mxu0 %v385
    %1900 = vmatprep.subr.mxu0 %v382
    %1901 = vmatpush1.msra.mxu0 %v381
    %1902 = vmatprep.subr.mxu0 %v378
    %1903 = vmatpush1.msra.mxu0 %v377
    %1904 = vmatprep.subr.mxu0 %v374
    %1905 = vmatpush1.msra.mxu0 %v373
    %1906 = vmatprep.subr.mxu0 %v370
    %1907 = vmatpush1.msra.mxu0 %v369
    %1908 = vmatprep.subr.mxu0 %v366
    %1909 = vmatpush1.msra.mxu0 %v365
    %1910 = vmatprep.subr.mxu0 %v362
    %1911 = vmatpush1.msra.mxu0 %v361
    %1912 = vmatprep.subr.mxu0 %v358
    %1913 = vmatpush1.msra.mxu0 %v357
    %1914 = vmatprep.subr.mxu0 %v354
    %1915 = vmatpush1.msra.mxu0 %v353
    %1916 = vmatprep.subr.mxu0 0.0
    %1917 = vmatpush2.msra.mxu0 0.0
    %1918 = vmatprep.subr.mxu0 0.0
    %1919 = vmatpush2.msra.mxu0 0.0
    %1920 = vmatprep.subr.mxu0 0.0
    %1921 = vmatpush2.msra.mxu0 0.0
    %1922 = vmatprep.subr.mxu0 0.0
    %1923 = vmatpush2.msra.mxu0 0.0
    %1924 = vmatprep.subr.mxu0 0.0
    %1925 = vmatpush2.msra.mxu0 0.0
    %1926 = vmatprep.subr.mxu0 0.0
    %1927 = vmatpush2.msra.mxu0 0.0
    %1928 = vmatprep.subr.mxu0 0.0
    %1929 = vmatpush2.msra.mxu0 0.0
    %1930 = vmatprep.subr.mxu0 0.0
    %1931 = vmatpush2.msra.mxu0 0.0
    %1932 = vmatprep.subr.mxu0 0.0
    %1933 = vmatpush2.msra.mxu0 0.0
    %1934 = vmatprep.subr.mxu0 0.0
    %1935 = vmatpush2.msra.mxu0 0.0
    %1936 = vmatprep.subr.mxu0 0.0
    %1937 = vmatpush2.msra.mxu0 0.0
    %1938 = vmatprep.subr.mxu0 0.0
    %1939 = vmatpush2.msra.mxu0 0.0
    %1940 = vmatprep.subr.mxu0 0.0
    %1941 = vmatpush2.msra.mxu0 0.0
    %1942 = vmatprep.subr.mxu0 0.0
    %1943 = vmatpush2.msra.mxu0 0.0
    %1944 = vmatprep.subr.mxu0 0.0
    %1945 = vmatpush2.msra.mxu0 0.0
    %1946 = vmatprep.subr.mxu0 0.0
    %1947 = vmatpush2.msra.mxu0 0.0
    %1948 = vmatprep.mubr.f32.mxu0 0.0
    %1949 = vmatmul.mubr.f32.gmra.mxu0 %v1811
    %v1950 = vpop.f32.mrf.mxu0
    %v1951 = vadd.f32 %v1806, %v1950
    %v1952 = vpop.f32.mrf.mxu0
    %v1953 = vadd.f32 %v1808, %v1952
    %1954 = vdwg.mxu0
    %v1955 = vadd.f32 %v1880, %v938
    %v1956 = vadd.f32 %v1882, %v942
    %v1957 = vadd.f32 %v1951, %v946
    %v1958 = vadd.f32 %v1953, %v950
    %v1959 = vxor.u32 %v1955, 2147483648
    %v1960 = vmul.f32 %v1959, 1.442695
    %v1961 = vpow.pop %v1960
    %v1962 = vadd.f32 %v1961, 1.0
    %v1963 = vrcp.pop %v1962
    %v1964 = vmul.f32 1.0, %v1963
    %v1965 = vxor.u32 %v1956, 2147483648
    %v1966 = vmul.f32 %v1965, 1.442695
    %v1967 = vpow.pop %v1966
    %v1968 = vadd.f32 %v1967, 1.0
    %v1969 = vrcp.pop %v1968
    %v1970 = vmul.f32 1.0, %v1969
    %v1971 = vtanh.pop %v1957
    %v1972 = vxor.u32 %v1958, 2147483648
    %v1973 = vmul.f32 %v1972, 1.442695
    %v1974 = vpow.pop %v1973
    %v1975 = vadd.f32 %v1974, 1.0
    %v1976 = vrcp.pop %v1975
    %v1977 = vmul.f32 1.0, %v1976
    %v1978 = vmul.f32 %v1970, %v1480
    %v1979 = vmul.f32 %v1964, %v1971
    %v1980 = vadd.f32 %v1978, %v1979
    %v1981 = vtanh.pop %v1980
    %v1982 = vmul.f32 %v1977, %v1981
    %1983 = vmatprep.subr.mxu0 %v348
    %1984 = vmatpush1.msra.mxu0 %v347
    %1985 = vmatprep.subr.mxu0 %v344
    %1986 = vmatpush1.msra.mxu0 %v343
    %1987 = vmatprep.subr.mxu0 %v340
    %1988 = vmatpush1.msra.mxu0 %v339
    %1989 = vmatprep.subr.mxu0 %v336
    %1990 = vmatpush1.msra.mxu0 %v335
    %1991 = vmatprep.subr.mxu0 %v332
    %1992 = vmatpush1.msra.mxu0 %v331
    %1993 = vmatprep.subr.mxu0 %v328
    %1994 = vmatpush1.msra.mxu0 %v327
    %1995 = vmatprep.subr.mxu0 %v324
    %1996 = vmatpush1.msra.mxu0 %v323
    %1997 = vmatprep.subr.mxu0 %v320
    %1998 = vmatpush1.msra.mxu0 %v319
    %1999 = vmatprep.subr.mxu0 %v316
    %2000 = vmatpush1.msra.mxu0 %v315
    %2001 = vmatprep.subr.mxu0 %v312
    %2002 = vmatpush1.msra.mxu0 %v311
    %2003 = vmatprep.subr.mxu0 %v308
    %2004 = vmatpush1.msra.mxu0 %v307
    %2005 = vmatprep.subr.mxu0 %v304
    %2006 = vmatpush1.msra.mxu0 %v303
    %2007 = vmatprep.subr.mxu0 %v300
    %2008 = vmatpush1.msra.mxu0 %v299
    %2009 = vmatprep.subr.mxu0 %v296
    %2010 = vmatpush1.msra.mxu0 %v295
    %2011 = vmatprep.subr.mxu0 %v292
    %2012 = vmatpush1.msra.mxu0 %v291
    %2013 = vmatprep.subr.mxu0 %v288
    %2014 = vmatpush1.msra.mxu0 %v287
    %2015 = vmatprep.subr.mxu0 0.0
    %2016 = vmatpush2.msra.mxu0 0.0
    %2017 = vmatprep.subr.mxu0 0.0
    %2018 = vmatpush2.msra.mxu0 0.0
    %2019 = vmatprep.subr.mxu0 0.0
    %2020 = vmatpush2.msra.mxu0 0.0
    %2021 = vmatprep.subr.mxu0 0.0
    %2022 = vmatpush2.msra.mxu0 0.0
    %2023 = vmatprep.subr.mxu0 0.0
    %2024 = vmatpush2.msra.mxu0 0.0
    %2025 = vmatprep.subr.mxu0 0.0
    %2026 = vmatpush2.msra.mxu0 0.0
    %2027 = vmatprep.subr.mxu0 0.0
    %2028 = vmatpush2.msra.mxu0 0.0
    %2029 = vmatprep.subr.mxu0 0.0
    %2030 = vmatpush2.msra.mxu0 0.0
    %2031 = vmatprep.subr.mxu0 0.0
    %2032 = vmatpush2.msra.mxu0 0.0
    %2033 = vmatprep.subr.mxu0 0.0
    %2034 = vmatpush2.msra.mxu0 0.0
    %2035 = vmatprep.subr.mxu0 0.0
    %2036 = vmatpush2.msra.mxu0 0.0
    %2037 = vmatprep.subr.mxu0 0.0
    %2038 = vmatpush2.msra.mxu0 0.0
    %2039 = vmatprep.subr.mxu0 0.0
    %2040 = vmatpush2.msra.mxu0 0.0
    %2041 = vmatprep.subr.mxu0 0.0
    %2042 = vmatpush2.msra.mxu0 0.0
    %2043 = vmatprep.subr.mxu0 0.0
    %2044 = vmatpush2.msra.mxu0 0.0
    %2045 = vmatprep.subr.mxu0 0.0
    %2046 = vmatpush2.msra.mxu0 0.0
    %2047 = vmatprep.mubr.f32.mxu0 0.0
    %2048 = vmatmul.mubr.f32.gmra.mxu0 %v1811
    %v2049 = vpop.f32.mrf.mxu0
    %v2050 = vadd.f32 0.0, %v2049
    %v2051 = vpop.f32.mrf.mxu0
    %v2052 = vadd.f32 0.0, %v2051
    %2053 = vdwg.mxu0
    %2054 = vmatprep.subr.mxu0 %v350
    %2055 = vmatpush1.msra.mxu0 %v349
    %2056 = vmatprep.subr.mxu0 %v346
    %2057 = vmatpush1.msra.mxu0 %v345
    %2058 = vmatprep.subr.mxu0 %v342
    %2059 = vmatpush1.msra.mxu0 %v341
    %2060 = vmatprep.subr.mxu0 %v338
    %2061 = vmatpush1.msra.mxu0 %v337
    %2062 = vmatprep.subr.mxu0 %v334
    %2063 = vmatpush1.msra.mxu0 %v333
    %2064 = vmatprep.subr.mxu0 %v330
    %2065 = vmatpush1.msra.mxu0 %v329
    %2066 = vmatprep.subr.mxu0 %v326
    %2067 = vmatpush1.msra.mxu0 %v325
    %2068 = vmatprep.subr.mxu0 %v322
    %2069 = vmatpush1.msra.mxu0 %v321
    %2070 = vmatprep.subr.mxu0 %v318
    %2071 = vmatpush1.msra.mxu0 %v317
    %2072 = vmatprep.subr.mxu0 %v314
    %2073 = vmatpush1.msra.mxu0 %v313
    %2074 = vmatprep.subr.mxu0 %v310
    %2075 = vmatpush1.msra.mxu0 %v309
    %2076 = vmatprep.subr.mxu0 %v306
    %2077 = vmatpush1.msra.mxu0 %v305
    %2078 = vmatprep.subr.mxu0 %v302
    %2079 = vmatpush1.msra.mxu0 %v301
    %2080 = vmatprep.subr.mxu0 %v298
    %2081 = vmatpush1.msra.mxu0 %v297
    %2082 = vmatprep.subr.mxu0 %v294
    %2083 = vmatpush1.msra.mxu0 %v293
    %2084 = vmatprep.subr.mxu0 %v290
    %2085 = vmatpush1.msra.mxu0 %v289
    %2086 = vmatprep.subr.mxu0 0.0
    %2087 = vmatpush2.msra.mxu0 0.0
    %2088 = vmatprep.subr.mxu0 0.0
    %2089 = vmatpush2.msra.mxu0 0.0
    %2090 = vmatprep.subr.mxu0 0.0
    %2091 = vmatpush2.msra.mxu0 0.0
    %2092 = vmatprep.subr.mxu0 0.0
    %2093 = vmatpush2.msra.mxu0 0.0
    %2094 = vmatprep.subr.mxu0 0.0
    %2095 = vmatpush2.msra.mxu0 0.0
    %2096 = vmatprep.subr.mxu0 0.0
    %2097 = vmatpush2.msra.mxu0 0.0
    %2098 = vmatprep.subr.mxu0 0.0
    %2099 = vmatpush2.msra.mxu0 0.0
    %2100 = vmatprep.subr.mxu0 0.0
    %2101 = vmatpush2.msra.mxu0 0.0
    %2102 = vmatprep.subr.mxu0 0.0
    %2103 = vmatpush2.msra.mxu0 0.0
    %2104 = vmatprep.subr.mxu0 0.0
    %2105 = vmatpush2.msra.mxu0 0.0
    %2106 = vmatprep.subr.mxu0 0.0
    %2107 = vmatpush2.msra.mxu0 0.0
    %2108 = vmatprep.subr.mxu0 0.0
    %2109 = vmatpush2.msra.mxu0 0.0
    %2110 = vmatprep.subr.mxu0 0.0
    %2111 = vmatpush2.msra.mxu0 0.0
    %2112 = vmatprep.subr.mxu0 0.0
    %2113 = vmatpush2.msra.mxu0 0.0
    %2114 = vmatprep.subr.mxu0 0.0
    %2115 = vmatpush2.msra.mxu0 0.0
    %2116 = vmatprep.subr.mxu0 0.0
    %2117 = vmatpush2.msra.mxu0 0.0
    %2118 = vmatprep.mubr.f32.mxu0 0.0
    %2119 = vmatmul.mubr.f32.gmra.mxu0 %v1811
    %v2120 = vpop.f32.mrf.mxu0
    %v2121 = vadd.f32 0.0, %v2120
    %v2122 = vpop.f32.mrf.mxu0
    %v2123 = vadd.f32 0.0, %v2122
    %2124 = vdwg.mxu0
    %v2129 = vrot.slane %v2050, 2
    %v2130 = vrot.slane %v2052, 2
    %v2131 = vrot.slane %v2121, 2
    %v2132 = vrot.slane %v2123, 2
    %v2137 = vadd.f32 %v200, %v2129
    %v2138 = vadd.f32 %v202, %v2130
    %v2139 = vadd.f32 %v277, %v2131
    %v2140 = vadd.f32 %v279, %v2132
    %v2141 = vxor.u32 %v2137, 2147483648
    %v2142 = vmul.f32 %v2141, 1.442695
    %v2143 = vpow.pop %v2142
    %v2144 = vadd.f32 %v2143, 1.0
    %v2145 = vrcp.pop %v2144
    %v2146 = vmul.f32 1.0, %v2145
    %v2147 = vxor.u32 %v2138, 2147483648
    %v2148 = vmul.f32 %v2147, 1.442695
    %v2149 = vpow.pop %v2148
    %v2150 = vadd.f32 %v2149, 1.0
    %v2151 = vrcp.pop %v2150
    %v2152 = vmul.f32 1.0, %v2151
    %v2153 = vtanh.pop %v2139
    %v2154 = vxor.u32 %v2140, 2147483648
    %v2155 = vmul.f32 %v2154, 1.442695
    %v2156 = vpow.pop %v2155
    %v2157 = vadd.f32 %v2156, 1.0
    %v2158 = vrcp.pop %v2157
    %v2159 = vmul.f32 1.0, %v2158
    %v2161 = vrot.slane %v1665, 6
    %v2163 = vmul.f32 %v2152, %v2161
    %v2164 = vmul.f32 %v2146, %v2153
    %v2165 = vadd.f32 %v2163, %v2164
    %v2166 = vtanh.pop %v2165
    %v2167 = vmul.f32 %v2159, %v2166
    %2168 = vmatprep.subr.mxu0 %v476
    %2169 = vmatpush1.msra.mxu0 %v475
    %2170 = vmatprep.subr.mxu0 %v472
    %2171 = vmatpush1.msra.mxu0 %v471
    %2172 = vmatprep.subr.mxu0 %v468
    %2173 = vmatpush1.msra.mxu0 %v467
    %2174 = vmatprep.subr.mxu0 %v464
    %2175 = vmatpush1.msra.mxu0 %v463
    %2176 = vmatprep.subr.mxu0 %v460
    %2177 = vmatpush1.msra.mxu0 %v459
    %2178 = vmatprep.subr.mxu0 %v456
    %2179 = vmatpush1.msra.mxu0 %v455
    %2180 = vmatprep.subr.mxu0 %v452
    %2181 = vmatpush1.msra.mxu0 %v451
    %2182 = vmatprep.subr.mxu0 %v448
    %2183 = vmatpush1.msra.mxu0 %v447
    %2184 = vmatprep.subr.mxu0 %v444
    %2185 = vmatpush1.msra.mxu0 %v443
    %2186 = vmatprep.subr.mxu0 %v440
    %2187 = vmatpush1.msra.mxu0 %v439
    %2188 = vmatprep.subr.mxu0 %v436
    %2189 = vmatpush1.msra.mxu0 %v435
    %2190 = vmatprep.subr.mxu0 %v432
    %2191 = vmatpush1.msra.mxu0 %v431
    %2192 = vmatprep.subr.mxu0 %v428
    %2193 = vmatpush1.msra.mxu0 %v427
    %2194 = vmatprep.subr.mxu0 %v424
    %2195 = vmatpush1.msra.mxu0 %v423
    %2196 = vmatprep.subr.mxu0 %v420
    %2197 = vmatpush1.msra.mxu0 %v419
    %2198 = vmatprep.subr.mxu0 %v416
    %2199 = vmatpush1.msra.mxu0 %v415
    %2200 = vmatprep.subr.mxu0 0.0
    %2201 = vmatpush2.msra.mxu0 0.0
    %2202 = vmatprep.subr.mxu0 0.0
    %2203 = vmatpush2.msra.mxu0 0.0
    %2204 = vmatprep.subr.mxu0 0.0
    %2205 = vmatpush2.msra.mxu0 0.0
    %2206 = vmatprep.subr.mxu0 0.0
    %2207 = vmatpush2.msra.mxu0 0.0
    %2208 = vmatprep.subr.mxu0 0.0
    %2209 = vmatpush2.msra.mxu0 0.0
    %2210 = vmatprep.subr.mxu0 0.0
    %2211 = vmatpush2.msra.mxu0 0.0
    %2212 = vmatprep.subr.mxu0 0.0
    %2213 = vmatpush2.msra.mxu0 0.0
    %2214 = vmatprep.subr.mxu0 0.0
    %2215 = vmatpush2.msra.mxu0 0.0
    %2216 = vmatprep.subr.mxu0 0.0
    %2217 = vmatpush2.msra.mxu0 0.0
    %2218 = vmatprep.subr.mxu0 0.0
    %2219 = vmatpush2.msra.mxu0 0.0
    %2220 = vmatprep.subr.mxu0 0.0
    %2221 = vmatpush2.msra.mxu0 0.0
    %2222 = vmatprep.subr.mxu0 0.0
    %2223 = vmatpush2.msra.mxu0 0.0
    %2224 = vmatprep.subr.mxu0 0.0
    %2225 = vmatpush2.msra.mxu0 0.0
    %2226 = vmatprep.subr.mxu0 0.0
    %2227 = vmatpush2.msra.mxu0 0.0
    %2228 = vmatprep.subr.mxu0 0.0
    %2229 = vmatpush2.msra.mxu0 0.0
    %2230 = vmatprep.subr.mxu0 0.0
    %2231 = vmatpush2.msra.mxu0 0.0
    %2232 = vmatprep.mubr.f32.mxu0 0.0
    %2233 = vmatmul.mubr.f32.gmra.mxu0 %v1982
    %v2234 = vpop.f32.mrf.mxu0
    %v2235 = vadd.f32 0.0, %v2234
    %v2236 = vpop.f32.mrf.mxu0
    %v2237 = vadd.f32 0.0, %v2236
    %2238 = vdwg.mxu0
    %2239 = vmatprep.subr.mxu0 %v478
    %2240 = vmatpush1.msra.mxu0 %v477
    %2241 = vmatprep.subr.mxu0 %v474
    %2242 = vmatpush1.msra.mxu0 %v473
    %2243 = vmatprep.subr.mxu0 %v470
    %2244 = vmatpush1.msra.mxu0 %v469
    %2245 = vmatprep.subr.mxu0 %v466
    %2246 = vmatpush1.msra.mxu0 %v465
    %2247 = vmatprep.subr.mxu0 %v462
    %2248 = vmatpush1.msra.mxu0 %v461
    %2249 = vmatprep.subr.mxu0 %v458
    %2250 = vmatpush1.msra.mxu0 %v457
    %2251 = vmatprep.subr.mxu0 %v454
    %2252 = vmatpush1.msra.mxu0 %v453
    %2253 = vmatprep.subr.mxu0 %v450
    %2254 = vmatpush1.msra.mxu0 %v449
    %2255 = vmatprep.subr.mxu0 %v446
    %2256 = vmatpush1.msra.mxu0 %v445
    %2257 = vmatprep.subr.mxu0 %v442
    %2258 = vmatpush1.msra.mxu0 %v441
    %2259 = vmatprep.subr.mxu0 %v438
    %2260 = vmatpush1.msra.mxu0 %v437
    %2261 = vmatprep.subr.mxu0 %v434
    %2262 = vmatpush1.msra.mxu0 %v433
    %2263 = vmatprep.subr.mxu0 %v430
    %2264 = vmatpush1.msra.mxu0 %v429
    %2265 = vmatprep.subr.mxu0 %v426
    %2266 = vmatpush1.msra.mxu0 %v425
    %2267 = vmatprep.subr.mxu0 %v422
    %2268 = vmatpush1.msra.mxu0 %v421
    %2269 = vmatprep.subr.mxu0 %v418
    %2270 = vmatpush1.msra.mxu0 %v417
    %2271 = vmatprep.subr.mxu0 0.0
    %2272 = vmatpush2.msra.mxu0 0.0
    %2273 = vmatprep.subr.mxu0 0.0
    %2274 = vmatpush2.msra.mxu0 0.0
    %2275 = vmatprep.subr.mxu0 0.0
    %2276 = vmatpush2.msra.mxu0 0.0
    %2277 = vmatprep.subr.mxu0 0.0
    %2278 = vmatpush2.msra.mxu0 0.0
    %2279 = vmatprep.subr.mxu0 0.0
    %2280 = vmatpush2.msra.mxu0 0.0
    %2281 = vmatprep.subr.mxu0 0.0
    %2282 = vmatpush2.msra.mxu0 0.0
    %2283 = vmatprep.subr.mxu0 0.0
    %2284 = vmatpush2.msra.mxu0 0.0
    %2285 = vmatprep.subr.mxu0 0.0
    %2286 = vmatpush2.msra.mxu0 0.0
    %2287 = vmatprep.subr.mxu0 0.0
    %2288 = vmatpush2.msra.mxu0 0.0
    %2289 = vmatprep.subr.mxu0 0.0
    %2290 = vmatpush2.msra.mxu0 0.0
    %2291 = vmatprep.subr.mxu0 0.0
    %2292 = vmatpush2.msra.mxu0 0.0
    %2293 = vmatprep.subr.mxu0 0.0
    %2294 = vmatpush2.msra.mxu0 0.0
    %2295 = vmatprep.subr.mxu0 0.0
    %2296 = vmatpush2.msra.mxu0 0.0
    %2297 = vmatprep.subr.mxu0 0.0
    %2298 = vmatpush2.msra.mxu0 0.0
    %2299 = vmatprep.subr.mxu0 0.0
    %2300 = vmatpush2.msra.mxu0 0.0
    %2301 = vmatprep.subr.mxu0 0.0
    %2302 = vmatpush2.msra.mxu0 0.0
    %2303 = vmatprep.mubr.f32.mxu0 0.0
    %2304 = vmatmul.mubr.f32.gmra.mxu0 %v1982
    %v2305 = vpop.f32.mrf.mxu0
    %v2306 = vadd.f32 0.0, %v2305
    %v2307 = vpop.f32.mrf.mxu0
    %v2308 = vadd.f32 0.0, %v2307
    %2309 = vdwg.mxu0
    %v2311 = vrot.slane %v2167, 6
    %2313 = vmatprep.subr.mxu0 %v412
    %2314 = vmatpush1.msra.mxu0 %v411
    %2315 = vmatprep.subr.mxu0 %v408
    %2316 = vmatpush1.msra.mxu0 %v407
    %2317 = vmatprep.subr.mxu0 %v404
    %2318 = vmatpush1.msra.mxu0 %v403
    %2319 = vmatprep.subr.mxu0 %v400
    %2320 = vmatpush1.msra.mxu0 %v399
    %2321 = vmatprep.subr.mxu0 %v396
    %2322 = vmatpush1.msra.mxu0 %v395
    %2323 = vmatprep.subr.mxu0 %v392
    %2324 = vmatpush1.msra.mxu0 %v391
    %2325 = vmatprep.subr.mxu0 %v388
    %2326 = vmatpush1.msra.mxu0 %v387
    %2327 = vmatprep.subr.mxu0 %v384
    %2328 = vmatpush1.msra.mxu0 %v383
    %2329 = vmatprep.subr.mxu0 %v380
    %2330 = vmatpush1.msra.mxu0 %v379
    %2331 = vmatprep.subr.mxu0 %v376
    %2332 = vmatpush1.msra.mxu0 %v375
    %2333 = vmatprep.subr.mxu0 %v372
    %2334 = vmatpush1.msra.mxu0 %v371
    %2335 = vmatprep.subr.mxu0 %v368
    %2336 = vmatpush1.msra.mxu0 %v367
    %2337 = vmatprep.subr.mxu0 %v364
    %2338 = vmatpush1.msra.mxu0 %v363
    %2339 = vmatprep.subr.mxu0 %v360
    %2340 = vmatpush1.msra.mxu0 %v359
    %2341 = vmatprep.subr.mxu0 %v356
    %2342 = vmatpush1.msra.mxu0 %v355
    %2343 = vmatprep.subr.mxu0 %v352
    %2344 = vmatpush1.msra.mxu0 %v351
    %2345 = vmatprep.subr.mxu0 0.0
    %2346 = vmatpush2.msra.mxu0 0.0
    %2347 = vmatprep.subr.mxu0 0.0
    %2348 = vmatpush2.msra.mxu0 0.0
    %2349 = vmatprep.subr.mxu0 0.0
    %2350 = vmatpush2.msra.mxu0 0.0
    %2351 = vmatprep.subr.mxu0 0.0
    %2352 = vmatpush2.msra.mxu0 0.0
    %2353 = vmatprep.subr.mxu0 0.0
    %2354 = vmatpush2.msra.mxu0 0.0
    %2355 = vmatprep.subr.mxu0 0.0
    %2356 = vmatpush2.msra.mxu0 0.0
    %2357 = vmatprep.subr.mxu0 0.0
    %2358 = vmatpush2.msra.mxu0 0.0
    %2359 = vmatprep.subr.mxu0 0.0
    %2360 = vmatpush2.msra.mxu0 0.0
    %2361 = vmatprep.subr.mxu0 0.0
    %2362 = vmatpush2.msra.mxu0 0.0
    %2363 = vmatprep.subr.mxu0 0.0
    %2364 = vmatpush2.msra.mxu0 0.0
    %2365 = vmatprep.subr.mxu0 0.0
    %2366 = vmatpush2.msra.mxu0 0.0
    %2367 = vmatprep.subr.mxu0 0.0
    %2368 = vmatpush2.msra.mxu0 0.0
    %2369 = vmatprep.subr.mxu0 0.0
    %2370 = vmatpush2.msra.mxu0 0.0
    %2371 = vmatprep.subr.mxu0 0.0
    %2372 = vmatpush2.msra.mxu0 0.0
    %2373 = vmatprep.subr.mxu0 0.0
    %2374 = vmatpush2.msra.mxu0 0.0
    %2375 = vmatprep.subr.mxu0 0.0
    %2376 = vmatpush2.msra.mxu0 0.0
    %2377 = vmatprep.mubr.f32.mxu0 0.0
    %2378 = vmatmul.mubr.f32.gmra.mxu0 %v2311
    %v2379 = vpop.f32.mrf.mxu0
    %v2380 = vadd.f32 %v2235, %v2379
    %v2381 = vpop.f32.mrf.mxu0
    %v2382 = vadd.f32 %v2237, %v2381
    %2383 = vdwg.mxu0
    %2384 = vmatprep.subr.mxu0 %v414
    %2385 = vmatpush1.msra.mxu0 %v413
    %2386 = vmatprep.subr.mxu0 %v410
    %2387 = vmatpush1.msra.mxu0 %v409
    %2388 = vmatprep.subr.mxu0 %v406
    %2389 = vmatpush1.msra.mxu0 %v405
    %2390 = vmatprep.subr.mxu0 %v402
    %2391 = vmatpush1.msra.mxu0 %v401
    %2392 = vmatprep.subr.mxu0 %v398
    %2393 = vmatpush1.msra.mxu0 %v397
    %2394 = vmatprep.subr.mxu0 %v394
    %2395 = vmatpush1.msra.mxu0 %v393
    %2396 = vmatprep.subr.mxu0 %v390
    %2397 = vmatpush1.msra.mxu0 %v389
    %2398 = vmatprep.subr.mxu0 %v386
    %2399 = vmatpush1.msra.mxu0 %v385
    %2400 = vmatprep.subr.mxu0 %v382
    %2401 = vmatpush1.msra.mxu0 %v381
    %2402 = vmatprep.subr.mxu0 %v378
    %2403 = vmatpush1.msra.mxu0 %v377
    %2404 = vmatprep.subr.mxu0 %v374
    %2405 = vmatpush1.msra.mxu0 %v373
    %2406 = vmatprep.subr.mxu0 %v370
    %2407 = vmatpush1.msra.mxu0 %v369
    %2408 = vmatprep.subr.mxu0 %v366
    %2409 = vmatpush1.msra.mxu0 %v365
    %2410 = vmatprep.subr.mxu0 %v362
    %2411 = vmatpush1.msra.mxu0 %v361
    %2412 = vmatprep.subr.mxu0 %v358
    %2413 = vmatpush1.msra.mxu0 %v357
    %2414 = vmatprep.subr.mxu0 %v354
    %2415 = vmatpush1.msra.mxu0 %v353
    %2416 = vmatprep.subr.mxu0 0.0
    %2417 = vmatpush2.msra.mxu0 0.0
    %2418 = vmatprep.subr.mxu0 0.0
    %2419 = vmatpush2.msra.mxu0 0.0
    %2420 = vmatprep.subr.mxu0 0.0
    %2421 = vmatpush2.msra.mxu0 0.0
    %2422 = vmatprep.subr.mxu0 0.0
    %2423 = vmatpush2.msra.mxu0 0.0
    %2424 = vmatprep.subr.mxu0 0.0
    %2425 = vmatpush2.msra.mxu0 0.0
    %2426 = vmatprep.subr.mxu0 0.0
    %2427 = vmatpush2.msra.mxu0 0.0
    %2428 = vmatprep.subr.mxu0 0.0
    %2429 = vmatpush2.msra.mxu0 0.0
    %2430 = vmatprep.subr.mxu0 0.0
    %2431 = vmatpush2.msra.mxu0 0.0
    %2432 = vmatprep.subr.mxu0 0.0
    %2433 = vmatpush2.msra.mxu0 0.0
    %2434 = vmatprep.subr.mxu0 0.0
    %2435 = vmatpush2.msra.mxu0 0.0
    %2436 = vmatprep.subr.mxu0 0.0
    %2437 = vmatpush2.msra.mxu0 0.0
    %2438 = vmatprep.subr.mxu0 0.0
    %2439 = vmatpush2.msra.mxu0 0.0
    %2440 = vmatprep.subr.mxu0 0.0
    %2441 = vmatpush2.msra.mxu0 0.0
    %2442 = vmatprep.subr.mxu0 0.0
    %2443 = vmatpush2.msra.mxu0 0.0
    %2444 = vmatprep.subr.mxu0 0.0
    %2445 = vmatpush2.msra.mxu0 0.0
    %2446 = vmatprep.subr.mxu0 0.0
    %2447 = vmatpush2.msra.mxu0 0.0
    %2448 = vmatprep.mubr.f32.mxu0 0.0
    %2449 = vmatmul.mubr.f32.gmra.mxu0 %v2311
    %v2450 = vpop.f32.mrf.mxu0
    %v2451 = vadd.f32 %v2306, %v2450
    %v2452 = vpop.f32.mrf.mxu0
    %v2453 = vadd.f32 %v2308, %v2452
    %2454 = vdwg.mxu0
    %v2455 = vadd.f32 %v2380, %v938
    %v2456 = vadd.f32 %v2382, %v942
    %v2457 = vadd.f32 %v2451, %v946
    %v2458 = vadd.f32 %v2453, %v950
    %v2459 = vxor.u32 %v2455, 2147483648
    %v2460 = vmul.f32 %v2459, 1.442695
    %v2461 = vpow.pop %v2460
    %v2462 = vadd.f32 %v2461, 1.0
    %v2463 = vrcp.pop %v2462
    %v2464 = vmul.f32 1.0, %v2463
    %v2465 = vxor.u32 %v2456, 2147483648
    %v2466 = vmul.f32 %v2465, 1.442695
    %v2467 = vpow.pop %v2466
    %v2468 = vadd.f32 %v2467, 1.0
    %v2469 = vrcp.pop %v2468
    %v2470 = vmul.f32 1.0, %v2469
    %v2471 = vtanh.pop %v2457
    %v2472 = vxor.u32 %v2458, 2147483648
    %v2473 = vmul.f32 %v2472, 1.442695
    %v2474 = vpow.pop %v2473
    %v2475 = vadd.f32 %v2474, 1.0
    %v2476 = vrcp.pop %v2475
    %v2477 = vmul.f32 1.0, %v2476
    %v2478 = vmul.f32 %v2470, %v1980
    %v2479 = vmul.f32 %v2464, %v2471
    %v2480 = vadd.f32 %v2478, %v2479
    %v2481 = vtanh.pop %v2480
    %v2482 = vmul.f32 %v2477, %v2481
    %2483 = vmatprep.subr.mxu0 %v348
    %2484 = vmatpush1.msra.mxu0 %v347
    %2485 = vmatprep.subr.mxu0 %v344
    %2486 = vmatpush1.msra.mxu0 %v343
    %2487 = vmatprep.subr.mxu0 %v340
    %2488 = vmatpush1.msra.mxu0 %v339
    %2489 = vmatprep.subr.mxu0 %v336
    %2490 = vmatpush1.msra.mxu0 %v335
    %2491 = vmatprep.subr.mxu0 %v332
    %2492 = vmatpush1.msra.mxu0 %v331
    %2493 = vmatprep.subr.mxu0 %v328
    %2494 = vmatpush1.msra.mxu0 %v327
    %2495 = vmatprep.subr.mxu0 %v324
    %2496 = vmatpush1.msra.mxu0 %v323
    %2497 = vmatprep.subr.mxu0 %v320
    %2498 = vmatpush1.msra.mxu0 %v319
    %2499 = vmatprep.subr.mxu0 %v316
    %2500 = vmatpush1.msra.mxu0 %v315
    %2501 = vmatprep.subr.mxu0 %v312
    %2502 = vmatpush1.msra.mxu0 %v311
    %2503 = vmatprep.subr.mxu0 %v308
    %2504 = vmatpush1.msra.mxu0 %v307
    %2505 = vmatprep.subr.mxu0 %v304
    %2506 = vmatpush1.msra.mxu0 %v303
    %2507 = vmatprep.subr.mxu0 %v300
    %2508 = vmatpush1.msra.mxu0 %v299
    %2509 = vmatprep.subr.mxu0 %v296
    %2510 = vmatpush1.msra.mxu0 %v295
    %2511 = vmatprep.subr.mxu0 %v292
    %2512 = vmatpush1.msra.mxu0 %v291
    %2513 = vmatprep.subr.mxu0 %v288
    %2514 = vmatpush1.msra.mxu0 %v287
    %2515 = vmatprep.subr.mxu0 0.0
    %2516 = vmatpush2.msra.mxu0 0.0
    %2517 = vmatprep.subr.mxu0 0.0
    %2518 = vmatpush2.msra.mxu0 0.0
    %2519 = vmatprep.subr.mxu0 0.0
    %2520 = vmatpush2.msra.mxu0 0.0
    %2521 = vmatprep.subr.mxu0 0.0
    %2522 = vmatpush2.msra.mxu0 0.0
    %2523 = vmatprep.subr.mxu0 0.0
    %2524 = vmatpush2.msra.mxu0 0.0
    %2525 = vmatprep.subr.mxu0 0.0
    %2526 = vmatpush2.msra.mxu0 0.0
    %2527 = vmatprep.subr.mxu0 0.0
    %2528 = vmatpush2.msra.mxu0 0.0
    %2529 = vmatprep.subr.mxu0 0.0
    %2530 = vmatpush2.msra.mxu0 0.0
    %2531 = vmatprep.subr.mxu0 0.0
    %2532 = vmatpush2.msra.mxu0 0.0
    %2533 = vmatprep.subr.mxu0 0.0
    %2534 = vmatpush2.msra.mxu0 0.0
    %2535 = vmatprep.subr.mxu0 0.0
    %2536 = vmatpush2.msra.mxu0 0.0
    %2537 = vmatprep.subr.mxu0 0.0
    %2538 = vmatpush2.msra.mxu0 0.0
    %2539 = vmatprep.subr.mxu0 0.0
    %2540 = vmatpush2.msra.mxu0 0.0
    %2541 = vmatprep.subr.mxu0 0.0
    %2542 = vmatpush2.msra.mxu0 0.0
    %2543 = vmatprep.subr.mxu0 0.0
    %2544 = vmatpush2.msra.mxu0 0.0
    %2545 = vmatprep.subr.mxu0 0.0
    %2546 = vmatpush2.msra.mxu0 0.0
    %2547 = vmatprep.mubr.f32.mxu0 0.0
    %2548 = vmatmul.mubr.f32.gmra.mxu0 %v2311
    %v2549 = vpop.f32.mrf.mxu0
    %v2550 = vadd.f32 0.0, %v2549
    %v2551 = vpop.f32.mrf.mxu0
    %v2552 = vadd.f32 0.0, %v2551
    %2553 = vdwg.mxu0
    %2554 = vmatprep.subr.mxu0 %v350
    %2555 = vmatpush1.msra.mxu0 %v349
    %2556 = vmatprep.subr.mxu0 %v346
    %2557 = vmatpush1.msra.mxu0 %v345
    %2558 = vmatprep.subr.mxu0 %v342
    %2559 = vmatpush1.msra.mxu0 %v341
    %2560 = vmatprep.subr.mxu0 %v338
    %2561 = vmatpush1.msra.mxu0 %v337
    %2562 = vmatprep.subr.mxu0 %v334
    %2563 = vmatpush1.msra.mxu0 %v333
    %2564 = vmatprep.subr.mxu0 %v330
    %2565 = vmatpush1.msra.mxu0 %v329
    %2566 = vmatprep.subr.mxu0 %v326
    %2567 = vmatpush1.msra.mxu0 %v325
    %2568 = vmatprep.subr.mxu0 %v322
    %2569 = vmatpush1.msra.mxu0 %v321
    %2570 = vmatprep.subr.mxu0 %v318
    %2571 = vmatpush1.msra.mxu0 %v317
    %2572 = vmatprep.subr.mxu0 %v314
    %2573 = vmatpush1.msra.mxu0 %v313
    %2574 = vmatprep.subr.mxu0 %v310
    %2575 = vmatpush1.msra.mxu0 %v309
    %2576 = vmatprep.subr.mxu0 %v306
    %2577 = vmatpush1.msra.mxu0 %v305
    %2578 = vmatprep.subr.mxu0 %v302
    %2579 = vmatpush1.msra.mxu0 %v301
    %2580 = vmatprep.subr.mxu0 %v298
    %2581 = vmatpush1.msra.mxu0 %v297
    %2582 = vmatprep.subr.mxu0 %v294
    %2583 = vmatpush1.msra.mxu0 %v293
    %2584 = vmatprep.subr.mxu0 %v290
    %2585 = vmatpush1.msra.mxu0 %v289
    %2586 = vmatprep.subr.mxu0 0.0
    %2587 = vmatpush2.msra.mxu0 0.0
    %2588 = vmatprep.subr.mxu0 0.0
    %2589 = vmatpush2.msra.mxu0 0.0
    %2590 = vmatprep.subr.mxu0 0.0
    %2591 = vmatpush2.msra.mxu0 0.0
    %2592 = vmatprep.subr.mxu0 0.0
    %2593 = vmatpush2.msra.mxu0 0.0
    %2594 = vmatprep.subr.mxu0 0.0
    %2595 = vmatpush2.msra.mxu0 0.0
    %2596 = vmatprep.subr.mxu0 0.0
    %2597 = vmatpush2.msra.mxu0 0.0
    %2598 = vmatprep.subr.mxu0 0.0
    %2599 = vmatpush2.msra.mxu0 0.0
    %2600 = vmatprep.subr.mxu0 0.0
    %2601 = vmatpush2.msra.mxu0 0.0
    %2602 = vmatprep.subr.mxu0 0.0
    %2603 = vmatpush2.msra.mxu0 0.0
    %2604 = vmatprep.subr.mxu0 0.0
    %2605 = vmatpush2.msra.mxu0 0.0
    %2606 = vmatprep.subr.mxu0 0.0
    %2607 = vmatpush2.msra.mxu0 0.0
    %2608 = vmatprep.subr.mxu0 0.0
    %2609 = vmatpush2.msra.mxu0 0.0
    %2610 = vmatprep.subr.mxu0 0.0
    %2611 = vmatpush2.msra.mxu0 0.0
    %2612 = vmatprep.subr.mxu0 0.0
    %2613 = vmatpush2.msra.mxu0 0.0
    %2614 = vmatprep.subr.mxu0 0.0
    %2615 = vmatpush2.msra.mxu0 0.0
    %2616 = vmatprep.subr.mxu0 0.0
    %2617 = vmatpush2.msra.mxu0 0.0
    %2618 = vmatprep.mubr.f32.mxu0 0.0
    %2619 = vmatmul.mubr.f32.gmra.mxu0 %v2311
    %v2620 = vpop.f32.mrf.mxu0
    %v2621 = vadd.f32 0.0, %v2620
    %v2622 = vpop.f32.mrf.mxu0
    %v2623 = vadd.f32 0.0, %v2622
    %2624 = vdwg.mxu0
    %v2625 = vadd.f32 %v206, %v2550
    %v2626 = vadd.f32 %v208, %v2552
    %v2627 = vadd.f32 %v283, %v2621
    %v2628 = vadd.f32 %v285, %v2623
    %v2629 = vxor.u32 %v2625, 2147483648
    %v2630 = vmul.f32 %v2629, 1.442695
    %v2631 = vpow.pop %v2630
    %v2632 = vadd.f32 %v2631, 1.0
    %v2633 = vrcp.pop %v2632
    %v2634 = vmul.f32 1.0, %v2633
    %v2635 = vxor.u32 %v2626, 2147483648
    %v2636 = vmul.f32 %v2635, 1.442695
    %v2637 = vpow.pop %v2636
    %v2638 = vadd.f32 %v2637, 1.0
    %v2639 = vrcp.pop %v2638
    %v2640 = vmul.f32 1.0, %v2639
    %v2641 = vtanh.pop %v2627
    %v2642 = vxor.u32 %v2628, 2147483648
    %v2643 = vmul.f32 %v2642, 1.442695
    %v2644 = vpow.pop %v2643
    %v2645 = vadd.f32 %v2644, 1.0
    %v2646 = vrcp.pop %v2645
    %v2647 = vmul.f32 1.0, %v2646
    %v2649 = vrot.slane %v2165, 6
    %v2651 = vmul.f32 %v2640, %v2649
    %v2652 = vmul.f32 %v2634, %v2641
    %v2653 = vadd.f32 %v2651, %v2652
    %v2654 = vtanh.pop %v2653
    %v2655 = vmul.f32 %v2647, %v2654
    %2656 = vmatprep.subr.mxu0 %v476
    %2657 = vmatpush1.msra.mxu0 %v475
    %2658 = vmatprep.subr.mxu0 %v472
    %2659 = vmatpush1.msra.mxu0 %v471
    %2660 = vmatprep.subr.mxu0 %v468
    %2661 = vmatpush1.msra.mxu0 %v467
    %2662 = vmatprep.subr.mxu0 %v464
    %2663 = vmatpush1.msra.mxu0 %v463
    %2664 = vmatprep.subr.mxu0 %v460
    %2665 = vmatpush1.msra.mxu0 %v459
    %2666 = vmatprep.subr.mxu0 %v456
    %2667 = vmatpush1.msra.mxu0 %v455
    %2668 = vmatprep.subr.mxu0 %v452
    %2669 = vmatpush1.msra.mxu0 %v451
    %2670 = vmatprep.subr.mxu0 %v448
    %2671 = vmatpush1.msra.mxu0 %v447
    %2672 = vmatprep.subr.mxu0 %v444
    %2673 = vmatpush1.msra.mxu0 %v443
    %2674 = vmatprep.subr.mxu0 %v440
    %2675 = vmatpush1.msra.mxu0 %v439
    %2676 = vmatprep.subr.mxu0 %v436
    %2677 = vmatpush1.msra.mxu0 %v435
    %2678 = vmatprep.subr.mxu0 %v432
    %2679 = vmatpush1.msra.mxu0 %v431
    %2680 = vmatprep.subr.mxu0 %v428
    %2681 = vmatpush1.msra.mxu0 %v427
    %2682 = vmatprep.subr.mxu0 %v424
    %2683 = vmatpush1.msra.mxu0 %v423
    %2684 = vmatprep.subr.mxu0 %v420
    %2685 = vmatpush1.msra.mxu0 %v419
    %2686 = vmatprep.subr.mxu0 %v416
    %2687 = vmatpush1.msra.mxu0 %v415
    %2688 = vmatprep.subr.mxu0 0.0
    %2689 = vmatpush2.msra.mxu0 0.0
    %2690 = vmatprep.subr.mxu0 0.0
    %2691 = vmatpush2.msra.mxu0 0.0
    %2692 = vmatprep.subr.mxu0 0.0
    %2693 = vmatpush2.msra.mxu0 0.0
    %2694 = vmatprep.subr.mxu0 0.0
    %2695 = vmatpush2.msra.mxu0 0.0
    %2696 = vmatprep.subr.mxu0 0.0
    %2697 = vmatpush2.msra.mxu0 0.0
    %2698 = vmatprep.subr.mxu0 0.0
    %2699 = vmatpush2.msra.mxu0 0.0
    %2700 = vmatprep.subr.mxu0 0.0
    %2701 = vmatpush2.msra.mxu0 0.0
    %2702 = vmatprep.subr.mxu0 0.0
    %2703 = vmatpush2.msra.mxu0 0.0
    %2704 = vmatprep.subr.mxu0 0.0
    %2705 = vmatpush2.msra.mxu0 0.0
    %2706 = vmatprep.subr.mxu0 0.0
    %2707 = vmatpush2.msra.mxu0 0.0
    %2708 = vmatprep.subr.mxu0 0.0
    %2709 = vmatpush2.msra.mxu0 0.0
    %2710 = vmatprep.subr.mxu0 0.0
    %2711 = vmatpush2.msra.mxu0 0.0
    %2712 = vmatprep.subr.mxu0 0.0
    %2713 = vmatpush2.msra.mxu0 0.0
    %2714 = vmatprep.subr.mxu0 0.0
    %2715 = vmatpush2.msra.mxu0 0.0
    %2716 = vmatprep.subr.mxu0 0.0
    %2717 = vmatpush2.msra.mxu0 0.0
    %2718 = vmatprep.subr.mxu0 0.0
    %2719 = vmatpush2.msra.mxu0 0.0
    %2720 = vmatprep.mubr.f32.mxu0 0.0
    %2721 = vmatmul.mubr.f32.gmra.mxu0 %v2482
    %v2722 = vpop.f32.mrf.mxu0
    %v2723 = vadd.f32 0.0, %v2722
    %v2724 = vpop.f32.mrf.mxu0
    %v2725 = vadd.f32 0.0, %v2724
    %2726 = vdwg.mxu0
    %2727 = vmatprep.subr.mxu0 %v478
    %2728 = vmatpush1.msra.mxu0 %v477
    %2729 = vmatprep.subr.mxu0 %v474
    %2730 = vmatpush1.msra.mxu0 %v473
    %2731 = vmatprep.subr.mxu0 %v470
    %2732 = vmatpush1.msra.mxu0 %v469
    %2733 = vmatprep.subr.mxu0 %v466
    %2734 = vmatpush1.msra.mxu0 %v465
    %2735 = vmatprep.subr.mxu0 %v462
    %2736 = vmatpush1.msra.mxu0 %v461
    %2737 = vmatprep.subr.mxu0 %v458
    %2738 = vmatpush1.msra.mxu0 %v457
    %2739 = vmatprep.subr.mxu0 %v454
    %2740 = vmatpush1.msra.mxu0 %v453
    %2741 = vmatprep.subr.mxu0 %v450
    %2742 = vmatpush1.msra.mxu0 %v449
    %2743 = vmatprep.subr.mxu0 %v446
    %2744 = vmatpush1.msra.mxu0 %v445
    %2745 = vmatprep.subr.mxu0 %v442
    %2746 = vmatpush1.msra.mxu0 %v441
    %2747 = vmatprep.subr.mxu0 %v438
    %2748 = vmatpush1.msra.mxu0 %v437
    %2749 = vmatprep.subr.mxu0 %v434
    %2750 = vmatpush1.msra.mxu0 %v433
    %2751 = vmatprep.subr.mxu0 %v430
    %2752 = vmatpush1.msra.mxu0 %v429
    %2753 = vmatprep.subr.mxu0 %v426
    %2754 = vmatpush1.msra.mxu0 %v425
    %2755 = vmatprep.subr.mxu0 %v422
    %2756 = vmatpush1.msra.mxu0 %v421
    %2757 = vmatprep.subr.mxu0 %v418
    %2758 = vmatpush1.msra.mxu0 %v417
    %2759 = vmatprep.subr.mxu0 0.0
    %2760 = vmatpush2.msra.mxu0 0.0
    %2761 = vmatprep.subr.mxu0 0.0
    %2762 = vmatpush2.msra.mxu0 0.0
    %2763 = vmatprep.subr.mxu0 0.0
    %2764 = vmatpush2.msra.mxu0 0.0
    %2765 = vmatprep.subr.mxu0 0.0
    %2766 = vmatpush2.msra.mxu0 0.0
    %2767 = vmatprep.subr.mxu0 0.0
    %2768 = vmatpush2.msra.mxu0 0.0
    %2769 = vmatprep.subr.mxu0 0.0
    %2770 = vmatpush2.msra.mxu0 0.0
    %2771 = vmatprep.subr.mxu0 0.0
    %2772 = vmatpush2.msra.mxu0 0.0
    %2773 = vmatprep.subr.mxu0 0.0
    %2774 = vmatpush2.msra.mxu0 0.0
    %2775 = vmatprep.subr.mxu0 0.0
    %2776 = vmatpush2.msra.mxu0 0.0
    %2777 = vmatprep.subr.mxu0 0.0
    %2778 = vmatpush2.msra.mxu0 0.0
    %2779 = vmatprep.subr.mxu0 0.0
    %2780 = vmatpush2.msra.mxu0 0.0
    %2781 = vmatprep.subr.mxu0 0.0
    %2782 = vmatpush2.msra.mxu0 0.0
    %2783 = vmatprep.subr.mxu0 0.0
    %2784 = vmatpush2.msra.mxu0 0.0
    %2785 = vmatprep.subr.mxu0 0.0
    %2786 = vmatpush2.msra.mxu0 0.0
    %2787 = vmatprep.subr.mxu0 0.0
    %2788 = vmatpush2.msra.mxu0 0.0
    %2789 = vmatprep.subr.mxu0 0.0
    %2790 = vmatpush2.msra.mxu0 0.0
    %2791 = vmatprep.mubr.f32.mxu0 0.0
    %2792 = vmatmul.mubr.f32.gmra.mxu0 %v2482
    %v2793 = vpop.f32.mrf.mxu0
    %v2794 = vadd.f32 0.0, %v2793
    %v2795 = vpop.f32.mrf.mxu0
    %v2796 = vadd.f32 0.0, %v2795
    %2797 = vdwg.mxu0
    %2798 = vmatprep.subr.mxu0 %v412
    %2799 = vmatpush1.msra.mxu0 %v411
    %2800 = vmatprep.subr.mxu0 %v408
    %2801 = vmatpush1.msra.mxu0 %v407
    %2802 = vmatprep.subr.mxu0 %v404
    %2803 = vmatpush1.msra.mxu0 %v403
    %2804 = vmatprep.subr.mxu0 %v400
    %2805 = vmatpush1.msra.mxu0 %v399
    %2806 = vmatprep.subr.mxu0 %v396
    %2807 = vmatpush1.msra.mxu0 %v395
    %2808 = vmatprep.subr.mxu0 %v392
    %2809 = vmatpush1.msra.mxu0 %v391
    %2810 = vmatprep.subr.mxu0 %v388
    %2811 = vmatpush1.msra.mxu0 %v387
    %2812 = vmatprep.subr.mxu0 %v384
    %2813 = vmatpush1.msra.mxu0 %v383
    %2814 = vmatprep.subr.mxu0 %v380
    %2815 = vmatpush1.msra.mxu0 %v379
    %2816 = vmatprep.subr.mxu0 %v376
    %2817 = vmatpush1.msra.mxu0 %v375
    %2818 = vmatprep.subr.mxu0 %v372
    %2819 = vmatpush1.msra.mxu0 %v371
    %2820 = vmatprep.subr.mxu0 %v368
    %2821 = vmatpush1.msra.mxu0 %v367
    %2822 = vmatprep.subr.mxu0 %v364
    %2823 = vmatpush1.msra.mxu0 %v363
    %2824 = vmatprep.subr.mxu0 %v360
    %2825 = vmatpush1.msra.mxu0 %v359
    %2826 = vmatprep.subr.mxu0 %v356
    %2827 = vmatpush1.msra.mxu0 %v355
    %2828 = vmatprep.subr.mxu0 %v352
    %2829 = vmatpush1.msra.mxu0 %v351
    %2830 = vmatprep.subr.mxu0 0.0
    %2831 = vmatpush2.msra.mxu0 0.0
    %2832 = vmatprep.subr.mxu0 0.0
    %2833 = vmatpush2.msra.mxu0 0.0
    %2834 = vmatprep.subr.mxu0 0.0
    %2835 = vmatpush2.msra.mxu0 0.0
    %2836 = vmatprep.subr.mxu0 0.0
    %2837 = vmatpush2.msra.mxu0 0.0
    %2838 = vmatprep.subr.mxu0 0.0
    %2839 = vmatpush2.msra.mxu0 0.0
    %2840 = vmatprep.subr.mxu0 0.0
    %2841 = vmatpush2.msra.mxu0 0.0
    %2842 = vmatprep.subr.mxu0 0.0
    %2843 = vmatpush2.msra.mxu0 0.0
    %2844 = vmatprep.subr.mxu0 0.0
    %2845 = vmatpush2.msra.mxu0 0.0
    %2846 = vmatprep.subr.mxu0 0.0
    %2847 = vmatpush2.msra.mxu0 0.0
    %2848 = vmatprep.subr.mxu0 0.0
    %2849 = vmatpush2.msra.mxu0 0.0
    %2850 = vmatprep.subr.mxu0 0.0
    %2851 = vmatpush2.msra.mxu0 0.0
    %2852 = vmatprep.subr.mxu0 0.0
    %2853 = vmatpush2.msra.mxu0 0.0
    %2854 = vmatprep.subr.mxu0 0.0
    %2855 = vmatpush2.msra.mxu0 0.0
    %2856 = vmatprep.subr.mxu0 0.0
    %2857 = vmatpush2.msra.mxu0 0.0
    %2858 = vmatprep.subr.mxu0 0.0
    %2859 = vmatpush2.msra.mxu0 0.0
    %2860 = vmatprep.subr.mxu0 0.0
    %2861 = vmatpush2.msra.mxu0 0.0
    %2862 = vmatprep.mubr.f32.mxu0 0.0
    %2863 = vmatmul.mubr.f32.gmra.mxu0 %v2655
    %v2864 = vpop.f32.mrf.mxu0
    %v2865 = vadd.f32 %v2723, %v2864
    %v2866 = vpop.f32.mrf.mxu0
    %v2867 = vadd.f32 %v2725, %v2866
    %2868 = vdwg.mxu0
    %2869 = vmatprep.subr.mxu0 %v414
    %2870 = vmatpush1.msra.mxu0 %v413
    %2871 = vmatprep.subr.mxu0 %v410
    %2872 = vmatpush1.msra.mxu0 %v409
    %2873 = vmatprep.subr.mxu0 %v406
    %2874 = vmatpush1.msra.mxu0 %v405
    %2875 = vmatprep.subr.mxu0 %v402
    %2876 = vmatpush1.msra.mxu0 %v401
    %2877 = vmatprep.subr.mxu0 %v398
    %2878 = vmatpush1.msra.mxu0 %v397
    %2879 = vmatprep.subr.mxu0 %v394
    %2880 = vmatpush1.msra.mxu0 %v393
    %2881 = vmatprep.subr.mxu0 %v390
    %2882 = vmatpush1.msra.mxu0 %v389
    %2883 = vmatprep.subr.mxu0 %v386
    %2884 = vmatpush1.msra.mxu0 %v385
    %2885 = vmatprep.subr.mxu0 %v382
    %2886 = vmatpush1.msra.mxu0 %v381
    %2887 = vmatprep.subr.mxu0 %v378
    %2888 = vmatpush1.msra.mxu0 %v377
    %2889 = vmatprep.subr.mxu0 %v374
    %2890 = vmatpush1.msra.mxu0 %v373
    %2891 = vmatprep.subr.mxu0 %v370
    %2892 = vmatpush1.msra.mxu0 %v369
    %2893 = vmatprep.subr.mxu0 %v366
    %2894 = vmatpush1.msra.mxu0 %v365
    %2895 = vmatprep.subr.mxu0 %v362
    %2896 = vmatpush1.msra.mxu0 %v361
    %2897 = vmatprep.subr.mxu0 %v358
    %2898 = vmatpush1.msra.mxu0 %v357
    %2899 = vmatprep.subr.mxu0 %v354
    %2900 = vmatpush1.msra.mxu0 %v353
    %2901 = vmatprep.subr.mxu0 0.0
    %2902 = vmatpush2.msra.mxu0 0.0
    %2903 = vmatprep.subr.mxu0 0.0
    %2904 = vmatpush2.msra.mxu0 0.0
    %2905 = vmatprep.subr.mxu0 0.0
    %2906 = vmatpush2.msra.mxu0 0.0
    %2907 = vmatprep.subr.mxu0 0.0
    %2908 = vmatpush2.msra.mxu0 0.0
    %2909 = vmatprep.subr.mxu0 0.0
    %2910 = vmatpush2.msra.mxu0 0.0
    %2911 = vmatprep.subr.mxu0 0.0
    %2912 = vmatpush2.msra.mxu0 0.0
    %2913 = vmatprep.subr.mxu0 0.0
    %2914 = vmatpush2.msra.mxu0 0.0
    %2915 = vmatprep.subr.mxu0 0.0
    %2916 = vmatpush2.msra.mxu0 0.0
    %2917 = vmatprep.subr.mxu0 0.0
    %2918 = vmatpush2.msra.mxu0 0.0
    %2919 = vmatprep.subr.mxu0 0.0
    %2920 = vmatpush2.msra.mxu0 0.0
    %2921 = vmatprep.subr.mxu0 0.0
    %2922 = vmatpush2.msra.mxu0 0.0
    %2923 = vmatprep.subr.mxu0 0.0
    %2924 = vmatpush2.msra.mxu0 0.0
    %2925 = vmatprep.subr.mxu0 0.0
    %2926 = vmatpush2.msra.mxu0 0.0
    %2927 = vmatprep.subr.mxu0 0.0
    %2928 = vmatpush2.msra.mxu0 0.0
    %2929 = vmatprep.subr.mxu0 0.0
    %2930 = vmatpush2.msra.mxu0 0.0
    %2931 = vmatprep.subr.mxu0 0.0
    %2932 = vmatpush2.msra.mxu0 0.0
    %2933 = vmatprep.mubr.f32.mxu0 0.0
    %2934 = vmatmul.mubr.f32.gmra.mxu0 %v2655
    %v2935 = vpop.f32.mrf.mxu0
    %v2936 = vadd.f32 %v2794, %v2935
    %v2937 = vpop.f32.mrf.mxu0
    %v2938 = vadd.f32 %v2796, %v2937
    %2939 = vdwg.mxu0
    %v2940 = vadd.f32 %v2865, %v938
    %v2941 = vadd.f32 %v2867, %v942
    %v2942 = vadd.f32 %v2936, %v946
    %v2943 = vadd.f32 %v2938, %v950
    %v2944 = vxor.u32 %v2940, 2147483648
    %v2945 = vmul.f32 %v2944, 1.442695
    %v2946 = vpow.pop %v2945
    %v2947 = vadd.f32 %v2946, 1.0
    %v2948 = vrcp.pop %v2947
    %v2949 = vmul.f32 1.0, %v2948
    %v2950 = vxor.u32 %v2941, 2147483648
    %v2951 = vmul.f32 %v2950, 1.442695
    %v2952 = vpow.pop %v2951
    %v2953 = vadd.f32 %v2952, 1.0
    %v2954 = vrcp.pop %v2953
    %v2955 = vmul.f32 1.0, %v2954
    %v2956 = vtanh.pop %v2942
    %v2957 = vxor.u32 %v2943, 2147483648
    %v2958 = vmul.f32 %v2957, 1.442695
    %v2959 = vpow.pop %v2958
    %v2960 = vadd.f32 %v2959, 1.0
    %v2961 = vrcp.pop %v2960
    %v2962 = vmul.f32 1.0, %v2961
    %v2963 = vmul.f32 %v2955, %v2480
    %v2964 = vmul.f32 %v2949, %v2956
    %v2965 = vadd.f32 %v2963, %v2964
    %v2966 = vtanh.pop %v2965
    %v2967 = vmul.f32 %v2962, %v2966
    %2968 = vmatprep.subr.mxu0 %v348
    %2969 = vmatpush1.msra.mxu0 %v347
    %2970 = vmatprep.subr.mxu0 %v344
    %2971 = vmatpush1.msra.mxu0 %v343
    %2972 = vmatprep.subr.mxu0 %v340
    %2973 = vmatpush1.msra.mxu0 %v339
    %2974 = vmatprep.subr.mxu0 %v336
    %2975 = vmatpush1.msra.mxu0 %v335
    %2976 = vmatprep.subr.mxu0 %v332
    %2977 = vmatpush1.msra.mxu0 %v331
    %2978 = vmatprep.subr.mxu0 %v328
    %2979 = vmatpush1.msra.mxu0 %v327
    %2980 = vmatprep.subr.mxu0 %v324
    %2981 = vmatpush1.msra.mxu0 %v323
    %2982 = vmatprep.subr.mxu0 %v320
    %2983 = vmatpush1.msra.mxu0 %v319
    %2984 = vmatprep.subr.mxu0 %v316
    %2985 = vmatpush1.msra.mxu0 %v315
    %2986 = vmatprep.subr.mxu0 %v312
    %2987 = vmatpush1.msra.mxu0 %v311
    %2988 = vmatprep.subr.mxu0 %v308
    %2989 = vmatpush1.msra.mxu0 %v307
    %2990 = vmatprep.subr.mxu0 %v304
    %2991 = vmatpush1.msra.mxu0 %v303
    %2992 = vmatprep.subr.mxu0 %v300
    %2993 = vmatpush1.msra.mxu0 %v299
    %2994 = vmatprep.subr.mxu0 %v296
    %2995 = vmatpush1.msra.mxu0 %v295
    %2996 = vmatprep.subr.mxu0 %v292
    %2997 = vmatpush1.msra.mxu0 %v291
    %2998 = vmatprep.subr.mxu0 %v288
    %2999 = vmatpush1.msra.mxu0 %v287
    %3000 = vmatprep.subr.mxu0 0.0
    %3001 = vmatpush2.msra.mxu0 0.0
    %3002 = vmatprep.subr.mxu0 0.0
    %3003 = vmatpush2.msra.mxu0 0.0
    %3004 = vmatprep.subr.mxu0 0.0
    %3005 = vmatpush2.msra.mxu0 0.0
    %3006 = vmatprep.subr.mxu0 0.0
    %3007 = vmatpush2.msra.mxu0 0.0
    %3008 = vmatprep.subr.mxu0 0.0
    %3009 = vmatpush2.msra.mxu0 0.0
    %3010 = vmatprep.subr.mxu0 0.0
    %3011 = vmatpush2.msra.mxu0 0.0
    %3012 = vmatprep.subr.mxu0 0.0
    %3013 = vmatpush2.msra.mxu0 0.0
    %3014 = vmatprep.subr.mxu0 0.0
    %3015 = vmatpush2.msra.mxu0 0.0
    %3016 = vmatprep.subr.mxu0 0.0
    %3017 = vmatpush2.msra.mxu0 0.0
    %3018 = vmatprep.subr.mxu0 0.0
    %3019 = vmatpush2.msra.mxu0 0.0
    %3020 = vmatprep.subr.mxu0 0.0
    %3021 = vmatpush2.msra.mxu0 0.0
    %3022 = vmatprep.subr.mxu0 0.0
    %3023 = vmatpush2.msra.mxu0 0.0
    %3024 = vmatprep.subr.mxu0 0.0
    %3025 = vmatpush2.msra.mxu0 0.0
    %3026 = vmatprep.subr.mxu0 0.0
    %3027 = vmatpush2.msra.mxu0 0.0
    %3028 = vmatprep.subr.mxu0 0.0
    %3029 = vmatpush2.msra.mxu0 0.0
    %3030 = vmatprep.subr.mxu0 0.0
    %3031 = vmatpush2.msra.mxu0 0.0
    %3032 = vmatprep.mubr.f32.mxu0 0.0
    %3033 = vmatmul.mubr.f32.gmra.mxu0 %v2655
    %v3034 = vpop.f32.mrf.mxu0
    %v3035 = vadd.f32 0.0, %v3034
    %v3036 = vpop.f32.mrf.mxu0
    %v3037 = vadd.f32 0.0, %v3036
    %3038 = vdwg.mxu0
    %3039 = vmatprep.subr.mxu0 %v350
    %3040 = vmatpush1.msra.mxu0 %v349
    %3041 = vmatprep.subr.mxu0 %v346
    %3042 = vmatpush1.msra.mxu0 %v345
    %3043 = vmatprep.subr.mxu0 %v342
    %3044 = vmatpush1.msra.mxu0 %v341
    %3045 = vmatprep.subr.mxu0 %v338
    %3046 = vmatpush1.msra.mxu0 %v337
    %3047 = vmatprep.subr.mxu0 %v334
    %3048 = vmatpush1.msra.mxu0 %v333
    %3049 = vmatprep.subr.mxu0 %v330
    %3050 = vmatpush1.msra.mxu0 %v329
    %3051 = vmatprep.subr.mxu0 %v326
    %3052 = vmatpush1.msra.mxu0 %v325
    %3053 = vmatprep.subr.mxu0 %v322
    %3054 = vmatpush1.msra.mxu0 %v321
    %3055 = vmatprep.subr.mxu0 %v318
    %3056 = vmatpush1.msra.mxu0 %v317
    %3057 = vmatprep.subr.mxu0 %v314
    %3058 = vmatpush1.msra.mxu0 %v313
    %3059 = vmatprep.subr.mxu0 %v310
    %3060 = vmatpush1.msra.mxu0 %v309
    %3061 = vmatprep.subr.mxu0 %v306
    %3062 = vmatpush1.msra.mxu0 %v305
    %3063 = vmatprep.subr.mxu0 %v302
    %3064 = vmatpush1.msra.mxu0 %v301
    %3065 = vmatprep.subr.mxu0 %v298
    %3066 = vmatpush1.msra.mxu0 %v297
    %3067 = vmatprep.subr.mxu0 %v294
    %3068 = vmatpush1.msra.mxu0 %v293
    %3069 = vmatprep.subr.mxu0 %v290
    %3070 = vmatpush1.msra.mxu0 %v289
    %3071 = vmatprep.subr.mxu0 0.0
    %3072 = vmatpush2.msra.mxu0 0.0
    %3073 = vmatprep.subr.mxu0 0.0
    %3074 = vmatpush2.msra.mxu0 0.0
    %3075 = vmatprep.subr.mxu0 0.0
    %3076 = vmatpush2.msra.mxu0 0.0
    %3077 = vmatprep.subr.mxu0 0.0
    %3078 = vmatpush2.msra.mxu0 0.0
    %3079 = vmatprep.subr.mxu0 0.0
    %3080 = vmatpush2.msra.mxu0 0.0
    %3081 = vmatprep.subr.mxu0 0.0
    %3082 = vmatpush2.msra.mxu0 0.0
    %3083 = vmatprep.subr.mxu0 0.0
    %3084 = vmatpush2.msra.mxu0 0.0
    %3085 = vmatprep.subr.mxu0 0.0
    %3086 = vmatpush2.msra.mxu0 0.0
    %3087 = vmatprep.subr.mxu0 0.0
    %3088 = vmatpush2.msra.mxu0 0.0
    %3089 = vmatprep.subr.mxu0 0.0
    %3090 = vmatpush2.msra.mxu0 0.0
    %3091 = vmatprep.subr.mxu0 0.0
    %3092 = vmatpush2.msra.mxu0 0.0
    %3093 = vmatprep.subr.mxu0 0.0
    %3094 = vmatpush2.msra.mxu0 0.0
    %3095 = vmatprep.subr.mxu0 0.0
    %3096 = vmatpush2.msra.mxu0 0.0
    %3097 = vmatprep.subr.mxu0 0.0
    %3098 = vmatpush2.msra.mxu0 0.0
    %3099 = vmatprep.subr.mxu0 0.0
    %3100 = vmatpush2.msra.mxu0 0.0
    %3101 = vmatprep.subr.mxu0 0.0
    %3102 = vmatpush2.msra.mxu0 0.0
    %3103 = vmatprep.mubr.f32.mxu0 0.0
    %3104 = vmatmul.mubr.f32.gmra.mxu0 %v2655
    %v3105 = vpop.f32.mrf.mxu0
    %v3106 = vadd.f32 0.0, %v3105
    %v3107 = vpop.f32.mrf.mxu0
    %v3108 = vadd.f32 0.0, %v3107
    %3109 = vdwg.mxu0
    %v3114 = vrot.slane %v3035, 6
    %v3115 = vrot.slane %v3037, 6
    %v3116 = vrot.slane %v3106, 6
    %v3117 = vrot.slane %v3108, 6
    %v3122 = vadd.f32 %v206, %v3114
    %v3123 = vadd.f32 %v208, %v3115
    %v3124 = vadd.f32 %v283, %v3116
    %v3125 = vadd.f32 %v285, %v3117
    %v3126 = vxor.u32 %v3122, 2147483648
    %v3127 = vmul.f32 %v3126, 1.442695
    %v3128 = vpow.pop %v3127
    %v3129 = vadd.f32 %v3128, 1.0
    %v3130 = vrcp.pop %v3129
    %v3131 = vmul.f32 1.0, %v3130
    %v3132 = vxor.u32 %v3123, 2147483648
    %v3133 = vmul.f32 %v3132, 1.442695
    %v3134 = vpow.pop %v3133
    %v3135 = vadd.f32 %v3134, 1.0
    %v3136 = vrcp.pop %v3135
    %v3137 = vmul.f32 1.0, %v3136
    %v3138 = vtanh.pop %v3124
    %v3139 = vxor.u32 %v3125, 2147483648
    %v3140 = vmul.f32 %v3139, 1.442695
    %v3141 = vpow.pop %v3140
    %v3142 = vadd.f32 %v3141, 1.0
    %v3143 = vrcp.pop %v3142
    %v3144 = vmul.f32 1.0, %v3143
    %v3146 = vrot.slane %v2653, 6
    %v3148 = vmul.f32 %v3137, %v3146
    %v3149 = vmul.f32 %v3131, %v3138
    %v3150 = vadd.f32 %v3148, %v3149
    %v3151 = vtanh.pop %v3150
    %v3152 = vmul.f32 %v3144, %v3151
    %3153 = vmatprep.subr.mxu0 %v476
    %3154 = vmatpush1.msra.mxu0 %v475
    %3155 = vmatprep.subr.mxu0 %v472
    %3156 = vmatpush1.msra.mxu0 %v471
    %3157 = vmatprep.subr.mxu0 %v468
    %3158 = vmatpush1.msra.mxu0 %v467
    %3159 = vmatprep.subr.mxu0 %v464
    %3160 = vmatpush1.msra.mxu0 %v463
    %3161 = vmatprep.subr.mxu0 %v460
    %3162 = vmatpush1.msra.mxu0 %v459
    %3163 = vmatprep.subr.mxu0 %v456
    %3164 = vmatpush1.msra.mxu0 %v455
    %3165 = vmatprep.subr.mxu0 %v452
    %3166 = vmatpush1.msra.mxu0 %v451
    %3167 = vmatprep.subr.mxu0 %v448
    %3168 = vmatpush1.msra.mxu0 %v447
    %3169 = vmatprep.subr.mxu0 %v444
    %3170 = vmatpush1.msra.mxu0 %v443
    %3171 = vmatprep.subr.mxu0 %v440
    %3172 = vmatpush1.msra.mxu0 %v439
    %3173 = vmatprep.subr.mxu0 %v436
    %3174 = vmatpush1.msra.mxu0 %v435
    %3175 = vmatprep.subr.mxu0 %v432
    %3176 = vmatpush1.msra.mxu0 %v431
    %3177 = vmatprep.subr.mxu0 %v428
    %3178 = vmatpush1.msra.mxu0 %v427
    %3179 = vmatprep.subr.mxu0 %v424
    %3180 = vmatpush1.msra.mxu0 %v423
    %3181 = vmatprep.subr.mxu0 %v420
    %3182 = vmatpush1.msra.mxu0 %v419
    %3183 = vmatprep.subr.mxu0 %v416
    %3184 = vmatpush1.msra.mxu0 %v415
    %3185 = vmatprep.subr.mxu0 0.0
    %3186 = vmatpush2.msra.mxu0 0.0
    %3187 = vmatprep.subr.mxu0 0.0
    %3188 = vmatpush2.msra.mxu0 0.0
    %3189 = vmatprep.subr.mxu0 0.0
    %3190 = vmatpush2.msra.mxu0 0.0
    %3191 = vmatprep.subr.mxu0 0.0
    %3192 = vmatpush2.msra.mxu0 0.0
    %3193 = vmatprep.subr.mxu0 0.0
    %3194 = vmatpush2.msra.mxu0 0.0
    %3195 = vmatprep.subr.mxu0 0.0
    %3196 = vmatpush2.msra.mxu0 0.0
    %3197 = vmatprep.subr.mxu0 0.0
    %3198 = vmatpush2.msra.mxu0 0.0
    %3199 = vmatprep.subr.mxu0 0.0
    %3200 = vmatpush2.msra.mxu0 0.0
    %3201 = vmatprep.subr.mxu0 0.0
    %3202 = vmatpush2.msra.mxu0 0.0
    %3203 = vmatprep.subr.mxu0 0.0
    %3204 = vmatpush2.msra.mxu0 0.0
    %3205 = vmatprep.subr.mxu0 0.0
    %3206 = vmatpush2.msra.mxu0 0.0
    %3207 = vmatprep.subr.mxu0 0.0
    %3208 = vmatpush2.msra.mxu0 0.0
    %3209 = vmatprep.subr.mxu0 0.0
    %3210 = vmatpush2.msra.mxu0 0.0
    %3211 = vmatprep.subr.mxu0 0.0
    %3212 = vmatpush2.msra.mxu0 0.0
    %3213 = vmatprep.subr.mxu0 0.0
    %3214 = vmatpush2.msra.mxu0 0.0
    %3215 = vmatprep.subr.mxu0 0.0
    %3216 = vmatpush2.msra.mxu0 0.0
    %3217 = vmatprep.mubr.f32.mxu0 0.0
    %3218 = vmatmul.mubr.f32.gmra.mxu0 %v2967
    %v3219 = vpop.f32.mrf.mxu0
    %v3220 = vadd.f32 0.0, %v3219
    %v3221 = vpop.f32.mrf.mxu0
    %v3222 = vadd.f32 0.0, %v3221
    %3223 = vdwg.mxu0
    %3224 = vmatprep.subr.mxu0 %v478
    %3225 = vmatpush1.msra.mxu0 %v477
    %3226 = vmatprep.subr.mxu0 %v474
    %3227 = vmatpush1.msra.mxu0 %v473
    %3228 = vmatprep.subr.mxu0 %v470
    %3229 = vmatpush1.msra.mxu0 %v469
    %3230 = vmatprep.subr.mxu0 %v466
    %3231 = vmatpush1.msra.mxu0 %v465
    %3232 = vmatprep.subr.mxu0 %v462
    %3233 = vmatpush1.msra.mxu0 %v461
    %3234 = vmatprep.subr.mxu0 %v458
    %3235 = vmatpush1.msra.mxu0 %v457
    %3236 = vmatprep.subr.mxu0 %v454
    %3237 = vmatpush1.msra.mxu0 %v453
    %3238 = vmatprep.subr.mxu0 %v450
    %3239 = vmatpush1.msra.mxu0 %v449
    %3240 = vmatprep.subr.mxu0 %v446
    %3241 = vmatpush1.msra.mxu0 %v445
    %3242 = vmatprep.subr.mxu0 %v442
    %3243 = vmatpush1.msra.mxu0 %v441
    %3244 = vmatprep.subr.mxu0 %v438
    %3245 = vmatpush1.msra.mxu0 %v437
    %3246 = vmatprep.subr.mxu0 %v434
    %3247 = vmatpush1.msra.mxu0 %v433
    %3248 = vmatprep.subr.mxu0 %v430
    %3249 = vmatpush1.msra.mxu0 %v429
    %3250 = vmatprep.subr.mxu0 %v426
    %3251 = vmatpush1.msra.mxu0 %v425
    %3252 = vmatprep.subr.mxu0 %v422
    %3253 = vmatpush1.msra.mxu0 %v421
    %3254 = vmatprep.subr.mxu0 %v418
    %3255 = vmatpush1.msra.mxu0 %v417
    %3256 = vmatprep.subr.mxu0 0.0
    %3257 = vmatpush2.msra.mxu0 0.0
    %3258 = vmatprep.subr.mxu0 0.0
    %3259 = vmatpush2.msra.mxu0 0.0
    %3260 = vmatprep.subr.mxu0 0.0
    %3261 = vmatpush2.msra.mxu0 0.0
    %3262 = vmatprep.subr.mxu0 0.0
    %3263 = vmatpush2.msra.mxu0 0.0
    %3264 = vmatprep.subr.mxu0 0.0
    %3265 = vmatpush2.msra.mxu0 0.0
    %3266 = vmatprep.subr.mxu0 0.0
    %3267 = vmatpush2.msra.mxu0 0.0
    %3268 = vmatprep.subr.mxu0 0.0
    %3269 = vmatpush2.msra.mxu0 0.0
    %3270 = vmatprep.subr.mxu0 0.0
    %3271 = vmatpush2.msra.mxu0 0.0
    %3272 = vmatprep.subr.mxu0 0.0
    %3273 = vmatpush2.msra.mxu0 0.0
    %3274 = vmatprep.subr.mxu0 0.0
    %3275 = vmatpush2.msra.mxu0 0.0
    %3276 = vmatprep.subr.mxu0 0.0
    %3277 = vmatpush2.msra.mxu0 0.0
    %3278 = vmatprep.subr.mxu0 0.0
    %3279 = vmatpush2.msra.mxu0 0.0
    %3280 = vmatprep.subr.mxu0 0.0
    %3281 = vmatpush2.msra.mxu0 0.0
    %3282 = vmatprep.subr.mxu0 0.0
    %3283 = vmatpush2.msra.mxu0 0.0
    %3284 = vmatprep.subr.mxu0 0.0
    %3285 = vmatpush2.msra.mxu0 0.0
    %3286 = vmatprep.subr.mxu0 0.0
    %3287 = vmatpush2.msra.mxu0 0.0
    %3288 = vmatprep.mubr.f32.mxu0 0.0
    %3289 = vmatmul.mubr.f32.gmra.mxu0 %v2967
    %v3290 = vpop.f32.mrf.mxu0
    %v3291 = vadd.f32 0.0, %v3290
    %v3292 = vpop.f32.mrf.mxu0
    %v3293 = vadd.f32 0.0, %v3292
    %3294 = vdwg.mxu0
    %v3296 = vrot.slane %v3152, 2
    %3298 = vmatprep.subr.mxu0 %v412
    %3299 = vmatpush1.msra.mxu0 %v411
    %3300 = vmatprep.subr.mxu0 %v408
    %3301 = vmatpush1.msra.mxu0 %v407
    %3302 = vmatprep.subr.mxu0 %v404
    %3303 = vmatpush1.msra.mxu0 %v403
    %3304 = vmatprep.subr.mxu0 %v400
    %3305 = vmatpush1.msra.mxu0 %v399
    %3306 = vmatprep.subr.mxu0 %v396
    %3307 = vmatpush1.msra.mxu0 %v395
    %3308 = vmatprep.subr.mxu0 %v392
    %3309 = vmatpush1.msra.mxu0 %v391
    %3310 = vmatprep.subr.mxu0 %v388
    %3311 = vmatpush1.msra.mxu0 %v387
    %3312 = vmatprep.subr.mxu0 %v384
    %3313 = vmatpush1.msra.mxu0 %v383
    %3314 = vmatprep.subr.mxu0 %v380
    %3315 = vmatpush1.msra.mxu0 %v379
    %3316 = vmatprep.subr.mxu0 %v376
    %3317 = vmatpush1.msra.mxu0 %v375
    %3318 = vmatprep.subr.mxu0 %v372
    %3319 = vmatpush1.msra.mxu0 %v371
    %3320 = vmatprep.subr.mxu0 %v368
    %3321 = vmatpush1.msra.mxu0 %v367
    %3322 = vmatprep.subr.mxu0 %v364
    %3323 = vmatpush1.msra.mxu0 %v363
    %3324 = vmatprep.subr.mxu0 %v360
    %3325 = vmatpush1.msra.mxu0 %v359
    %3326 = vmatprep.subr.mxu0 %v356
    %3327 = vmatpush1.msra.mxu0 %v355
    %3328 = vmatprep.subr.mxu0 %v352
    %3329 = vmatpush1.msra.mxu0 %v351
    %3330 = vmatprep.subr.mxu0 0.0
    %3331 = vmatpush2.msra.mxu0 0.0
    %3332 = vmatprep.subr.mxu0 0.0
    %3333 = vmatpush2.msra.mxu0 0.0
    %3334 = vmatprep.subr.mxu0 0.0
    %3335 = vmatpush2.msra.mxu0 0.0
    %3336 = vmatprep.subr.mxu0 0.0
    %3337 = vmatpush2.msra.mxu0 0.0
    %3338 = vmatprep.subr.mxu0 0.0
    %3339 = vmatpush2.msra.mxu0 0.0
    %3340 = vmatprep.subr.mxu0 0.0
    %3341 = vmatpush2.msra.mxu0 0.0
    %3342 = vmatprep.subr.mxu0 0.0
    %3343 = vmatpush2.msra.mxu0 0.0
    %3344 = vmatprep.subr.mxu0 0.0
    %3345 = vmatpush2.msra.mxu0 0.0
    %3346 = vmatprep.subr.mxu0 0.0
    %3347 = vmatpush2.msra.mxu0 0.0
    %3348 = vmatprep.subr.mxu0 0.0
    %3349 = vmatpush2.msra.mxu0 0.0
    %3350 = vmatprep.subr.mxu0 0.0
    %3351 = vmatpush2.msra.mxu0 0.0
    %3352 = vmatprep.subr.mxu0 0.0
    %3353 = vmatpush2.msra.mxu0 0.0
    %3354 = vmatprep.subr.mxu0 0.0
    %3355 = vmatpush2.msra.mxu0 0.0
    %3356 = vmatprep.subr.mxu0 0.0
    %3357 = vmatpush2.msra.mxu0 0.0
    %3358 = vmatprep.subr.mxu0 0.0
    %3359 = vmatpush2.msra.mxu0 0.0
    %3360 = vmatprep.subr.mxu0 0.0
    %3361 = vmatpush2.msra.mxu0 0.0
    %3362 = vmatprep.mubr.f32.mxu0 0.0
    %3363 = vmatmul.mubr.f32.gmra.mxu0 %v3296
    %v3364 = vpop.f32.mrf.mxu0
    %v3365 = vadd.f32 %v3220, %v3364
    %v3366 = vpop.f32.mrf.mxu0
    %v3367 = vadd.f32 %v3222, %v3366
    %3368 = vdwg.mxu0
    %3369 = vmatprep.subr.mxu0 %v414
    %3370 = vmatpush1.msra.mxu0 %v413
    %3371 = vmatprep.subr.mxu0 %v410
    %3372 = vmatpush1.msra.mxu0 %v409
    %3373 = vmatprep.subr.mxu0 %v406
    %3374 = vmatpush1.msra.mxu0 %v405
    %3375 = vmatprep.subr.mxu0 %v402
    %3376 = vmatpush1.msra.mxu0 %v401
    %3377 = vmatprep.subr.mxu0 %v398
    %3378 = vmatpush1.msra.mxu0 %v397
    %3379 = vmatprep.subr.mxu0 %v394
    %3380 = vmatpush1.msra.mxu0 %v393
    %3381 = vmatprep.subr.mxu0 %v390
    %3382 = vmatpush1.msra.mxu0 %v389
    %3383 = vmatprep.subr.mxu0 %v386
    %3384 = vmatpush1.msra.mxu0 %v385
    %3385 = vmatprep.subr.mxu0 %v382
    %3386 = vmatpush1.msra.mxu0 %v381
    %3387 = vmatprep.subr.mxu0 %v378
    %3388 = vmatpush1.msra.mxu0 %v377
    %3389 = vmatprep.subr.mxu0 %v374
    %3390 = vmatpush1.msra.mxu0 %v373
    %3391 = vmatprep.subr.mxu0 %v370
    %3392 = vmatpush1.msra.mxu0 %v369
    %3393 = vmatprep.subr.mxu0 %v366
    %3394 = vmatpush1.msra.mxu0 %v365
    %3395 = vmatprep.subr.mxu0 %v362
    %3396 = vmatpush1.msra.mxu0 %v361
    %3397 = vmatprep.subr.mxu0 %v358
    %3398 = vmatpush1.msra.mxu0 %v357
    %3399 = vmatprep.subr.mxu0 %v354
    %3400 = vmatpush1.msra.mxu0 %v353
    %3401 = vmatprep.subr.mxu0 0.0
    %3402 = vmatpush2.msra.mxu0 0.0
    %3403 = vmatprep.subr.mxu0 0.0
    %3404 = vmatpush2.msra.mxu0 0.0
    %3405 = vmatprep.subr.mxu0 0.0
    %3406 = vmatpush2.msra.mxu0 0.0
    %3407 = vmatprep.subr.mxu0 0.0
    %3408 = vmatpush2.msra.mxu0 0.0
    %3409 = vmatprep.subr.mxu0 0.0
    %3410 = vmatpush2.msra.mxu0 0.0
    %3411 = vmatprep.subr.mxu0 0.0
    %3412 = vmatpush2.msra.mxu0 0.0
    %3413 = vmatprep.subr.mxu0 0.0
    %3414 = vmatpush2.msra.mxu0 0.0
    %3415 = vmatprep.subr.mxu0 0.0
    %3416 = vmatpush2.msra.mxu0 0.0
    %3417 = vmatprep.subr.mxu0 0.0
    %3418 = vmatpush2.msra.mxu0 0.0
    %3419 = vmatprep.subr.mxu0 0.0
    %3420 = vmatpush2.msra.mxu0 0.0
    %3421 = vmatprep.subr.mxu0 0.0
    %3422 = vmatpush2.msra.mxu0 0.0
    %3423 = vmatprep.subr.mxu0 0.0
    %3424 = vmatpush2.msra.mxu0 0.0
    %3425 = vmatprep.subr.mxu0 0.0
    %3426 = vmatpush2.msra.mxu0 0.0
    %3427 = vmatprep.subr.mxu0 0.0
    %3428 = vmatpush2.msra.mxu0 0.0
    %3429 = vmatprep.subr.mxu0 0.0
    %3430 = vmatpush2.msra.mxu0 0.0
    %3431 = vmatprep.subr.mxu0 0.0
    %3432 = vmatpush2.msra.mxu0 0.0
    %3433 = vmatprep.mubr.f32.mxu0 0.0
    %3434 = vmatmul.mubr.f32.gmra.mxu0 %v3296
    %v3435 = vpop.f32.mrf.mxu0
    %v3436 = vadd.f32 %v3291, %v3435
    %v3437 = vpop.f32.mrf.mxu0
    %v3438 = vadd.f32 %v3293, %v3437
    %3439 = vdwg.mxu0
    %v3440 = vadd.f32 %v3365, %v938
    %v3441 = vadd.f32 %v3367, %v942
    %v3442 = vadd.f32 %v3436, %v946
    %v3443 = vadd.f32 %v3438, %v950
    %v3444 = vxor.u32 %v3440, 2147483648
    %v3445 = vmul.f32 %v3444, 1.442695
    %v3446 = vpow.pop %v3445
    %v3447 = vadd.f32 %v3446, 1.0
    %v3448 = vrcp.pop %v3447
    %v3449 = vmul.f32 1.0, %v3448
    %v3450 = vxor.u32 %v3441, 2147483648
    %v3451 = vmul.f32 %v3450, 1.442695
    %v3452 = vpow.pop %v3451
    %v3453 = vadd.f32 %v3452, 1.0
    %v3454 = vrcp.pop %v3453
    %v3455 = vmul.f32 1.0, %v3454
    %v3456 = vtanh.pop %v3442
    %v3457 = vxor.u32 %v3443, 2147483648
    %v3458 = vmul.f32 %v3457, 1.442695
    %v3459 = vpow.pop %v3458
    %v3460 = vadd.f32 %v3459, 1.0
    %v3461 = vrcp.pop %v3460
    %v3462 = vmul.f32 1.0, %v3461
    %v3463 = vmul.f32 %v3455, %v2965
    %v3464 = vmul.f32 %v3449, %v3456
    %v3465 = vadd.f32 %v3463, %v3464
    %v3466 = vtanh.pop %v3465
    %v3467 = vmul.f32 %v3462, %v3466
    %3468 = vmatprep.subr.mxu0 %v348
    %3469 = vmatpush1.msra.mxu0 %v347
    %3470 = vmatprep.subr.mxu0 %v344
    %3471 = vmatpush1.msra.mxu0 %v343
    %3472 = vmatprep.subr.mxu0 %v340
    %3473 = vmatpush1.msra.mxu0 %v339
    %3474 = vmatprep.subr.mxu0 %v336
    %3475 = vmatpush1.msra.mxu0 %v335
    %3476 = vmatprep.subr.mxu0 %v332
    %3477 = vmatpush1.msra.mxu0 %v331
    %3478 = vmatprep.subr.mxu0 %v328
    %3479 = vmatpush1.msra.mxu0 %v327
    %3480 = vmatprep.subr.mxu0 %v324
    %3481 = vmatpush1.msra.mxu0 %v323
    %3482 = vmatprep.subr.mxu0 %v320
    %3483 = vmatpush1.msra.mxu0 %v319
    %3484 = vmatprep.subr.mxu0 %v316
    %3485 = vmatpush1.msra.mxu0 %v315
    %3486 = vmatprep.subr.mxu0 %v312
    %3487 = vmatpush1.msra.mxu0 %v311
    %3488 = vmatprep.subr.mxu0 %v308
    %3489 = vmatpush1.msra.mxu0 %v307
    %3490 = vmatprep.subr.mxu0 %v304
    %3491 = vmatpush1.msra.mxu0 %v303
    %3492 = vmatprep.subr.mxu0 %v300
    %3493 = vmatpush1.msra.mxu0 %v299
    %3494 = vmatprep.subr.mxu0 %v296
    %3495 = vmatpush1.msra.mxu0 %v295
    %3496 = vmatprep.subr.mxu0 %v292
    %3497 = vmatpush1.msra.mxu0 %v291
    %3498 = vmatprep.subr.mxu0 %v288
    %3499 = vmatpush1.msra.mxu0 %v287
    %3500 = vmatprep.subr.mxu0 0.0
    %3501 = vmatpush2.msra.mxu0 0.0
    %3502 = vmatprep.subr.mxu0 0.0
    %3503 = vmatpush2.msra.mxu0 0.0
    %3504 = vmatprep.subr.mxu0 0.0
    %3505 = vmatpush2.msra.mxu0 0.0
    %3506 = vmatprep.subr.mxu0 0.0
    %3507 = vmatpush2.msra.mxu0 0.0
    %3508 = vmatprep.subr.mxu0 0.0
    %3509 = vmatpush2.msra.mxu0 0.0
    %3510 = vmatprep.subr.mxu0 0.0
    %3511 = vmatpush2.msra.mxu0 0.0
    %3512 = vmatprep.subr.mxu0 0.0
    %3513 = vmatpush2.msra.mxu0 0.0
    %3514 = vmatprep.subr.mxu0 0.0
    %3515 = vmatpush2.msra.mxu0 0.0
    %3516 = vmatprep.subr.mxu0 0.0
    %3517 = vmatpush2.msra.mxu0 0.0
    %3518 = vmatprep.subr.mxu0 0.0
    %3519 = vmatpush2.msra.mxu0 0.0
    %3520 = vmatprep.subr.mxu0 0.0
    %3521 = vmatpush2.msra.mxu0 0.0
    %3522 = vmatprep.subr.mxu0 0.0
    %3523 = vmatpush2.msra.mxu0 0.0
    %3524 = vmatprep.subr.mxu0 0.0
    %3525 = vmatpush2.msra.mxu0 0.0
    %3526 = vmatprep.subr.mxu0 0.0
    %3527 = vmatpush2.msra.mxu0 0.0
    %3528 = vmatprep.subr.mxu0 0.0
    %3529 = vmatpush2.msra.mxu0 0.0
    %3530 = vmatprep.subr.mxu0 0.0
    %3531 = vmatpush2.msra.mxu0 0.0
    %3532 = vmatprep.mubr.f32.mxu0 0.0
    %3533 = vmatmul.mubr.f32.gmra.mxu0 %v3296
    %v3534 = vpop.f32.mrf.mxu0
    %v3535 = vadd.f32 0.0, %v3534
    %v3536 = vpop.f32.mrf.mxu0
    %v3537 = vadd.f32 0.0, %v3536
    %3538 = vdwg.mxu0
    %3539 = vmatprep.subr.mxu0 %v350
    %3540 = vmatpush1.msra.mxu0 %v349
    %3541 = vmatprep.subr.mxu0 %v346
    %3542 = vmatpush1.msra.mxu0 %v345
    %3543 = vmatprep.subr.mxu0 %v342
    %3544 = vmatpush1.msra.mxu0 %v341
    %3545 = vmatprep.subr.mxu0 %v338
    %3546 = vmatpush1.msra.mxu0 %v337
    %3547 = vmatprep.subr.mxu0 %v334
    %3548 = vmatpush1.msra.mxu0 %v333
    %3549 = vmatprep.subr.mxu0 %v330
    %3550 = vmatpush1.msra.mxu0 %v329
    %3551 = vmatprep.subr.mxu0 %v326
    %3552 = vmatpush1.msra.mxu0 %v325
    %3553 = vmatprep.subr.mxu0 %v322
    %3554 = vmatpush1.msra.mxu0 %v321
    %3555 = vmatprep.subr.mxu0 %v318
    %3556 = vmatpush1.msra.mxu0 %v317
    %3557 = vmatprep.subr.mxu0 %v314
    %3558 = vmatpush1.msra.mxu0 %v313
    %3559 = vmatprep.subr.mxu0 %v310
    %3560 = vmatpush1.msra.mxu0 %v309
    %3561 = vmatprep.subr.mxu0 %v306
    %3562 = vmatpush1.msra.mxu0 %v305
    %3563 = vmatprep.subr.mxu0 %v302
    %3564 = vmatpush1.msra.mxu0 %v301
    %3565 = vmatprep.subr.mxu0 %v298
    %3566 = vmatpush1.msra.mxu0 %v297
    %3567 = vmatprep.subr.mxu0 %v294
    %3568 = vmatpush1.msra.mxu0 %v293
    %3569 = vmatprep.subr.mxu0 %v290
    %3570 = vmatpush1.msra.mxu0 %v289
    %3571 = vmatprep.subr.mxu0 0.0
    %3572 = vmatpush2.msra.mxu0 0.0
    %3573 = vmatprep.subr.mxu0 0.0
    %3574 = vmatpush2.msra.mxu0 0.0
    %3575 = vmatprep.subr.mxu0 0.0
    %3576 = vmatpush2.msra.mxu0 0.0
    %3577 = vmatprep.subr.mxu0 0.0
    %3578 = vmatpush2.msra.mxu0 0.0
    %3579 = vmatprep.subr.mxu0 0.0
    %3580 = vmatpush2.msra.mxu0 0.0
    %3581 = vmatprep.subr.mxu0 0.0
    %3582 = vmatpush2.msra.mxu0 0.0
    %3583 = vmatprep.subr.mxu0 0.0
    %3584 = vmatpush2.msra.mxu0 0.0
    %3585 = vmatprep.subr.mxu0 0.0
    %3586 = vmatpush2.msra.mxu0 0.0
    %3587 = vmatprep.subr.mxu0 0.0
    %3588 = vmatpush2.msra.mxu0 0.0
    %3589 = vmatprep.subr.mxu0 0.0
    %3590 = vmatpush2.msra.mxu0 0.0
    %3591 = vmatprep.subr.mxu0 0.0
    %3592 = vmatpush2.msra.mxu0 0.0
    %3593 = vmatprep.subr.mxu0 0.0
    %3594 = vmatpush2.msra.mxu0 0.0
    %3595 = vmatprep.subr.mxu0 0.0
    %3596 = vmatpush2.msra.mxu0 0.0
    %3597 = vmatprep.subr.mxu0 0.0
    %3598 = vmatpush2.msra.mxu0 0.0
    %3599 = vmatprep.subr.mxu0 0.0
    %3600 = vmatpush2.msra.mxu0 0.0
    %3601 = vmatprep.subr.mxu0 0.0
    %3602 = vmatpush2.msra.mxu0 0.0
    %3603 = vmatprep.mubr.f32.mxu0 0.0
    %3604 = vmatmul.mubr.f32.gmra.mxu0 %v3296
    %v3605 = vpop.f32.mrf.mxu0
    %v3606 = vadd.f32 0.0, %v3605
    %v3607 = vpop.f32.mrf.mxu0
    %v3608 = vadd.f32 0.0, %v3607
    %3609 = vdwg.mxu0
    %v3614 = vrot.slane %v3535, 4
    %v3615 = vrot.slane %v3537, 4
    %v3616 = vrot.slane %v3606, 4
    %v3617 = vrot.slane %v3608, 4
    %v3622 = vadd.f32 %v206, %v3614
    %v3623 = vadd.f32 %v208, %v3615
    %v3624 = vadd.f32 %v283, %v3616
    %v3625 = vadd.f32 %v285, %v3617
    %v3626 = vxor.u32 %v3622, 2147483648
    %v3627 = vmul.f32 %v3626, 1.442695
    %v3628 = vpow.pop %v3627
    %v3629 = vadd.f32 %v3628, 1.0
    %v3630 = vrcp.pop %v3629
    %v3631 = vmul.f32 1.0, %v3630
    %v3632 = vxor.u32 %v3623, 2147483648
    %v3633 = vmul.f32 %v3632, 1.442695
    %v3634 = vpow.pop %v3633
    %v3635 = vadd.f32 %v3634, 1.0
    %v3636 = vrcp.pop %v3635
    %v3637 = vmul.f32 1.0, %v3636
    %v3638 = vtanh.pop %v3624
    %v3639 = vxor.u32 %v3625, 2147483648
    %v3640 = vmul.f32 %v3639, 1.442695
    %v3641 = vpow.pop %v3640
    %v3642 = vadd.f32 %v3641, 1.0
    %v3643 = vrcp.pop %v3642
    %v3644 = vmul.f32 1.0, %v3643
    %v3646 = vrot.slane %v3150, 6
    %v3648 = vmul.f32 %v3637, %v3646
    %v3649 = vmul.f32 %v3631, %v3638
    %v3650 = vadd.f32 %v3648, %v3649
    %v3651 = vtanh.pop %v3650
    %v3652 = vmul.f32 %v3644, %v3651
    %3653 = vmatprep.subr.mxu0 %v476
    %3654 = vmatpush1.msra.mxu0 %v475
    %3655 = vmatprep.subr.mxu0 %v472
    %3656 = vmatpush1.msra.mxu0 %v471
    %3657 = vmatprep.subr.mxu0 %v468
    %3658 = vmatpush1.msra.mxu0 %v467
    %3659 = vmatprep.subr.mxu0 %v464
    %3660 = vmatpush1.msra.mxu0 %v463
    %3661 = vmatprep.subr.mxu0 %v460
    %3662 = vmatpush1.msra.mxu0 %v459
    %3663 = vmatprep.subr.mxu0 %v456
    %3664 = vmatpush1.msra.mxu0 %v455
    %3665 = vmatprep.subr.mxu0 %v452
    %3666 = vmatpush1.msra.mxu0 %v451
    %3667 = vmatprep.subr.mxu0 %v448
    %3668 = vmatpush1.msra.mxu0 %v447
    %3669 = vmatprep.subr.mxu0 %v444
    %3670 = vmatpush1.msra.mxu0 %v443
    %3671 = vmatprep.subr.mxu0 %v440
    %3672 = vmatpush1.msra.mxu0 %v439
    %3673 = vmatprep.subr.mxu0 %v436
    %3674 = vmatpush1.msra.mxu0 %v435
    %3675 = vmatprep.subr.mxu0 %v432
    %3676 = vmatpush1.msra.mxu0 %v431
    %3677 = vmatprep.subr.mxu0 %v428
    %3678 = vmatpush1.msra.mxu0 %v427
    %3679 = vmatprep.subr.mxu0 %v424
    %3680 = vmatpush1.msra.mxu0 %v423
    %3681 = vmatprep.subr.mxu0 %v420
    %3682 = vmatpush1.msra.mxu0 %v419
    %3683 = vmatprep.subr.mxu0 %v416
    %3684 = vmatpush1.msra.mxu0 %v415
    %3685 = vmatprep.subr.mxu0 0.0
    %3686 = vmatpush2.msra.mxu0 0.0
    %3687 = vmatprep.subr.mxu0 0.0
    %3688 = vmatpush2.msra.mxu0 0.0
    %3689 = vmatprep.subr.mxu0 0.0
    %3690 = vmatpush2.msra.mxu0 0.0
    %3691 = vmatprep.subr.mxu0 0.0
    %3692 = vmatpush2.msra.mxu0 0.0
    %3693 = vmatprep.subr.mxu0 0.0
    %3694 = vmatpush2.msra.mxu0 0.0
    %3695 = vmatprep.subr.mxu0 0.0
    %3696 = vmatpush2.msra.mxu0 0.0
    %3697 = vmatprep.subr.mxu0 0.0
    %3698 = vmatpush2.msra.mxu0 0.0
    %3699 = vmatprep.subr.mxu0 0.0
    %3700 = vmatpush2.msra.mxu0 0.0
    %3701 = vmatprep.subr.mxu0 0.0
    %3702 = vmatpush2.msra.mxu0 0.0
    %3703 = vmatprep.subr.mxu0 0.0
    %3704 = vmatpush2.msra.mxu0 0.0
    %3705 = vmatprep.subr.mxu0 0.0
    %3706 = vmatpush2.msra.mxu0 0.0
    %3707 = vmatprep.subr.mxu0 0.0
    %3708 = vmatpush2.msra.mxu0 0.0
    %3709 = vmatprep.subr.mxu0 0.0
    %3710 = vmatpush2.msra.mxu0 0.0
    %3711 = vmatprep.subr.mxu0 0.0
    %3712 = vmatpush2.msra.mxu0 0.0
    %3713 = vmatprep.subr.mxu0 0.0
    %3714 = vmatpush2.msra.mxu0 0.0
    %3715 = vmatprep.subr.mxu0 0.0
    %3716 = vmatpush2.msra.mxu0 0.0
    %3717 = vmatprep.mubr.f32.mxu0 0.0
    %3718 = vmatmul.mubr.f32.gmra.mxu0 %v3467
    %v3719 = vpop.f32.mrf.mxu0
    %v3720 = vadd.f32 0.0, %v3719
    %v3721 = vpop.f32.mrf.mxu0
    %v3722 = vadd.f32 0.0, %v3721
    %3723 = vdwg.mxu0
    %3724 = vmatprep.subr.mxu0 %v478
    %3725 = vmatpush1.msra.mxu0 %v477
    %3726 = vmatprep.subr.mxu0 %v474
    %3727 = vmatpush1.msra.mxu0 %v473
    %3728 = vmatprep.subr.mxu0 %v470
    %3729 = vmatpush1.msra.mxu0 %v469
    %3730 = vmatprep.subr.mxu0 %v466
    %3731 = vmatpush1.msra.mxu0 %v465
    %3732 = vmatprep.subr.mxu0 %v462
    %3733 = vmatpush1.msra.mxu0 %v461
    %3734 = vmatprep.subr.mxu0 %v458
    %3735 = vmatpush1.msra.mxu0 %v457
    %3736 = vmatprep.subr.mxu0 %v454
    %3737 = vmatpush1.msra.mxu0 %v453
    %3738 = vmatprep.subr.mxu0 %v450
    %3739 = vmatpush1.msra.mxu0 %v449
    %3740 = vmatprep.subr.mxu0 %v446
    %3741 = vmatpush1.msra.mxu0 %v445
    %3742 = vmatprep.subr.mxu0 %v442
    %3743 = vmatpush1.msra.mxu0 %v441
    %3744 = vmatprep.subr.mxu0 %v438
    %3745 = vmatpush1.msra.mxu0 %v437
    %3746 = vmatprep.subr.mxu0 %v434
    %3747 = vmatpush1.msra.mxu0 %v433
    %3748 = vmatprep.subr.mxu0 %v430
    %3749 = vmatpush1.msra.mxu0 %v429
    %3750 = vmatprep.subr.mxu0 %v426
    %3751 = vmatpush1.msra.mxu0 %v425
    %3752 = vmatprep.subr.mxu0 %v422
    %3753 = vmatpush1.msra.mxu0 %v421
    %3754 = vmatprep.subr.mxu0 %v418
    %3755 = vmatpush1.msra.mxu0 %v417
    %3756 = vmatprep.subr.mxu0 0.0
    %3757 = vmatpush2.msra.mxu0 0.0
    %3758 = vmatprep.subr.mxu0 0.0
    %3759 = vmatpush2.msra.mxu0 0.0
    %3760 = vmatprep.subr.mxu0 0.0
    %3761 = vmatpush2.msra.mxu0 0.0
    %3762 = vmatprep.subr.mxu0 0.0
    %3763 = vmatpush2.msra.mxu0 0.0
    %3764 = vmatprep.subr.mxu0 0.0
    %3765 = vmatpush2.msra.mxu0 0.0
    %3766 = vmatprep.subr.mxu0 0.0
    %3767 = vmatpush2.msra.mxu0 0.0
    %3768 = vmatprep.subr.mxu0 0.0
    %3769 = vmatpush2.msra.mxu0 0.0
    %3770 = vmatprep.subr.mxu0 0.0
    %3771 = vmatpush2.msra.mxu0 0.0
    %3772 = vmatprep.subr.mxu0 0.0
    %3773 = vmatpush2.msra.mxu0 0.0
    %3774 = vmatprep.subr.mxu0 0.0
    %3775 = vmatpush2.msra.mxu0 0.0
    %3776 = vmatprep.subr.mxu0 0.0
    %3777 = vmatpush2.msra.mxu0 0.0
    %3778 = vmatprep.subr.mxu0 0.0
    %3779 = vmatpush2.msra.mxu0 0.0
    %3780 = vmatprep.subr.mxu0 0.0
    %3781 = vmatpush2.msra.mxu0 0.0
    %3782 = vmatprep.subr.mxu0 0.0
    %3783 = vmatpush2.msra.mxu0 0.0
    %3784 = vmatprep.subr.mxu0 0.0
    %3785 = vmatpush2.msra.mxu0 0.0
    %3786 = vmatprep.subr.mxu0 0.0
    %3787 = vmatpush2.msra.mxu0 0.0
    %3788 = vmatprep.mubr.f32.mxu0 0.0
    %3789 = vmatmul.mubr.f32.gmra.mxu0 %v3467
    %v3790 = vpop.f32.mrf.mxu0
    %v3791 = vadd.f32 0.0, %v3790
    %v3792 = vpop.f32.mrf.mxu0
    %v3793 = vadd.f32 0.0, %v3792
    %3794 = vdwg.mxu0
    %v3796 = vrot.slane %v3652, 4
    %3798 = vmatprep.subr.mxu0 %v412
    %3799 = vmatpush1.msra.mxu0 %v411
    %3800 = vmatprep.subr.mxu0 %v408
    %3801 = vmatpush1.msra.mxu0 %v407
    %3802 = vmatprep.subr.mxu0 %v404
    %3803 = vmatpush1.msra.mxu0 %v403
    %3804 = vmatprep.subr.mxu0 %v400
    %3805 = vmatpush1.msra.mxu0 %v399
    %3806 = vmatprep.subr.mxu0 %v396
    %3807 = vmatpush1.msra.mxu0 %v395
    %3808 = vmatprep.subr.mxu0 %v392
    %3809 = vmatpush1.msra.mxu0 %v391
    %3810 = vmatprep.subr.mxu0 %v388
    %3811 = vmatpush1.msra.mxu0 %v387
    %3812 = vmatprep.subr.mxu0 %v384
    %3813 = vmatpush1.msra.mxu0 %v383
    %3814 = vmatprep.subr.mxu0 %v380
    %3815 = vmatpush1.msra.mxu0 %v379
    %3816 = vmatprep.subr.mxu0 %v376
    %3817 = vmatpush1.msra.mxu0 %v375
    %3818 = vmatprep.subr.mxu0 %v372
    %3819 = vmatpush1.msra.mxu0 %v371
    %3820 = vmatprep.subr.mxu0 %v368
    %3821 = vmatpush1.msra.mxu0 %v367
    %3822 = vmatprep.subr.mxu0 %v364
    %3823 = vmatpush1.msra.mxu0 %v363
    %3824 = vmatprep.subr.mxu0 %v360
    %3825 = vmatpush1.msra.mxu0 %v359
    %3826 = vmatprep.subr.mxu0 %v356
    %3827 = vmatpush1.msra.mxu0 %v355
    %3828 = vmatprep.subr.mxu0 %v352
    %3829 = vmatpush1.msra.mxu0 %v351
    %3830 = vmatprep.subr.mxu0 0.0
    %3831 = vmatpush2.msra.mxu0 0.0
    %3832 = vmatprep.subr.mxu0 0.0
    %3833 = vmatpush2.msra.mxu0 0.0
    %3834 = vmatprep.subr.mxu0 0.0
    %3835 = vmatpush2.msra.mxu0 0.0
    %3836 = vmatprep.subr.mxu0 0.0
    %3837 = vmatpush2.msra.mxu0 0.0
    %3838 = vmatprep.subr.mxu0 0.0
    %3839 = vmatpush2.msra.mxu0 0.0
    %3840 = vmatprep.subr.mxu0 0.0
    %3841 = vmatpush2.msra.mxu0 0.0
    %3842 = vmatprep.subr.mxu0 0.0
    %3843 = vmatpush2.msra.mxu0 0.0
    %3844 = vmatprep.subr.mxu0 0.0
    %3845 = vmatpush2.msra.mxu0 0.0
    %3846 = vmatprep.subr.mxu0 0.0
    %3847 = vmatpush2.msra.mxu0 0.0
    %3848 = vmatprep.subr.mxu0 0.0
    %3849 = vmatpush2.msra.mxu0 0.0
    %3850 = vmatprep.subr.mxu0 0.0
    %3851 = vmatpush2.msra.mxu0 0.0
    %3852 = vmatprep.subr.mxu0 0.0
    %3853 = vmatpush2.msra.mxu0 0.0
    %3854 = vmatprep.subr.mxu0 0.0
    %3855 = vmatpush2.msra.mxu0 0.0
    %3856 = vmatprep.subr.mxu0 0.0
    %3857 = vmatpush2.msra.mxu0 0.0
    %3858 = vmatprep.subr.mxu0 0.0
    %3859 = vmatpush2.msra.mxu0 0.0
    %3860 = vmatprep.subr.mxu0 0.0
    %3861 = vmatpush2.msra.mxu0 0.0
    %3862 = vmatprep.mubr.f32.mxu0 0.0
    %3863 = vmatmul.mubr.f32.gmra.mxu0 %v3796
    %v3864 = vpop.f32.mrf.mxu0
    %v3865 = vadd.f32 %v3720, %v3864
    %v3866 = vpop.f32.mrf.mxu0
    %v3867 = vadd.f32 %v3722, %v3866
    %3868 = vdwg.mxu0
    %3869 = vmatprep.subr.mxu0 %v414
    %3870 = vmatpush1.msra.mxu0 %v413
    %3871 = vmatprep.subr.mxu0 %v410
    %3872 = vmatpush1.msra.mxu0 %v409
    %3873 = vmatprep.subr.mxu0 %v406
    %3874 = vmatpush1.msra.mxu0 %v405
    %3875 = vmatprep.subr.mxu0 %v402
    %3876 = vmatpush1.msra.mxu0 %v401
    %3877 = vmatprep.subr.mxu0 %v398
    %3878 = vmatpush1.msra.mxu0 %v397
    %3879 = vmatprep.subr.mxu0 %v394
    %3880 = vmatpush1.msra.mxu0 %v393
    %3881 = vmatprep.subr.mxu0 %v390
    %3882 = vmatpush1.msra.mxu0 %v389
    %3883 = vmatprep.subr.mxu0 %v386
    %3884 = vmatpush1.msra.mxu0 %v385
    %3885 = vmatprep.subr.mxu0 %v382
    %3886 = vmatpush1.msra.mxu0 %v381
    %3887 = vmatprep.subr.mxu0 %v378
    %3888 = vmatpush1.msra.mxu0 %v377
    %3889 = vmatprep.subr.mxu0 %v374
    %3890 = vmatpush1.msra.mxu0 %v373
    %3891 = vmatprep.subr.mxu0 %v370
    %3892 = vmatpush1.msra.mxu0 %v369
    %3893 = vmatprep.subr.mxu0 %v366
    %3894 = vmatpush1.msra.mxu0 %v365
    %3895 = vmatprep.subr.mxu0 %v362
    %3896 = vmatpush1.msra.mxu0 %v361
    %3897 = vmatprep.subr.mxu0 %v358
    %3898 = vmatpush1.msra.mxu0 %v357
    %3899 = vmatprep.subr.mxu0 %v354
    %3900 = vmatpush1.msra.mxu0 %v353
    %3901 = vmatprep.subr.mxu0 0.0
    %3902 = vmatpush2.msra.mxu0 0.0
    %3903 = vmatprep.subr.mxu0 0.0
    %3904 = vmatpush2.msra.mxu0 0.0
    %3905 = vmatprep.subr.mxu0 0.0
    %3906 = vmatpush2.msra.mxu0 0.0
    %3907 = vmatprep.subr.mxu0 0.0
    %3908 = vmatpush2.msra.mxu0 0.0
    %3909 = vmatprep.subr.mxu0 0.0
    %3910 = vmatpush2.msra.mxu0 0.0
    %3911 = vmatprep.subr.mxu0 0.0
    %3912 = vmatpush2.msra.mxu0 0.0
    %3913 = vmatprep.subr.mxu0 0.0
    %3914 = vmatpush2.msra.mxu0 0.0
    %3915 = vmatprep.subr.mxu0 0.0
    %3916 = vmatpush2.msra.mxu0 0.0
    %3917 = vmatprep.subr.mxu0 0.0
    %3918 = vmatpush2.msra.mxu0 0.0
    %3919 = vmatprep.subr.mxu0 0.0
    %3920 = vmatpush2.msra.mxu0 0.0
    %3921 = vmatprep.subr.mxu0 0.0
    %3922 = vmatpush2.msra.mxu0 0.0
    %3923 = vmatprep.subr.mxu0 0.0
    %3924 = vmatpush2.msra.mxu0 0.0
    %3925 = vmatprep.subr.mxu0 0.0
    %3926 = vmatpush2.msra.mxu0 0.0
    %3927 = vmatprep.subr.mxu0 0.0
    %3928 = vmatpush2.msra.mxu0 0.0
    %3929 = vmatprep.subr.mxu0 0.0
    %3930 = vmatpush2.msra.mxu0 0.0
    %3931 = vmatprep.subr.mxu0 0.0
    %3932 = vmatpush2.msra.mxu0 0.0
    %3933 = vmatprep.mubr.f32.mxu0 0.0
    %3934 = vmatmul.mubr.f32.gmra.mxu0 %v3796
    %v3935 = vpop.f32.mrf.mxu0
    %v3936 = vadd.f32 %v3791, %v3935
    %v3937 = vpop.f32.mrf.mxu0
    %v3938 = vadd.f32 %v3793, %v3937
    %3939 = vdwg.mxu0
    %v3940 = vadd.f32 %v3865, %v938
    %v3941 = vadd.f32 %v3867, %v942
    %v3942 = vadd.f32 %v3936, %v946
    %v3943 = vadd.f32 %v3938, %v950
    %v3944 = vxor.u32 %v3940, 2147483648
    %v3945 = vmul.f32 %v3944, 1.442695
    %v3946 = vpow.pop %v3945
    %v3947 = vadd.f32 %v3946, 1.0
    %v3948 = vrcp.pop %v3947
    %v3949 = vmul.f32 1.0, %v3948
    %v3950 = vxor.u32 %v3941, 2147483648
    %v3951 = vmul.f32 %v3950, 1.442695
    %v3952 = vpow.pop %v3951
    %v3953 = vadd.f32 %v3952, 1.0
    %v3954 = vrcp.pop %v3953
    %v3955 = vmul.f32 1.0, %v3954
    %v3956 = vtanh.pop %v3942
    %v3957 = vxor.u32 %v3943, 2147483648
    %v3958 = vmul.f32 %v3957, 1.442695
    %v3959 = vpow.pop %v3958
    %v3960 = vadd.f32 %v3959, 1.0
    %v3961 = vrcp.pop %v3960
    %v3962 = vmul.f32 1.0, %v3961
    %v3963 = vmul.f32 %v3955, %v3465
    %v3964 = vmul.f32 %v3949, %v3956
    %v3965 = vadd.f32 %v3963, %v3964
    %v3966 = vtanh.pop %v3965
    %v3967 = vmul.f32 %v3962, %v3966
    %3968 = vmatprep.subr.mxu0 %v348
    %3969 = vmatpush1.msra.mxu0 %v347
    %3970 = vmatprep.subr.mxu0 %v344
    %3971 = vmatpush1.msra.mxu0 %v343
    %3972 = vmatprep.subr.mxu0 %v340
    %3973 = vmatpush1.msra.mxu0 %v339
    %3974 = vmatprep.subr.mxu0 %v336
    %3975 = vmatpush1.msra.mxu0 %v335
    %3976 = vmatprep.subr.mxu0 %v332
    %3977 = vmatpush1.msra.mxu0 %v331
    %3978 = vmatprep.subr.mxu0 %v328
    %3979 = vmatpush1.msra.mxu0 %v327
    %3980 = vmatprep.subr.mxu0 %v324
    %3981 = vmatpush1.msra.mxu0 %v323
    %3982 = vmatprep.subr.mxu0 %v320
    %3983 = vmatpush1.msra.mxu0 %v319
    %3984 = vmatprep.subr.mxu0 %v316
    %3985 = vmatpush1.msra.mxu0 %v315
    %3986 = vmatprep.subr.mxu0 %v312
    %3987 = vmatpush1.msra.mxu0 %v311
    %3988 = vmatprep.subr.mxu0 %v308
    %3989 = vmatpush1.msra.mxu0 %v307
    %3990 = vmatprep.subr.mxu0 %v304
    %3991 = vmatpush1.msra.mxu0 %v303
    %3992 = vmatprep.subr.mxu0 %v300
    %3993 = vmatpush1.msra.mxu0 %v299
    %3994 = vmatprep.subr.mxu0 %v296
    %3995 = vmatpush1.msra.mxu0 %v295
    %3996 = vmatprep.subr.mxu0 %v292
    %3997 = vmatpush1.msra.mxu0 %v291
    %3998 = vmatprep.subr.mxu0 %v288
    %3999 = vmatpush1.msra.mxu0 %v287
    %4000 = vmatprep.subr.mxu0 0.0
    %4001 = vmatpush2.msra.mxu0 0.0
    %4002 = vmatprep.subr.mxu0 0.0
    %4003 = vmatpush2.msra.mxu0 0.0
    %4004 = vmatprep.subr.mxu0 0.0
    %4005 = vmatpush2.msra.mxu0 0.0
    %4006 = vmatprep.subr.mxu0 0.0
    %4007 = vmatpush2.msra.mxu0 0.0
    %4008 = vmatprep.subr.mxu0 0.0
    %4009 = vmatpush2.msra.mxu0 0.0
    %4010 = vmatprep.subr.mxu0 0.0
    %4011 = vmatpush2.msra.mxu0 0.0
    %4012 = vmatprep.subr.mxu0 0.0
    %4013 = vmatpush2.msra.mxu0 0.0
    %4014 = vmatprep.subr.mxu0 0.0
    %4015 = vmatpush2.msra.mxu0 0.0
    %4016 = vmatprep.subr.mxu0 0.0
    %4017 = vmatpush2.msra.mxu0 0.0
    %4018 = vmatprep.subr.mxu0 0.0
    %4019 = vmatpush2.msra.mxu0 0.0
    %4020 = vmatprep.subr.mxu0 0.0
    %4021 = vmatpush2.msra.mxu0 0.0
    %4022 = vmatprep.subr.mxu0 0.0
    %4023 = vmatpush2.msra.mxu0 0.0
    %4024 = vmatprep.subr.mxu0 0.0
    %4025 = vmatpush2.msra.mxu0 0.0
    %4026 = vmatprep.subr.mxu0 0.0
    %4027 = vmatpush2.msra.mxu0 0.0
    %4028 = vmatprep.subr.mxu0 0.0
    %4029 = vmatpush2.msra.mxu0 0.0
    %4030 = vmatprep.subr.mxu0 0.0
    %4031 = vmatpush2.msra.mxu0 0.0
    %4032 = vmatprep.mubr.f32.mxu0 0.0
    %4033 = vmatmul.mubr.f32.gmra.mxu0 %v3796
    %v4034 = vpop.f32.mrf.mxu0
    %v4035 = vadd.f32 0.0, %v4034
    %v4036 = vpop.f32.mrf.mxu0
    %v4037 = vadd.f32 0.0, %v4036
    %4038 = vdwg.mxu0
    %4039 = vmatprep.subr.mxu0 %v350
    %4040 = vmatpush1.msra.mxu0 %v349
    %4041 = vmatprep.subr.mxu0 %v346
    %4042 = vmatpush1.msra.mxu0 %v345
    %4043 = vmatprep.subr.mxu0 %v342
    %4044 = vmatpush1.msra.mxu0 %v341
    %4045 = vmatprep.subr.mxu0 %v338
    %4046 = vmatpush1.msra.mxu0 %v337
    %4047 = vmatprep.subr.mxu0 %v334
    %4048 = vmatpush1.msra.mxu0 %v333
    %4049 = vmatprep.subr.mxu0 %v330
    %4050 = vmatpush1.msra.mxu0 %v329
    %4051 = vmatprep.subr.mxu0 %v326
    %4052 = vmatpush1.msra.mxu0 %v325
    %4053 = vmatprep.subr.mxu0 %v322
    %4054 = vmatpush1.msra.mxu0 %v321
    %4055 = vmatprep.subr.mxu0 %v318
    %4056 = vmatpush1.msra.mxu0 %v317
    %4057 = vmatprep.subr.mxu0 %v314
    %4058 = vmatpush1.msra.mxu0 %v313
    %4059 = vmatprep.subr.mxu0 %v310
    %4060 = vmatpush1.msra.mxu0 %v309
    %4061 = vmatprep.subr.mxu0 %v306
    %4062 = vmatpush1.msra.mxu0 %v305
    %4063 = vmatprep.subr.mxu0 %v302
    %4064 = vmatpush1.msra.mxu0 %v301
    %4065 = vmatprep.subr.mxu0 %v298
    %4066 = vmatpush1.msra.mxu0 %v297
    %4067 = vmatprep.subr.mxu0 %v294
    %4068 = vmatpush1.msra.mxu0 %v293
    %4069 = vmatprep.subr.mxu0 %v290
    %4070 = vmatpush1.msra.mxu0 %v289
    %4071 = vmatprep.subr.mxu0 0.0
    %4072 = vmatpush2.msra.mxu0 0.0
    %4073 = vmatprep.subr.mxu0 0.0
    %4074 = vmatpush2.msra.mxu0 0.0
    %4075 = vmatprep.subr.mxu0 0.0
    %4076 = vmatpush2.msra.mxu0 0.0
    %4077 = vmatprep.subr.mxu0 0.0
    %4078 = vmatpush2.msra.mxu0 0.0
    %4079 = vmatprep.subr.mxu0 0.0
    %4080 = vmatpush2.msra.mxu0 0.0
    %4081 = vmatprep.subr.mxu0 0.0
    %4082 = vmatpush2.msra.mxu0 0.0
    %4083 = vmatprep.subr.mxu0 0.0
    %4084 = vmatpush2.msra.mxu0 0.0
    %4085 = vmatprep.subr.mxu0 0.0
    %4086 = vmatpush2.msra.mxu0 0.0
    %4087 = vmatprep.subr.mxu0 0.0
    %4088 = vmatpush2.msra.mxu0 0.0
    %4089 = vmatprep.subr.mxu0 0.0
    %4090 = vmatpush2.msra.mxu0 0.0
    %4091 = vmatprep.subr.mxu0 0.0
    %4092 = vmatpush2.msra.mxu0 0.0
    %4093 = vmatprep.subr.mxu0 0.0
    %4094 = vmatpush2.msra.mxu0 0.0
    %4095 = vmatprep.subr.mxu0 0.0
    %4096 = vmatpush2.msra.mxu0 0.0
    %4097 = vmatprep.subr.mxu0 0.0
    %4098 = vmatpush2.msra.mxu0 0.0
    %4099 = vmatprep.subr.mxu0 0.0
    %4100 = vmatpush2.msra.mxu0 0.0
    %4101 = vmatprep.subr.mxu0 0.0
    %4102 = vmatpush2.msra.mxu0 0.0
    %4103 = vmatprep.mubr.f32.mxu0 0.0
    %4104 = vmatmul.mubr.f32.gmra.mxu0 %v3796
    %v4105 = vpop.f32.mrf.mxu0
    %v4106 = vadd.f32 0.0, %v4105
    %v4107 = vpop.f32.mrf.mxu0
    %v4108 = vadd.f32 0.0, %v4107
    %4109 = vdwg.mxu0
    %v4114 = vrot.slane %v4035, 2
    %v4115 = vrot.slane %v4037, 2
    %v4116 = vrot.slane %v4106, 2
    %v4117 = vrot.slane %v4108, 2
    %v4122 = vadd.f32 %v206, %v4114
    %v4123 = vadd.f32 %v208, %v4115
    %v4124 = vadd.f32 %v283, %v4116
    %v4125 = vadd.f32 %v285, %v4117
    %v4126 = vxor.u32 %v4122, 2147483648
    %v4127 = vmul.f32 %v4126, 1.442695
    %v4128 = vpow.pop %v4127
    %v4129 = vadd.f32 %v4128, 1.0
    %v4130 = vrcp.pop %v4129
    %v4131 = vmul.f32 1.0, %v4130
    %v4132 = vxor.u32 %v4123, 2147483648
    %v4133 = vmul.f32 %v4132, 1.442695
    %v4134 = vpow.pop %v4133
    %v4135 = vadd.f32 %v4134, 1.0
    %v4136 = vrcp.pop %v4135
    %v4137 = vmul.f32 1.0, %v4136
    %v4138 = vtanh.pop %v4124
    %v4139 = vxor.u32 %v4125, 2147483648
    %v4140 = vmul.f32 %v4139, 1.442695
    %v4141 = vpow.pop %v4140
    %v4142 = vadd.f32 %v4141, 1.0
    %v4143 = vrcp.pop %v4142
    %v4144 = vmul.f32 1.0, %v4143
    %v4146 = vrot.slane %v3650, 6
    %v4148 = vmul.f32 %v4137, %v4146
    %v4149 = vmul.f32 %v4131, %v4138
    %v4150 = vadd.f32 %v4148, %v4149
    %v4151 = vtanh.pop %v4150
    %v4152 = vmul.f32 %v4144, %v4151
    %4153 = vmatprep.subr.mxu0 %v476
    %4154 = vmatpush1.msra.mxu0 %v475
    %4155 = vmatprep.subr.mxu0 %v472
    %4156 = vmatpush1.msra.mxu0 %v471
    %4157 = vmatprep.subr.mxu0 %v468
    %4158 = vmatpush1.msra.mxu0 %v467
    %4159 = vmatprep.subr.mxu0 %v464
    %4160 = vmatpush1.msra.mxu0 %v463
    %4161 = vmatprep.subr.mxu0 %v460
    %4162 = vmatpush1.msra.mxu0 %v459
    %4163 = vmatprep.subr.mxu0 %v456
    %4164 = vmatpush1.msra.mxu0 %v455
    %4165 = vmatprep.subr.mxu0 %v452
    %4166 = vmatpush1.msra.mxu0 %v451
    %4167 = vmatprep.subr.mxu0 %v448
    %4168 = vmatpush1.msra.mxu0 %v447
    %4169 = vmatprep.subr.mxu0 %v444
    %4170 = vmatpush1.msra.mxu0 %v443
    %4171 = vmatprep.subr.mxu0 %v440
    %4172 = vmatpush1.msra.mxu0 %v439
    %4173 = vmatprep.subr.mxu0 %v436
    %4174 = vmatpush1.msra.mxu0 %v435
    %4175 = vmatprep.subr.mxu0 %v432
    %4176 = vmatpush1.msra.mxu0 %v431
    %4177 = vmatprep.subr.mxu0 %v428
    %4178 = vmatpush1.msra.mxu0 %v427
    %4179 = vmatprep.subr.mxu0 %v424
    %4180 = vmatpush1.msra.mxu0 %v423
    %4181 = vmatprep.subr.mxu0 %v420
    %4182 = vmatpush1.msra.mxu0 %v419
    %4183 = vmatprep.subr.mxu0 %v416
    %4184 = vmatpush1.msra.mxu0 %v415
    %4185 = vmatprep.subr.mxu0 0.0
    %4186 = vmatpush2.msra.mxu0 0.0
    %4187 = vmatprep.subr.mxu0 0.0
    %4188 = vmatpush2.msra.mxu0 0.0
    %4189 = vmatprep.subr.mxu0 0.0
    %4190 = vmatpush2.msra.mxu0 0.0
    %4191 = vmatprep.subr.mxu0 0.0
    %4192 = vmatpush2.msra.mxu0 0.0
    %4193 = vmatprep.subr.mxu0 0.0
    %4194 = vmatpush2.msra.mxu0 0.0
    %4195 = vmatprep.subr.mxu0 0.0
    %4196 = vmatpush2.msra.mxu0 0.0
    %4197 = vmatprep.subr.mxu0 0.0
    %4198 = vmatpush2.msra.mxu0 0.0
    %4199 = vmatprep.subr.mxu0 0.0
    %4200 = vmatpush2.msra.mxu0 0.0
    %4201 = vmatprep.subr.mxu0 0.0
    %4202 = vmatpush2.msra.mxu0 0.0
    %4203 = vmatprep.subr.mxu0 0.0
    %4204 = vmatpush2.msra.mxu0 0.0
    %4205 = vmatprep.subr.mxu0 0.0
    %4206 = vmatpush2.msra.mxu0 0.0
    %4207 = vmatprep.subr.mxu0 0.0
    %4208 = vmatpush2.msra.mxu0 0.0
    %4209 = vmatprep.subr.mxu0 0.0
    %4210 = vmatpush2.msra.mxu0 0.0
    %4211 = vmatprep.subr.mxu0 0.0
    %4212 = vmatpush2.msra.mxu0 0.0
    %4213 = vmatprep.subr.mxu0 0.0
    %4214 = vmatpush2.msra.mxu0 0.0
    %4215 = vmatprep.subr.mxu0 0.0
    %4216 = vmatpush2.msra.mxu0 0.0
    %4217 = vmatprep.mubr.f32.mxu0 0.0
    %4218 = vmatmul.mubr.f32.gmra.mxu0 %v3967
    %v4219 = vpop.f32.mrf.mxu0
    %v4220 = vadd.f32 0.0, %v4219
    %v4221 = vpop.f32.mrf.mxu0
    %v4222 = vadd.f32 0.0, %v4221
    %4223 = vdwg.mxu0
    %4224 = vmatprep.subr.mxu0 %v478
    %4225 = vmatpush1.msra.mxu0 %v477
    %4226 = vmatprep.subr.mxu0 %v474
    %4227 = vmatpush1.msra.mxu0 %v473
    %4228 = vmatprep.subr.mxu0 %v470
    %4229 = vmatpush1.msra.mxu0 %v469
    %4230 = vmatprep.subr.mxu0 %v466
    %4231 = vmatpush1.msra.mxu0 %v465
    %4232 = vmatprep.subr.mxu0 %v462
    %4233 = vmatpush1.msra.mxu0 %v461
    %4234 = vmatprep.subr.mxu0 %v458
    %4235 = vmatpush1.msra.mxu0 %v457
    %4236 = vmatprep.subr.mxu0 %v454
    %4237 = vmatpush1.msra.mxu0 %v453
    %4238 = vmatprep.subr.mxu0 %v450
    %4239 = vmatpush1.msra.mxu0 %v449
    %4240 = vmatprep.subr.mxu0 %v446
    %4241 = vmatpush1.msra.mxu0 %v445
    %4242 = vmatprep.subr.mxu0 %v442
    %4243 = vmatpush1.msra.mxu0 %v441
    %4244 = vmatprep.subr.mxu0 %v438
    %4245 = vmatpush1.msra.mxu0 %v437
    %4246 = vmatprep.subr.mxu0 %v434
    %4247 = vmatpush1.msra.mxu0 %v433
    %4248 = vmatprep.subr.mxu0 %v430
    %4249 = vmatpush1.msra.mxu0 %v429
    %4250 = vmatprep.subr.mxu0 %v426
    %4251 = vmatpush1.msra.mxu0 %v425
    %4252 = vmatprep.subr.mxu0 %v422
    %4253 = vmatpush1.msra.mxu0 %v421
    %4254 = vmatprep.subr.mxu0 %v418
    %4255 = vmatpush1.msra.mxu0 %v417
    %4256 = vmatprep.subr.mxu0 0.0
    %4257 = vmatpush2.msra.mxu0 0.0
    %4258 = vmatprep.subr.mxu0 0.0
    %4259 = vmatpush2.msra.mxu0 0.0
    %4260 = vmatprep.subr.mxu0 0.0
    %4261 = vmatpush2.msra.mxu0 0.0
    %4262 = vmatprep.subr.mxu0 0.0
    %4263 = vmatpush2.msra.mxu0 0.0
    %4264 = vmatprep.subr.mxu0 0.0
    %4265 = vmatpush2.msra.mxu0 0.0
    %4266 = vmatprep.subr.mxu0 0.0
    %4267 = vmatpush2.msra.mxu0 0.0
    %4268 = vmatprep.subr.mxu0 0.0
    %4269 = vmatpush2.msra.mxu0 0.0
    %4270 = vmatprep.subr.mxu0 0.0
    %4271 = vmatpush2.msra.mxu0 0.0
    %4272 = vmatprep.subr.mxu0 0.0
    %4273 = vmatpush2.msra.mxu0 0.0
    %4274 = vmatprep.subr.mxu0 0.0
    %4275 = vmatpush2.msra.mxu0 0.0
    %4276 = vmatprep.subr.mxu0 0.0
    %4277 = vmatpush2.msra.mxu0 0.0
    %4278 = vmatprep.subr.mxu0 0.0
    %4279 = vmatpush2.msra.mxu0 0.0
    %4280 = vmatprep.subr.mxu0 0.0
    %4281 = vmatpush2.msra.mxu0 0.0
    %4282 = vmatprep.subr.mxu0 0.0
    %4283 = vmatpush2.msra.mxu0 0.0
    %4284 = vmatprep.subr.mxu0 0.0
    %4285 = vmatpush2.msra.mxu0 0.0
    %4286 = vmatprep.subr.mxu0 0.0
    %4287 = vmatpush2.msra.mxu0 0.0
    %4288 = vmatprep.mubr.f32.mxu0 0.0
    %4289 = vmatmul.mubr.f32.gmra.mxu0 %v3967
    %v4290 = vpop.f32.mrf.mxu0
    %v4291 = vadd.f32 0.0, %v4290
    %v4292 = vpop.f32.mrf.mxu0
    %v4293 = vadd.f32 0.0, %v4292
    %4294 = vdwg.mxu0
    %v4296 = vrot.slane %v4152, 6
    %4298 = vmatprep.subr.mxu0 %v412
    %4299 = vmatpush1.msra.mxu0 %v411
    %4300 = vmatprep.subr.mxu0 %v408
    %4301 = vmatpush1.msra.mxu0 %v407
    %4302 = vmatprep.subr.mxu0 %v404
    %4303 = vmatpush1.msra.mxu0 %v403
    %4304 = vmatprep.subr.mxu0 %v400
    %4305 = vmatpush1.msra.mxu0 %v399
    %4306 = vmatprep.subr.mxu0 %v396
    %4307 = vmatpush1.msra.mxu0 %v395
    %4308 = vmatprep.subr.mxu0 %v392
    %4309 = vmatpush1.msra.mxu0 %v391
    %4310 = vmatprep.subr.mxu0 %v388
    %4311 = vmatpush1.msra.mxu0 %v387
    %4312 = vmatprep.subr.mxu0 %v384
    %4313 = vmatpush1.msra.mxu0 %v383
    %4314 = vmatprep.subr.mxu0 %v380
    %4315 = vmatpush1.msra.mxu0 %v379
    %4316 = vmatprep.subr.mxu0 %v376
    %4317 = vmatpush1.msra.mxu0 %v375
    %4318 = vmatprep.subr.mxu0 %v372
    %4319 = vmatpush1.msra.mxu0 %v371
    %4320 = vmatprep.subr.mxu0 %v368
    %4321 = vmatpush1.msra.mxu0 %v367
    %4322 = vmatprep.subr.mxu0 %v364
    %4323 = vmatpush1.msra.mxu0 %v363
    %4324 = vmatprep.subr.mxu0 %v360
    %4325 = vmatpush1.msra.mxu0 %v359
    %4326 = vmatprep.subr.mxu0 %v356
    %4327 = vmatpush1.msra.mxu0 %v355
    %4328 = vmatprep.subr.mxu0 %v352
    %4329 = vmatpush1.msra.mxu0 %v351
    %4330 = vmatprep.subr.mxu0 0.0
    %4331 = vmatpush2.msra.mxu0 0.0
    %4332 = vmatprep.subr.mxu0 0.0
    %4333 = vmatpush2.msra.mxu0 0.0
    %4334 = vmatprep.subr.mxu0 0.0
    %4335 = vmatpush2.msra.mxu0 0.0
    %4336 = vmatprep.subr.mxu0 0.0
    %4337 = vmatpush2.msra.mxu0 0.0
    %4338 = vmatprep.subr.mxu0 0.0
    %4339 = vmatpush2.msra.mxu0 0.0
    %4340 = vmatprep.subr.mxu0 0.0
    %4341 = vmatpush2.msra.mxu0 0.0
    %4342 = vmatprep.subr.mxu0 0.0
    %4343 = vmatpush2.msra.mxu0 0.0
    %4344 = vmatprep.subr.mxu0 0.0
    %4345 = vmatpush2.msra.mxu0 0.0
    %4346 = vmatprep.subr.mxu0 0.0
    %4347 = vmatpush2.msra.mxu0 0.0
    %4348 = vmatprep.subr.mxu0 0.0
    %4349 = vmatpush2.msra.mxu0 0.0
    %4350 = vmatprep.subr.mxu0 0.0
    %4351 = vmatpush2.msra.mxu0 0.0
    %4352 = vmatprep.subr.mxu0 0.0
    %4353 = vmatpush2.msra.mxu0 0.0
    %4354 = vmatprep.subr.mxu0 0.0
    %4355 = vmatpush2.msra.mxu0 0.0
    %4356 = vmatprep.subr.mxu0 0.0
    %4357 = vmatpush2.msra.mxu0 0.0
    %4358 = vmatprep.subr.mxu0 0.0
    %4359 = vmatpush2.msra.mxu0 0.0
    %4360 = vmatprep.subr.mxu0 0.0
    %4361 = vmatpush2.msra.mxu0 0.0
    %4362 = vmatprep.mubr.f32.mxu0 0.0
    %4363 = vmatmul.mubr.f32.gmra.mxu0 %v4296
    %v4364 = vpop.f32.mrf.mxu0
    %v4365 = vadd.f32 %v4220, %v4364
    %v4366 = vpop.f32.mrf.mxu0
    %v4367 = vadd.f32 %v4222, %v4366
    %4368 = vdwg.mxu0
    %4369 = vmatprep.subr.mxu0 %v414
    %4370 = vmatpush1.msra.mxu0 %v413
    %4371 = vmatprep.subr.mxu0 %v410
    %4372 = vmatpush1.msra.mxu0 %v409
    %4373 = vmatprep.subr.mxu0 %v406
    %4374 = vmatpush1.msra.mxu0 %v405
    %4375 = vmatprep.subr.mxu0 %v402
    %4376 = vmatpush1.msra.mxu0 %v401
    %4377 = vmatprep.subr.mxu0 %v398
    %4378 = vmatpush1.msra.mxu0 %v397
    %4379 = vmatprep.subr.mxu0 %v394
    %4380 = vmatpush1.msra.mxu0 %v393
    %4381 = vmatprep.subr.mxu0 %v390
    %4382 = vmatpush1.msra.mxu0 %v389
    %4383 = vmatprep.subr.mxu0 %v386
    %4384 = vmatpush1.msra.mxu0 %v385
    %4385 = vmatprep.subr.mxu0 %v382
    %4386 = vmatpush1.msra.mxu0 %v381
    %4387 = vmatprep.subr.mxu0 %v378
    %4388 = vmatpush1.msra.mxu0 %v377
    %4389 = vmatprep.subr.mxu0 %v374
    %4390 = vmatpush1.msra.mxu0 %v373
    %4391 = vmatprep.subr.mxu0 %v370
    %4392 = vmatpush1.msra.mxu0 %v369
    %4393 = vmatprep.subr.mxu0 %v366
    %4394 = vmatpush1.msra.mxu0 %v365
    %4395 = vmatprep.subr.mxu0 %v362
    %4396 = vmatpush1.msra.mxu0 %v361
    %4397 = vmatprep.subr.mxu0 %v358
    %4398 = vmatpush1.msra.mxu0 %v357
    %4399 = vmatprep.subr.mxu0 %v354
    %4400 = vmatpush1.msra.mxu0 %v353
    %4401 = vmatprep.subr.mxu0 0.0
    %4402 = vmatpush2.msra.mxu0 0.0
    %4403 = vmatprep.subr.mxu0 0.0
    %4404 = vmatpush2.msra.mxu0 0.0
    %4405 = vmatprep.subr.mxu0 0.0
    %4406 = vmatpush2.msra.mxu0 0.0
    %4407 = vmatprep.subr.mxu0 0.0
    %4408 = vmatpush2.msra.mxu0 0.0
    %4409 = vmatprep.subr.mxu0 0.0
    %4410 = vmatpush2.msra.mxu0 0.0
    %4411 = vmatprep.subr.mxu0 0.0
    %4412 = vmatpush2.msra.mxu0 0.0
    %4413 = vmatprep.subr.mxu0 0.0
    %4414 = vmatpush2.msra.mxu0 0.0
    %4415 = vmatprep.subr.mxu0 0.0
    %4416 = vmatpush2.msra.mxu0 0.0
    %4417 = vmatprep.subr.mxu0 0.0
    %4418 = vmatpush2.msra.mxu0 0.0
    %4419 = vmatprep.subr.mxu0 0.0
    %4420 = vmatpush2.msra.mxu0 0.0
    %4421 = vmatprep.subr.mxu0 0.0
    %4422 = vmatpush2.msra.mxu0 0.0
    %4423 = vmatprep.subr.mxu0 0.0
    %4424 = vmatpush2.msra.mxu0 0.0
    %4425 = vmatprep.subr.mxu0 0.0
    %4426 = vmatpush2.msra.mxu0 0.0
    %4427 = vmatprep.subr.mxu0 0.0
    %4428 = vmatpush2.msra.mxu0 0.0
    %4429 = vmatprep.subr.mxu0 0.0
    %4430 = vmatpush2.msra.mxu0 0.0
    %4431 = vmatprep.subr.mxu0 0.0
    %4432 = vmatpush2.msra.mxu0 0.0
    %4433 = vmatprep.mubr.f32.mxu0 0.0
    %4434 = vmatmul.mubr.f32.gmra.mxu0 %v4296
    %v4435 = vpop.f32.mrf.mxu0
    %v4436 = vadd.f32 %v4291, %v4435
    %v4437 = vpop.f32.mrf.mxu0
    %v4438 = vadd.f32 %v4293, %v4437
    %4439 = vdwg.mxu0
    %v4440 = vadd.f32 %v4365, %v938
    %v4441 = vadd.f32 %v4367, %v942
    %v4442 = vadd.f32 %v4436, %v946
    %v4443 = vadd.f32 %v4438, %v950
    %v4444 = vxor.u32 %v4440, 2147483648
    %v4445 = vmul.f32 %v4444, 1.442695
    %v4446 = vpow.pop %v4445
    %v4447 = vadd.f32 %v4446, 1.0
    %v4448 = vrcp.pop %v4447
    %v4449 = vmul.f32 1.0, %v4448
    %v4450 = vxor.u32 %v4441, 2147483648
    %v4451 = vmul.f32 %v4450, 1.442695
    %v4452 = vpow.pop %v4451
    %v4453 = vadd.f32 %v4452, 1.0
    %v4454 = vrcp.pop %v4453
    %v4455 = vmul.f32 1.0, %v4454
    %v4456 = vtanh.pop %v4442
    %v4457 = vxor.u32 %v4443, 2147483648
    %v4458 = vmul.f32 %v4457, 1.442695
    %v4459 = vpow.pop %v4458
    %v4460 = vadd.f32 %v4459, 1.0
    %v4461 = vrcp.pop %v4460
    %v4462 = vmul.f32 1.0, %v4461
    %v4463 = vmul.f32 %v4455, %v3965
    %v4464 = vmul.f32 %v4449, %v4456
    %v4465 = vadd.f32 %v4463, %v4464
    %v4466 = vtanh.pop %v4465
    %v4467 = vmul.f32 %v4462, %v4466
    %v4468 = vld [vmem:[%s10] sm:$0xff]
    %v4469 = vld [vmem:[%s10 + $0x8] sm:$0xff]
    %v4470 = vld [vmem:[%s10 + $0x10] sm:$0xff]
    %v4471 = vld [vmem:[%s10 + $0x18] sm:$0xff]
    %v4472 = vld [vmem:[%s10 + $0x20] sm:$0xff]
    %v4473 = vld [vmem:[%s10 + $0x28] sm:$0xff]
    %v4474 = vld [vmem:[%s10 + $0x30] sm:$0xff]
    %v4475 = vld [vmem:[%s10 + $0x38] sm:$0xff]
    %v4476 = vld [vmem:[%s10 + $0x40] sm:$0xff]
    %v4477 = vld [vmem:[%s10 + $0x48] sm:$0xff]
    %v4478 = vld [vmem:[%s10 + $0x50] sm:$0xff]
    %v4479 = vld [vmem:[%s10 + $0x58] sm:$0xff]
    %v4480 = vld [vmem:[%s10 + $0x60] sm:$0xff]
    %v4481 = vld [vmem:[%s10 + $0x68] sm:$0xff]
    %v4482 = vld [vmem:[%s10 + $0x70] sm:$0xff]
    %v4483 = vld [vmem:[%s10 + $0x78] sm:$0xff]
    %v4484 = vld [vmem:[%s10 + $0x80] sm:$0xff]
    %v4485 = vld [vmem:[%s10 + $0x88] sm:$0xff]
    %v4486 = vld [vmem:[%s10 + $0x90] sm:$0xff]
    %v4487 = vld [vmem:[%s10 + $0x98] sm:$0xff]
    %v4488 = vld [vmem:[%s10 + $0xa0] sm:$0xff]
    %v4489 = vld [vmem:[%s10 + $0xa8] sm:$0xff]
    %v4490 = vld [vmem:[%s10 + $0xb0] sm:$0xff]
    %v4491 = vld [vmem:[%s10 + $0xb8] sm:$0xff]
    %v4492 = vld [vmem:[%s10 + $0xc0] sm:$0xff]
    %v4493 = vld [vmem:[%s10 + $0xc8] sm:$0xff]
    %v4494 = vld [vmem:[%s10 + $0xd0] sm:$0xff]
    %v4495 = vld [vmem:[%s10 + $0xd8] sm:$0xff]
    %v4496 = vld [vmem:[%s10 + $0xe0] sm:$0xff]
    %v4497 = vld [vmem:[%s10 + $0xe8] sm:$0xff]
    %v4498 = vld [vmem:[%s10 + $0xf0] sm:$0xff]
    %v4499 = vld [vmem:[%s10 + $0xf8] sm:$0xff]
    %v4500 = vld [vmem:[%s11] sm:$0x3]
    %v4502 = vlaneseq
    %v4503 = vshrl.u32 %v4502, 7
    %v4504 = vsub.s32 0, %v4503
    %v4505 = vrot.slane %v4500, %v4504
    %v4506 = vlaneseq
    %v4507 = vshrl.u32 %v4506, 7
    %v4508 = vsub.s32 1, %v4507
    %v4509 = vrot.slane %v4500, %v4508
    %4512 = vmatprep.subr.mxu0 %v4499
    %4513 = vmatpush1.msra.mxu0 %v4498
    %4514 = vmatprep.subr.mxu0 %v4497
    %4515 = vmatpush1.msra.mxu0 %v4496
    %4516 = vmatprep.subr.mxu0 %v4495
    %4517 = vmatpush1.msra.mxu0 %v4494
    %4518 = vmatprep.subr.mxu0 %v4493
    %4519 = vmatpush1.msra.mxu0 %v4492
    %4520 = vmatprep.subr.mxu0 %v4491
    %4521 = vmatpush1.msra.mxu0 %v4490
    %4522 = vmatprep.subr.mxu0 %v4489
    %4523 = vmatpush1.msra.mxu0 %v4488
    %4524 = vmatprep.subr.mxu0 %v4487
    %4525 = vmatpush1.msra.mxu0 %v4486
    %4526 = vmatprep.subr.mxu0 %v4485
    %4527 = vmatpush1.msra.mxu0 %v4484
    %4528 = vmatprep.subr.mxu0 %v4483
    %4529 = vmatpush1.msra.mxu0 %v4482
    %4530 = vmatprep.subr.mxu0 %v4481
    %4531 = vmatpush1.msra.mxu0 %v4480
    %4532 = vmatprep.subr.mxu0 %v4479
    %4533 = vmatpush1.msra.mxu0 %v4478
    %4534 = vmatprep.subr.mxu0 %v4477
    %4535 = vmatpush1.msra.mxu0 %v4476
    %4536 = vmatprep.subr.mxu0 %v4475
    %4537 = vmatpush1.msra.mxu0 %v4474
    %4538 = vmatprep.subr.mxu0 %v4473
    %4539 = vmatpush1.msra.mxu0 %v4472
    %4540 = vmatprep.subr.mxu0 %v4471
    %4541 = vmatpush1.msra.mxu0 %v4470
    %4542 = vmatprep.subr.mxu0 %v4469
    %4543 = vmatpush1.msra.mxu0 %v4468
    %4544 = vmatprep.subr.mxu0 0.0
    %4545 = vmatpush2.msra.mxu0 0.0
    %4546 = vmatprep.subr.mxu0 0.0
    %4547 = vmatpush2.msra.mxu0 0.0
    %4548 = vmatprep.subr.mxu0 0.0
    %4549 = vmatpush2.msra.mxu0 0.0
    %4550 = vmatprep.subr.mxu0 0.0
    %4551 = vmatpush2.msra.mxu0 0.0
    %4552 = vmatprep.subr.mxu0 0.0
    %4553 = vmatpush2.msra.mxu0 0.0
    %4554 = vmatprep.subr.mxu0 0.0
    %4555 = vmatpush2.msra.mxu0 0.0
    %4556 = vmatprep.subr.mxu0 0.0
    %4557 = vmatpush2.msra.mxu0 0.0
    %4558 = vmatprep.subr.mxu0 0.0
    %4559 = vmatpush2.msra.mxu0 0.0
    %4560 = vmatprep.subr.mxu0 0.0
    %4561 = vmatpush2.msra.mxu0 0.0
    %4562 = vmatprep.subr.mxu0 0.0
    %4563 = vmatpush2.msra.mxu0 0.0
    %4564 = vmatprep.subr.mxu0 0.0
    %4565 = vmatpush2.msra.mxu0 0.0
    %4566 = vmatprep.subr.mxu0 0.0
    %4567 = vmatpush2.msra.mxu0 0.0
    %4568 = vmatprep.subr.mxu0 0.0
    %4569 = vmatpush2.msra.mxu0 0.0
    %4570 = vmatprep.subr.mxu0 0.0
    %4571 = vmatpush2.msra.mxu0 0.0
    %4572 = vmatprep.subr.mxu0 0.0
    %4573 = vmatpush2.msra.mxu0 0.0
    %4574 = vmatprep.subr.mxu0 0.0
    %4575 = vmatpush2.msra.mxu0 0.0
    %4576 = vmatprep.mubr.f32.mxu0 0.0
    %4577 = vmatmul.mubr.f32.gmra.mxu0 %v982
    %v4578 = vpop.f32.mrf.mxu0
    %v4579 = vadd.f32 %v4505, %v4578
    %v4580 = vpop.f32.mrf.mxu0
    %v4581 = vadd.f32 %v4509, %v4580
    %4582 = vdwg.mxu0
    %v4583 = vtanh.pop %v4579
    %v4584 = vtanh.pop %v4581
    %v4585 = vmul.f32 %v4583, %v4296
    %vm4586 = vcmask 1041408
    %v4587 = vsel %vm4586, %v4585, 0.0
    %4588 = vadd.xlane.f32.xlu0 %v4587
    %v4589 = vpop.xlane.xlu0 %4588
    %v4590 = vmul.f32 %v4584, %v4467
    %v4591 = vsel %vm4586, %v4590, 0.0
    %4592 = vadd.xlane.f32.xlu0 %v4591
    %v4593 = vpop.xlane.xlu0 %4592
    %v4594 = vadd.f32 %v4589, %v4593
    %v4595 = vmul.f32 %v4594, 0.70710677
    %4596 = vmatprep.subr.mxu0 %v4499
    %4597 = vmatpush1.msra.mxu0 %v4498
    %4598 = vmatprep.subr.mxu0 %v4497
    %4599 = vmatpush1.msra.mxu0 %v4496
    %4600 = vmatprep.subr.mxu0 %v4495
    %4601 = vmatpush1.msra.mxu0 %v4494
    %4602 = vmatprep.subr.mxu0 %v4493
    %4603 = vmatpush1.msra.mxu0 %v4492
    %4604 = vmatprep.subr.mxu0 %v4491
    %4605 = vmatpush1.msra.mxu0 %v4490
    %4606 = vmatprep.subr.mxu0 %v4489
    %4607 = vmatpush1.msra.mxu0 %v4488
    %4608 = vmatprep.subr.mxu0 %v4487
    %4609 = vmatpush1.msra.mxu0 %v4486
    %4610 = vmatprep.subr.mxu0 %v4485
    %4611 = vmatpush1.msra.mxu0 %v4484
    %4612 = vmatprep.subr.mxu0 %v4483
    %4613 = vmatpush1.msra.mxu0 %v4482
    %4614 = vmatprep.subr.mxu0 %v4481
    %4615 = vmatpush1.msra.mxu0 %v4480
    %4616 = vmatprep.subr.mxu0 %v4479
    %4617 = vmatpush1.msra.mxu0 %v4478
    %4618 = vmatprep.subr.mxu0 %v4477
    %4619 = vmatpush1.msra.mxu0 %v4476
    %4620 = vmatprep.subr.mxu0 %v4475
    %4621 = vmatpush1.msra.mxu0 %v4474
    %4622 = vmatprep.subr.mxu0 %v4473
    %4623 = vmatpush1.msra.mxu0 %v4472
    %4624 = vmatprep.subr.mxu0 %v4471
    %4625 = vmatpush1.msra.mxu0 %v4470
    %4626 = vmatprep.subr.mxu0 %v4469
    %4627 = vmatpush1.msra.mxu0 %v4468
    %4628 = vmatprep.subr.mxu0 0.0
    %4629 = vmatpush2.msra.mxu0 0.0
    %4630 = vmatprep.subr.mxu0 0.0
    %4631 = vmatpush2.msra.mxu0 0.0
    %4632 = vmatprep.subr.mxu0 0.0
    %4633 = vmatpush2.msra.mxu0 0.0
    %4634 = vmatprep.subr.mxu0 0.0
    %4635 = vmatpush2.msra.mxu0 0.0
    %4636 = vmatprep.subr.mxu0 0.0
    %4637 = vmatpush2.msra.mxu0 0.0
    %4638 = vmatprep.subr.mxu0 0.0
    %4639 = vmatpush2.msra.mxu0 0.0
    %4640 = vmatprep.subr.mxu0 0.0
    %4641 = vmatpush2.msra.mxu0 0.0
    %4642 = vmatprep.subr.mxu0 0.0
    %4643 = vmatpush2.msra.mxu0 0.0
    %4644 = vmatprep.subr.mxu0 0.0
    %4645 = vmatpush2.msra.mxu0 0.0
    %4646 = vmatprep.subr.mxu0 0.0
    %4647 = vmatpush2.msra.mxu0 0.0
    %4648 = vmatprep.subr.mxu0 0.0
    %4649 = vmatpush2.msra.mxu0 0.0
    %4650 = vmatprep.subr.mxu0 0.0
    %4651 = vmatpush2.msra.mxu0 0.0
    %4652 = vmatprep.subr.mxu0 0.0
    %4653 = vmatpush2.msra.mxu0 0.0
    %4654 = vmatprep.subr.mxu0 0.0
    %4655 = vmatpush2.msra.mxu0 0.0
    %4656 = vmatprep.subr.mxu0 0.0
    %4657 = vmatpush2.msra.mxu0 0.0
    %4658 = vmatprep.subr.mxu0 0.0
    %4659 = vmatpush2.msra.mxu0 0.0
    %4660 = vmatprep.mubr.f32.mxu0 0.0
    %4661 = vmatmul.mubr.f32.gmra.mxu0 %v1482
    %v4662 = vpop.f32.mrf.mxu0
    %v4663 = vadd.f32 %v4505, %v4662
    %v4664 = vpop.f32.mrf.mxu0
    %v4665 = vadd.f32 %v4509, %v4664
    %4666 = vdwg.mxu0
    %v4667 = vtanh.pop %v4663
    %v4668 = vtanh.pop %v4665
    %v4669 = vmul.f32 %v4667, %v4296
    %v4670 = vsel %vm4586, %v4669, 0.0
    %4671 = vadd.xlane.f32.xlu0 %v4670
    %v4672 = vpop.xlane.xlu0 %4671
    %v4673 = vmul.f32 %v4668, %v4467
    %v4674 = vsel %vm4586, %v4673, 0.0
    %4675 = vadd.xlane.f32.xlu0 %v4674
    %v4676 = vpop.xlane.xlu0 %4675
    %v4677 = vadd.f32 %v4672, %v4676
    %v4678 = vmul.f32 %v4677, 0.70710677
    %4679 = vmatprep.subr.mxu0 %v4499
    %4680 = vmatpush1.msra.mxu0 %v4498
    %4681 = vmatprep.subr.mxu0 %v4497
    %4682 = vmatpush1.msra.mxu0 %v4496
    %4683 = vmatprep.subr.mxu0 %v4495
    %4684 = vmatpush1.msra.mxu0 %v4494
    %4685 = vmatprep.subr.mxu0 %v4493
    %4686 = vmatpush1.msra.mxu0 %v4492
    %4687 = vmatprep.subr.mxu0 %v4491
    %4688 = vmatpush1.msra.mxu0 %v4490
    %4689 = vmatprep.subr.mxu0 %v4489
    %4690 = vmatpush1.msra.mxu0 %v4488
    %4691 = vmatprep.subr.mxu0 %v4487
    %4692 = vmatpush1.msra.mxu0 %v4486
    %4693 = vmatprep.subr.mxu0 %v4485
    %4694 = vmatpush1.msra.mxu0 %v4484
    %4695 = vmatprep.subr.mxu0 %v4483
    %4696 = vmatpush1.msra.mxu0 %v4482
    %4697 = vmatprep.subr.mxu0 %v4481
    %4698 = vmatpush1.msra.mxu0 %v4480
    %4699 = vmatprep.subr.mxu0 %v4479
    %4700 = vmatpush1.msra.mxu0 %v4478
    %4701 = vmatprep.subr.mxu0 %v4477
    %4702 = vmatpush1.msra.mxu0 %v4476
    %4703 = vmatprep.subr.mxu0 %v4475
    %4704 = vmatpush1.msra.mxu0 %v4474
    %4705 = vmatprep.subr.mxu0 %v4473
    %4706 = vmatpush1.msra.mxu0 %v4472
    %4707 = vmatprep.subr.mxu0 %v4471
    %4708 = vmatpush1.msra.mxu0 %v4470
    %4709 = vmatprep.subr.mxu0 %v4469
    %4710 = vmatpush1.msra.mxu0 %v4468
    %4711 = vmatprep.subr.mxu0 0.0
    %4712 = vmatpush2.msra.mxu0 0.0
    %4713 = vmatprep.subr.mxu0 0.0
    %4714 = vmatpush2.msra.mxu0 0.0
    %4715 = vmatprep.subr.mxu0 0.0
    %4716 = vmatpush2.msra.mxu0 0.0
    %4717 = vmatprep.subr.mxu0 0.0
    %4718 = vmatpush2.msra.mxu0 0.0
    %4719 = vmatprep.subr.mxu0 0.0
    %4720 = vmatpush2.msra.mxu0 0.0
    %4721 = vmatprep.subr.mxu0 0.0
    %4722 = vmatpush2.msra.mxu0 0.0
    %4723 = vmatprep.subr.mxu0 0.0
    %4724 = vmatpush2.msra.mxu0 0.0
    %4725 = vmatprep.subr.mxu0 0.0
    %4726 = vmatpush2.msra.mxu0 0.0
    %4727 = vmatprep.subr.mxu0 0.0
    %4728 = vmatpush2.msra.mxu0 0.0
    %4729 = vmatprep.subr.mxu0 0.0
    %4730 = vmatpush2.msra.mxu0 0.0
    %4731 = vmatprep.subr.mxu0 0.0
    %4732 = vmatpush2.msra.mxu0 0.0
    %4733 = vmatprep.subr.mxu0 0.0
    %4734 = vmatpush2.msra.mxu0 0.0
    %4735 = vmatprep.subr.mxu0 0.0
    %4736 = vmatpush2.msra.mxu0 0.0
    %4737 = vmatprep.subr.mxu0 0.0
    %4738 = vmatpush2.msra.mxu0 0.0
    %4739 = vmatprep.subr.mxu0 0.0
    %4740 = vmatpush2.msra.mxu0 0.0
    %4741 = vmatprep.subr.mxu0 0.0
    %4742 = vmatpush2.msra.mxu0 0.0
    %4743 = vmatprep.mubr.f32.mxu0 0.0
    %4744 = vmatmul.mubr.f32.gmra.mxu0 %v1982
    %v4745 = vpop.f32.mrf.mxu0
    %v4746 = vadd.f32 %v4505, %v4745
    %v4747 = vpop.f32.mrf.mxu0
    %v4748 = vadd.f32 %v4509, %v4747
    %4749 = vdwg.mxu0
    %v4750 = vtanh.pop %v4746
    %v4751 = vtanh.pop %v4748
    %v4752 = vmul.f32 %v4750, %v4296
    %v4753 = vsel %vm4586, %v4752, 0.0
    %4754 = vadd.xlane.f32.xlu0 %v4753
    %v4755 = vpop.xlane.xlu0 %4754
    %v4756 = vmul.f32 %v4751, %v4467
    %v4757 = vsel %vm4586, %v4756, 0.0
    %4758 = vadd.xlane.f32.xlu0 %v4757
    %v4759 = vpop.xlane.xlu0 %4758
    %v4760 = vadd.f32 %v4755, %v4759
    %v4761 = vmul.f32 %v4760, 0.70710677
    %4762 = vmatprep.subr.mxu0 %v4499
    %4763 = vmatpush1.msra.mxu0 %v4498
    %4764 = vmatprep.subr.mxu0 %v4497
    %4765 = vmatpush1.msra.mxu0 %v4496
    %4766 = vmatprep.subr.mxu0 %v4495
    %4767 = vmatpush1.msra.mxu0 %v4494
    %4768 = vmatprep.subr.mxu0 %v4493
    %4769 = vmatpush1.msra.mxu0 %v4492
    %4770 = vmatprep.subr.mxu0 %v4491
    %4771 = vmatpush1.msra.mxu0 %v4490
    %4772 = vmatprep.subr.mxu0 %v4489
    %4773 = vmatpush1.msra.mxu0 %v4488
    %4774 = vmatprep.subr.mxu0 %v4487
    %4775 = vmatpush1.msra.mxu0 %v4486
    %4776 = vmatprep.subr.mxu0 %v4485
    %4777 = vmatpush1.msra.mxu0 %v4484
    %4778 = vmatprep.subr.mxu0 %v4483
    %4779 = vmatpush1.msra.mxu0 %v4482
    %4780 = vmatprep.subr.mxu0 %v4481
    %4781 = vmatpush1.msra.mxu0 %v4480
    %4782 = vmatprep.subr.mxu0 %v4479
    %4783 = vmatpush1.msra.mxu0 %v4478
    %4784 = vmatprep.subr.mxu0 %v4477
    %4785 = vmatpush1.msra.mxu0 %v4476
    %4786 = vmatprep.subr.mxu0 %v4475
    %4787 = vmatpush1.msra.mxu0 %v4474
    %4788 = vmatprep.subr.mxu0 %v4473
    %4789 = vmatpush1.msra.mxu0 %v4472
    %4790 = vmatprep.subr.mxu0 %v4471
    %4791 = vmatpush1.msra.mxu0 %v4470
    %4792 = vmatprep.subr.mxu0 %v4469
    %4793 = vmatpush1.msra.mxu0 %v4468
    %4794 = vmatprep.subr.mxu0 0.0
    %4795 = vmatpush2.msra.mxu0 0.0
    %4796 = vmatprep.subr.mxu0 0.0
    %4797 = vmatpush2.msra.mxu0 0.0
    %4798 = vmatprep.subr.mxu0 0.0
    %4799 = vmatpush2.msra.mxu0 0.0
    %4800 = vmatprep.subr.mxu0 0.0
    %4801 = vmatpush2.msra.mxu0 0.0
    %4802 = vmatprep.subr.mxu0 0.0
    %4803 = vmatpush2.msra.mxu0 0.0
    %4804 = vmatprep.subr.mxu0 0.0
    %4805 = vmatpush2.msra.mxu0 0.0
    %4806 = vmatprep.subr.mxu0 0.0
    %4807 = vmatpush2.msra.mxu0 0.0
    %4808 = vmatprep.subr.mxu0 0.0
    %4809 = vmatpush2.msra.mxu0 0.0
    %4810 = vmatprep.subr.mxu0 0.0
    %4811 = vmatpush2.msra.mxu0 0.0
    %4812 = vmatprep.subr.mxu0 0.0
    %4813 = vmatpush2.msra.mxu0 0.0
    %4814 = vmatprep.subr.mxu0 0.0
    %4815 = vmatpush2.msra.mxu0 0.0
    %4816 = vmatprep.subr.mxu0 0.0
    %4817 = vmatpush2.msra.mxu0 0.0
    %4818 = vmatprep.subr.mxu0 0.0
    %4819 = vmatpush2.msra.mxu0 0.0
    %4820 = vmatprep.subr.mxu0 0.0
    %4821 = vmatpush2.msra.mxu0 0.0
    %4822 = vmatprep.subr.mxu0 0.0
    %4823 = vmatpush2.msra.mxu0 0.0
    %4824 = vmatprep.subr.mxu0 0.0
    %4825 = vmatpush2.msra.mxu0 0.0
    %4826 = vmatprep.mubr.f32.mxu0 0.0
    %4827 = vmatmul.mubr.f32.gmra.mxu0 %v2482
    %v4828 = vpop.f32.mrf.mxu0
    %v4829 = vadd.f32 %v4505, %v4828
    %v4830 = vpop.f32.mrf.mxu0
    %v4831 = vadd.f32 %v4509, %v4830
    %4832 = vdwg.mxu0
    %v4833 = vtanh.pop %v4829
    %v4834 = vtanh.pop %v4831
    %v4835 = vmul.f32 %v4833, %v4296
    %v4836 = vsel %vm4586, %v4835, 0.0
    %4837 = vadd.xlane.f32.xlu0 %v4836
    %v4838 = vpop.xlane.xlu0 %4837
    %v4839 = vmul.f32 %v4834, %v4467
    %v4840 = vsel %vm4586, %v4839, 0.0
    %4841 = vadd.xlane.f32.xlu0 %v4840
    %v4842 = vpop.xlane.xlu0 %4841
    %v4843 = vadd.f32 %v4838, %v4842
    %v4844 = vmul.f32 %v4843, 0.70710677
    %4845 = vmatprep.subr.mxu0 %v4499
    %4846 = vmatpush1.msra.mxu0 %v4498
    %4847 = vmatprep.subr.mxu0 %v4497
    %4848 = vmatpush1.msra.mxu0 %v4496
    %4849 = vmatprep.subr.mxu0 %v4495
    %4850 = vmatpush1.msra.mxu0 %v4494
    %4851 = vmatprep.subr.mxu0 %v4493
    %4852 = vmatpush1.msra.mxu0 %v4492
    %4853 = vmatprep.subr.mxu0 %v4491
    %4854 = vmatpush1.msra.mxu0 %v4490
    %4855 = vmatprep.subr.mxu0 %v4489
    %4856 = vmatpush1.msra.mxu0 %v4488
    %4857 = vmatprep.subr.mxu0 %v4487
    %4858 = vmatpush1.msra.mxu0 %v4486
    %4859 = vmatprep.subr.mxu0 %v4485
    %4860 = vmatpush1.msra.mxu0 %v4484
    %4861 = vmatprep.subr.mxu0 %v4483
    %4862 = vmatpush1.msra.mxu0 %v4482
    %4863 = vmatprep.subr.mxu0 %v4481
    %4864 = vmatpush1.msra.mxu0 %v4480
    %4865 = vmatprep.subr.mxu0 %v4479
    %4866 = vmatpush1.msra.mxu0 %v4478
    %4867 = vmatprep.subr.mxu0 %v4477
    %4868 = vmatpush1.msra.mxu0 %v4476
    %4869 = vmatprep.subr.mxu0 %v4475
    %4870 = vmatpush1.msra.mxu0 %v4474
    %4871 = vmatprep.subr.mxu0 %v4473
    %4872 = vmatpush1.msra.mxu0 %v4472
    %4873 = vmatprep.subr.mxu0 %v4471
    %4874 = vmatpush1.msra.mxu0 %v4470
    %4875 = vmatprep.subr.mxu0 %v4469
    %4876 = vmatpush1.msra.mxu0 %v4468
    %4877 = vmatprep.subr.mxu0 0.0
    %4878 = vmatpush2.msra.mxu0 0.0
    %4879 = vmatprep.subr.mxu0 0.0
    %4880 = vmatpush2.msra.mxu0 0.0
    %4881 = vmatprep.subr.mxu0 0.0
    %4882 = vmatpush2.msra.mxu0 0.0
    %4883 = vmatprep.subr.mxu0 0.0
    %4884 = vmatpush2.msra.mxu0 0.0
    %4885 = vmatprep.subr.mxu0 0.0
    %4886 = vmatpush2.msra.mxu0 0.0
    %4887 = vmatprep.subr.mxu0 0.0
    %4888 = vmatpush2.msra.mxu0 0.0
    %4889 = vmatprep.subr.mxu0 0.0
    %4890 = vmatpush2.msra.mxu0 0.0
    %4891 = vmatprep.subr.mxu0 0.0
    %4892 = vmatpush2.msra.mxu0 0.0
    %4893 = vmatprep.subr.mxu0 0.0
    %4894 = vmatpush2.msra.mxu0 0.0
    %4895 = vmatprep.subr.mxu0 0.0
    %4896 = vmatpush2.msra.mxu0 0.0
    %4897 = vmatprep.subr.mxu0 0.0
    %4898 = vmatpush2.msra.mxu0 0.0
    %4899 = vmatprep.subr.mxu0 0.0
    %4900 = vmatpush2.msra.mxu0 0.0
    %4901 = vmatprep.subr.mxu0 0.0
    %4902 = vmatpush2.msra.mxu0 0.0
    %4903 = vmatprep.subr.mxu0 0.0
    %4904 = vmatpush2.msra.mxu0 0.0
    %4905 = vmatprep.subr.mxu0 0.0
    %4906 = vmatpush2.msra.mxu0 0.0
    %4907 = vmatprep.subr.mxu0 0.0
    %4908 = vmatpush2.msra.mxu0 0.0
    %4909 = vmatprep.mubr.f32.mxu0 0.0
    %4910 = vmatmul.mubr.f32.gmra.mxu0 %v2967
    %v4911 = vpop.f32.mrf.mxu0
    %v4912 = vadd.f32 %v4505, %v4911
    %v4913 = vpop.f32.mrf.mxu0
    %v4914 = vadd.f32 %v4509, %v4913
    %4915 = vdwg.mxu0
    %v4916 = vtanh.pop %v4912
    %v4917 = vtanh.pop %v4914
    %v4918 = vmul.f32 %v4916, %v4296
    %v4919 = vsel %vm4586, %v4918, 0.0
    %4920 = vadd.xlane.f32.xlu0 %v4919
    %v4921 = vpop.xlane.xlu0 %4920
    %v4922 = vmul.f32 %v4917, %v4467
    %v4923 = vsel %vm4586, %v4922, 0.0
    %4924 = vadd.xlane.f32.xlu0 %v4923
    %v4925 = vpop.xlane.xlu0 %4924
    %v4926 = vadd.f32 %v4921, %v4925
    %v4927 = vmul.f32 %v4926, 0.70710677
    %4928 = vmatprep.subr.mxu0 %v4499
    %4929 = vmatpush1.msra.mxu0 %v4498
    %4930 = vmatprep.subr.mxu0 %v4497
    %4931 = vmatpush1.msra.mxu0 %v4496
    %4932 = vmatprep.subr.mxu0 %v4495
    %4933 = vmatpush1.msra.mxu0 %v4494
    %4934 = vmatprep.subr.mxu0 %v4493
    %4935 = vmatpush1.msra.mxu0 %v4492
    %4936 = vmatprep.subr.mxu0 %v4491
    %4937 = vmatpush1.msra.mxu0 %v4490
    %4938 = vmatprep.subr.mxu0 %v4489
    %4939 = vmatpush1.msra.mxu0 %v4488
    %4940 = vmatprep.subr.mxu0 %v4487
    %4941 = vmatpush1.msra.mxu0 %v4486
    %4942 = vmatprep.subr.mxu0 %v4485
    %4943 = vmatpush1.msra.mxu0 %v4484
    %4944 = vmatprep.subr.mxu0 %v4483
    %4945 = vmatpush1.msra.mxu0 %v4482
    %4946 = vmatprep.subr.mxu0 %v4481
    %4947 = vmatpush1.msra.mxu0 %v4480
    %4948 = vmatprep.subr.mxu0 %v4479
    %4949 = vmatpush1.msra.mxu0 %v4478
    %4950 = vmatprep.subr.mxu0 %v4477
    %4951 = vmatpush1.msra.mxu0 %v4476
    %4952 = vmatprep.subr.mxu0 %v4475
    %4953 = vmatpush1.msra.mxu0 %v4474
    %4954 = vmatprep.subr.mxu0 %v4473
    %4955 = vmatpush1.msra.mxu0 %v4472
    %4956 = vmatprep.subr.mxu0 %v4471
    %4957 = vmatpush1.msra.mxu0 %v4470
    %4958 = vmatprep.subr.mxu0 %v4469
    %4959 = vmatpush1.msra.mxu0 %v4468
    %4960 = vmatprep.subr.mxu0 0.0
    %4961 = vmatpush2.msra.mxu0 0.0
    %4962 = vmatprep.subr.mxu0 0.0
    %4963 = vmatpush2.msra.mxu0 0.0
    %4964 = vmatprep.subr.mxu0 0.0
    %4965 = vmatpush2.msra.mxu0 0.0
    %4966 = vmatprep.subr.mxu0 0.0
    %4967 = vmatpush2.msra.mxu0 0.0
    %4968 = vmatprep.subr.mxu0 0.0
    %4969 = vmatpush2.msra.mxu0 0.0
    %4970 = vmatprep.subr.mxu0 0.0
    %4971 = vmatpush2.msra.mxu0 0.0
    %4972 = vmatprep.subr.mxu0 0.0
    %4973 = vmatpush2.msra.mxu0 0.0
    %4974 = vmatprep.subr.mxu0 0.0
    %4975 = vmatpush2.msra.mxu0 0.0
    %4976 = vmatprep.subr.mxu0 0.0
    %4977 = vmatpush2.msra.mxu0 0.0
    %4978 = vmatprep.subr.mxu0 0.0
    %4979 = vmatpush2.msra.mxu0 0.0
    %4980 = vmatprep.subr.mxu0 0.0
    %4981 = vmatpush2.msra.mxu0 0.0
    %4982 = vmatprep.subr.mxu0 0.0
    %4983 = vmatpush2.msra.mxu0 0.0
    %4984 = vmatprep.subr.mxu0 0.0
    %4985 = vmatpush2.msra.mxu0 0.0
    %4986 = vmatprep.subr.mxu0 0.0
    %4987 = vmatpush2.msra.mxu0 0.0
    %4988 = vmatprep.subr.mxu0 0.0
    %4989 = vmatpush2.msra.mxu0 0.0
    %4990 = vmatprep.subr.mxu0 0.0
    %4991 = vmatpush2.msra.mxu0 0.0
    %4992 = vmatprep.mubr.f32.mxu0 0.0
    %4993 = vmatmul.mubr.f32.gmra.mxu0 %v3467
    %v4994 = vpop.f32.mrf.mxu0
    %v4995 = vadd.f32 %v4505, %v4994
    %v4996 = vpop.f32.mrf.mxu0
    %v4997 = vadd.f32 %v4509, %v4996
    %4998 = vdwg.mxu0
    %v4999 = vtanh.pop %v4995
    %v5000 = vtanh.pop %v4997
    %v5001 = vmul.f32 %v4999, %v4296
    %v5002 = vsel %vm4586, %v5001, 0.0
    %5003 = vadd.xlane.f32.xlu0 %v5002
    %v5004 = vpop.xlane.xlu0 %5003
    %v5005 = vmul.f32 %v5000, %v4467
    %v5006 = vsel %vm4586, %v5005, 0.0
    %5007 = vadd.xlane.f32.xlu0 %v5006
    %v5008 = vpop.xlane.xlu0 %5007
    %v5009 = vadd.f32 %v5004, %v5008
    %v5010 = vmul.f32 %v5009, 0.70710677
    %5011 = vmatprep.subr.mxu0 %v4499
    %5012 = vmatpush1.msra.mxu0 %v4498
    %5013 = vmatprep.subr.mxu0 %v4497
    %5014 = vmatpush1.msra.mxu0 %v4496
    %5015 = vmatprep.subr.mxu0 %v4495
    %5016 = vmatpush1.msra.mxu0 %v4494
    %5017 = vmatprep.subr.mxu0 %v4493
    %5018 = vmatpush1.msra.mxu0 %v4492
    %5019 = vmatprep.subr.mxu0 %v4491
    %5020 = vmatpush1.msra.mxu0 %v4490
    %5021 = vmatprep.subr.mxu0 %v4489
    %5022 = vmatpush1.msra.mxu0 %v4488
    %5023 = vmatprep.subr.mxu0 %v4487
    %5024 = vmatpush1.msra.mxu0 %v4486
    %5025 = vmatprep.subr.mxu0 %v4485
    %5026 = vmatpush1.msra.mxu0 %v4484
    %5027 = vmatprep.subr.mxu0 %v4483
    %5028 = vmatpush1.msra.mxu0 %v4482
    %5029 = vmatprep.subr.mxu0 %v4481
    %5030 = vmatpush1.msra.mxu0 %v4480
    %5031 = vmatprep.subr.mxu0 %v4479
    %5032 = vmatpush1.msra.mxu0 %v4478
    %5033 = vmatprep.subr.mxu0 %v4477
    %5034 = vmatpush1.msra.mxu0 %v4476
    %5035 = vmatprep.subr.mxu0 %v4475
    %5036 = vmatpush1.msra.mxu0 %v4474
    %5037 = vmatprep.subr.mxu0 %v4473
    %5038 = vmatpush1.msra.mxu0 %v4472
    %5039 = vmatprep.subr.mxu0 %v4471
    %5040 = vmatpush1.msra.mxu0 %v4470
    %5041 = vmatprep.subr.mxu0 %v4469
    %5042 = vmatpush1.msra.mxu0 %v4468
    %5043 = vmatprep.subr.mxu0 0.0
    %5044 = vmatpush2.msra.mxu0 0.0
    %5045 = vmatprep.subr.mxu0 0.0
    %5046 = vmatpush2.msra.mxu0 0.0
    %5047 = vmatprep.subr.mxu0 0.0
    %5048 = vmatpush2.msra.mxu0 0.0
    %5049 = vmatprep.subr.mxu0 0.0
    %5050 = vmatpush2.msra.mxu0 0.0
    %5051 = vmatprep.subr.mxu0 0.0
    %5052 = vmatpush2.msra.mxu0 0.0
    %5053 = vmatprep.subr.mxu0 0.0
    %5054 = vmatpush2.msra.mxu0 0.0
    %5055 = vmatprep.subr.mxu0 0.0
    %5056 = vmatpush2.msra.mxu0 0.0
    %5057 = vmatprep.subr.mxu0 0.0
    %5058 = vmatpush2.msra.mxu0 0.0
    %5059 = vmatprep.subr.mxu0 0.0
    %5060 = vmatpush2.msra.mxu0 0.0
    %5061 = vmatprep.subr.mxu0 0.0
    %5062 = vmatpush2.msra.mxu0 0.0
    %5063 = vmatprep.subr.mxu0 0.0
    %5064 = vmatpush2.msra.mxu0 0.0
    %5065 = vmatprep.subr.mxu0 0.0
    %5066 = vmatpush2.msra.mxu0 0.0
    %5067 = vmatprep.subr.mxu0 0.0
    %5068 = vmatpush2.msra.mxu0 0.0
    %5069 = vmatprep.subr.mxu0 0.0
    %5070 = vmatpush2.msra.mxu0 0.0
    %5071 = vmatprep.subr.mxu0 0.0
    %5072 = vmatpush2.msra.mxu0 0.0
    %5073 = vmatprep.subr.mxu0 0.0
    %5074 = vmatpush2.msra.mxu0 0.0
    %5075 = vmatprep.mubr.f32.mxu0 0.0
    %5076 = vmatmul.mubr.f32.gmra.mxu0 %v3967
    %v5077 = vpop.f32.mrf.mxu0
    %v5078 = vadd.f32 %v4505, %v5077
    %v5079 = vpop.f32.mrf.mxu0
    %v5080 = vadd.f32 %v4509, %v5079
    %5081 = vdwg.mxu0
    %v5082 = vtanh.pop %v5078
    %v5083 = vtanh.pop %v5080
    %v5084 = vmul.f32 %v5082, %v4296
    %v5085 = vsel %vm4586, %v5084, 0.0
    %5086 = vadd.xlane.f32.xlu0 %v5085
    %v5087 = vpop.xlane.xlu0 %5086
    %v5088 = vmul.f32 %v5083, %v4467
    %v5089 = vsel %vm4586, %v5088, 0.0
    %5090 = vadd.xlane.f32.xlu0 %v5089
    %v5091 = vpop.xlane.xlu0 %5090
    %v5092 = vadd.f32 %v5087, %v5091
    %v5093 = vmul.f32 %v5092, 0.70710677
    %5094 = vmatprep.subr.mxu0 %v4499
    %5095 = vmatpush1.msra.mxu0 %v4498
    %5096 = vmatprep.subr.mxu0 %v4497
    %5097 = vmatpush1.msra.mxu0 %v4496
    %5098 = vmatprep.subr.mxu0 %v4495
    %5099 = vmatpush1.msra.mxu0 %v4494
    %5100 = vmatprep.subr.mxu0 %v4493
    %5101 = vmatpush1.msra.mxu0 %v4492
    %5102 = vmatprep.subr.mxu0 %v4491
    %5103 = vmatpush1.msra.mxu0 %v4490
    %5104 = vmatprep.subr.mxu0 %v4489
    %5105 = vmatpush1.msra.mxu0 %v4488
    %5106 = vmatprep.subr.mxu0 %v4487
    %5107 = vmatpush1.msra.mxu0 %v4486
    %5108 = vmatprep.subr.mxu0 %v4485
    %5109 = vmatpush1.msra.mxu0 %v4484
    %5110 = vmatprep.subr.mxu0 %v4483
    %5111 = vmatpush1.msra.mxu0 %v4482
    %5112 = vmatprep.subr.mxu0 %v4481
    %5113 = vmatpush1.msra.mxu0 %v4480
    %5114 = vmatprep.subr.mxu0 %v4479
    %5115 = vmatpush1.msra.mxu0 %v4478
    %5116 = vmatprep.subr.mxu0 %v4477
    %5117 = vmatpush1.msra.mxu0 %v4476
    %5118 = vmatprep.subr.mxu0 %v4475
    %5119 = vmatpush1.msra.mxu0 %v4474
    %5120 = vmatprep.subr.mxu0 %v4473
    %5121 = vmatpush1.msra.mxu0 %v4472
    %5122 = vmatprep.subr.mxu0 %v4471
    %5123 = vmatpush1.msra.mxu0 %v4470
    %5124 = vmatprep.subr.mxu0 %v4469
    %5125 = vmatpush1.msra.mxu0 %v4468
    %5126 = vmatprep.subr.mxu0 0.0
    %5127 = vmatpush2.msra.mxu0 0.0
    %5128 = vmatprep.subr.mxu0 0.0
    %5129 = vmatpush2.msra.mxu0 0.0
    %5130 = vmatprep.subr.mxu0 0.0
    %5131 = vmatpush2.msra.mxu0 0.0
    %5132 = vmatprep.subr.mxu0 0.0
    %5133 = vmatpush2.msra.mxu0 0.0
    %5134 = vmatprep.subr.mxu0 0.0
    %5135 = vmatpush2.msra.mxu0 0.0
    %5136 = vmatprep.subr.mxu0 0.0
    %5137 = vmatpush2.msra.mxu0 0.0
    %5138 = vmatprep.subr.mxu0 0.0
    %5139 = vmatpush2.msra.mxu0 0.0
    %5140 = vmatprep.subr.mxu0 0.0
    %5141 = vmatpush2.msra.mxu0 0.0
    %5142 = vmatprep.subr.mxu0 0.0
    %5143 = vmatpush2.msra.mxu0 0.0
    %5144 = vmatprep.subr.mxu0 0.0
    %5145 = vmatpush2.msra.mxu0 0.0
    %5146 = vmatprep.subr.mxu0 0.0
    %5147 = vmatpush2.msra.mxu0 0.0
    %5148 = vmatprep.subr.mxu0 0.0
    %5149 = vmatpush2.msra.mxu0 0.0
    %5150 = vmatprep.subr.mxu0 0.0
    %5151 = vmatpush2.msra.mxu0 0.0
    %5152 = vmatprep.subr.mxu0 0.0
    %5153 = vmatpush2.msra.mxu0 0.0
    %5154 = vmatprep.subr.mxu0 0.0
    %5155 = vmatpush2.msra.mxu0 0.0
    %5156 = vmatprep.subr.mxu0 0.0
    %5157 = vmatpush2.msra.mxu0 0.0
    %5158 = vmatprep.mubr.f32.mxu0 0.0
    %5159 = vmatmul.mubr.f32.gmra.mxu0 %v4467
    %v5160 = vpop.f32.mrf.mxu0
    %v5161 = vadd.f32 %v4505, %v5160
    %v5162 = vpop.f32.mrf.mxu0
    %v5163 = vadd.f32 %v4509, %v5162
    %5164 = vdwg.mxu0
    %v5165 = vtanh.pop %v5161
    %v5166 = vtanh.pop %v5163
    %v5167 = vmul.f32 %v5165, %v4296
    %v5168 = vsel %vm4586, %v5167, 0.0
    %5169 = vadd.xlane.f32.xlu0 %v5168
    %v5170 = vpop.xlane.xlu0 %5169
    %v5171 = vmul.f32 %v5166, %v4467
    %v5172 = vsel %vm4586, %v5171, 0.0
    %5173 = vadd.xlane.f32.xlu0 %v5172
    %v5174 = vpop.xlane.xlu0 %5173
    %v5175 = vadd.f32 %v5170, %v5174
    %v5176 = vmul.f32 %v5175, 0.70710677
    %v5177 = vmax.f32 %v4595, %v4678
    %v5178 = vmax.f32 %v5177, %v4761
    %v5179 = vmax.f32 %v5178, %v4844
    %v5180 = vmax.f32 %v5179, %v4927
    %v5181 = vmax.f32 %v5180, %v5010
    %v5182 = vmax.f32 %v5181, %v5093
    %v5183 = vmax.f32 %v5182, %v5176
    %v5184 = vsub.f32 %v4595, %v5183
    %v5185 = vmul.f32 %v5184, 1.442695
    %v5186 = vpow.pop %v5185
    %v5187 = vsub.f32 %v4678, %v5183
    %v5188 = vmul.f32 %v5187, 1.442695
    %v5189 = vpow.pop %v5188
    %v5190 = vsub.f32 %v4761, %v5183
    %v5191 = vmul.f32 %v5190, 1.442695
    %v5192 = vpow.pop %v5191
    %v5193 = vsub.f32 %v4844, %v5183
    %v5194 = vmul.f32 %v5193, 1.442695
    %v5195 = vpow.pop %v5194
    %v5196 = vsub.f32 %v4927, %v5183
    %v5197 = vmul.f32 %v5196, 1.442695
    %v5198 = vpow.pop %v5197
    %v5199 = vsub.f32 %v5010, %v5183
    %v5200 = vmul.f32 %v5199, 1.442695
    %v5201 = vpow.pop %v5200
    %v5202 = vsub.f32 %v5093, %v5183
    %v5203 = vmul.f32 %v5202, 1.442695
    %v5204 = vpow.pop %v5203
    %v5205 = vsub.f32 %v5176, %v5183
    %v5206 = vmul.f32 %v5205, 1.442695
    %v5207 = vpow.pop %v5206
    %v5208 = vadd.f32 %v5186, %v5189
    %v5209 = vadd.f32 %v5208, %v5192
    %v5210 = vadd.f32 %v5209, %v5195
    %v5211 = vadd.f32 %v5210, %v5198
    %v5212 = vadd.f32 %v5211, %v5201
    %v5213 = vadd.f32 %v5212, %v5204
    %v5214 = vadd.f32 %v5213, %v5207
    %v5215 = vrcp.pop %v5214
    %v5216 = vmul.f32 1.0, %v5215
    %v5217 = vmul.f32 %v5186, %v5216
    %v5218 = vmul.f32 %v982, %v5217
    %v5219 = vadd.f32 %v5218, 0.0
    %v5220 = vmul.f32 %v5189, %v5216
    %v5221 = vmul.f32 %v1482, %v5220
    %v5222 = vadd.f32 %v5219, %v5221
    %v5223 = vmul.f32 %v5192, %v5216
    %v5224 = vmul.f32 %v1982, %v5223
    %v5225 = vadd.f32 %v5222, %v5224
    %v5226 = vmul.f32 %v5195, %v5216
    %v5227 = vmul.f32 %v2482, %v5226
    %v5228 = vadd.f32 %v5225, %v5227
    %v5229 = vmul.f32 %v5198, %v5216
    %v5230 = vmul.f32 %v2967, %v5229
    %v5231 = vadd.f32 %v5228, %v5230
    %v5232 = vmul.f32 %v5201, %v5216
    %v5233 = vmul.f32 %v3467, %v5232
    %v5234 = vadd.f32 %v5231, %v5233
    %v5235 = vmul.f32 %v5204, %v5216
    %v5236 = vmul.f32 %v3967, %v5235
    %v5237 = vadd.f32 %v5234, %v5236
    %v5238 = vmul.f32 %v5207, %v5216
    %v5239 = vmul.f32 %v4467, %v5238
    %v5240 = vadd.f32 %v5237, %v5239
    %v5241 = vld [vmem:[%s1] sm:$0x3]
    %v5242 = vld [vmem:[%s12] sm:$0x1]
    %v5243 = vld [vmem:[%s13] sm:$0x1]
    %v5244 = vlaneseq
    %v5245 = vshrl.u32 %v5244, 7
    %v5246 = vsub.s32 0, %v5245
    %v5247 = vrot.slane %v5241, %v5246
    %5249 = vbcast.lane.b32.xlu0 %v5247, 256
    %v5250 = vpop.permute.xlu0 %5249
    %v5251 = vlaneseq
    %v5252 = vshrl.u32 %v5251, 7
    %v5253 = vsub.s32 1, %v5252
    %v5254 = vrot.slane %v5241, %v5253
    %5256 = vbcast.lane.b32.xlu0 %v5254, 256
    %v5257 = vpop.permute.xlu0 %5256
    %v5259 = vlaneseq
    %v5260 = vshrl.u32 %v5259, 7
    %v5261 = vsub.s32 0, %v5260
    %v5262 = vrot.slane %v5242, %v5261
    %v5264 = vmul.f32 %v5250, %v5262
    %v5265 = vmul.f32 %v5257, %v5262
    %v5267 = vlaneseq
    %v5268 = vshrl.u32 %v5267, 7
    %v5269 = vsub.s32 0, %v5268
    %v5270 = vrot.slane %v5243, %v5269
    %v5272 = vadd.f32 %v5264, %v5270
    %v5273 = vadd.f32 %v5265, %v5270
    %v5274 = vmax.f32 %v5272, 0.0
    %v5275 = vmax.f32 %v5273, 0.0
    %v5276 = vld [vmem:[%s14] sm:$0xff]
    %v5277 = vld [vmem:[%s15] sm:$0x1]
    %v5279 = vlaneseq
    %v5280 = vshrl.u32 %v5279, 7
    %v5281 = vsub.s32 0, %v5280
    %v5282 = vrot.slane %v5277, %v5281
    %vm5284 = vcmask 64512
    %v5286 = vsel %vm5284, %v5274, 0
    %v5289 = vsel %vm5284, %v5275, 0
    %5291 = vmatprep.subr.mxu0 0.0
    %5292 = vmatpush1.msra.mxu0 0.0
    %5293 = vmatprep.subr.mxu0 0.0
    %5294 = vmatpush1.msra.mxu0 0.0
    %5295 = vmatprep.subr.mxu0 0.0
    %5296 = vmatpush1.msra.mxu0 0.0
    %5297 = vmatprep.subr.mxu0 0.0
    %5298 = vmatpush1.msra.mxu0 0.0
    %5299 = vmatprep.subr.mxu0 0.0
    %5300 = vmatpush1.msra.mxu0 0.0
    %5301 = vmatprep.subr.mxu0 0.0
    %5302 = vmatpush1.msra.mxu0 0.0
    %5303 = vmatprep.subr.mxu0 0.0
    %5304 = vmatpush1.msra.mxu0 0.0
    %5305 = vmatprep.subr.mxu0 0.0
    %5306 = vmatpush1.msra.mxu0 0.0
    %5307 = vmatprep.subr.mxu0 0.0
    %5308 = vmatpush1.msra.mxu0 0.0
    %5309 = vmatprep.subr.mxu0 0.0
    %5310 = vmatpush1.msra.mxu0 0.0
    %5311 = vmatprep.subr.mxu0 0.0
    %5312 = vmatpush1.msra.mxu0 0.0
    %5313 = vmatprep.subr.mxu0 0.0
    %5314 = vmatpush1.msra.mxu0 0.0
    %5315 = vmatprep.subr.mxu0 0.0
    %5316 = vmatpush1.msra.mxu0 0.0
    %5317 = vmatprep.subr.mxu0 0.0
    %5318 = vmatpush1.msra.mxu0 0.0
    %5319 = vmatprep.subr.mxu0 0.0
    %5320 = vmatpush1.msra.mxu0 0.0
    %5321 = vmatprep.subr.mxu0 0.0
    %5322 = vmatpush1.msra.mxu0 %v5276
    %5323 = vmatprep.subr.mxu0 0.0
    %5324 = vmatpush2.msra.mxu0 0.0
    %5325 = vmatprep.subr.mxu0 0.0
    %5326 = vmatpush2.msra.mxu0 0.0
    %5327 = vmatprep.subr.mxu0 0.0
    %5328 = vmatpush2.msra.mxu0 0.0
    %5329 = vmatprep.subr.mxu0 0.0
    %5330 = vmatpush2.msra.mxu0 0.0
    %5331 = vmatprep.subr.mxu0 0.0
    %5332 = vmatpush2.msra.mxu0 0.0
    %5333 = vmatprep.subr.mxu0 0.0
    %5334 = vmatpush2.msra.mxu0 0.0
    %5335 = vmatprep.subr.mxu0 0.0
    %5336 = vmatpush2.msra.mxu0 0.0
    %5337 = vmatprep.subr.mxu0 0.0
    %5338 = vmatpush2.msra.mxu0 0.0
    %5339 = vmatprep.subr.mxu0 0.0
    %5340 = vmatpush2.msra.mxu0 0.0
    %5341 = vmatprep.subr.mxu0 0.0
    %5342 = vmatpush2.msra.mxu0 0.0
    %5343 = vmatprep.subr.mxu0 0.0
    %5344 = vmatpush2.msra.mxu0 0.0
    %5345 = vmatprep.subr.mxu0 0.0
    %5346 = vmatpush2.msra.mxu0 0.0
    %5347 = vmatprep.subr.mxu0 0.0
    %5348 = vmatpush2.msra.mxu0 0.0
    %5349 = vmatprep.subr.mxu0 0.0
    %5350 = vmatpush2.msra.mxu0 0.0
    %5351 = vmatprep.subr.mxu0 0.0
    %5352 = vmatpush2.msra.mxu0 0.0
    %5353 = vmatprep.subr.mxu0 0.0
    %5354 = vmatpush2.msra.mxu0 0.0
    %5355 = vmatprep.mubr.f32.mxu0 0.0
    %5356 = vmatmul.mubr.f32.gmra.mxu0 %v5286
    %v5357 = vpop.f32.mrf.mxu0
    %v5358 = vadd.f32 %v5282, %v5357
    %v5359 = vpop.f32.mrf.mxu0
    %5360 = vmatprep.mubr.f32.mxu0 0.0
    %5361 = vmatmul.mubr.f32.gmra.mxu0 %v5289
    %v5362 = vpop.f32.mrf.mxu0
    %v5363 = vadd.f32 %v5282, %v5362
    %v5364 = vpop.f32.mrf.mxu0
    %5365 = vdwg.mxu0
    %v5366 = vmax.f32 %v5358, 0.0
    %v5367 = vmax.f32 %v5363, 0.0
    %v5368 = vld [vmem:[%s16] sm:$0xff]
    %v5369 = vld [vmem:[%s16 + $0x8] sm:$0xff]
    %v5370 = vld [vmem:[%s16 + $0x10] sm:$0xff]
    %v5371 = vld [vmem:[%s16 + $0x18] sm:$0xff]
    %v5372 = vld [vmem:[%s16 + $0x20] sm:$0xff]
    %v5373 = vld [vmem:[%s16 + $0x28] sm:$0xff]
    %v5374 = vld [vmem:[%s16 + $0x30] sm:$0xff]
    %v5375 = vld [vmem:[%s16 + $0x38] sm:$0xff]
    %v5376 = vld [vmem:[%s16 + $0x40] sm:$0xff]
    %v5377 = vld [vmem:[%s16 + $0x48] sm:$0xff]
    %v5378 = vld [vmem:[%s16 + $0x50] sm:$0xff]
    %v5379 = vld [vmem:[%s16 + $0x58] sm:$0xff]
    %v5380 = vld [vmem:[%s16 + $0x60] sm:$0xff]
    %v5381 = vld [vmem:[%s16 + $0x68] sm:$0xff]
    %v5382 = vld [vmem:[%s16 + $0x70] sm:$0xff]
    %v5383 = vld [vmem:[%s16 + $0x78] sm:$0xff]
    %v5384 = vld [vmem:[%s17] sm:$0x1]
    %v5386 = vlaneseq
    %v5387 = vshrl.u32 %v5386, 7
    %v5388 = vsub.s32 0, %v5387
    %v5389 = vrot.slane %v5384, %v5388
    %5391 = vmatprep.subr.mxu0 0.0
    %5392 = vmatpush1.msra.mxu0 %v5383
    %5393 = vmatprep.subr.mxu0 0.0
    %5394 = vmatpush1.msra.mxu0 %v5382
    %5395 = vmatprep.subr.mxu0 0.0
    %5396 = vmatpush1.msra.mxu0 %v5381
    %5397 = vmatprep.subr.mxu0 0.0
    %5398 = vmatpush1.msra.mxu0 %v5380
    %5399 = vmatprep.subr.mxu0 0.0
    %5400 = vmatpush1.msra.mxu0 %v5379
    %5401 = vmatprep.subr.mxu0 0.0
    %5402 = vmatpush1.msra.mxu0 %v5378
    %5403 = vmatprep.subr.mxu0 0.0
    %5404 = vmatpush1.msra.mxu0 %v5377
    %5405 = vmatprep.subr.mxu0 0.0
    %5406 = vmatpush1.msra.mxu0 %v5376
    %5407 = vmatprep.subr.mxu0 0.0
    %5408 = vmatpush1.msra.mxu0 %v5375
    %5409 = vmatprep.subr.mxu0 0.0
    %5410 = vmatpush1.msra.mxu0 %v5374
    %5411 = vmatprep.subr.mxu0 0.0
    %5412 = vmatpush1.msra.mxu0 %v5373
    %5413 = vmatprep.subr.mxu0 0.0
    %5414 = vmatpush1.msra.mxu0 %v5372
    %5415 = vmatprep.subr.mxu0 0.0
    %5416 = vmatpush1.msra.mxu0 %v5371
    %5417 = vmatprep.subr.mxu0 0.0
    %5418 = vmatpush1.msra.mxu0 %v5370
    %5419 = vmatprep.subr.mxu0 0.0
    %5420 = vmatpush1.msra.mxu0 %v5369
    %5421 = vmatprep.subr.mxu0 0.0
    %5422 = vmatpush1.msra.mxu0 %v5368
    %5423 = vmatprep.subr.mxu0 0.0
    %5424 = vmatpush2.msra.mxu0 0.0
    %5425 = vmatprep.subr.mxu0 0.0
    %5426 = vmatpush2.msra.mxu0 0.0
    %5427 = vmatprep.subr.mxu0 0.0
    %5428 = vmatpush2.msra.mxu0 0.0
    %5429 = vmatprep.subr.mxu0 0.0
    %5430 = vmatpush2.msra.mxu0 0.0
    %5431 = vmatprep.subr.mxu0 0.0
    %5432 = vmatpush2.msra.mxu0 0.0
    %5433 = vmatprep.subr.mxu0 0.0
    %5434 = vmatpush2.msra.mxu0 0.0
    %5435 = vmatprep.subr.mxu0 0.0
    %5436 = vmatpush2.msra.mxu0 0.0
    %5437 = vmatprep.subr.mxu0 0.0
    %5438 = vmatpush2.msra.mxu0 0.0
    %5439 = vmatprep.subr.mxu0 0.0
    %5440 = vmatpush2.msra.mxu0 0.0
    %5441 = vmatprep.subr.mxu0 0.0
    %5442 = vmatpush2.msra.mxu0 0.0
    %5443 = vmatprep.subr.mxu0 0.0
    %5444 = vmatpush2.msra.mxu0 0.0
    %5445 = vmatprep.subr.mxu0 0.0
    %5446 = vmatpush2.msra.mxu0 0.0
    %5447 = vmatprep.subr.mxu0 0.0
    %5448 = vmatpush2.msra.mxu0 0.0
    %5449 = vmatprep.subr.mxu0 0.0
    %5450 = vmatpush2.msra.mxu0 0.0
    %5451 = vmatprep.subr.mxu0 0.0
    %5452 = vmatpush2.msra.mxu0 0.0
    %5453 = vmatprep.subr.mxu0 0.0
    %5454 = vmatpush2.msra.mxu0 0.0
    %5455 = vmatprep.mubr.f32.mxu0 0.0
    %5456 = vmatmul.mubr.f32.gmra.mxu0 %v5366
    %v5457 = vpop.f32.mrf.mxu0
    %v5458 = vadd.f32 %v5389, %v5457
    %v5459 = vpop.f32.mrf.mxu0
    %5460 = vmatprep.mubr.f32.mxu0 0.0
    %5461 = vmatmul.mubr.f32.gmra.mxu0 %v5367
    %v5462 = vpop.f32.mrf.mxu0
    %v5463 = vadd.f32 %v5389, %v5462
    %v5464 = vpop.f32.mrf.mxu0
    %5465 = vdwg.mxu0
    %v5466 = vtanh.pop %v5458
    %v5467 = vtanh.pop %v5463
    %v5468 = vld [vmem:[%s2] sm:$0x1]
    %v5470 = vlaneseq
    %v5471 = vshrl.u32 %v5470, 7
    %v5472 = vsub.s32 0, %v5471
    %v5473 = vrot.slane %v5468, %v5472
    %v5475 = vmul.f32 %v5241, %v5473
    %v5476 = vld [vmem:[%s3] sm:$0x1]
    %v5478 = vlaneseq
    %v5479 = vshrl.u32 %v5478, 7
    %v5480 = vsub.s32 0, %v5479
    %v5481 = vrot.slane %v5476, %v5480
    %v5483 = vadd.f32 %v5475, %v5481
    %v5486 = vunpack.c.l.s4 1966171168
    %v5487 = vunpack.c.0.s8 %v5486
    %v5488 = vlaneseq
    %v5489 = vshrl.u32 %v5488, 7
    %v5490 = vsub.s32 %v5487, %v5489
    %v5491 = vrot.slane %v5483, %v5490
    %v5492 = vcombine.high %v5491, %v5491
    %v5494 = vunpack.c.l.s4 1966171168
    %v5495 = vunpack.c.0.s8 %v5494
    %v5496 = vlaneseq
    %v5497 = vshrl.u32 %v5496, 7
    %v5498 = vsub.s32 %v5495, %v5497
    %v5499 = vrot.slane %v5491, %v5498
    %v5501 = vunpack.c.l.s4 1966171168
    %v5502 = vunpack.c.0.s8 %v5501
    %v5503 = vlaneseq
    %v5504 = vshrl.u32 %v5503, 7
    %v5505 = vsub.s32 %v5502, %v5504
    %v5506 = vrot.slane %v5492, %v5505
    %v5507 = vlaneseq
    %v5508 = vshrl.u32 %v5507, 7
    %v5509 = vsub.s32 0, %v5508
    %v5510 = vrot.slane %v5499, %v5509
    %v5511 = vlaneseq
    %v5512 = vshrl.u32 %v5511, 7
    %v5513 = vsub.s32 0, %v5512
    %v5514 = vrot.slane %v5506, %v5513
    %v5517 = vmul.f32 %v5466, %v5510
    %v5518 = vmul.f32 %v5467, %v5514
    %v5519 = vsel %vm5284, %v5517, 0.0
    %5520 = vadd.xlane.f32.xlu0 %v5519
    %v5521 = vpop.xlane.xlu0 %5520
    %v5522 = vsel %vm5284, %v5518, 0.0
    %5523 = vadd.xlane.f32.xlu0 %v5522
    %v5524 = vpop.xlane.xlu0 %5523
    %v5525 = vmul.f32 %v5521, 0.70710677
    %v5526 = vmul.f32 %v5524, 0.70710677
    %v5529 = vlaneseq
    %v5530 = vand.u32 %v5529, 127
    %v5531 = vlaneseq
    %v5532 = vshrl.u32 %v5531, 7
    %v5533 = vsub.s32 %v5530, %v5532
    %v5534 = vrot.slane %v5525, %v5533
    %v5535 = vlaneseq
    %v5536 = vshrl.u32 %v5535, 7
    %v5537 = vsub.s32 %v5530, %v5536
    %v5538 = vrot.slane %v5526, %v5537
    %vm5539 = vcmask 1041409
    %v5540 = vsel %vm5539, %v5538, %v5534
    %vm5542 = vcmask 58368
    %v5543 = vsel %vm5542, %v5540, -inf
    %5544 = vmax.xlane.f32.xlu0 %v5543
    %v5545 = vpop.xlane.xlu0 %5544
    %v5547 = vlaneseq
    %v5548 = vshrl.u32 %v5547, 7
    %v5549 = vsub.s32 0, %v5548
    %v5550 = vrot.slane %v5545, %v5549
    %v5551 = vlaneseq
    %v5552 = vshrl.u32 %v5551, 7
    %v5553 = vsub.s32 1, %v5552
    %v5554 = vrot.slane %v5545, %v5553
    %v5557 = vsub.f32 %v5525, %v5550
    %v5558 = vsub.f32 %v5526, %v5554
    %v5559 = vmul.f32 %v5557, 1.442695
    %v5560 = vpow.pop %v5559
    %v5561 = vmul.f32 %v5558, 1.442695
    %v5562 = vpow.pop %v5561
    %5565 = vset.pattern.permute.xlu0 0
    %5566 = vperm.xlu0 %5565, %v5560
    %v5567 = vpop.permute.xlu0 %5566
    %5568 = vset.pattern.permute.xlu0 0
    %5569 = vperm.xlu0 %5568, %v5562
    %v5570 = vpop.permute.xlu0 %5569
    %v5571 = vlaneseq
    %v5572 = vshrl.u32 %v5571, 7
    %v5573 = vsub.s32 %v5530, %v5572
    %v5574 = vrot.slane %v5567, %v5573
    %v5575 = vlaneseq
    %v5576 = vshrl.u32 %v5575, 7
    %v5577 = vsub.s32 %v5530, %v5576
    %v5578 = vrot.slane %v5570, %v5577
    %v5579 = vsel %vm5539, %v5578, %v5574
    %v5581 = vsel %vm5542, %v5579, 0.0
    %5582 = vadd.xlane.f32.xlu0 %v5581
    %v5583 = vpop.xlane.xlu0 %5582
    %v5585 = vlaneseq
    %v5586 = vshrl.u32 %v5585, 7
    %v5587 = vsub.s32 0, %v5586
    %v5588 = vrot.slane %v5583, %v5587
    %v5589 = vlaneseq
    %v5590 = vshrl.u32 %v5589, 7
    %v5591 = vsub.s32 1, %v5590
    %v5592 = vrot.slane %v5583, %v5591
    %v5595 = vrcp.pop %v5588
    %v5596 = vmul.f32 %v5560, %v5595
    %v5597 = vrcp.pop %v5592
    %v5598 = vmul.f32 %v5562, %v5597
    %v5600 = vlaneseq
    %v5601 = vshrl.u32 %v5600, 7
    %v5602 = vsub.s32 0, %v5601
    %v5603 = vrot.slane %v5241, %v5602
    %5605 = vbcast.lane.b32.xlu0 %v5603, 256
    %v5606 = vpop.permute.xlu0 %5605
    %v5607 = vlaneseq
    %v5608 = vshrl.u32 %v5607, 7
    %v5609 = vsub.s32 1, %v5608
    %v5610 = vrot.slane %v5241, %v5609
    %5612 = vbcast.lane.b32.xlu0 %v5610, 256
    %v5613 = vpop.permute.xlu0 %5612
    %v5616 = vmul.f32 %v5596, %v5606
    %v5617 = vmul.f32 %v5598, %v5613
    %v5618 = vld [vmem:[%s18] sm:$0xff]
    %v5619 = vld [vmem:[%s18 + $0x8] sm:$0xff]
    %v5620 = vld [vmem:[%s18 + $0x10] sm:$0xff]
    %v5621 = vld [vmem:[%s18 + $0x18] sm:$0xff]
    %v5622 = vld [vmem:[%s18 + $0x20] sm:$0xff]
    %v5623 = vld [vmem:[%s18 + $0x28] sm:$0xff]
    %v5624 = vld [vmem:[%s18 + $0x30] sm:$0xff]
    %v5625 = vld [vmem:[%s18 + $0x38] sm:$0xff]
    %v5626 = vld [vmem:[%s18 + $0x40] sm:$0xff]
    %v5627 = vld [vmem:[%s18 + $0x48] sm:$0xff]
    %v5628 = vld [vmem:[%s18 + $0x50] sm:$0xff]
    %v5629 = vld [vmem:[%s18 + $0x58] sm:$0xff]
    %v5630 = vld [vmem:[%s18 + $0x60] sm:$0xff]
    %v5631 = vld [vmem:[%s18 + $0x68] sm:$0xff]
    %v5632 = vld [vmem:[%s18 + $0x70] sm:$0xff]
    %v5633 = vld [vmem:[%s18 + $0x78] sm:$0xff]
    %v5634 = vld [vmem:[%s18 + $0x80] sm:$0xff]
    %v5635 = vld [vmem:[%s18 + $0x88] sm:$0xff]
    %v5636 = vld [vmem:[%s18 + $0x90] sm:$0xff]
    %v5637 = vld [vmem:[%s18 + $0x98] sm:$0xff]
    %v5638 = vld [vmem:[%s18 + $0xa0] sm:$0xff]
    %v5639 = vld [vmem:[%s18 + $0xa8] sm:$0xff]
    %v5640 = vld [vmem:[%s18 + $0xb0] sm:$0xff]
    %v5641 = vld [vmem:[%s18 + $0xb8] sm:$0xff]
    %v5642 = vld [vmem:[%s18 + $0xc0] sm:$0xff]
    %v5643 = vld [vmem:[%s18 + $0xc8] sm:$0xff]
    %v5644 = vld [vmem:[%s18 + $0xd0] sm:$0xff]
    %v5645 = vld [vmem:[%s18 + $0xd8] sm:$0xff]
    %v5646 = vld [vmem:[%s18 + $0xe0] sm:$0xff]
    %v5647 = vld [vmem:[%s18 + $0xe8] sm:$0xff]
    %v5648 = vld [vmem:[%s18 + $0xf0] sm:$0xff]
    %v5649 = vld [vmem:[%s18 + $0xf8] sm:$0xff]
    %v5650 = vld [vmem:[%s19] sm:$0xff]
    %v5651 = vld [vmem:[%s19 + $0x8] sm:$0xff]
    %5654 = vset.pattern.permute.xlu0 0
    %5655 = vperm.xlu0 %5654, %v5616
    %v5656 = vpop.permute.xlu0 %5655
    %5657 = vset.pattern.permute.xlu0 0
    %5658 = vperm.xlu0 %5657, %v5617
    %v5659 = vpop.permute.xlu0 %5658
    %v5660 = vlaneseq
    %v5661 = vshrl.u32 %v5660, 7
    %v5662 = vsub.s32 %v5530, %v5661
    %v5663 = vrot.slane %v5656, %v5662
    %v5664 = vlaneseq
    %v5665 = vshrl.u32 %v5664, 7
    %v5666 = vsub.s32 %v5530, %v5665
    %v5667 = vrot.slane %v5659, %v5666
    %v5668 = vsel %vm5539, %v5667, %v5663
    %v5669 = vsel %vm5284, %v5668, 0
    %5671 = vmatprep.subr.mxu0 0.0
    %5672 = vmatpush1.msra.mxu0 0.0
    %5673 = vmatprep.subr.mxu0 0.0
    %5674 = vmatpush1.msra.mxu0 0.0
    %5675 = vmatprep.subr.mxu0 0.0
    %5676 = vmatpush1.msra.mxu0 0.0
    %5677 = vmatprep.subr.mxu0 0.0
    %5678 = vmatpush1.msra.mxu0 0.0
    %5679 = vmatprep.subr.mxu0 0.0
    %5680 = vmatpush1.msra.mxu0 0.0
    %5681 = vmatprep.subr.mxu0 0.0
    %5682 = vmatpush1.msra.mxu0 0.0
    %5683 = vmatprep.subr.mxu0 0.0
    %5684 = vmatpush1.msra.mxu0 0.0
    %5685 = vmatprep.subr.mxu0 0.0
    %5686 = vmatpush1.msra.mxu0 0.0
    %5687 = vmatprep.subr.mxu0 0.0
    %5688 = vmatpush1.msra.mxu0 0.0
    %5689 = vmatprep.subr.mxu0 0.0
    %5690 = vmatpush1.msra.mxu0 0.0
    %5691 = vmatprep.subr.mxu0 0.0
    %5692 = vmatpush1.msra.mxu0 0.0
    %5693 = vmatprep.subr.mxu0 0.0
    %5694 = vmatpush1.msra.mxu0 0.0
    %5695 = vmatprep.subr.mxu0 0.0
    %5696 = vmatpush1.msra.mxu0 0.0
    %5697 = vmatprep.subr.mxu0 0.0
    %5698 = vmatpush1.msra.mxu0 0.0
    %5699 = vmatprep.subr.mxu0 0.0
    %5700 = vmatpush1.msra.mxu0 0.0
    %5701 = vmatprep.subr.mxu0 %v5651
    %5702 = vmatpush1.msra.mxu0 %v5650
    %5703 = vmatprep.subr.mxu0 0.0
    %5704 = vmatpush2.msra.mxu0 0.0
    %5705 = vmatprep.subr.mxu0 0.0
    %5706 = vmatpush2.msra.mxu0 0.0
    %5707 = vmatprep.subr.mxu0 0.0
    %5708 = vmatpush2.msra.mxu0 0.0
    %5709 = vmatprep.subr.mxu0 0.0
    %5710 = vmatpush2.msra.mxu0 0.0
    %5711 = vmatprep.subr.mxu0 0.0
    %5712 = vmatpush2.msra.mxu0 0.0
    %5713 = vmatprep.subr.mxu0 0.0
    %5714 = vmatpush2.msra.mxu0 0.0
    %5715 = vmatprep.subr.mxu0 0.0
    %5716 = vmatpush2.msra.mxu0 0.0
    %5717 = vmatprep.subr.mxu0 0.0
    %5718 = vmatpush2.msra.mxu0 0.0
    %5719 = vmatprep.subr.mxu0 0.0
    %5720 = vmatpush2.msra.mxu0 0.0
    %5721 = vmatprep.subr.mxu0 0.0
    %5722 = vmatpush2.msra.mxu0 0.0
    %5723 = vmatprep.subr.mxu0 0.0
    %5724 = vmatpush2.msra.mxu0 0.0
    %5725 = vmatprep.subr.mxu0 0.0
    %5726 = vmatpush2.msra.mxu0 0.0
    %5727 = vmatprep.subr.mxu0 0.0
    %5728 = vmatpush2.msra.mxu0 0.0
    %5729 = vmatprep.subr.mxu0 0.0
    %5730 = vmatpush2.msra.mxu0 0.0
    %5731 = vmatprep.subr.mxu0 0.0
    %5732 = vmatpush2.msra.mxu0 0.0
    %5733 = vmatprep.subr.mxu0 0.0
    %5734 = vmatpush2.msra.mxu0 0.0
    %5735 = vmatprep.mubr.f32.mxu0 0.0
    %5736 = vmatmul.mubr.f32.gmra.mxu0 %v5669
    %v5737 = vpop.f32.mrf.mxu0
    %v5738 = vadd.f32 0.0, %v5737
    %v5739 = vpop.f32.mrf.mxu0
    %v5740 = vadd.f32 0.0, %v5739
    %5741 = vdwg.mxu0
    %5742 = vmatprep.subr.mxu0 %v5649
    %5743 = vmatpush1.msra.mxu0 %v5648
    %5744 = vmatprep.subr.mxu0 %v5647
    %5745 = vmatpush1.msra.mxu0 %v5646
    %5746 = vmatprep.subr.mxu0 %v5645
    %5747 = vmatpush1.msra.mxu0 %v5644
    %5748 = vmatprep.subr.mxu0 %v5643
    %5749 = vmatpush1.msra.mxu0 %v5642
    %5750 = vmatprep.subr.mxu0 %v5641
    %5751 = vmatpush1.msra.mxu0 %v5640
    %5752 = vmatprep.subr.mxu0 %v5639
    %5753 = vmatpush1.msra.mxu0 %v5638
    %5754 = vmatprep.subr.mxu0 %v5637
    %5755 = vmatpush1.msra.mxu0 %v5636
    %5756 = vmatprep.subr.mxu0 %v5635
    %5757 = vmatpush1.msra.mxu0 %v5634
    %5758 = vmatprep.subr.mxu0 %v5633
    %5759 = vmatpush1.msra.mxu0 %v5632
    %5760 = vmatprep.subr.mxu0 %v5631
    %5761 = vmatpush1.msra.mxu0 %v5630
    %5762 = vmatprep.subr.mxu0 %v5629
    %5763 = vmatpush1.msra.mxu0 %v5628
    %5764 = vmatprep.subr.mxu0 %v5627
    %5765 = vmatpush1.msra.mxu0 %v5626
    %5766 = vmatprep.subr.mxu0 %v5625
    %5767 = vmatpush1.msra.mxu0 %v5624
    %5768 = vmatprep.subr.mxu0 %v5623
    %5769 = vmatpush1.msra.mxu0 %v5622
    %5770 = vmatprep.subr.mxu0 %v5621
    %5771 = vmatpush1.msra.mxu0 %v5620
    %5772 = vmatprep.subr.mxu0 %v5619
    %5773 = vmatpush1.msra.mxu0 %v5618
    %5774 = vmatprep.subr.mxu0 0.0
    %5775 = vmatpush2.msra.mxu0 0.0
    %5776 = vmatprep.subr.mxu0 0.0
    %5777 = vmatpush2.msra.mxu0 0.0
    %5778 = vmatprep.subr.mxu0 0.0
    %5779 = vmatpush2.msra.mxu0 0.0
    %5780 = vmatprep.subr.mxu0 0.0
    %5781 = vmatpush2.msra.mxu0 0.0
    %5782 = vmatprep.subr.mxu0 0.0
    %5783 = vmatpush2.msra.mxu0 0.0
    %5784 = vmatprep.subr.mxu0 0.0
    %5785 = vmatpush2.msra.mxu0 0.0
    %5786 = vmatprep.subr.mxu0 0.0
    %5787 = vmatpush2.msra.mxu0 0.0
    %5788 = vmatprep.subr.mxu0 0.0
    %5789 = vmatpush2.msra.mxu0 0.0
    %5790 = vmatprep.subr.mxu0 0.0
    %5791 = vmatpush2.msra.mxu0 0.0
    %5792 = vmatprep.subr.mxu0 0.0
    %5793 = vmatpush2.msra.mxu0 0.0
    %5794 = vmatprep.subr.mxu0 0.0
    %5795 = vmatpush2.msra.mxu0 0.0
    %5796 = vmatprep.subr.mxu0 0.0
    %5797 = vmatpush2.msra.mxu0 0.0
    %5798 = vmatprep.subr.mxu0 0.0
    %5799 = vmatpush2.msra.mxu0 0.0
    %5800 = vmatprep.subr.mxu0 0.0
    %5801 = vmatpush2.msra.mxu0 0.0
    %5802 = vmatprep.subr.mxu0 0.0
    %5803 = vmatpush2.msra.mxu0 0.0
    %5804 = vmatprep.subr.mxu0 0.0
    %5805 = vmatpush2.msra.mxu0 0.0
    %5806 = vmatprep.mubr.f32.mxu0 0.0
    %5807 = vmatmul.mubr.f32.gmra.mxu0 %v5240
    %v5808 = vpop.f32.mrf.mxu0
    %v5809 = vadd.f32 %v5738, %v5808
    %v5810 = vpop.f32.mrf.mxu0
    %v5811 = vadd.f32 %v5740, %v5810
    %5812 = vdwg.mxu0
    %v5813 = vld [vmem:[%s20] sm:$0x3]
    %v5815 = vlaneseq
    %v5816 = vshrl.u32 %v5815, 7
    %v5817 = vsub.s32 0, %v5816
    %v5818 = vrot.slane %v5813, %v5817
    %v5819 = vlaneseq
    %v5820 = vshrl.u32 %v5819, 7
    %v5821 = vsub.s32 1, %v5820
    %v5822 = vrot.slane %v5813, %v5821
    %v5825 = vadd.f32 %v5809, %v5818
    %v5826 = vadd.f32 %v5811, %v5822
    %v5827 = vmax.f32 %v5825, 0.0
    %v5828 = vmax.f32 %v5826, 0.0
    %v5829 = vld [vmem:[%s21] sm:$0xff]
    %v5830 = vld [vmem:[%s21 + $0x8] sm:$0xff]
    %v5831 = vld [vmem:[%s21 + $0x10] sm:$0xff]
    %v5832 = vld [vmem:[%s21 + $0x18] sm:$0xff]
    %v5833 = vld [vmem:[%s21 + $0x20] sm:$0xff]
    %v5834 = vld [vmem:[%s21 + $0x28] sm:$0xff]
    %v5835 = vld [vmem:[%s21 + $0x30] sm:$0xff]
    %v5836 = vld [vmem:[%s21 + $0x38] sm:$0xff]
    %v5837 = vld [vmem:[%s21 + $0x40] sm:$0xff]
    %v5838 = vld [vmem:[%s21 + $0x48] sm:$0xff]
    %v5839 = vld [vmem:[%s21 + $0x50] sm:$0xff]
    %v5840 = vld [vmem:[%s21 + $0x58] sm:$0xff]
    %v5841 = vld [vmem:[%s21 + $0x60] sm:$0xff]
    %v5842 = vld [vmem:[%s21 + $0x68] sm:$0xff]
    %v5843 = vld [vmem:[%s21 + $0x70] sm:$0xff]
    %v5844 = vld [vmem:[%s21 + $0x78] sm:$0xff]
    %v5845 = vld [vmem:[%s21 + $0x80] sm:$0xff]
    %v5846 = vld [vmem:[%s21 + $0x88] sm:$0xff]
    %v5847 = vld [vmem:[%s21 + $0x90] sm:$0xff]
    %v5848 = vld [vmem:[%s21 + $0x98] sm:$0xff]
    %v5849 = vld [vmem:[%s21 + $0xa0] sm:$0xff]
    %v5850 = vld [vmem:[%s21 + $0xa8] sm:$0xff]
    %v5851 = vld [vmem:[%s21 + $0xb0] sm:$0xff]
    %v5852 = vld [vmem:[%s21 + $0xb8] sm:$0xff]
    %v5853 = vld [vmem:[%s21 + $0xc0] sm:$0xff]
    %v5854 = vld [vmem:[%s21 + $0xc8] sm:$0xff]
    %v5855 = vld [vmem:[%s21 + $0xd0] sm:$0xff]
    %v5856 = vld [vmem:[%s21 + $0xd8] sm:$0xff]
    %v5857 = vld [vmem:[%s21 + $0xe0] sm:$0xff]
    %v5858 = vld [vmem:[%s21 + $0xe8] sm:$0xff]
    %v5859 = vld [vmem:[%s21 + $0xf0] sm:$0xff]
    %v5860 = vld [vmem:[%s21 + $0xf8] sm:$0xff]
    %v5861 = vld [vmem:[%s22] sm:$0x1]
    %v5863 = vlaneseq
    %v5864 = vshrl.u32 %v5863, 7
    %v5865 = vsub.s32 0, %v5864
    %v5866 = vrot.slane %v5861, %v5865
    %5868 = vmatprep.subr.mxu0 0.0
    %5869 = vmatpush1.msra.mxu0 %v5844
    %5870 = vmatprep.subr.mxu0 0.0
    %5871 = vmatpush1.msra.mxu0 %v5843
    %5872 = vmatprep.subr.mxu0 0.0
    %5873 = vmatpush1.msra.mxu0 %v5842
    %5874 = vmatprep.subr.mxu0 0.0
    %5875 = vmatpush1.msra.mxu0 %v5841
    %5876 = vmatprep.subr.mxu0 0.0
    %5877 = vmatpush1.msra.mxu0 %v5840
    %5878 = vmatprep.subr.mxu0 0.0
    %5879 = vmatpush1.msra.mxu0 %v5839
    %5880 = vmatprep.subr.mxu0 0.0
    %5881 = vmatpush1.msra.mxu0 %v5838
    %5882 = vmatprep.subr.mxu0 0.0
    %5883 = vmatpush1.msra.mxu0 %v5837
    %5884 = vmatprep.subr.mxu0 0.0
    %5885 = vmatpush1.msra.mxu0 %v5836
    %5886 = vmatprep.subr.mxu0 0.0
    %5887 = vmatpush1.msra.mxu0 %v5835
    %5888 = vmatprep.subr.mxu0 0.0
    %5889 = vmatpush1.msra.mxu0 %v5834
    %5890 = vmatprep.subr.mxu0 0.0
    %5891 = vmatpush1.msra.mxu0 %v5833
    %5892 = vmatprep.subr.mxu0 0.0
    %5893 = vmatpush1.msra.mxu0 %v5832
    %5894 = vmatprep.subr.mxu0 0.0
    %5895 = vmatpush1.msra.mxu0 %v5831
    %5896 = vmatprep.subr.mxu0 0.0
    %5897 = vmatpush1.msra.mxu0 %v5830
    %5898 = vmatprep.subr.mxu0 0.0
    %5899 = vmatpush1.msra.mxu0 %v5829
    %5900 = vmatprep.subr.mxu0 0.0
    %5901 = vmatpush2.msra.mxu0 %v5860
    %5902 = vmatprep.subr.mxu0 0.0
    %5903 = vmatpush2.msra.mxu0 %v5859
    %5904 = vmatprep.subr.mxu0 0.0
    %5905 = vmatpush2.msra.mxu0 %v5858
    %5906 = vmatprep.subr.mxu0 0.0
    %5907 = vmatpush2.msra.mxu0 %v5857
    %5908 = vmatprep.subr.mxu0 0.0
    %5909 = vmatpush2.msra.mxu0 %v5856
    %5910 = vmatprep.subr.mxu0 0.0
    %5911 = vmatpush2.msra.mxu0 %v5855
    %5912 = vmatprep.subr.mxu0 0.0
    %5913 = vmatpush2.msra.mxu0 %v5854
    %5914 = vmatprep.subr.mxu0 0.0
    %5915 = vmatpush2.msra.mxu0 %v5853
    %5916 = vmatprep.subr.mxu0 0.0
    %5917 = vmatpush2.msra.mxu0 %v5852
    %5918 = vmatprep.subr.mxu0 0.0
    %5919 = vmatpush2.msra.mxu0 %v5851
    %5920 = vmatprep.subr.mxu0 0.0
    %5921 = vmatpush2.msra.mxu0 %v5850
    %5922 = vmatprep.subr.mxu0 0.0
    %5923 = vmatpush2.msra.mxu0 %v5849
    %5924 = vmatprep.subr.mxu0 0.0
    %5925 = vmatpush2.msra.mxu0 %v5848
    %5926 = vmatprep.subr.mxu0 0.0
    %5927 = vmatpush2.msra.mxu0 %v5847
    %5928 = vmatprep.subr.mxu0 0.0
    %5929 = vmatpush2.msra.mxu0 %v5846
    %5930 = vmatprep.subr.mxu0 0.0
    %5931 = vmatpush2.msra.mxu0 %v5845
    %5932 = vmatprep.mubr.f32.mxu0 %v5828
    %5933 = vmatmul.mubr.f32.gmra.mxu0 %v5827
    %v5934 = vpop.f32.mrf.mxu0
    %v5935 = vadd.f32 %v5866, %v5934
    %v5936 = vpop.f32.mrf.mxu0
    %5937 = vdwg.mxu0
    %v5938 = vmax.f32 %v5935, 0.0
    %v5939 = vld [vmem:[%s23] sm:$0xff]
    %v5940 = vld [vmem:[%s23 + $0x8] sm:$0xff]
    %v5941 = vld [vmem:[%s23 + $0x10] sm:$0xff]
    %v5942 = vld [vmem:[%s23 + $0x18] sm:$0xff]
    %v5943 = vld [vmem:[%s23 + $0x20] sm:$0xff]
    %v5944 = vld [vmem:[%s23 + $0x28] sm:$0xff]
    %v5945 = vld [vmem:[%s23 + $0x30] sm:$0xff]
    %v5946 = vld [vmem:[%s23 + $0x38] sm:$0xff]
    %v5947 = vld [vmem:[%s23 + $0x40] sm:$0xff]
    %v5948 = vld [vmem:[%s23 + $0x48] sm:$0xff]
    %v5949 = vld [vmem:[%s23 + $0x50] sm:$0xff]
    %v5950 = vld [vmem:[%s23 + $0x58] sm:$0xff]
    %v5951 = vld [vmem:[%s23 + $0x60] sm:$0xff]
    %v5952 = vld [vmem:[%s23 + $0x68] sm:$0xff]
    %v5953 = vld [vmem:[%s23 + $0x70] sm:$0xff]
    %v5954 = vld [vmem:[%s23 + $0x78] sm:$0xff]
    %v5955 = vld [vmem:[%s24] sm:$0x1]
    %v5957 = vlaneseq
    %v5958 = vshrl.u32 %v5957, 7
    %v5959 = vsub.s32 0, %v5958
    %v5960 = vrot.slane %v5955, %v5959
    %5962 = vmatprep.subr.mxu0 0.0
    %5963 = vmatpush1.msra.mxu0 %v5954
    %5964 = vmatprep.subr.mxu0 0.0
    %5965 = vmatpush1.msra.mxu0 %v5953
    %5966 = vmatprep.subr.mxu0 0.0
    %5967 = vmatpush1.msra.mxu0 %v5952
    %5968 = vmatprep.subr.mxu0 0.0
    %5969 = vmatpush1.msra.mxu0 %v5951
    %5970 = vmatprep.subr.mxu0 0.0
    %5971 = vmatpush1.msra.mxu0 %v5950
    %5972 = vmatprep.subr.mxu0 0.0
    %5973 = vmatpush1.msra.mxu0 %v5949
    %5974 = vmatprep.subr.mxu0 0.0
    %5975 = vmatpush1.msra.mxu0 %v5948
    %5976 = vmatprep.subr.mxu0 0.0
    %5977 = vmatpush1.msra.mxu0 %v5947
    %5978 = vmatprep.subr.mxu0 0.0
    %5979 = vmatpush1.msra.mxu0 %v5946
    %5980 = vmatprep.subr.mxu0 0.0
    %5981 = vmatpush1.msra.mxu0 %v5945
    %5982 = vmatprep.subr.mxu0 0.0
    %5983 = vmatpush1.msra.mxu0 %v5944
    %5984 = vmatprep.subr.mxu0 0.0
    %5985 = vmatpush1.msra.mxu0 %v5943
    %5986 = vmatprep.subr.mxu0 0.0
    %5987 = vmatpush1.msra.mxu0 %v5942
    %5988 = vmatprep.subr.mxu0 0.0
    %5989 = vmatpush1.msra.mxu0 %v5941
    %5990 = vmatprep.subr.mxu0 0.0
    %5991 = vmatpush1.msra.mxu0 %v5940
    %5992 = vmatprep.subr.mxu0 0.0
    %5993 = vmatpush1.msra.mxu0 %v5939
    %5994 = vmatprep.subr.mxu0 0.0
    %5995 = vmatpush2.msra.mxu0 0.0
    %5996 = vmatprep.subr.mxu0 0.0
    %5997 = vmatpush2.msra.mxu0 0.0
    %5998 = vmatprep.subr.mxu0 0.0
    %5999 = vmatpush2.msra.mxu0 0.0
    %6000 = vmatprep.subr.mxu0 0.0
    %6001 = vmatpush2.msra.mxu0 0.0
    %6002 = vmatprep.subr.mxu0 0.0
    %6003 = vmatpush2.msra.mxu0 0.0
    %6004 = vmatprep.subr.mxu0 0.0
    %6005 = vmatpush2.msra.mxu0 0.0
    %6006 = vmatprep.subr.mxu0 0.0
    %6007 = vmatpush2.msra.mxu0 0.0
    %6008 = vmatprep.subr.mxu0 0.0
    %6009 = vmatpush2.msra.mxu0 0.0
    %6010 = vmatprep.subr.mxu0 0.0
    %6011 = vmatpush2.msra.mxu0 0.0
    %6012 = vmatprep.subr.mxu0 0.0
    %6013 = vmatpush2.msra.mxu0 0.0
    %6014 = vmatprep.subr.mxu0 0.0
    %6015 = vmatpush2.msra.mxu0 0.0
    %6016 = vmatprep.subr.mxu0 0.0
    %6017 = vmatpush2.msra.mxu0 0.0
    %6018 = vmatprep.subr.mxu0 0.0
    %6019 = vmatpush2.msra.mxu0 0.0
    %6020 = vmatprep.subr.mxu0 0.0
    %6021 = vmatpush2.msra.mxu0 0.0
    %6022 = vmatprep.subr.mxu0 0.0
    %6023 = vmatpush2.msra.mxu0 0.0
    %6024 = vmatprep.subr.mxu0 0.0
    %6025 = vmatpush2.msra.mxu0 0.0
    %6026 = vmatprep.mubr.f32.mxu0 0.0
    %6027 = vmatmul.mubr.f32.gmra.mxu0 %v5938
    %v6028 = vpop.f32.mrf.mxu0
    %v6029 = vadd.f32 %v5960, %v6028
    %v6030 = vpop.f32.mrf.mxu0
    %6031 = vdwg.mxu0
    %v6032 = vtanh.pop %v6029
    %v6033 = vmul.f32 %v6032, 2.0
    %vm6034 = vcmask 25600
    %6035 = vst.msk [vmem:[#allocation2] sm:$0x3] %vm6034, %v6033
    // Predicated region
    $region102: #{actor_forward.1} parent=1 // pred_check
      _
    $region103: #{actor_forward.1} parent=1 // pred_check_branch
      %6037 = sbr.rel (0) target = $region105
    $region104: #{actor_forward.1} parent=1 // pred_region
      %s6039 = ssub.s32 32, 32
      %6040 = vsyncadd [#allocation3], %s6039
      %s6042 = sshll.u32 [#allocation2], 4
      %s6043 = int_to_ptr.vmem [resolvable:$true] %s6042
      %6045 = dma.vmem_to_hbm [thread:$0]  %s6043, 32, %s25, [#allocation3]
    $region105: #{actor_forward.1} parent=1 // pred_fallthru
      _
    // Predicated region
    $region106: #{actor_forward.1} parent=1 // pred_check
      _
    $region107: #{actor_forward.1} parent=1 // pred_check_branch
      %6047 = sbr.rel (0) target = $region109
    $region108: #{actor_forward.1} parent=1 // pred_region
      %6048 = dma.done [#allocation3], 32
    $region109: #{actor_forward.1} parent=1 // pred_fallthru
      _
    %6049 = vsyncpa [#allocation3], 1

</llo_original>
